<compile_context>
chip_gen: v7x
topology: tpu7x:2x2x1
jax: 0.10.0
libtpu: 0.0.40
codegen_flags: <defaults>
</compile_context>

<pallas_src>
import jax
import jax.numpy as jnp
from jax import lax
from jax.experimental import pallas as pl
from jax.experimental.pallas import tpu as pltpu

_VMEM_LIMIT = 32 * 1024 * 1024


def _round_up(x, m):
    return ((x + m - 1) // m) * m


def _pick_chunk(n, target=8):
    for c in range(min(target, n), 0, -1):
        if n % c == 0:
            return c
    return n


# -----------------------------------------------------------------------------
# Encoder: single-layer unidirectional LSTM, h0 = c0 = 0, torch gate order
# (i, f, g, o), fused gate weights (in, 4E).  Grid over S-chunks; hN/cN output
# blocks (constant index map -> resident) double as the cross-chunk carry.
# -----------------------------------------------------------------------------
def encoder_lstm_kernel(x_ref, wih_ref, whh_ref, b_ref,
                        out_ref, hN_ref, cN_ref, xg_sc):
    TC, B, E = x_ref.shape

    # Per-chunk hoisted input transform: one (TC*B, E) @ (E, 4E) bf16 MXU dot,
    # bias folded in, staged in f32 VMEM scratch.
    x_flat = x_ref[...].reshape(TC * B, E).astype(jnp.bfloat16)
    xg_sc[...] = (jnp.dot(x_flat, wih_ref[...],
                          preferred_element_type=jnp.float32)
                  + b_ref[...]).reshape(TC, B, 4 * E)

    whh = whh_ref[...]                      # (E, 4E) bf16, loop-invariant

    @pl.when(pl.program_id(0) == 0)
    def _():                                # h0 = c0 = 0
        hN_ref[...] = jnp.zeros(hN_ref.shape, hN_ref.dtype)
        cN_ref[...] = jnp.zeros(cN_ref.shape, cN_ref.dtype)

    def step(t, carry):
        h, c = carry
        gates = xg_sc[t] + jnp.dot(h.astype(jnp.bfloat16), whh,
                                   preferred_element_type=jnp.float32)
        sg = jax.nn.sigmoid(gates)          # one full-vreg EUP pass
        i, f, o = sg[:, 0:E], sg[:, E:2 * E], sg[:, 3 * E:4 * E]
        g = jnp.tanh(gates[:, 2 * E:3 * E])
        c = f * c + i * g
        h = o * jnp.tanh(c)
        out_ref[t] = h
        return (h, c)

    unroll = True if TC <= 8 else 2
    hN, cN = lax.fori_loop(0, TC, step, (hN_ref[...], cN_ref[...]),
                           unroll=unroll)
    hN_ref[...] = hN
    cN_ref[...] = cN


def run_encoder(x_sbe, w_ih, w_hh, b_ih, b_hh, *, chunk=8):
    S, B, E = x_sbe.shape
    chunk = _pick_chunk(S, chunk)
    # torch gates (i,f,g,o) are stacked on the rows of (4E, E); transposing
    # gives the fused (E, 4E) layout with gate k in columns [kE:(k+1)E].
    wih = w_ih.T.astype(jnp.bfloat16)
    whh = w_hh.T.astype(jnp.bfloat16)
    b = (b_ih + b_hh).reshape(1, 4 * E).astype(jnp.float32)

    return pl.pallas_call(
        encoder_lstm_kernel,
        out_shape=(jax.ShapeDtypeStruct((S, B, E), jnp.float32),
                   jax.ShapeDtypeStruct((B, E), jnp.float32),
                   jax.ShapeDtypeStruct((B, E), jnp.float32)),
        grid=(S // chunk,),
        in_specs=[pl.BlockSpec((chunk, B, E), lambda s: (s, 0, 0)),
                  pl.BlockSpec((E, 4 * E), lambda s: (0, 0)),
                  pl.BlockSpec((E, 4 * E), lambda s: (0, 0)),
                  pl.BlockSpec((1, 4 * E), lambda s: (0, 0))],
        out_specs=(pl.BlockSpec((chunk, B, E), lambda s: (s, 0, 0)),
                   pl.BlockSpec((B, E), lambda s: (0, 0)),
                   pl.BlockSpec((B, E), lambda s: (0, 0))),
        scratch_shapes=[pltpu.VMEM((chunk, B, 4 * E), jnp.float32)],
        compiler_params=pltpu.CompilerParams(
            dimension_semantics=("arbitrary",),
            vmem_limit_bytes=_VMEM_LIMIT),
    )(x_sbe, wih, whh, b)


# -----------------------------------------------------------------------------
# Decoder ('test' phase) recurrence.  Grid over T-chunks ("arbitrary"), carries
# (h, c, input_feed) live in VMEM scratch.  Per step:
#   gates = xgate[t] + feed @ Wfd(D,4D) + h @ Whh(D,4D)   (fused, bf16 MXU)
#   h, c  = LSTMCell update (i,f,g,o)
#   ctx,a = attention(h, enc)   (enc batch-major (B,S,E), exact softmax over S)
#   out   = tanh(ctx @ Wop_ctx + h @ Wop_h);  feed = out
# fc_out + log_softmax are hoisted to a separate tiled stage.
# -----------------------------------------------------------------------------
def decoder_kernel(x_ref, enc_ref, h0_ref, c0_ref,
                   wx_ref, wfd_ref, whh_ref, b_ref,
                   wip_ref, wopc_ref, woph_ref,
                   outs_ref, attn_ref,
                   xg_sc, h_sc, c_sc, feed_sc):
    TC, B, D = x_ref.shape

    # Per-chunk hoisted token-embedding gate transform (bias folded in).
    x_flat = x_ref[...].reshape(TC * B, D).astype(jnp.bfloat16)
    xg_sc[...] = (jnp.dot(x_flat, wx_ref[...],
                          preferred_element_type=jnp.float32)
                  + b_ref[...]).reshape(TC, B, 4 * D)

    wfd = wfd_ref[...]
    whh = whh_ref[...]
    wip = wip_ref[...]
    wopc = wopc_ref[...]
    woph = woph_ref[...]
    enc = enc_ref[...]                      # (B, S, E) f32, batch-major

    @pl.when(pl.program_id(0) == 0)
    def _():
        h_sc[...] = h0_ref[...]
        c_sc[...] = c0_ref[...]
        feed_sc[...] = jnp.zeros(feed_sc.shape, feed_sc.dtype)

    def step(t, carry):
        h, c, feed = carry
        gates = (xg_sc[t]
                 + jnp.dot(feed.astype(jnp.bfloat16), wfd,
                           preferred_element_type=jnp.float32)
                 + jnp.dot(h.astype(jnp.bfloat16), whh,
                           preferred_element_type=jnp.float32))
        sg = jax.nn.sigmoid(gates)
        i, f, o = sg[:, 0:D], sg[:, D:2 * D], sg[:, 3 * D:4 * D]
        g = jnp.tanh(gates[:, 2 * D:3 * D])
        c = f * c + i * g
        h = o * jnp.tanh(c)

        # AttentionLayer (exact softmax over source length S, lane axis).
        hb = h.astype(jnp.bfloat16)
        xq = jnp.dot(hb, wip, preferred_element_type=jnp.float32)     # (B, D)
        # TODO(synk): use lax.dot_general (MXU) for these reductions at
        #             production E/S instead of VPU/XLU sums.
        scores = jnp.sum(enc * xq[:, None, :], axis=2)                # (B, S)
        m = jnp.max(scores, axis=1, keepdims=True)
        e = jnp.exp(scores - m)
        attn = e / jnp.sum(e, axis=1, keepdims=True)                  # (B, S)
        ctx = jnp.sum(attn[:, :, None] * enc, axis=1)                 # (B, E)
        out = jnp.tanh(
            jnp.dot(ctx.astype(jnp.bfloat16), wopc,
                    preferred_element_type=jnp.float32)
            + jnp.dot(hb, woph, preferred_element_type=jnp.float32))  # (B, D)

        outs_ref[t] = out
        attn_ref[t] = attn
        return (h, c, out)

    unroll = True if TC <= 8 else 2
    h, c, feed = lax.fori_loop(0, TC, step,
                               (h_sc[...], c_sc[...], feed_sc[...]),
                               unroll=unroll)
    h_sc[...] = h
    c_sc[...] = c
    feed_sc[...] = feed


def run_decoder(x_tbd, enc_bse, enc_h, enc_c,
                w_ih, w_hh, b_ih, b_hh, w_inproj, w_outproj, *, chunk=8):
    T, B, D = x_tbd.shape
    S, E = enc_bse.shape[1], enc_bse.shape[2]
    chunk = _pick_chunk(T, chunk)

    # torch cat order is (x[j], input_feed): split W_ih columns, then fuse the
    # four gates along the lane axis ((in, 4D)); bias folded into precompute.
    wx = w_ih[:, :D].T.astype(jnp.bfloat16)          # (D, 4D)
    wfd = w_ih[:, D:].T.astype(jnp.bfloat16)         # (E, 4D)  (E == D)
    whh = w_hh.T.astype(jnp.bfloat16)                # (D, 4D)
    b = (b_ih + b_hh).reshape(1, 4 * D).astype(jnp.float32)
    # Attention projections; output_proj split over its (ctx, hidden) input.
    wip = w_inproj.T.astype(jnp.bfloat16)            # (E, D)
    wopc = w_outproj[:, :E].T.astype(jnp.bfloat16)   # (E, D)
    woph = w_outproj[:, E:].T.astype(jnp.bfloat16)   # (D, D)

    return pl.pallas_call(
        decoder_kernel,
        out_shape=(jax.ShapeDtypeStruct((T, B, D), jnp.float32),
                   jax.ShapeDtypeStruct((T, B, S), jnp.float32)),
        grid=(T // chunk,),
        in_specs=[pl.BlockSpec((chunk, B, D), lambda t: (t, 0, 0)),
                  pl.BlockSpec((B, S, E), lambda t: (0, 0, 0)),
                  pl.BlockSpec((B, D), lambda t: (0, 0)),
                  pl.BlockSpec((B, D), lambda t: (0, 0)),
                  pl.BlockSpec((D, 4 * D), lambda t: (0, 0)),
                  pl.BlockSpec((E, 4 * D), lambda t: (0, 0)),
                  pl.BlockSpec((D, 4 * D), lambda t: (0, 0)),
                  pl.BlockSpec((1, 4 * D), lambda t: (0, 0)),
                  pl.BlockSpec((E, D), lambda t: (0, 0)),
                  pl.BlockSpec((E, D), lambda t: (0, 0)),
                  pl.BlockSpec((D, D), lambda t: (0, 0))],
        out_specs=(pl.BlockSpec((chunk, B, D), lambda t: (t, 0, 0)),
                   pl.BlockSpec((chunk, B, S), lambda t: (t, 0, 0))),
        scratch_shapes=[pltpu.VMEM((chunk, B, 4 * D), jnp.float32),
                        pltpu.VMEM((B, D), jnp.float32),
                        pltpu.VMEM((B, D), jnp.float32),
                        pltpu.VMEM((B, D), jnp.float32)],
        compiler_params=pltpu.CompilerParams(
            dimension_semantics=("arbitrary",),
            vmem_limit_bytes=_VMEM_LIMIT),
    )(x_tbd, enc_bse, enc_h, enc_c, wx, wfd, whh, b, wip, wopc, woph)


# -----------------------------------------------------------------------------
# Hoisted fc_out + log_softmax.  Stage 1: [rows, D] @ [D, V] tiled over
# (row blocks "parallel") x (V blocks "arbitrary"), bf16 MXU / f32 accumulate;
# per-row logsumexp accumulated online (running max + running sum in VMEM
# scratch) so the weight / logits never need a full-V VMEM block.  Padded
# vocab columns carry a -1e30 f32 bias -> zero softmax mass.
# Stage 2: logits - lse (tiled elementwise).
# -----------------------------------------------------------------------------
def fc_logits_lse_kernel(x_ref, w_ref, b_ref, logits_ref, lse_ref, m_sc, l_sc):
    v = pl.program_id(1)

    @pl.when(v == 0)
    def _():
        m_sc[...] = jnp.full(m_sc.shape, -jnp.inf, m_sc.dtype)
        l_sc[...] = jnp.zeros(l_sc.shape, l_sc.dtype)

    logits = jnp.dot(x_ref[...], w_ref[...],
                     preferred_element_type=jnp.float32) + b_ref[...]
    logits_ref[...] = logits

    bmax = jnp.max(logits, axis=1, keepdims=True)
    m_new = jnp.maximum(m_sc[...], bmax)
    l_sc[...] = (l_sc[...] * jnp.exp(m_sc[...] - m_new)
                 + jnp.sum(jnp.exp(logits - m_new), axis=1, keepdims=True))
    m_sc[...] = m_new

    @pl.when(v == pl.num_programs(1) - 1)
    def _():
        lse_ref[...] = m_sc[...] + jnp.log(l_sc[...])


def fc_sub_lse_kernel(logits_ref, lse_ref, out_ref):
    out_ref[...] = logits_ref[...] - lse_ref[...]


def run_fc_logsoftmax(x_rows, fc_w, fc_b, *, row_tile=256, v_tile=1024):
    rows, Dm = x_rows.shape
    V = fc_w.shape[0]

    row_tile = min(row_tile, _round_up(rows, 8))
    rows_pad = _round_up(rows, row_tile)
    v_tile = min(v_tile, _round_up(V, 128))
    V_pad = _round_up(V, v_tile)

    x = x_rows.astype(jnp.bfloat16)
    if rows_pad != rows:
        x = jnp.pad(x, ((0, rows_pad - rows), (0, 0)))
    w = jnp.zeros((Dm, V_pad), jnp.bfloat16).at[:, :V].set(
        fc_w.T.astype(jnp.bfloat16))
    b = jnp.full((1, V_pad), -1e30, jnp.float32).at[0, :V].set(fc_b)

    grid = (rows_pad // row_tile, V_pad // v_tile)
    cost = pl.CostEstimate(
        flops=2 * rows_pad * Dm * V_pad,
        transcendentals=rows_pad * V_pad,
        bytes_accessed=(rows_pad * Dm * 2 + Dm * V_pad * 2
                        + rows_pad * V_pad * 4 + rows_pad * 4))

    logits, lse = pl.pallas_call(
        fc_logits_lse_kernel,
        out_shape=(jax.ShapeDtypeStruct((rows_pad, V_pad), jnp.float32),
                   jax.ShapeDtypeStruct((rows_pad, 1), jnp.float32)),
        grid=grid,
        in_specs=[pl.BlockSpec((row_tile, Dm), lambda r, v: (r, 0)),
                  pl.BlockSpec((Dm, v_tile), lambda r, v: (0, v)),
                  pl.BlockSpec((1, v_tile), lambda r, v: (0, v))],
        out_specs=(pl.BlockSpec((row_tile, v_tile), lambda r, v: (r, v)),
                   pl.BlockSpec((row_tile, 1), lambda r, v: (r, 0))),
        scratch_shapes=[pltpu.VMEM((row_tile, 1), jnp.float32),
                        pltpu.VMEM((row_tile, 1), jnp.float32)],
        compiler_params=pltpu.CompilerParams(
            dimension_semantics=("parallel", "arbitrary"),
            vmem_limit_bytes=_VMEM_LIMIT),
        cost_estimate=cost,
    )(x, w, b)

    logp = pl.pallas_call(
        fc_sub_lse_kernel,
        out_shape=jax.ShapeDtypeStruct((rows_pad, V_pad), jnp.float32),
        grid=grid,
        in_specs=[pl.BlockSpec((row_tile, v_tile), lambda r, v: (r, v)),
                  pl.BlockSpec((row_tile, 1), lambda r, v: (r, 0))],
        out_specs=pl.BlockSpec((row_tile, v_tile), lambda r, v: (r, v)),
        compiler_params=pltpu.CompilerParams(
            dimension_semantics=("parallel", "parallel"),
            vmem_limit_bytes=_VMEM_LIMIT),
    )(logits, lse)

    return logp[:rows, :V]


# -----------------------------------------------------------------------------
# Parameter init (deterministic, uniform(-0.1, 0.1) like the torch helpers).
# -----------------------------------------------------------------------------
def init_params(key, v_src, v_dst, E, D):
    def u(k, shape):
        return jax.random.uniform(k, shape, jnp.float32, -0.1, 0.1)

    ks = jax.random.split(key, 14)
    return {
        "enc_embed": u(ks[0], (v_src, E)),
        "enc_w_ih": u(ks[1], (4 * E, E)),
        "enc_w_hh": u(ks[2], (4 * E, E)),
        "enc_b_ih": u(ks[3], (4 * E,)),
        "enc_b_hh": u(ks[4], (4 * E,)),
        "dec_embed": u(ks[5], (v_dst, D)),
        "dec_w_ih": u(ks[6], (4 * D, E + D)),     # layer-0 LSTMCell
        "dec_w_hh": u(ks[7], (4 * D, D)),
        "dec_b_ih": u(ks[8], (4 * D,)),
        "dec_b_hh": u(ks[9], (4 * D,)),
        "attn_in_proj": u(ks[10], (D, E)),        # Linear(E -> D, no bias)
        "attn_out_proj": u(ks[11], (D, 2 * D)),   # Linear(2D -> D, no bias)
        "fc_out_w": u(ks[12], (v_dst, D)),        # out_embed_dim == embed_dim
        "fc_out_b": u(ks[13], (v_dst,)),
    }


def lstm_model_forward(params, src_tokens, prev_output_tokens):
    """LSTMModel.forward(phase='test') -> (decoder_out, p, hidden_list, attn)."""
    B, S = src_tokens.shape
    T = prev_output_tokens.shape[1]
    V = params["fc_out_w"].shape[0]
    D = params["dec_embed"].shape[1]

    B_pad = _round_up(B, 8)                    # pad batch to sublane height
    if B_pad != B:
        src_tokens = jnp.pad(src_tokens, ((0, B_pad - B), (0, 0)))
        prev_output_tokens = jnp.pad(prev_output_tokens,
                                     ((0, B_pad - B), (0, 0)))

    # --- encoder (embedding gather = glue; recurrence in Pallas) ---
    enc_emb = jnp.take(params["enc_embed"], src_tokens, axis=0)   # (Bp, S, E)
    enc_x = jnp.transpose(enc_emb, (1, 0, 2))                     # (S, Bp, E)
    enc_outs_sbe, enc_h, enc_c = run_encoder(
        enc_x, params["enc_w_ih"], params["enc_w_hh"],
        params["enc_b_ih"], params["enc_b_hh"])
    enc_bse = jnp.transpose(enc_outs_sbe, (1, 0, 2))              # small

    # --- decoder recurrence (no fc_out on the serial path) ---
    dec_emb = jnp.take(params["dec_embed"], prev_output_tokens, axis=0)
    dec_x = jnp.transpose(dec_emb, (1, 0, 2))                     # (T, Bp, D)
    outs_tbd, attn_tbs = run_decoder(
        dec_x, enc_bse, enc_h, enc_c,
        params["dec_w_ih"], params["dec_w_hh"],
        params["dec_b_ih"], params["dec_b_hh"],
        params["attn_in_proj"], params["attn_out_proj"])

    # --- hoisted fc_out + log_softmax; rows fed in (b, t) order so the V-wide
    #     log-prob tensor is never transposed on the host ---
    outs_btd = jnp.transpose(outs_tbd, (1, 0, 2))                 # small (B,T,D)
    x_rows = outs_btd.reshape(B_pad * T, D)
    logp = run_fc_logsoftmax(x_rows, params["fc_out_w"], params["fc_out_b"])
    decoder_out = logp.reshape(B_pad, T, V)[:B]                   # (B, T, V)

    attn_scores = jnp.transpose(attn_tbs, (1, 0, 2))[:B]          # (B, T, S)
    p = 0
    hidden_list = []   # 'test' phase returns an (empty) hidden_list_test
    return decoder_out, p, hidden_list, attn_scores


# -----------------------------------------------------------------------------
# Pure-JAX f32 reference (mirrors the torch forward) for a sanity check.
# -----------------------------------------------------------------------------
def _reference_forward(params, src_tokens, prev_output_tokens):
    E = params["enc_embed"].shape[1]
    D = params["dec_embed"].shape[1]
    B, S = src_tokens.shape
    T = prev_output_tokens.shape[1]

    def cell(inp, h, c, w_ih, w_hh, b_ih, b_hh):
        gates = inp @ w_ih.T + h @ w_hh.T + b_ih + b_hh
        i, f, g, o = jnp.split(gates, 4, axis=1)
        c = jax.nn.sigmoid(f) * c + jax.nn.sigmoid(i) * jnp.tanh(g)
        h = jax.nn.sigmoid(o) * jnp.tanh(c)
        return h, c

    x = jnp.take(params["enc_embed"], src_tokens, axis=0)
    h = jnp.zeros((B, E)); c = jnp.zeros((B, E))
    enc_list = []
    for t in range(S):
        h, c = cell(x[:, t, :], h, c, params["enc_w_ih"], params["enc_w_hh"],
                    params["enc_b_ih"], params["enc_b_hh"])
        enc_list.append(h)
    enc = jnp.stack(enc_list, axis=0)                              # (S, B, E)

    xd = jnp.take(params["dec_embed"], prev_output_tokens, axis=0)
    feed = jnp.zeros((B, D))
    outs, attns = [], []
    for j in range(T):
        inp = jnp.concatenate([xd[:, j, :], feed], axis=1)
        h, c = cell(inp, h, c, params["dec_w_ih"], params["dec_w_hh"],
                    params["dec_b_ih"], params["dec_b_hh"])
        xq = h @ params["attn_in_proj"].T
        scores = jnp.sum(enc * xq[None, :, :], axis=2)             # (S, B)
        a = jax.nn.softmax(scores, axis=0)
        ctx = jnp.sum(a[:, :, None] * enc, axis=0)                 # (B, E)
        out = jnp.tanh(jnp.concatenate([ctx, h], axis=1)
                       @ params["attn_out_proj"].T)
        feed = out
        outs.append(out)
        attns.append(a.T)
    outs = jnp.stack(outs, axis=1)                                 # (B, T, D)
    logits = outs @ params["fc_out_w"].T + params["fc_out_b"]
    return jax.nn.log_softmax(logits, axis=-1), jnp.stack(attns, axis=1)


if __name__ == "__main__":
    key = jax.random.PRNGKey(0)
    kp, k1, k2 = jax.random.split(key, 3)

    B, S_src, T_dec = 2, 8, 8          # batch, source len, target len
    E = D = 32                         # encoder_embed_dim == decoder_embed_dim
    V_src, V_dst = 64, 64              # vocab sizes

    params = init_params(kp, V_src, V_dst, E, D)
    src_tokens = jax.random.randint(k1, (B, S_src), 0, V_src, dtype=jnp.int32)
    prev_output_tokens = jax.random.randint(k2, (B, T_dec), 0, V_dst,
                                            dtype=jnp.int32)

    fwd = jax.jit(lstm_model_forward)
    decoder_out, p, hidden_list, attn = fwd(params, src_tokens,
                                            prev_output_tokens)
    jax.block_until_ready(decoder_out)

    assert decoder_out.shape == (B, T_dec, V_dst)
    assert attn.shape == (B, T_dec, S_src)
    # rows of decoder_out are log-softmax -> exp sums to 1
    assert jnp.allclose(jnp.sum(jnp.exp(decoder_out), axis=-1), 1.0, atol=1e-3)

    # sanity check against the f32 pure-JAX reference (bf16 MXU tolerance)
    ref_logp, ref_attn = _reference_forward(params, src_tokens,
                                            prev_output_tokens)
    assert float(jnp.max(jnp.abs(decoder_out - ref_logp))) < 3e-2
    assert float(jnp.max(jnp.abs(attn - ref_attn))) < 1e-2

    print("KERNEL_OK")
</pallas_src>

<mosaic_0001>
module attributes {stable_mosaic.version = 11 : i64} {
  func.func @encoder_lstm_kernel(%arg0: i32, %arg1: memref<8x8x32xf32, #tpu.memory_space<vmem>>, %arg2: memref<32x128xbf16, #tpu.memory_space<vmem>>, %arg3: memref<32x128xbf16, #tpu.memory_space<vmem>>, %arg4: memref<1x128xf32, #tpu.memory_space<vmem>>, %arg5: memref<8x8x32xf32, #tpu.memory_space<vmem>>, %arg6: memref<8x32xf32, #tpu.memory_space<vmem>>, %arg7: memref<8x32xf32, #tpu.memory_space<vmem>>, %arg8: memref<8x8x128xf32, #tpu.memory_space<vmem>>) attributes {dimension_semantics = [#tpu.dimension_semantics<arbitrary>], iteration_bounds = array<i64: 1>, scalar_prefetch = 0 : i64, scratch_operands = 1 : i64, tpu.core_type = #tpu.core_type<tc>, window_params = [{transform_indices = @transform_0, window_bounds = array<i64: 8, 8, 32>}, {pipeline_mode = #tpu.pipeline_mode<synchronous>, transform_indices = @transform_1, window_bounds = array<i64: 32, 128>}, {pipeline_mode = #tpu.pipeline_mode<synchronous>, transform_indices = @transform_2, window_bounds = array<i64: 32, 128>}, {pipeline_mode = #tpu.pipeline_mode<synchronous>, transform_indices = @transform_3, window_bounds = array<i64: 1, 128>}, {transform_indices = @transform_4, window_bounds = array<i64: 8, 8, 32>}, {pipeline_mode = #tpu.pipeline_mode<synchronous>, transform_indices = @transform_5, window_bounds = array<i64: 8, 32>}, {pipeline_mode = #tpu.pipeline_mode<synchronous>, transform_indices = @transform_6, window_bounds = array<i64: 8, 32>}]} {
    %c0 = arith.constant 0 : index
    %c0_0 = arith.constant 0 : index
    %c0_1 = arith.constant 0 : index
    %0 = vector.load %arg1[%c0, %c0_0, %c0_1] : memref<8x8x32xf32, #tpu.memory_space<vmem>>, vector<8x8x32xf32>
    %1 = vector.shape_cast %0 : vector<8x8x32xf32> to vector<64x32xf32>
    %2 = arith.truncf %1 : vector<64x32xf32> to vector<64x32xbf16>
    %c0_2 = arith.constant 0 : index
    %c0_3 = arith.constant 0 : index
    %3 = vector.load %arg2[%c0_2, %c0_3] : memref<32x128xbf16, #tpu.memory_space<vmem>>, vector<32x128xbf16>
    %cst = arith.constant dense<0.000000e+00> : vector<64x128xf32>
    %4 = tpu.matmul %2, %3, %cst {dimension_numbers = #tpu.dot_dimension_numbers<[1], [0], [0], [1], [0, 0, 1, 1], [], []>} : vector<64x32xbf16>, vector<32x128xbf16>, vector<64x128xf32> -> vector<64x128xf32>
    %c0_4 = arith.constant 0 : index
    %c0_5 = arith.constant 0 : index
    %5 = vector.load %arg4[%c0_4, %c0_5] : memref<1x128xf32, #tpu.memory_space<vmem>>, vector<1x128xf32>
    %6 = vector.broadcast %5 : vector<1x128xf32> to vector<64x128xf32>
    %7 = arith.addf %4, %6 : vector<64x128xf32>
    %8 = vector.shape_cast %7 : vector<64x128xf32> to vector<8x8x128xf32>
    %c0_6 = arith.constant 0 : index
    %c0_7 = arith.constant 0 : index
    %c0_8 = arith.constant 0 : index
    %9 = vector.load %arg8[%c0_6, %c0_7, %c0_8] : memref<8x8x128xf32, #tpu.memory_space<vmem>>, vector<8x8x128xf32>
    tpu.vector_store %arg8[%c0_6, %c0_7, %c0_8], %8 {strides = array<i32>} : memref<8x8x128xf32, #tpu.memory_space<vmem>>, vector<8x8x128xf32>,
    %c0_9 = arith.constant 0 : index
    %c0_10 = arith.constant 0 : index
    %10 = vector.load %arg3[%c0_9, %c0_10] : memref<32x128xbf16, #tpu.memory_space<vmem>>, vector<32x128xbf16>
    %c0_i32 = arith.constant 0 : i32
    %11 = arith.cmpi eq, %arg0, %c0_i32 : i32
    %12 = arith.extui %11 : i1 to i32
    %c0_i32_11 = arith.constant 0 : i32
    %13 = arith.cmpi ne, %12, %c0_i32_11 : i32
    scf.if %13 {
      %cst_69 = arith.constant 0.000000e+00 : f32
      %218 = vector.broadcast %cst_69 : f32 to vector<8x32xf32>
      %c0_70 = arith.constant 0 : index
      %c0_71 = arith.constant 0 : index
      %219 = vector.load %arg6[%c0_70, %c0_71] : memref<8x32xf32, #tpu.memory_space<vmem>>, vector<8x32xf32>
      tpu.vector_store %arg6[%c0_70, %c0_71], %218 {strides = array<i32>} : memref<8x32xf32, #tpu.memory_space<vmem>>, vector<8x32xf32>,
      %cst_72 = arith.constant 0.000000e+00 : f32
      %220 = vector.broadcast %cst_72 : f32 to vector<8x32xf32>
      %c0_73 = arith.constant 0 : index
      %c0_74 = arith.constant 0 : index
      %221 = vector.load %arg7[%c0_73, %c0_74] : memref<8x32xf32, #tpu.memory_space<vmem>>, vector<8x32xf32>
      tpu.vector_store %arg7[%c0_73, %c0_74], %220 {strides = array<i32>} : memref<8x32xf32, #tpu.memory_space<vmem>>, vector<8x32xf32>,
    } else {
    }
    %c0_12 = arith.constant 0 : index
    %c0_13 = arith.constant 0 : index
    %14 = vector.load %arg6[%c0_12, %c0_13] : memref<8x32xf32, #tpu.memory_space<vmem>>, vector<8x32xf32>
    %c0_14 = arith.constant 0 : index
    %c0_15 = arith.constant 0 : index
    %15 = vector.load %arg7[%c0_14, %c0_15] : memref<8x32xf32, #tpu.memory_space<vmem>>, vector<8x32xf32>
    %c0_i32_16 = arith.constant 0 : i32
    %16 = arith.index_cast %c0_i32_16 : i32 to index
    %c0_17 = arith.constant 0 : index
    %c0_18 = arith.constant 0 : index
    %17 = vector.load %arg8[%16, %c0_17, %c0_18] : memref<8x8x128xf32, #tpu.memory_space<vmem>>, vector<1x8x128xf32>
    %18 = vector.shape_cast %17 : vector<1x8x128xf32> to vector<8x128xf32>
    %19 = arith.truncf %14 : vector<8x32xf32> to vector<8x32xbf16>
    %cst_19 = arith.constant dense<0.000000e+00> : vector<8x128xf32>
    %20 = tpu.matmul %19, %10, %cst_19 {dimension_numbers = #tpu.dot_dimension_numbers<[1], [0], [0], [1], [0, 0, 1, 1], [], []>} : vector<8x32xbf16>, vector<32x128xbf16>, vector<8x128xf32> -> vector<8x128xf32>
    %21 = arith.addf %18, %20 : vector<8x128xf32>
    %22 = arith.negf %21 : vector<8x128xf32>
    %23 = math.exp %22 : vector<8x128xf32>
    %cst_20 = arith.constant 1.000000e+00 : f32
    %24 = vector.broadcast %cst_20 : f32 to vector<8x128xf32>
    %25 = arith.addf %24, %23 : vector<8x128xf32>
    %26 = arith.divf %24, %25 : vector<8x128xf32>
    %27 = vector.extract_strided_slice %26 {offsets = [0, 0], sizes = [8, 32], strides = [1, 1]} : vector<8x128xf32> to vector<8x32xf32>
    %28 = vector.extract_strided_slice %26 {offsets = [0, 32], sizes = [8, 32], strides = [1, 1]} : vector<8x128xf32> to vector<8x32xf32>
    %29 = vector.extract_strided_slice %26 {offsets = [0, 96], sizes = [8, 32], strides = [1, 1]} : vector<8x128xf32> to vector<8x32xf32>
    %30 = vector.extract_strided_slice %21 {offsets = [0, 64], sizes = [8, 32], strides = [1, 1]} : vector<8x128xf32> to vector<8x32xf32>
    %31 = math.tanh %30 : vector<8x32xf32>
    %32 = arith.mulf %28, %15 : vector<8x32xf32>
    %33 = arith.mulf %27, %31 : vector<8x32xf32>
    %34 = arith.addf %32, %33 : vector<8x32xf32>
    %35 = math.tanh %34 : vector<8x32xf32>
    %36 = arith.mulf %29, %35 : vector<8x32xf32>
    %37 = arith.index_cast %c0_i32_16 : i32 to index
    %c0_21 = arith.constant 0 : index
    %c0_22 = arith.constant 0 : index
    %38 = vector.load %arg5[%37, %c0_21, %c0_22] : memref<8x8x32xf32, #tpu.memory_space<vmem>>, vector<1x8x32xf32>
    %39 = vector.shape_cast %38 : vector<1x8x32xf32> to vector<8x32xf32>
    %40 = vector.shape_cast %36 : vector<8x32xf32> to vector<1x8x32xf32>
    tpu.vector_store %arg5[%37, %c0_21, %c0_22], %40 {strides = array<i32>} : memref<8x8x32xf32, #tpu.memory_space<vmem>>, vector<1x8x32xf32>,
    %c1_i32 = arith.constant 1 : i32
    %41 = arith.index_cast %c1_i32 : i32 to index
    %c0_23 = arith.constant 0 : index
    %c0_24 = arith.constant 0 : index
    %42 = vector.load %arg8[%41, %c0_23, %c0_24] : memref<8x8x128xf32, #tpu.memory_space<vmem>>, vector<1x8x128xf32>
    %43 = vector.shape_cast %42 : vector<1x8x128xf32> to vector<8x128xf32>
    %44 = arith.truncf %36 : vector<8x32xf32> to vector<8x32xbf16>
    %cst_25 = arith.constant dense<0.000000e+00> : vector<8x128xf32>
    %45 = tpu.matmul %44, %10, %cst_25 {dimension_numbers = #tpu.dot_dimension_numbers<[1], [0], [0], [1], [0, 0, 1, 1], [], []>} : vector<8x32xbf16>, vector<32x128xbf16>, vector<8x128xf32> -> vector<8x128xf32>
    %46 = arith.addf %43, %45 : vector<8x128xf32>
    %47 = arith.negf %46 : vector<8x128xf32>
    %48 = math.exp %47 : vector<8x128xf32>
    %cst_26 = arith.constant 1.000000e+00 : f32
    %49 = vector.broadcast %cst_26 : f32 to vector<8x128xf32>
    %50 = arith.addf %49, %48 : vector<8x128xf32>
    %51 = arith.divf %49, %50 : vector<8x128xf32>
    %52 = vector.extract_strided_slice %51 {offsets = [0, 0], sizes = [8, 32], strides = [1, 1]} : vector<8x128xf32> to vector<8x32xf32>
    %53 = vector.extract_strided_slice %51 {offsets = [0, 32], sizes = [8, 32], strides = [1, 1]} : vector<8x128xf32> to vector<8x32xf32>
    %54 = vector.extract_strided_slice %51 {offsets = [0, 96], sizes = [8, 32], strides = [1, 1]} : vector<8x128xf32> to vector<8x32xf32>
    %55 = vector.extract_strided_slice %46 {offsets = [0, 64], sizes = [8, 32], strides = [1, 1]} : vector<8x128xf32> to vector<8x32xf32>
    %56 = math.tanh %55 : vector<8x32xf32>
    %57 = arith.mulf %53, %34 : vector<8x32xf32>
    %58 = arith.mulf %52, %56 : vector<8x32xf32>
    %59 = arith.addf %57, %58 : vector<8x32xf32>
    %60 = math.tanh %59 : vector<8x32xf32>
    %61 = arith.mulf %54, %60 : vector<8x32xf32>
    %62 = arith.index_cast %c1_i32 : i32 to index
    %c0_27 = arith.constant 0 : index
    %c0_28 = arith.constant 0 : index
    %63 = vector.load %arg5[%62, %c0_27, %c0_28] : memref<8x8x32xf32, #tpu.memory_space<vmem>>, vector<1x8x32xf32>
    %64 = vector.shape_cast %63 : vector<1x8x32xf32> to vector<8x32xf32>
    %65 = vector.shape_cast %61 : vector<8x32xf32> to vector<1x8x32xf32>
    tpu.vector_store %arg5[%62, %c0_27, %c0_28], %65 {strides = array<i32>} : memref<8x8x32xf32, #tpu.memory_space<vmem>>, vector<1x8x32xf32>,
    %c2_i32 = arith.constant 2 : i32
    %66 = arith.index_cast %c2_i32 : i32 to index
    %c0_29 = arith.constant 0 : index
    %c0_30 = arith.constant 0 : index
    %67 = vector.load %arg8[%66, %c0_29, %c0_30] : memref<8x8x128xf32, #tpu.memory_space<vmem>>, vector<1x8x128xf32>
    %68 = vector.shape_cast %67 : vector<1x8x128xf32> to vector<8x128xf32>
    %69 = arith.truncf %61 : vector<8x32xf32> to vector<8x32xbf16>
    %cst_31 = arith.constant dense<0.000000e+00> : vector<8x128xf32>
    %70 = tpu.matmul %69, %10, %cst_31 {dimension_numbers = #tpu.dot_dimension_numbers<[1], [0], [0], [1], [0, 0, 1, 1], [], []>} : vector<8x32xbf16>, vector<32x128xbf16>, vector<8x128xf32> -> vector<8x128xf32>
    %71 = arith.addf %68, %70 : vector<8x128xf32>
    %72 = arith.negf %71 : vector<8x128xf32>
    %73 = math.exp %72 : vector<8x128xf32>
    %cst_32 = arith.constant 1.000000e+00 : f32
    %74 = vector.broadcast %cst_32 : f32 to vector<8x128xf32>
    %75 = arith.addf %74, %73 : vector<8x128xf32>
    %76 = arith.divf %74, %75 : vector<8x128xf32>
    %77 = vector.extract_strided_slice %76 {offsets = [0, 0], sizes = [8, 32], strides = [1, 1]} : vector<8x128xf32> to vector<8x32xf32>
    %78 = vector.extract_strided_slice %76 {offsets = [0, 32], sizes = [8, 32], strides = [1, 1]} : vector<8x128xf32> to vector<8x32xf32>
    %79 = vector.extract_strided_slice %76 {offsets = [0, 96], sizes = [8, 32], strides = [1, 1]} : vector<8x128xf32> to vector<8x32xf32>
    %80 = vector.extract_strided_slice %71 {offsets = [0, 64], sizes = [8, 32], strides = [1, 1]} : vector<8x128xf32> to vector<8x32xf32>
    %81 = math.tanh %80 : vector<8x32xf32>
    %82 = arith.mulf %78, %59 : vector<8x32xf32>
    %83 = arith.mulf %77, %81 : vector<8x32xf32>
    %84 = arith.addf %82, %83 : vector<8x32xf32>
    %85 = math.tanh %84 : vector<8x32xf32>
    %86 = arith.mulf %79, %85 : vector<8x32xf32>
    %87 = arith.index_cast %c2_i32 : i32 to index
    %c0_33 = arith.constant 0 : index
    %c0_34 = arith.constant 0 : index
    %88 = vector.load %arg5[%87, %c0_33, %c0_34] : memref<8x8x32xf32, #tpu.memory_space<vmem>>, vector<1x8x32xf32>
    %89 = vector.shape_cast %88 : vector<1x8x32xf32> to vector<8x32xf32>
    %90 = vector.shape_cast %86 : vector<8x32xf32> to vector<1x8x32xf32>
    tpu.vector_store %arg5[%87, %c0_33, %c0_34], %90 {strides = array<i32>} : memref<8x8x32xf32, #tpu.memory_space<vmem>>, vector<1x8x32xf32>,
    %c3_i32 = arith.constant 3 : i32
    %91 = arith.index_cast %c3_i32 : i32 to index
    %c0_35 = arith.constant 0 : index
    %c0_36 = arith.constant 0 : index
    %92 = vector.load %arg8[%91, %c0_35, %c0_36] : memref<8x8x128xf32, #tpu.memory_space<vmem>>, vector<1x8x128xf32>
    %93 = vector.shape_cast %92 : vector<1x8x128xf32> to vector<8x128xf32>
    %94 = arith.truncf %86 : vector<8x32xf32> to vector<8x32xbf16>
    %cst_37 = arith.constant dense<0.000000e+00> : vector<8x128xf32>
    %95 = tpu.matmul %94, %10, %cst_37 {dimension_numbers = #tpu.dot_dimension_numbers<[1], [0], [0], [1], [0, 0, 1, 1], [], []>} : vector<8x32xbf16>, vector<32x128xbf16>, vector<8x128xf32> -> vector<8x128xf32>
    %96 = arith.addf %93, %95 : vector<8x128xf32>
    %97 = arith.negf %96 : vector<8x128xf32>
    %98 = math.exp %97 : vector<8x128xf32>
    %cst_38 = arith.constant 1.000000e+00 : f32
    %99 = vector.broadcast %cst_38 : f32 to vector<8x128xf32>
    %100 = arith.addf %99, %98 : vector<8x128xf32>
    %101 = arith.divf %99, %100 : vector<8x128xf32>
    %102 = vector.extract_strided_slice %101 {offsets = [0, 0], sizes = [8, 32], strides = [1, 1]} : vector<8x128xf32> to vector<8x32xf32>
    %103 = vector.extract_strided_slice %101 {offsets = [0, 32], sizes = [8, 32], strides = [1, 1]} : vector<8x128xf32> to vector<8x32xf32>
    %104 = vector.extract_strided_slice %101 {offsets = [0, 96], sizes = [8, 32], strides = [1, 1]} : vector<8x128xf32> to vector<8x32xf32>
    %105 = vector.extract_strided_slice %96 {offsets = [0, 64], sizes = [8, 32], strides = [1, 1]} : vector<8x128xf32> to vector<8x32xf32>
    %106 = math.tanh %105 : vector<8x32xf32>
    %107 = arith.mulf %103, %84 : vector<8x32xf32>
    %108 = arith.mulf %102, %106 : vector<8x32xf32>
    %109 = arith.addf %107, %108 : vector<8x32xf32>
    %110 = math.tanh %109 : vector<8x32xf32>
    %111 = arith.mulf %104, %110 : vector<8x32xf32>
    %112 = arith.index_cast %c3_i32 : i32 to index
    %c0_39 = arith.constant 0 : index
    %c0_40 = arith.constant 0 : index
    %113 = vector.load %arg5[%112, %c0_39, %c0_40] : memref<8x8x32xf32, #tpu.memory_space<vmem>>, vector<1x8x32xf32>
    %114 = vector.shape_cast %113 : vector<1x8x32xf32> to vector<8x32xf32>
    %115 = vector.shape_cast %111 : vector<8x32xf32> to vector<1x8x32xf32>
    tpu.vector_store %arg5[%112, %c0_39, %c0_40], %115 {strides = array<i32>} : memref<8x8x32xf32, #tpu.memory_space<vmem>>, vector<1x8x32xf32>,
    %c4_i32 = arith.constant 4 : i32
    %116 = arith.index_cast %c4_i32 : i32 to index
    %c0_41 = arith.constant 0 : index
    %c0_42 = arith.constant 0 : index
    %117 = vector.load %arg8[%116, %c0_41, %c0_42] : memref<8x8x128xf32, #tpu.memory_space<vmem>>, vector<1x8x128xf32>
    %118 = vector.shape_cast %117 : vector<1x8x128xf32> to vector<8x128xf32>
    %119 = arith.truncf %111 : vector<8x32xf32> to vector<8x32xbf16>
    %cst_43 = arith.constant dense<0.000000e+00> : vector<8x128xf32>
    %120 = tpu.matmul %119, %10, %cst_43 {dimension_numbers = #tpu.dot_dimension_numbers<[1], [0], [0], [1], [0, 0, 1, 1], [], []>} : vector<8x32xbf16>, vector<32x128xbf16>, vector<8x128xf32> -> vector<8x128xf32>
    %121 = arith.addf %118, %120 : vector<8x128xf32>
    %122 = arith.negf %121 : vector<8x128xf32>
    %123 = math.exp %122 : vector<8x128xf32>
    %cst_44 = arith.constant 1.000000e+00 : f32
    %124 = vector.broadcast %cst_44 : f32 to vector<8x128xf32>
    %125 = arith.addf %124, %123 : vector<8x128xf32>
    %126 = arith.divf %124, %125 : vector<8x128xf32>
    %127 = vector.extract_strided_slice %126 {offsets = [0, 0], sizes = [8, 32], strides = [1, 1]} : vector<8x128xf32> to vector<8x32xf32>
    %128 = vector.extract_strided_slice %126 {offsets = [0, 32], sizes = [8, 32], strides = [1, 1]} : vector<8x128xf32> to vector<8x32xf32>
    %129 = vector.extract_strided_slice %126 {offsets = [0, 96], sizes = [8, 32], strides = [1, 1]} : vector<8x128xf32> to vector<8x32xf32>
    %130 = vector.extract_strided_slice %121 {offsets = [0, 64], sizes = [8, 32], strides = [1, 1]} : vector<8x128xf32> to vector<8x32xf32>
    %131 = math.tanh %130 : vector<8x32xf32>
    %132 = arith.mulf %128, %109 : vector<8x32xf32>
    %133 = arith.mulf %127, %131 : vector<8x32xf32>
    %134 = arith.addf %132, %133 : vector<8x32xf32>
    %135 = math.tanh %134 : vector<8x32xf32>
    %136 = arith.mulf %129, %135 : vector<8x32xf32>
    %137 = arith.index_cast %c4_i32 : i32 to index
    %c0_45 = arith.constant 0 : index
    %c0_46 = arith.constant 0 : index
    %138 = vector.load %arg5[%137, %c0_45, %c0_46] : memref<8x8x32xf32, #tpu.memory_space<vmem>>, vector<1x8x32xf32>
    %139 = vector.shape_cast %138 : vector<1x8x32xf32> to vector<8x32xf32>
    %140 = vector.shape_cast %136 : vector<8x32xf32> to vector<1x8x32xf32>
    tpu.vector_store %arg5[%137, %c0_45, %c0_46], %140 {strides = array<i32>} : memref<8x8x32xf32, #tpu.memory_space<vmem>>, vector<1x8x32xf32>,
    %c5_i32 = arith.constant 5 : i32
    %141 = arith.index_cast %c5_i32 : i32 to index
    %c0_47 = arith.constant 0 : index
    %c0_48 = arith.constant 0 : index
    %142 = vector.load %arg8[%141, %c0_47, %c0_48] : memref<8x8x128xf32, #tpu.memory_space<vmem>>, vector<1x8x128xf32>
    %143 = vector.shape_cast %142 : vector<1x8x128xf32> to vector<8x128xf32>
    %144 = arith.truncf %136 : vector<8x32xf32> to vector<8x32xbf16>
    %cst_49 = arith.constant dense<0.000000e+00> : vector<8x128xf32>
    %145 = tpu.matmul %144, %10, %cst_49 {dimension_numbers = #tpu.dot_dimension_numbers<[1], [0], [0], [1], [0, 0, 1, 1], [], []>} : vector<8x32xbf16>, vector<32x128xbf16>, vector<8x128xf32> -> vector<8x128xf32>
    %146 = arith.addf %143, %145 : vector<8x128xf32>
    %147 = arith.negf %146 : vector<8x128xf32>
    %148 = math.exp %147 : vector<8x128xf32>
    %cst_50 = arith.constant 1.000000e+00 : f32
    %149 = vector.broadcast %cst_50 : f32 to vector<8x128xf32>
    %150 = arith.addf %149, %148 : vector<8x128xf32>
    %151 = arith.divf %149, %150 : vector<8x128xf32>
    %152 = vector.extract_strided_slice %151 {offsets = [0, 0], sizes = [8, 32], strides = [1, 1]} : vector<8x128xf32> to vector<8x32xf32>
    %153 = vector.extract_strided_slice %151 {offsets = [0, 32], sizes = [8, 32], strides = [1, 1]} : vector<8x128xf32> to vector<8x32xf32>
    %154 = vector.extract_strided_slice %151 {offsets = [0, 96], sizes = [8, 32], strides = [1, 1]} : vector<8x128xf32> to vector<8x32xf32>
    %155 = vector.extract_strided_slice %146 {offsets = [0, 64], sizes = [8, 32], strides = [1, 1]} : vector<8x128xf32> to vector<8x32xf32>
    %156 = math.tanh %155 : vector<8x32xf32>
    %157 = arith.mulf %153, %134 : vector<8x32xf32>
    %158 = arith.mulf %152, %156 : vector<8x32xf32>
    %159 = arith.addf %157, %158 : vector<8x32xf32>
    %160 = math.tanh %159 : vector<8x32xf32>
    %161 = arith.mulf %154, %160 : vector<8x32xf32>
    %162 = arith.index_cast %c5_i32 : i32 to index
    %c0_51 = arith.constant 0 : index
    %c0_52 = arith.constant 0 : index
    %163 = vector.load %arg5[%162, %c0_51, %c0_52] : memref<8x8x32xf32, #tpu.memory_space<vmem>>, vector<1x8x32xf32>
    %164 = vector.shape_cast %163 : vector<1x8x32xf32> to vector<8x32xf32>
    %165 = vector.shape_cast %161 : vector<8x32xf32> to vector<1x8x32xf32>
    tpu.vector_store %arg5[%162, %c0_51, %c0_52], %165 {strides = array<i32>} : memref<8x8x32xf32, #tpu.memory_space<vmem>>, vector<1x8x32xf32>,
    %c6_i32 = arith.constant 6 : i32
    %166 = arith.index_cast %c6_i32 : i32 to index
    %c0_53 = arith.constant 0 : index
    %c0_54 = arith.constant 0 : index
    %167 = vector.load %arg8[%166, %c0_53, %c0_54] : memref<8x8x128xf32, #tpu.memory_space<vmem>>, vector<1x8x128xf32>
    %168 = vector.shape_cast %167 : vector<1x8x128xf32> to vector<8x128xf32>
    %169 = arith.truncf %161 : vector<8x32xf32> to vector<8x32xbf16>
    %cst_55 = arith.constant dense<0.000000e+00> : vector<8x128xf32>
    %170 = tpu.matmul %169, %10, %cst_55 {dimension_numbers = #tpu.dot_dimension_numbers<[1], [0], [0], [1], [0, 0, 1, 1], [], []>} : vector<8x32xbf16>, vector<32x128xbf16>, vector<8x128xf32> -> vector<8x128xf32>
    %171 = arith.addf %168, %170 : vector<8x128xf32>
    %172 = arith.negf %171 : vector<8x128xf32>
    %173 = math.exp %172 : vector<8x128xf32>
    %cst_56 = arith.constant 1.000000e+00 : f32
    %174 = vector.broadcast %cst_56 : f32 to vector<8x128xf32>
    %175 = arith.addf %174, %173 : vector<8x128xf32>
    %176 = arith.divf %174, %175 : vector<8x128xf32>
    %177 = vector.extract_strided_slice %176 {offsets = [0, 0], sizes = [8, 32], strides = [1, 1]} : vector<8x128xf32> to vector<8x32xf32>
    %178 = vector.extract_strided_slice %176 {offsets = [0, 32], sizes = [8, 32], strides = [1, 1]} : vector<8x128xf32> to vector<8x32xf32>
    %179 = vector.extract_strided_slice %176 {offsets = [0, 96], sizes = [8, 32], strides = [1, 1]} : vector<8x128xf32> to vector<8x32xf32>
    %180 = vector.extract_strided_slice %171 {offsets = [0, 64], sizes = [8, 32], strides = [1, 1]} : vector<8x128xf32> to vector<8x32xf32>
    %181 = math.tanh %180 : vector<8x32xf32>
    %182 = arith.mulf %178, %159 : vector<8x32xf32>
    %183 = arith.mulf %177, %181 : vector<8x32xf32>
    %184 = arith.addf %182, %183 : vector<8x32xf32>
    %185 = math.tanh %184 : vector<8x32xf32>
    %186 = arith.mulf %179, %185 : vector<8x32xf32>
    %187 = arith.index_cast %c6_i32 : i32 to index
    %c0_57 = arith.constant 0 : index
    %c0_58 = arith.constant 0 : index
    %188 = vector.load %arg5[%187, %c0_57, %c0_58] : memref<8x8x32xf32, #tpu.memory_space<vmem>>, vector<1x8x32xf32>
    %189 = vector.shape_cast %188 : vector<1x8x32xf32> to vector<8x32xf32>
    %190 = vector.shape_cast %186 : vector<8x32xf32> to vector<1x8x32xf32>
    tpu.vector_store %arg5[%187, %c0_57, %c0_58], %190 {strides = array<i32>} : memref<8x8x32xf32, #tpu.memory_space<vmem>>, vector<1x8x32xf32>,
    %c7_i32 = arith.constant 7 : i32
    %191 = arith.index_cast %c7_i32 : i32 to index
    %c0_59 = arith.constant 0 : index
    %c0_60 = arith.constant 0 : index
    %192 = vector.load %arg8[%191, %c0_59, %c0_60] : memref<8x8x128xf32, #tpu.memory_space<vmem>>, vector<1x8x128xf32>
    %193 = vector.shape_cast %192 : vector<1x8x128xf32> to vector<8x128xf32>
    %194 = arith.truncf %186 : vector<8x32xf32> to vector<8x32xbf16>
    %cst_61 = arith.constant dense<0.000000e+00> : vector<8x128xf32>
    %195 = tpu.matmul %194, %10, %cst_61 {dimension_numbers = #tpu.dot_dimension_numbers<[1], [0], [0], [1], [0, 0, 1, 1], [], []>} : vector<8x32xbf16>, vector<32x128xbf16>, vector<8x128xf32> -> vector<8x128xf32>
    %196 = arith.addf %193, %195 : vector<8x128xf32>
    %197 = arith.negf %196 : vector<8x128xf32>
    %198 = math.exp %197 : vector<8x128xf32>
    %cst_62 = arith.constant 1.000000e+00 : f32
    %199 = vector.broadcast %cst_62 : f32 to vector<8x128xf32>
    %200 = arith.addf %199, %198 : vector<8x128xf32>
    %201 = arith.divf %199, %200 : vector<8x128xf32>
    %202 = vector.extract_strided_slice %201 {offsets = [0, 0], sizes = [8, 32], strides = [1, 1]} : vector<8x128xf32> to vector<8x32xf32>
    %203 = vector.extract_strided_slice %201 {offsets = [0, 32], sizes = [8, 32], strides = [1, 1]} : vector<8x128xf32> to vector<8x32xf32>
    %204 = vector.extract_strided_slice %201 {offsets = [0, 96], sizes = [8, 32], strides = [1, 1]} : vector<8x128xf32> to vector<8x32xf32>
    %205 = vector.extract_strided_slice %196 {offsets = [0, 64], sizes = [8, 32], strides = [1, 1]} : vector<8x128xf32> to vector<8x32xf32>
    %206 = math.tanh %205 : vector<8x32xf32>
    %207 = arith.mulf %203, %184 : vector<8x32xf32>
    %208 = arith.mulf %202, %206 : vector<8x32xf32>
    %209 = arith.addf %207, %208 : vector<8x32xf32>
    %210 = math.tanh %209 : vector<8x32xf32>
    %211 = arith.mulf %204, %210 : vector<8x32xf32>
    %212 = arith.index_cast %c7_i32 : i32 to index
    %c0_63 = arith.constant 0 : index
    %c0_64 = arith.constant 0 : index
    %213 = vector.load %arg5[%212, %c0_63, %c0_64] : memref<8x8x32xf32, #tpu.memory_space<vmem>>, vector<1x8x32xf32>
    %214 = vector.shape_cast %213 : vector<1x8x32xf32> to vector<8x32xf32>
    %215 = vector.shape_cast %211 : vector<8x32xf32> to vector<1x8x32xf32>
    tpu.vector_store %arg5[%212, %c0_63, %c0_64], %215 {strides = array<i32>} : memref<8x8x32xf32, #tpu.memory_space<vmem>>, vector<1x8x32xf32>,
    %c8_i32 = arith.constant 8 : i32
    %c0_65 = arith.constant 0 : index
    %c0_66 = arith.constant 0 : index
    %216 = vector.load %arg6[%c0_65, %c0_66] : memref<8x32xf32, #tpu.memory_space<vmem>>, vector<8x32xf32>
    tpu.vector_store %arg6[%c0_65, %c0_66], %211 {strides = array<i32>} : memref<8x32xf32, #tpu.memory_space<vmem>>, vector<8x32xf32>,
    %c0_67 = arith.constant 0 : index
    %c0_68 = arith.constant 0 : index
    %217 = vector.load %arg7[%c0_67, %c0_68] : memref<8x32xf32, #tpu.memory_space<vmem>>, vector<8x32xf32>
    tpu.vector_store %arg7[%c0_67, %c0_68], %209 {strides = array<i32>} : memref<8x32xf32, #tpu.memory_space<vmem>>, vector<8x32xf32>,
    return
  }
  func.func @transform_0(%arg0: i32) -> (i32, i32, i32) {
    %c0_i32 = arith.constant 0 : i32
    %c0_i32_0 = arith.constant 0 : i32
    %c0_i32_1 = arith.constant 0 : i32
    return %arg0, %c0_i32, %c0_i32_0 : i32, i32, i32
  }
  func.func @transform_1(%arg0: i32) -> (i32, i32) {
    %c0_i32 = arith.constant 0 : i32
    %c0_i32_0 = arith.constant 0 : i32
    %c0_i32_1 = arith.constant 0 : i32
    return %c0_i32, %c0_i32_0 : i32, i32
  }
  func.func @transform_2(%arg0: i32) -> (i32, i32) {
    %c0_i32 = arith.constant 0 : i32
    %c0_i32_0 = arith.constant 0 : i32
    %c0_i32_1 = arith.constant 0 : i32
    return %c0_i32, %c0_i32_0 : i32, i32
  }
  func.func @transform_3(%arg0: i32) -> (i32, i32) {
    %c0_i32 = arith.constant 0 : i32
    %c0_i32_0 = arith.constant 0 : i32
    %c0_i32_1 = arith.constant 0 : i32
    return %c0_i32, %c0_i32_0 : i32, i32
  }
  func.func @transform_4(%arg0: i32) -> (i32, i32, i32) {
    %c0_i32 = arith.constant 0 : i32
    %c0_i32_0 = arith.constant 0 : i32
    %c0_i32_1 = arith.constant 0 : i32
    return %arg0, %c0_i32, %c0_i32_0 : i32, i32, i32
  }
  func.func @transform_5(%arg0: i32) -> (i32, i32) {
    %c0_i32 = arith.constant 0 : i32
    %c0_i32_0 = arith.constant 0 : i32
    %c0_i32_1 = arith.constant 0 : i32
    return %c0_i32, %c0_i32_0 : i32, i32
  }
  func.func @transform_6(%arg0: i32) -> (i32, i32) {
    %c0_i32 = arith.constant 0 : i32
    %c0_i32_0 = arith.constant 0 : i32
    %c0_i32_1 = arith.constant 0 : i32
    return %c0_i32, %c0_i32_0 : i32, i32
  }
}

module attributes {stable_mosaic.version = 11 : i64} {
  func.func @decoder_kernel(%arg0: i32, %arg1: memref<8x8x32xf32, #tpu.memory_space<vmem>>, %arg2: memref<8x8x32xf32, #tpu.memory_space<vmem>>, %arg3: memref<8x32xf32, #tpu.memory_space<vmem>>, %arg4: memref<8x32xf32, #tpu.memory_space<vmem>>, %arg5: memref<32x128xbf16, #tpu.memory_space<vmem>>, %arg6: memref<32x128xbf16, #tpu.memory_space<vmem>>, %arg7: memref<32x128xbf16, #tpu.memory_space<vmem>>, %arg8: memref<1x128xf32, #tpu.memory_space<vmem>>, %arg9: memref<32x32xbf16, #tpu.memory_space<vmem>>, %arg10: memref<32x32xbf16, #tpu.memory_space<vmem>>, %arg11: memref<32x32xbf16, #tpu.memory_space<vmem>>, %arg12: memref<8x8x32xf32, #tpu.memory_space<vmem>>, %arg13: memref<8x8x8xf32, #tpu.memory_space<vmem>>, %arg14: memref<8x8x128xf32, #tpu.memory_space<vmem>>, %arg15: memref<8x32xf32, #tpu.memory_space<vmem>>, %arg16: memref<8x32xf32, #tpu.memory_space<vmem>>, %arg17: memref<8x32xf32, #tpu.memory_space<vmem>>) attributes {dimension_semantics = [#tpu.dimension_semantics<arbitrary>], iteration_bounds = array<i64: 1>, scalar_prefetch = 0 : i64, scratch_operands = 4 : i64, tpu.core_type = #tpu.core_type<tc>, window_params = [{transform_indices = @transform_0, window_bounds = array<i64: 8, 8, 32>}, {pipeline_mode = #tpu.pipeline_mode<synchronous>, transform_indices = @transform_1, window_bounds = array<i64: 8, 8, 32>}, {pipeline_mode = #tpu.pipeline_mode<synchronous>, transform_indices = @transform_2, window_bounds = array<i64: 8, 32>}, {pipeline_mode = #tpu.pipeline_mode<synchronous>, transform_indices = @transform_3, window_bounds = array<i64: 8, 32>}, {pipeline_mode = #tpu.pipeline_mode<synchronous>, transform_indices = @transform_4, window_bounds = array<i64: 32, 128>}, {pipeline_mode = #tpu.pipeline_mode<synchronous>, transform_indices = @transform_5, window_bounds = array<i64: 32, 128>}, {pipeline_mode = #tpu.pipeline_mode<synchronous>, transform_indices = @transform_6, window_bounds = array<i64: 32, 128>}, {pipeline_mode = #tpu.pipeline_mode<synchronous>, transform_indices = @transform_7, window_bounds = array<i64: 1, 128>}, {pipeline_mode = #tpu.pipeline_mode<synchronous>, transform_indices = @transform_8, window_bounds = array<i64: 32, 32>}, {pipeline_mode = #tpu.pipeline_mode<synchronous>, transform_indices = @transform_9, window_bounds = array<i64: 32, 32>}, {pipeline_mode = #tpu.pipeline_mode<synchronous>, transform_indices = @transform_10, window_bounds = array<i64: 32, 32>}, {transform_indices = @transform_11, window_bounds = array<i64: 8, 8, 32>}, {transform_indices = @transform_12, window_bounds = array<i64: 8, 8, 8>}]} {
    %c0 = arith.constant 0 : index
    %c0_0 = arith.constant 0 : index
    %c0_1 = arith.constant 0 : index
    %0 = vector.load %arg1[%c0, %c0_0, %c0_1] : memref<8x8x32xf32, #tpu.memory_space<vmem>>, vector<8x8x32xf32>
    %1 = vector.shape_cast %0 : vector<8x8x32xf32> to vector<64x32xf32>
    %2 = arith.truncf %1 : vector<64x32xf32> to vector<64x32xbf16>
    %c0_2 = arith.constant 0 : index
    %c0_3 = arith.constant 0 : index
    %3 = vector.load %arg5[%c0_2, %c0_3] : memref<32x128xbf16, #tpu.memory_space<vmem>>, vector<32x128xbf16>
    %cst = arith.constant dense<0.000000e+00> : vector<64x128xf32>
    %4 = tpu.matmul %2, %3, %cst {dimension_numbers = #tpu.dot_dimension_numbers<[1], [0], [0], [1], [0, 0, 1, 1], [], []>} : vector<64x32xbf16>, vector<32x128xbf16>, vector<64x128xf32> -> vector<64x128xf32>
    %c0_4 = arith.constant 0 : index
    %c0_5 = arith.constant 0 : index
    %5 = vector.load %arg8[%c0_4, %c0_5] : memref<1x128xf32, #tpu.memory_space<vmem>>, vector<1x128xf32>
    %6 = vector.broadcast %5 : vector<1x128xf32> to vector<64x128xf32>
    %7 = arith.addf %4, %6 : vector<64x128xf32>
    %8 = vector.shape_cast %7 : vector<64x128xf32> to vector<8x8x128xf32>
    %c0_6 = arith.constant 0 : index
    %c0_7 = arith.constant 0 : index
    %c0_8 = arith.constant 0 : index
    %9 = vector.load %arg14[%c0_6, %c0_7, %c0_8] : memref<8x8x128xf32, #tpu.memory_space<vmem>>, vector<8x8x128xf32>
    tpu.vector_store %arg14[%c0_6, %c0_7, %c0_8], %8 {strides = array<i32>} : memref<8x8x128xf32, #tpu.memory_space<vmem>>, vector<8x8x128xf32>,
    %c0_9 = arith.constant 0 : index
    %c0_10 = arith.constant 0 : index
    %10 = vector.load %arg6[%c0_9, %c0_10] : memref<32x128xbf16, #tpu.memory_space<vmem>>, vector<32x128xbf16>
    %c0_11 = arith.constant 0 : index
    %c0_12 = arith.constant 0 : index
    %11 = vector.load %arg7[%c0_11, %c0_12] : memref<32x128xbf16, #tpu.memory_space<vmem>>, vector<32x128xbf16>
    %c0_13 = arith.constant 0 : index
    %c0_14 = arith.constant 0 : index
    %12 = vector.load %arg9[%c0_13, %c0_14] : memref<32x32xbf16, #tpu.memory_space<vmem>>, vector<32x32xbf16>
    %c0_15 = arith.constant 0 : index
    %c0_16 = arith.constant 0 : index
    %13 = vector.load %arg10[%c0_15, %c0_16] : memref<32x32xbf16, #tpu.memory_space<vmem>>, vector<32x32xbf16>
    %c0_17 = arith.constant 0 : index
    %c0_18 = arith.constant 0 : index
    %14 = vector.load %arg11[%c0_17, %c0_18] : memref<32x32xbf16, #tpu.memory_space<vmem>>, vector<32x32xbf16>
    %c0_19 = arith.constant 0 : index
    %c0_20 = arith.constant 0 : index
    %c0_21 = arith.constant 0 : index
    %15 = vector.load %arg2[%c0_19, %c0_20, %c0_21] : memref<8x8x32xf32, #tpu.memory_space<vmem>>, vector<8x8x32xf32>
    %c0_i32 = arith.constant 0 : i32
    %16 = arith.cmpi eq, %arg0, %c0_i32 : i32
    %17 = arith.extui %16 : i1 to i32
    %c0_i32_22 = arith.constant 0 : i32
    %18 = arith.cmpi ne, %17, %c0_i32_22 : i32
    scf.if %18 {
      %c0_164 = arith.constant 0 : index
      %c0_165 = arith.constant 0 : index
      %473 = vector.load %arg3[%c0_164, %c0_165] : memref<8x32xf32, #tpu.memory_space<vmem>>, vector<8x32xf32>
      %c0_166 = arith.constant 0 : index
      %c0_167 = arith.constant 0 : index
      %474 = vector.load %arg15[%c0_166, %c0_167] : memref<8x32xf32, #tpu.memory_space<vmem>>, vector<8x32xf32>
      tpu.vector_store %arg15[%c0_166, %c0_167], %473 {strides = array<i32>} : memref<8x32xf32, #tpu.memory_space<vmem>>, vector<8x32xf32>,
      %c0_168 = arith.constant 0 : index
      %c0_169 = arith.constant 0 : index
      %475 = vector.load %arg4[%c0_168, %c0_169] : memref<8x32xf32, #tpu.memory_space<vmem>>, vector<8x32xf32>
      %c0_170 = arith.constant 0 : index
      %c0_171 = arith.constant 0 : index
      %476 = vector.load %arg16[%c0_170, %c0_171] : memref<8x32xf32, #tpu.memory_space<vmem>>, vector<8x32xf32>
      tpu.vector_store %arg16[%c0_170, %c0_171], %475 {strides = array<i32>} : memref<8x32xf32, #tpu.memory_space<vmem>>, vector<8x32xf32>,
      %cst_172 = arith.constant 0.000000e+00 : f32
      %477 = vector.broadcast %cst_172 : f32 to vector<8x32xf32>
      %c0_173 = arith.constant 0 : index
      %c0_174 = arith.constant 0 : index
      %478 = vector.load %arg17[%c0_173, %c0_174] : memref<8x32xf32, #tpu.memory_space<vmem>>, vector<8x32xf32>
      tpu.vector_store %arg17[%c0_173, %c0_174], %477 {strides = array<i32>} : memref<8x32xf32, #tpu.memory_space<vmem>>, vector<8x32xf32>,
    } else {
    }
    %c0_23 = arith.constant 0 : index
    %c0_24 = arith.constant 0 : index
    %19 = vector.load %arg15[%c0_23, %c0_24] : memref<8x32xf32, #tpu.memory_space<vmem>>, vector<8x32xf32>
    %c0_25 = arith.constant 0 : index
    %c0_26 = arith.constant 0 : index
    %20 = vector.load %arg16[%c0_25, %c0_26] : memref<8x32xf32, #tpu.memory_space<vmem>>, vector<8x32xf32>
    %c0_27 = arith.constant 0 : index
    %c0_28 = arith.constant 0 : index
    %21 = vector.load %arg17[%c0_27, %c0_28] : memref<8x32xf32, #tpu.memory_space<vmem>>, vector<8x32xf32>
    %c0_i32_29 = arith.constant 0 : i32
    %22 = arith.index_cast %c0_i32_29 : i32 to index
    %c0_30 = arith.constant 0 : index
    %c0_31 = arith.constant 0 : index
    %23 = vector.load %arg14[%22, %c0_30, %c0_31] : memref<8x8x128xf32, #tpu.memory_space<vmem>>, vector<1x8x128xf32>
    %24 = vector.shape_cast %23 : vector<1x8x128xf32> to vector<8x128xf32>
    %25 = arith.truncf %21 : vector<8x32xf32> to vector<8x32xbf16>
    %cst_32 = arith.constant dense<0.000000e+00> : vector<8x128xf32>
    %26 = tpu.matmul %25, %10, %cst_32 {dimension_numbers = #tpu.dot_dimension_numbers<[1], [0], [0], [1], [0, 0, 1, 1], [], []>} : vector<8x32xbf16>, vector<32x128xbf16>, vector<8x128xf32> -> vector<8x128xf32>
    %27 = arith.addf %24, %26 : vector<8x128xf32>
    %28 = arith.truncf %19 : vector<8x32xf32> to vector<8x32xbf16>
    %cst_33 = arith.constant dense<0.000000e+00> : vector<8x128xf32>
    %29 = tpu.matmul %28, %11, %cst_33 {dimension_numbers = #tpu.dot_dimension_numbers<[1], [0], [0], [1], [0, 0, 1, 1], [], []>} : vector<8x32xbf16>, vector<32x128xbf16>, vector<8x128xf32> -> vector<8x128xf32>
    %30 = arith.addf %27, %29 : vector<8x128xf32>
    %31 = arith.negf %30 : vector<8x128xf32>
    %32 = math.exp %31 : vector<8x128xf32>
    %cst_34 = arith.constant 1.000000e+00 : f32
    %33 = vector.broadcast %cst_34 : f32 to vector<8x128xf32>
    %34 = arith.addf %33, %32 : vector<8x128xf32>
    %35 = arith.divf %33, %34 : vector<8x128xf32>
    %36 = vector.extract_strided_slice %35 {offsets = [0, 0], sizes = [8, 32], strides = [1, 1]} : vector<8x128xf32> to vector<8x32xf32>
    %37 = vector.extract_strided_slice %35 {offsets = [0, 32], sizes = [8, 32], strides = [1, 1]} : vector<8x128xf32> to vector<8x32xf32>
    %38 = vector.extract_strided_slice %35 {offsets = [0, 96], sizes = [8, 32], strides = [1, 1]} : vector<8x128xf32> to vector<8x32xf32>
    %39 = vector.extract_strided_slice %30 {offsets = [0, 64], sizes = [8, 32], strides = [1, 1]} : vector<8x128xf32> to vector<8x32xf32>
    %40 = math.tanh %39 : vector<8x32xf32>
    %41 = arith.mulf %37, %20 : vector<8x32xf32>
    %42 = arith.mulf %36, %40 : vector<8x32xf32>
    %43 = arith.addf %41, %42 : vector<8x32xf32>
    %44 = math.tanh %43 : vector<8x32xf32>
    %45 = arith.mulf %38, %44 : vector<8x32xf32>
    %46 = arith.truncf %45 : vector<8x32xf32> to vector<8x32xbf16>
    %cst_35 = arith.constant dense<0.000000e+00> : vector<8x32xf32>
    %47 = tpu.matmul %46, %12, %cst_35 {dimension_numbers = #tpu.dot_dimension_numbers<[1], [0], [0], [1], [0, 0, 1, 1], [], []>} : vector<8x32xbf16>, vector<32x32xbf16>, vector<8x32xf32> -> vector<8x32xf32>
    %48 = vector.shape_cast %47 : vector<8x32xf32> to vector<8x1x32xf32>
    %49 = vector.broadcast %48 : vector<8x1x32xf32> to vector<8x8x32xf32>
    %50 = arith.mulf %15, %49 : vector<8x8x32xf32>
    %cst_36 = arith.constant dense<0.000000e+00> : vector<8x8xf32>
    %51 = vector.multi_reduction <add>, %50, %cst_36 [2] : vector<8x8x32xf32> to vector<8x8xf32>
    %cst_37 = arith.constant dense<0xFF800000> : vector<8xf32>
    %52 = vector.multi_reduction <maximumf>, %51, %cst_37 [1] : vector<8x8xf32> to vector<8xf32>
    %53 = vector.shape_cast %52 : vector<8xf32> to vector<8x1xf32>
    %54 = vector.broadcast %53 : vector<8x1xf32> to vector<8x8xf32>
    %55 = arith.subf %51, %54 : vector<8x8xf32>
    %56 = math.exp %55 : vector<8x8xf32>
    %cst_38 = arith.constant dense<0.000000e+00> : vector<8xf32>
    %57 = vector.multi_reduction <add>, %56, %cst_38 [1] : vector<8x8xf32> to vector<8xf32>
    %58 = vector.shape_cast %57 : vector<8xf32> to vector<8x1xf32>
    %59 = vector.broadcast %58 : vector<8x1xf32> to vector<8x8xf32>
    %60 = arith.divf %56, %59 : vector<8x8xf32>
    %61 = vector.shape_cast %60 : vector<8x8xf32> to vector<8x8x1xf32>
    %62 = vector.broadcast %61 : vector<8x8x1xf32> to vector<8x8x32xf32>
    %63 = arith.mulf %62, %15 : vector<8x8x32xf32>
    %cst_39 = arith.constant dense<0.000000e+00> : vector<8x32xf32>
    %64 = vector.multi_reduction <add>, %63, %cst_39 [1] : vector<8x8x32xf32> to vector<8x32xf32>
    %65 = arith.truncf %64 : vector<8x32xf32> to vector<8x32xbf16>
    %cst_40 = arith.constant dense<0.000000e+00> : vector<8x32xf32>
    %66 = tpu.matmul %65, %13, %cst_40 {dimension_numbers = #tpu.dot_dimension_numbers<[1], [0], [0], [1], [0, 0, 1, 1], [], []>} : vector<8x32xbf16>, vector<32x32xbf16>, vector<8x32xf32> -> vector<8x32xf32>
    %cst_41 = arith.constant dense<0.000000e+00> : vector<8x32xf32>
    %67 = tpu.matmul %46, %14, %cst_41 {dimension_numbers = #tpu.dot_dimension_numbers<[1], [0], [0], [1], [0, 0, 1, 1], [], []>} : vector<8x32xbf16>, vector<32x32xbf16>, vector<8x32xf32> -> vector<8x32xf32>
    %68 = arith.addf %66, %67 : vector<8x32xf32>
    %69 = math.tanh %68 : vector<8x32xf32>
    %70 = arith.index_cast %c0_i32_29 : i32 to index
    %c0_42 = arith.constant 0 : index
    %c0_43 = arith.constant 0 : index
    %71 = vector.load %arg12[%70, %c0_42, %c0_43] : memref<8x8x32xf32, #tpu.memory_space<vmem>>, vector<1x8x32xf32>
    %72 = vector.shape_cast %71 : vector<1x8x32xf32> to vector<8x32xf32>
    %73 = vector.shape_cast %69 : vector<8x32xf32> to vector<1x8x32xf32>
    tpu.vector_store %arg12[%70, %c0_42, %c0_43], %73 {strides = array<i32>} : memref<8x8x32xf32, #tpu.memory_space<vmem>>, vector<1x8x32xf32>,
    %74 = arith.index_cast %c0_i32_29 : i32 to index
    %c0_44 = arith.constant 0 : index
    %c0_45 = arith.constant 0 : index
    %75 = vector.load %arg13[%74, %c0_44, %c0_45] : memref<8x8x8xf32, #tpu.memory_space<vmem>>, vector<1x8x8xf32>
    %76 = vector.shape_cast %75 : vector<1x8x8xf32> to vector<8x8xf32>
    %77 = vector.shape_cast %60 : vector<8x8xf32> to vector<1x8x8xf32>
    tpu.vector_store %arg13[%74, %c0_44, %c0_45], %77 {strides = array<i32>} : memref<8x8x8xf32, #tpu.memory_space<vmem>>, vector<1x8x8xf32>,
    %c1_i32 = arith.constant 1 : i32
    %78 = arith.index_cast %c1_i32 : i32 to index
    %c0_46 = arith.constant 0 : index
    %c0_47 = arith.constant 0 : index
    %79 = vector.load %arg14[%78, %c0_46, %c0_47] : memref<8x8x128xf32, #tpu.memory_space<vmem>>, vector<1x8x128xf32>
    %80 = vector.shape_cast %79 : vector<1x8x128xf32> to vector<8x128xf32>
    %81 = arith.truncf %69 : vector<8x32xf32> to vector<8x32xbf16>
    %cst_48 = arith.constant dense<0.000000e+00> : vector<8x128xf32>
    %82 = tpu.matmul %81, %10, %cst_48 {dimension_numbers = #tpu.dot_dimension_numbers<[1], [0], [0], [1], [0, 0, 1, 1], [], []>} : vector<8x32xbf16>, vector<32x128xbf16>, vector<8x128xf32> -> vector<8x128xf32>
    %83 = arith.addf %80, %82 : vector<8x128xf32>
    %84 = arith.truncf %45 : vector<8x32xf32> to vector<8x32xbf16>
    %cst_49 = arith.constant dense<0.000000e+00> : vector<8x128xf32>
    %85 = tpu.matmul %84, %11, %cst_49 {dimension_numbers = #tpu.dot_dimension_numbers<[1], [0], [0], [1], [0, 0, 1, 1], [], []>} : vector<8x32xbf16>, vector<32x128xbf16>, vector<8x128xf32> -> vector<8x128xf32>
    %86 = arith.addf %83, %85 : vector<8x128xf32>
    %87 = arith.negf %86 : vector<8x128xf32>
    %88 = math.exp %87 : vector<8x128xf32>
    %cst_50 = arith.constant 1.000000e+00 : f32
    %89 = vector.broadcast %cst_50 : f32 to vector<8x128xf32>
    %90 = arith.addf %89, %88 : vector<8x128xf32>
    %91 = arith.divf %89, %90 : vector<8x128xf32>
    %92 = vector.extract_strided_slice %91 {offsets = [0, 0], sizes = [8, 32], strides = [1, 1]} : vector<8x128xf32> to vector<8x32xf32>
    %93 = vector.extract_strided_slice %91 {offsets = [0, 32], sizes = [8, 32], strides = [1, 1]} : vector<8x128xf32> to vector<8x32xf32>
    %94 = vector.extract_strided_slice %91 {offsets = [0, 96], sizes = [8, 32], strides = [1, 1]} : vector<8x128xf32> to vector<8x32xf32>
    %95 = vector.extract_strided_slice %86 {offsets = [0, 64], sizes = [8, 32], strides = [1, 1]} : vector<8x128xf32> to vector<8x32xf32>
    %96 = math.tanh %95 : vector<8x32xf32>
    %97 = arith.mulf %93, %43 : vector<8x32xf32>
    %98 = arith.mulf %92, %96 : vector<8x32xf32>
    %99 = arith.addf %97, %98 : vector<8x32xf32>
    %100 = math.tanh %99 : vector<8x32xf32>
    %101 = arith.mulf %94, %100 : vector<8x32xf32>
    %102 = arith.truncf %101 : vector<8x32xf32> to vector<8x32xbf16>
    %cst_51 = arith.constant dense<0.000000e+00> : vector<8x32xf32>
    %103 = tpu.matmul %102, %12, %cst_51 {dimension_numbers = #tpu.dot_dimension_numbers<[1], [0], [0], [1], [0, 0, 1, 1], [], []>} : vector<8x32xbf16>, vector<32x32xbf16>, vector<8x32xf32> -> vector<8x32xf32>
    %104 = vector.shape_cast %103 : vector<8x32xf32> to vector<8x1x32xf32>
    %105 = vector.broadcast %104 : vector<8x1x32xf32> to vector<8x8x32xf32>
    %106 = arith.mulf %15, %105 : vector<8x8x32xf32>
    %cst_52 = arith.constant dense<0.000000e+00> : vector<8x8xf32>
    %107 = vector.multi_reduction <add>, %106, %cst_52 [2] : vector<8x8x32xf32> to vector<8x8xf32>
    %cst_53 = arith.constant dense<0xFF800000> : vector<8xf32>
    %108 = vector.multi_reduction <maximumf>, %107, %cst_53 [1] : vector<8x8xf32> to vector<8xf32>
    %109 = vector.shape_cast %108 : vector<8xf32> to vector<8x1xf32>
    %110 = vector.broadcast %109 : vector<8x1xf32> to vector<8x8xf32>
    %111 = arith.subf %107, %110 : vector<8x8xf32>
    %112 = math.exp %111 : vector<8x8xf32>
    %cst_54 = arith.constant dense<0.000000e+00> : vector<8xf32>
    %113 = vector.multi_reduction <add>, %112, %cst_54 [1] : vector<8x8xf32> to vector<8xf32>
    %114 = vector.shape_cast %113 : vector<8xf32> to vector<8x1xf32>
    %115 = vector.broadcast %114 : vector<8x1xf32> to vector<8x8xf32>
    %116 = arith.divf %112, %115 : vector<8x8xf32>
    %117 = vector.shape_cast %116 : vector<8x8xf32> to vector<8x8x1xf32>
    %118 = vector.broadcast %117 : vector<8x8x1xf32> to vector<8x8x32xf32>
    %119 = arith.mulf %118, %15 : vector<8x8x32xf32>
    %cst_55 = arith.constant dense<0.000000e+00> : vector<8x32xf32>
    %120 = vector.multi_reduction <add>, %119, %cst_55 [1] : vector<8x8x32xf32> to vector<8x32xf32>
    %121 = arith.truncf %120 : vector<8x32xf32> to vector<8x32xbf16>
    %cst_56 = arith.constant dense<0.000000e+00> : vector<8x32xf32>
    %122 = tpu.matmul %121, %13, %cst_56 {dimension_numbers = #tpu.dot_dimension_numbers<[1], [0], [0], [1], [0, 0, 1, 1], [], []>} : vector<8x32xbf16>, vector<32x32xbf16>, vector<8x32xf32> -> vector<8x32xf32>
    %cst_57 = arith.constant dense<0.000000e+00> : vector<8x32xf32>
    %123 = tpu.matmul %102, %14, %cst_57 {dimension_numbers = #tpu.dot_dimension_numbers<[1], [0], [0], [1], [0, 0, 1, 1], [], []>} : vector<8x32xbf16>, vector<32x32xbf16>, vector<8x32xf32> -> vector<8x32xf32>
    %124 = arith.addf %122, %123 : vector<8x32xf32>
    %125 = math.tanh %124 : vector<8x32xf32>
    %126 = arith.index_cast %c1_i32 : i32 to index
    %c0_58 = arith.constant 0 : index
    %c0_59 = arith.constant 0 : index
    %127 = vector.load %arg12[%126, %c0_58, %c0_59] : memref<8x8x32xf32, #tpu.memory_space<vmem>>, vector<1x8x32xf32>
    %128 = vector.shape_cast %127 : vector<1x8x32xf32> to vector<8x32xf32>
    %129 = vector.shape_cast %125 : vector<8x32xf32> to vector<1x8x32xf32>
    tpu.vector_store %arg12[%126, %c0_58, %c0_59], %129 {strides = array<i32>} : memref<8x8x32xf32, #tpu.memory_space<vmem>>, vector<1x8x32xf32>,
    %130 = arith.index_cast %c1_i32 : i32 to index
    %c0_60 = arith.constant 0 : index
    %c0_61 = arith.constant 0 : index
    %131 = vector.load %arg13[%130, %c0_60, %c0_61] : memref<8x8x8xf32, #tpu.memory_space<vmem>>, vector<1x8x8xf32>
    %132 = vector.shape_cast %131 : vector<1x8x8xf32> to vector<8x8xf32>
    %133 = vector.shape_cast %116 : vector<8x8xf32> to vector<1x8x8xf32>
    tpu.vector_store %arg13[%130, %c0_60, %c0_61], %133 {strides = array<i32>} : memref<8x8x8xf32, #tpu.memory_space<vmem>>, vector<1x8x8xf32>,
    %c2_i32 = arith.constant 2 : i32
    %134 = arith.index_cast %c2_i32 : i32 to index
    %c0_62 = arith.constant 0 : index
    %c0_63 = arith.constant 0 : index
    %135 = vector.load %arg14[%134, %c0_62, %c0_63] : memref<8x8x128xf32, #tpu.memory_space<vmem>>, vector<1x8x128xf32>
    %136 = vector.shape_cast %135 : vector<1x8x128xf32> to vector<8x128xf32>
    %137 = arith.truncf %125 : vector<8x32xf32> to vector<8x32xbf16>
    %cst_64 = arith.constant dense<0.000000e+00> : vector<8x128xf32>
    %138 = tpu.matmul %137, %10, %cst_64 {dimension_numbers = #tpu.dot_dimension_numbers<[1], [0], [0], [1], [0, 0, 1, 1], [], []>} : vector<8x32xbf16>, vector<32x128xbf16>, vector<8x128xf32> -> vector<8x128xf32>
    %139 = arith.addf %136, %138 : vector<8x128xf32>
    %140 = arith.truncf %101 : vector<8x32xf32> to vector<8x32xbf16>
    %cst_65 = arith.constant dense<0.000000e+00> : vector<8x128xf32>
    %141 = tpu.matmul %140, %11, %cst_65 {dimension_numbers = #tpu.dot_dimension_numbers<[1], [0], [0], [1], [0, 0, 1, 1], [], []>} : vector<8x32xbf16>, vector<32x128xbf16>, vector<8x128xf32> -> vector<8x128xf32>
    %142 = arith.addf %139, %141 : vector<8x128xf32>
    %143 = arith.negf %142 : vector<8x128xf32>
    %144 = math.exp %143 : vector<8x128xf32>
    %cst_66 = arith.constant 1.000000e+00 : f32
    %145 = vector.broadcast %cst_66 : f32 to vector<8x128xf32>
    %146 = arith.addf %145, %144 : vector<8x128xf32>
    %147 = arith.divf %145, %146 : vector<8x128xf32>
    %148 = vector.extract_strided_slice %147 {offsets = [0, 0], sizes = [8, 32], strides = [1, 1]} : vector<8x128xf32> to vector<8x32xf32>
    %149 = vector.extract_strided_slice %147 {offsets = [0, 32], sizes = [8, 32], strides = [1, 1]} : vector<8x128xf32> to vector<8x32xf32>
    %150 = vector.extract_strided_slice %147 {offsets = [0, 96], sizes = [8, 32], strides = [1, 1]} : vector<8x128xf32> to vector<8x32xf32>
    %151 = vector.extract_strided_slice %142 {offsets = [0, 64], sizes = [8, 32], strides = [1, 1]} : vector<8x128xf32> to vector<8x32xf32>
    %152 = math.tanh %151 : vector<8x32xf32>
    %153 = arith.mulf %149, %99 : vector<8x32xf32>
    %154 = arith.mulf %148, %152 : vector<8x32xf32>
    %155 = arith.addf %153, %154 : vector<8x32xf32>
    %156 = math.tanh %155 : vector<8x32xf32>
    %157 = arith.mulf %150, %156 : vector<8x32xf32>
    %158 = arith.truncf %157 : vector<8x32xf32> to vector<8x32xbf16>
    %cst_67 = arith.constant dense<0.000000e+00> : vector<8x32xf32>
    %159 = tpu.matmul %158, %12, %cst_67 {dimension_numbers = #tpu.dot_dimension_numbers<[1], [0], [0], [1], [0, 0, 1, 1], [], []>} : vector<8x32xbf16>, vector<32x32xbf16>, vector<8x32xf32> -> vector<8x32xf32>
    %160 = vector.shape_cast %159 : vector<8x32xf32> to vector<8x1x32xf32>
    %161 = vector.broadcast %160 : vector<8x1x32xf32> to vector<8x8x32xf32>
    %162 = arith.mulf %15, %161 : vector<8x8x32xf32>
    %cst_68 = arith.constant dense<0.000000e+00> : vector<8x8xf32>
    %163 = vector.multi_reduction <add>, %162, %cst_68 [2] : vector<8x8x32xf32> to vector<8x8xf32>
    %cst_69 = arith.constant dense<0xFF800000> : vector<8xf32>
    %164 = vector.multi_reduction <maximumf>, %163, %cst_69 [1] : vector<8x8xf32> to vector<8xf32>
    %165 = vector.shape_cast %164 : vector<8xf32> to vector<8x1xf32>
    %166 = vector.broadcast %165 : vector<8x1xf32> to vector<8x8xf32>
    %167 = arith.subf %163, %166 : vector<8x8xf32>
    %168 = math.exp %167 : vector<8x8xf32>
    %cst_70 = arith.constant dense<0.000000e+00> : vector<8xf32>
    %169 = vector.multi_reduction <add>, %168, %cst_70 [1] : vector<8x8xf32> to vector<8xf32>
    %170 = vector.shape_cast %169 : vector<8xf32> to vector<8x1xf32>
    %171 = vector.broadcast %170 : vector<8x1xf32> to vector<8x8xf32>
    %172 = arith.divf %168, %171 : vector<8x8xf32>
    %173 = vector.shape_cast %172 : vector<8x8xf32> to vector<8x8x1xf32>
    %174 = vector.broadcast %173 : vector<8x8x1xf32> to vector<8x8x32xf32>
    %175 = arith.mulf %174, %15 : vector<8x8x32xf32>
    %cst_71 = arith.constant dense<0.000000e+00> : vector<8x32xf32>
    %176 = vector.multi_reduction <add>, %175, %cst_71 [1] : vector<8x8x32xf32> to vector<8x32xf32>
    %177 = arith.truncf %176 : vector<8x32xf32> to vector<8x32xbf16>
    %cst_72 = arith.constant dense<0.000000e+00> : vector<8x32xf32>
    %178 = tpu.matmul %177, %13, %cst_72 {dimension_numbers = #tpu.dot_dimension_numbers<[1], [0], [0], [1], [0, 0, 1, 1], [], []>} : vector<8x32xbf16>, vector<32x32xbf16>, vector<8x32xf32> -> vector<8x32xf32>
    %cst_73 = arith.constant dense<0.000000e+00> : vector<8x32xf32>
    %179 = tpu.matmul %158, %14, %cst_73 {dimension_numbers = #tpu.dot_dimension_numbers<[1], [0], [0], [1], [0, 0, 1, 1], [], []>} : vector<8x32xbf16>, vector<32x32xbf16>, vector<8x32xf32> -> vector<8x32xf32>
    %180 = arith.addf %178, %179 : vector<8x32xf32>
    %181 = math.tanh %180 : vector<8x32xf32>
    %182 = arith.index_cast %c2_i32 : i32 to index
    %c0_74 = arith.constant 0 : index
    %c0_75 = arith.constant 0 : index
    %183 = vector.load %arg12[%182, %c0_74, %c0_75] : memref<8x8x32xf32, #tpu.memory_space<vmem>>, vector<1x8x32xf32>
    %184 = vector.shape_cast %183 : vector<1x8x32xf32> to vector<8x32xf32>
    %185 = vector.shape_cast %181 : vector<8x32xf32> to vector<1x8x32xf32>
    tpu.vector_store %arg12[%182, %c0_74, %c0_75], %185 {strides = array<i32>} : memref<8x8x32xf32, #tpu.memory_space<vmem>>, vector<1x8x32xf32>,
    %186 = arith.index_cast %c2_i32 : i32 to index
    %c0_76 = arith.constant 0 : index
    %c0_77 = arith.constant 0 : index
    %187 = vector.load %arg13[%186, %c0_76, %c0_77] : memref<8x8x8xf32, #tpu.memory_space<vmem>>, vector<1x8x8xf32>
    %188 = vector.shape_cast %187 : vector<1x8x8xf32> to vector<8x8xf32>
    %189 = vector.shape_cast %172 : vector<8x8xf32> to vector<1x8x8xf32>
    tpu.vector_store %arg13[%186, %c0_76, %c0_77], %189 {strides = array<i32>} : memref<8x8x8xf32, #tpu.memory_space<vmem>>, vector<1x8x8xf32>,
    %c3_i32 = arith.constant 3 : i32
    %190 = arith.index_cast %c3_i32 : i32 to index
    %c0_78 = arith.constant 0 : index
    %c0_79 = arith.constant 0 : index
    %191 = vector.load %arg14[%190, %c0_78, %c0_79] : memref<8x8x128xf32, #tpu.memory_space<vmem>>, vector<1x8x128xf32>
    %192 = vector.shape_cast %191 : vector<1x8x128xf32> to vector<8x128xf32>
    %193 = arith.truncf %181 : vector<8x32xf32> to vector<8x32xbf16>
    %cst_80 = arith.constant dense<0.000000e+00> : vector<8x128xf32>
    %194 = tpu.matmul %193, %10, %cst_80 {dimension_numbers = #tpu.dot_dimension_numbers<[1], [0], [0], [1], [0, 0, 1, 1], [], []>} : vector<8x32xbf16>, vector<32x128xbf16>, vector<8x128xf32> -> vector<8x128xf32>
    %195 = arith.addf %192, %194 : vector<8x128xf32>
    %196 = arith.truncf %157 : vector<8x32xf32> to vector<8x32xbf16>
    %cst_81 = arith.constant dense<0.000000e+00> : vector<8x128xf32>
    %197 = tpu.matmul %196, %11, %cst_81 {dimension_numbers = #tpu.dot_dimension_numbers<[1], [0], [0], [1], [0, 0, 1, 1], [], []>} : vector<8x32xbf16>, vector<32x128xbf16>, vector<8x128xf32> -> vector<8x128xf32>
    %198 = arith.addf %195, %197 : vector<8x128xf32>
    %199 = arith.negf %198 : vector<8x128xf32>
    %200 = math.exp %199 : vector<8x128xf32>
    %cst_82 = arith.constant 1.000000e+00 : f32
    %201 = vector.broadcast %cst_82 : f32 to vector<8x128xf32>
    %202 = arith.addf %201, %200 : vector<8x128xf32>
    %203 = arith.divf %201, %202 : vector<8x128xf32>
    %204 = vector.extract_strided_slice %203 {offsets = [0, 0], sizes = [8, 32], strides = [1, 1]} : vector<8x128xf32> to vector<8x32xf32>
    %205 = vector.extract_strided_slice %203 {offsets = [0, 32], sizes = [8, 32], strides = [1, 1]} : vector<8x128xf32> to vector<8x32xf32>
    %206 = vector.extract_strided_slice %203 {offsets = [0, 96], sizes = [8, 32], strides = [1, 1]} : vector<8x128xf32> to vector<8x32xf32>
    %207 = vector.extract_strided_slice %198 {offsets = [0, 64], sizes = [8, 32], strides = [1, 1]} : vector<8x128xf32> to vector<8x32xf32>
    %208 = math.tanh %207 : vector<8x32xf32>
    %209 = arith.mulf %205, %155 : vector<8x32xf32>
    %210 = arith.mulf %204, %208 : vector<8x32xf32>
    %211 = arith.addf %209, %210 : vector<8x32xf32>
    %212 = math.tanh %211 : vector<8x32xf32>
    %213 = arith.mulf %206, %212 : vector<8x32xf32>
    %214 = arith.truncf %213 : vector<8x32xf32> to vector<8x32xbf16>
    %cst_83 = arith.constant dense<0.000000e+00> : vector<8x32xf32>
    %215 = tpu.matmul %214, %12, %cst_83 {dimension_numbers = #tpu.dot_dimension_numbers<[1], [0], [0], [1], [0, 0, 1, 1], [], []>} : vector<8x32xbf16>, vector<32x32xbf16>, vector<8x32xf32> -> vector<8x32xf32>
    %216 = vector.shape_cast %215 : vector<8x32xf32> to vector<8x1x32xf32>
    %217 = vector.broadcast %216 : vector<8x1x32xf32> to vector<8x8x32xf32>
    %218 = arith.mulf %15, %217 : vector<8x8x32xf32>
    %cst_84 = arith.constant dense<0.000000e+00> : vector<8x8xf32>
    %219 = vector.multi_reduction <add>, %218, %cst_84 [2] : vector<8x8x32xf32> to vector<8x8xf32>
    %cst_85 = arith.constant dense<0xFF800000> : vector<8xf32>
    %220 = vector.multi_reduction <maximumf>, %219, %cst_85 [1] : vector<8x8xf32> to vector<8xf32>
    %221 = vector.shape_cast %220 : vector<8xf32> to vector<8x1xf32>
    %222 = vector.broadcast %221 : vector<8x1xf32> to vector<8x8xf32>
    %223 = arith.subf %219, %222 : vector<8x8xf32>
    %224 = math.exp %223 : vector<8x8xf32>
    %cst_86 = arith.constant dense<0.000000e+00> : vector<8xf32>
    %225 = vector.multi_reduction <add>, %224, %cst_86 [1] : vector<8x8xf32> to vector<8xf32>
    %226 = vector.shape_cast %225 : vector<8xf32> to vector<8x1xf32>
    %227 = vector.broadcast %226 : vector<8x1xf32> to vector<8x8xf32>
    %228 = arith.divf %224, %227 : vector<8x8xf32>
    %229 = vector.shape_cast %228 : vector<8x8xf32> to vector<8x8x1xf32>
    %230 = vector.broadcast %229 : vector<8x8x1xf32> to vector<8x8x32xf32>
    %231 = arith.mulf %230, %15 : vector<8x8x32xf32>
    %cst_87 = arith.constant dense<0.000000e+00> : vector<8x32xf32>
    %232 = vector.multi_reduction <add>, %231, %cst_87 [1] : vector<8x8x32xf32> to vector<8x32xf32>
    %233 = arith.truncf %232 : vector<8x32xf32> to vector<8x32xbf16>
    %cst_88 = arith.constant dense<0.000000e+00> : vector<8x32xf32>
    %234 = tpu.matmul %233, %13, %cst_88 {dimension_numbers = #tpu.dot_dimension_numbers<[1], [0], [0], [1], [0, 0, 1, 1], [], []>} : vector<8x32xbf16>, vector<32x32xbf16>, vector<8x32xf32> -> vector<8x32xf32>
    %cst_89 = arith.constant dense<0.000000e+00> : vector<8x32xf32>
    %235 = tpu.matmul %214, %14, %cst_89 {dimension_numbers = #tpu.dot_dimension_numbers<[1], [0], [0], [1], [0, 0, 1, 1], [], []>} : vector<8x32xbf16>, vector<32x32xbf16>, vector<8x32xf32> -> vector<8x32xf32>
    %236 = arith.addf %234, %235 : vector<8x32xf32>
    %237 = math.tanh %236 : vector<8x32xf32>
    %238 = arith.index_cast %c3_i32 : i32 to index
    %c0_90 = arith.constant 0 : index
    %c0_91 = arith.constant 0 : index
    %239 = vector.load %arg12[%238, %c0_90, %c0_91] : memref<8x8x32xf32, #tpu.memory_space<vmem>>, vector<1x8x32xf32>
    %240 = vector.shape_cast %239 : vector<1x8x32xf32> to vector<8x32xf32>
    %241 = vector.shape_cast %237 : vector<8x32xf32> to vector<1x8x32xf32>
    tpu.vector_store %arg12[%238, %c0_90, %c0_91], %241 {strides = array<i32>} : memref<8x8x32xf32, #tpu.memory_space<vmem>>, vector<1x8x32xf32>,
    %242 = arith.index_cast %c3_i32 : i32 to index
    %c0_92 = arith.constant 0 : index
    %c0_93 = arith.constant 0 : index
    %243 = vector.load %arg13[%242, %c0_92, %c0_93] : memref<8x8x8xf32, #tpu.memory_space<vmem>>, vector<1x8x8xf32>
    %244 = vector.shape_cast %243 : vector<1x8x8xf32> to vector<8x8xf32>
    %245 = vector.shape_cast %228 : vector<8x8xf32> to vector<1x8x8xf32>
    tpu.vector_store %arg13[%242, %c0_92, %c0_93], %245 {strides = array<i32>} : memref<8x8x8xf32, #tpu.memory_space<vmem>>, vector<1x8x8xf32>,
    %c4_i32 = arith.constant 4 : i32
    %246 = arith.index_cast %c4_i32 : i32 to index
    %c0_94 = arith.constant 0 : index
    %c0_95 = arith.constant 0 : index
    %247 = vector.load %arg14[%246, %c0_94, %c0_95] : memref<8x8x128xf32, #tpu.memory_space<vmem>>, vector<1x8x128xf32>
    %248 = vector.shape_cast %247 : vector<1x8x128xf32> to vector<8x128xf32>
    %249 = arith.truncf %237 : vector<8x32xf32> to vector<8x32xbf16>
    %cst_96 = arith.constant dense<0.000000e+00> : vector<8x128xf32>
    %250 = tpu.matmul %249, %10, %cst_96 {dimension_numbers = #tpu.dot_dimension_numbers<[1], [0], [0], [1], [0, 0, 1, 1], [], []>} : vector<8x32xbf16>, vector<32x128xbf16>, vector<8x128xf32> -> vector<8x128xf32>
    %251 = arith.addf %248, %250 : vector<8x128xf32>
    %252 = arith.truncf %213 : vector<8x32xf32> to vector<8x32xbf16>
    %cst_97 = arith.constant dense<0.000000e+00> : vector<8x128xf32>
    %253 = tpu.matmul %252, %11, %cst_97 {dimension_numbers = #tpu.dot_dimension_numbers<[1], [0], [0], [1], [0, 0, 1, 1], [], []>} : vector<8x32xbf16>, vector<32x128xbf16>, vector<8x128xf32> -> vector<8x128xf32>
    %254 = arith.addf %251, %253 : vector<8x128xf32>
    %255 = arith.negf %254 : vector<8x128xf32>
    %256 = math.exp %255 : vector<8x128xf32>
    %cst_98 = arith.constant 1.000000e+00 : f32
    %257 = vector.broadcast %cst_98 : f32 to vector<8x128xf32>
    %258 = arith.addf %257, %256 : vector<8x128xf32>
    %259 = arith.divf %257, %258 : vector<8x128xf32>
    %260 = vector.extract_strided_slice %259 {offsets = [0, 0], sizes = [8, 32], strides = [1, 1]} : vector<8x128xf32> to vector<8x32xf32>
    %261 = vector.extract_strided_slice %259 {offsets = [0, 32], sizes = [8, 32], strides = [1, 1]} : vector<8x128xf32> to vector<8x32xf32>
    %262 = vector.extract_strided_slice %259 {offsets = [0, 96], sizes = [8, 32], strides = [1, 1]} : vector<8x128xf32> to vector<8x32xf32>
    %263 = vector.extract_strided_slice %254 {offsets = [0, 64], sizes = [8, 32], strides = [1, 1]} : vector<8x128xf32> to vector<8x32xf32>
    %264 = math.tanh %263 : vector<8x32xf32>
    %265 = arith.mulf %261, %211 : vector<8x32xf32>
    %266 = arith.mulf %260, %264 : vector<8x32xf32>
    %267 = arith.addf %265, %266 : vector<8x32xf32>
    %268 = math.tanh %267 : vector<8x32xf32>
    %269 = arith.mulf %262, %268 : vector<8x32xf32>
    %270 = arith.truncf %269 : vector<8x32xf32> to vector<8x32xbf16>
    %cst_99 = arith.constant dense<0.000000e+00> : vector<8x32xf32>
    %271 = tpu.matmul %270, %12, %cst_99 {dimension_numbers = #tpu.dot_dimension_numbers<[1], [0], [0], [1], [0, 0, 1, 1], [], []>} : vector<8x32xbf16>, vector<32x32xbf16>, vector<8x32xf32> -> vector<8x32xf32>
    %272 = vector.shape_cast %271 : vector<8x32xf32> to vector<8x1x32xf32>
    %273 = vector.broadcast %272 : vector<8x1x32xf32> to vector<8x8x32xf32>
    %274 = arith.mulf %15, %273 : vector<8x8x32xf32>
    %cst_100 = arith.constant dense<0.000000e+00> : vector<8x8xf32>
    %275 = vector.multi_reduction <add>, %274, %cst_100 [2] : vector<8x8x32xf32> to vector<8x8xf32>
    %cst_101 = arith.constant dense<0xFF800000> : vector<8xf32>
    %276 = vector.multi_reduction <maximumf>, %275, %cst_101 [1] : vector<8x8xf32> to vector<8xf32>
    %277 = vector.shape_cast %276 : vector<8xf32> to vector<8x1xf32>
    %278 = vector.broadcast %277 : vector<8x1xf32> to vector<8x8xf32>
    %279 = arith.subf %275, %278 : vector<8x8xf32>
    %280 = math.exp %279 : vector<8x8xf32>
    %cst_102 = arith.constant dense<0.000000e+00> : vector<8xf32>
    %281 = vector.multi_reduction <add>, %280, %cst_102 [1] : vector<8x8xf32> to vector<8xf32>
    %282 = vector.shape_cast %281 : vector<8xf32> to vector<8x1xf32>
    %283 = vector.broadcast %282 : vector<8x1xf32> to vector<8x8xf32>
    %284 = arith.divf %280, %283 : vector<8x8xf32>
    %285 = vector.shape_cast %284 : vector<8x8xf32> to vector<8x8x1xf32>
    %286 = vector.broadcast %285 : vector<8x8x1xf32> to vector<8x8x32xf32>
    %287 = arith.mulf %286, %15 : vector<8x8x32xf32>
    %cst_103 = arith.constant dense<0.000000e+00> : vector<8x32xf32>
    %288 = vector.multi_reduction <add>, %287, %cst_103 [1] : vector<8x8x32xf32> to vector<8x32xf32>
    %289 = arith.truncf %288 : vector<8x32xf32> to vector<8x32xbf16>
    %cst_104 = arith.constant dense<0.000000e+00> : vector<8x32xf32>
    %290 = tpu.matmul %289, %13, %cst_104 {dimension_numbers = #tpu.dot_dimension_numbers<[1], [0], [0], [1], [0, 0, 1, 1], [], []>} : vector<8x32xbf16>, vector<32x32xbf16>, vector<8x32xf32> -> vector<8x32xf32>
    %cst_105 = arith.constant dense<0.000000e+00> : vector<8x32xf32>
    %291 = tpu.matmul %270, %14, %cst_105 {dimension_numbers = #tpu.dot_dimension_numbers<[1], [0], [0], [1], [0, 0, 1, 1], [], []>} : vector<8x32xbf16>, vector<32x32xbf16>, vector<8x32xf32> -> vector<8x32xf32>
    %292 = arith.addf %290, %291 : vector<8x32xf32>
    %293 = math.tanh %292 : vector<8x32xf32>
    %294 = arith.index_cast %c4_i32 : i32 to index
    %c0_106 = arith.constant 0 : index
    %c0_107 = arith.constant 0 : index
    %295 = vector.load %arg12[%294, %c0_106, %c0_107] : memref<8x8x32xf32, #tpu.memory_space<vmem>>, vector<1x8x32xf32>
    %296 = vector.shape_cast %295 : vector<1x8x32xf32> to vector<8x32xf32>
    %297 = vector.shape_cast %293 : vector<8x32xf32> to vector<1x8x32xf32>
    tpu.vector_store %arg12[%294, %c0_106, %c0_107], %297 {strides = array<i32>} : memref<8x8x32xf32, #tpu.memory_space<vmem>>, vector<1x8x32xf32>,
    %298 = arith.index_cast %c4_i32 : i32 to index
    %c0_108 = arith.constant 0 : index
    %c0_109 = arith.constant 0 : index
    %299 = vector.load %arg13[%298, %c0_108, %c0_109] : memref<8x8x8xf32, #tpu.memory_space<vmem>>, vector<1x8x8xf32>
    %300 = vector.shape_cast %299 : vector<1x8x8xf32> to vector<8x8xf32>
    %301 = vector.shape_cast %284 : vector<8x8xf32> to vector<1x8x8xf32>
    tpu.vector_store %arg13[%298, %c0_108, %c0_109], %301 {strides = array<i32>} : memref<8x8x8xf32, #tpu.memory_space<vmem>>, vector<1x8x8xf32>,
    %c5_i32 = arith.constant 5 : i32
    %302 = arith.index_cast %c5_i32 : i32 to index
    %c0_110 = arith.constant 0 : index
    %c0_111 = arith.constant 0 : index
    %303 = vector.load %arg14[%302, %c0_110, %c0_111] : memref<8x8x128xf32, #tpu.memory_space<vmem>>, vector<1x8x128xf32>
    %304 = vector.shape_cast %303 : vector<1x8x128xf32> to vector<8x128xf32>
    %305 = arith.truncf %293 : vector<8x32xf32> to vector<8x32xbf16>
    %cst_112 = arith.constant dense<0.000000e+00> : vector<8x128xf32>
    %306 = tpu.matmul %305, %10, %cst_112 {dimension_numbers = #tpu.dot_dimension_numbers<[1], [0], [0], [1], [0, 0, 1, 1], [], []>} : vector<8x32xbf16>, vector<32x128xbf16>, vector<8x128xf32> -> vector<8x128xf32>
    %307 = arith.addf %304, %306 : vector<8x128xf32>
    %308 = arith.truncf %269 : vector<8x32xf32> to vector<8x32xbf16>
    %cst_113 = arith.constant dense<0.000000e+00> : vector<8x128xf32>
    %309 = tpu.matmul %308, %11, %cst_113 {dimension_numbers = #tpu.dot_dimension_numbers<[1], [0], [0], [1], [0, 0, 1, 1], [], []>} : vector<8x32xbf16>, vector<32x128xbf16>, vector<8x128xf32> -> vector<8x128xf32>
    %310 = arith.addf %307, %309 : vector<8x128xf32>
    %311 = arith.negf %310 : vector<8x128xf32>
    %312 = math.exp %311 : vector<8x128xf32>
    %cst_114 = arith.constant 1.000000e+00 : f32
    %313 = vector.broadcast %cst_114 : f32 to vector<8x128xf32>
    %314 = arith.addf %313, %312 : vector<8x128xf32>
    %315 = arith.divf %313, %314 : vector<8x128xf32>
    %316 = vector.extract_strided_slice %315 {offsets = [0, 0], sizes = [8, 32], strides = [1, 1]} : vector<8x128xf32> to vector<8x32xf32>
    %317 = vector.extract_strided_slice %315 {offsets = [0, 32], sizes = [8, 32], strides = [1, 1]} : vector<8x128xf32> to vector<8x32xf32>
    %318 = vector.extract_strided_slice %315 {offsets = [0, 96], sizes = [8, 32], strides = [1, 1]} : vector<8x128xf32> to vector<8x32xf32>
    %319 = vector.extract_strided_slice %310 {offsets = [0, 64], sizes = [8, 32], strides = [1, 1]} : vector<8x128xf32> to vector<8x32xf32>
    %320 = math.tanh %319 : vector<8x32xf32>
    %321 = arith.mulf %317, %267 : vector<8x32xf32>
    %322 = arith.mulf %316, %320 : vector<8x32xf32>
    %323 = arith.addf %321, %322 : vector<8x32xf32>
    %324 = math.tanh %323 : vector<8x32xf32>
    %325 = arith.mulf %318, %324 : vector<8x32xf32>
    %326 = arith.truncf %325 : vector<8x32xf32> to vector<8x32xbf16>
    %cst_115 = arith.constant dense<0.000000e+00> : vector<8x32xf32>
    %327 = tpu.matmul %326, %12, %cst_115 {dimension_numbers = #tpu.dot_dimension_numbers<[1], [0], [0], [1], [0, 0, 1, 1], [], []>} : vector<8x32xbf16>, vector<32x32xbf16>, vector<8x32xf32> -> vector<8x32xf32>
    %328 = vector.shape_cast %327 : vector<8x32xf32> to vector<8x1x32xf32>
    %329 = vector.broadcast %328 : vector<8x1x32xf32> to vector<8x8x32xf32>
    %330 = arith.mulf %15, %329 : vector<8x8x32xf32>
    %cst_116 = arith.constant dense<0.000000e+00> : vector<8x8xf32>
    %331 = vector.multi_reduction <add>, %330, %cst_116 [2] : vector<8x8x32xf32> to vector<8x8xf32>
    %cst_117 = arith.constant dense<0xFF800000> : vector<8xf32>
    %332 = vector.multi_reduction <maximumf>, %331, %cst_117 [1] : vector<8x8xf32> to vector<8xf32>
    %333 = vector.shape_cast %332 : vector<8xf32> to vector<8x1xf32>
    %334 = vector.broadcast %333 : vector<8x1xf32> to vector<8x8xf32>
    %335 = arith.subf %331, %334 : vector<8x8xf32>
    %336 = math.exp %335 : vector<8x8xf32>
    %cst_118 = arith.constant dense<0.000000e+00> : vector<8xf32>
    %337 = vector.multi_reduction <add>, %336, %cst_118 [1] : vector<8x8xf32> to vector<8xf32>
    %338 = vector.shape_cast %337 : vector<8xf32> to vector<8x1xf32>
    %339 = vector.broadcast %338 : vector<8x1xf32> to vector<8x8xf32>
    %340 = arith.divf %336, %339 : vector<8x8xf32>
    %341 = vector.shape_cast %340 : vector<8x8xf32> to vector<8x8x1xf32>
    %342 = vector.broadcast %341 : vector<8x8x1xf32> to vector<8x8x32xf32>
    %343 = arith.mulf %342, %15 : vector<8x8x32xf32>
    %cst_119 = arith.constant dense<0.000000e+00> : vector<8x32xf32>
    %344 = vector.multi_reduction <add>, %343, %cst_119 [1] : vector<8x8x32xf32> to vector<8x32xf32>
    %345 = arith.truncf %344 : vector<8x32xf32> to vector<8x32xbf16>
    %cst_120 = arith.constant dense<0.000000e+00> : vector<8x32xf32>
    %346 = tpu.matmul %345, %13, %cst_120 {dimension_numbers = #tpu.dot_dimension_numbers<[1], [0], [0], [1], [0, 0, 1, 1], [], []>} : vector<8x32xbf16>, vector<32x32xbf16>, vector<8x32xf32> -> vector<8x32xf32>
    %cst_121 = arith.constant dense<0.000000e+00> : vector<8x32xf32>
    %347 = tpu.matmul %326, %14, %cst_121 {dimension_numbers = #tpu.dot_dimension_numbers<[1], [0], [0], [1], [0, 0, 1, 1], [], []>} : vector<8x32xbf16>, vector<32x32xbf16>, vector<8x32xf32> -> vector<8x32xf32>
    %348 = arith.addf %346, %347 : vector<8x32xf32>
    %349 = math.tanh %348 : vector<8x32xf32>
    %350 = arith.index_cast %c5_i32 : i32 to index
    %c0_122 = arith.constant 0 : index
    %c0_123 = arith.constant 0 : index
    %351 = vector.load %arg12[%350, %c0_122, %c0_123] : memref<8x8x32xf32, #tpu.memory_space<vmem>>, vector<1x8x32xf32>
    %352 = vector.shape_cast %351 : vector<1x8x32xf32> to vector<8x32xf32>
    %353 = vector.shape_cast %349 : vector<8x32xf32> to vector<1x8x32xf32>
    tpu.vector_store %arg12[%350, %c0_122, %c0_123], %353 {strides = array<i32>} : memref<8x8x32xf32, #tpu.memory_space<vmem>>, vector<1x8x32xf32>,
    %354 = arith.index_cast %c5_i32 : i32 to index
    %c0_124 = arith.constant 0 : index
    %c0_125 = arith.constant 0 : index
    %355 = vector.load %arg13[%354, %c0_124, %c0_125] : memref<8x8x8xf32, #tpu.memory_space<vmem>>, vector<1x8x8xf32>
    %356 = vector.shape_cast %355 : vector<1x8x8xf32> to vector<8x8xf32>
    %357 = vector.shape_cast %340 : vector<8x8xf32> to vector<1x8x8xf32>
    tpu.vector_store %arg13[%354, %c0_124, %c0_125], %357 {strides = array<i32>} : memref<8x8x8xf32, #tpu.memory_space<vmem>>, vector<1x8x8xf32>,
    %c6_i32 = arith.constant 6 : i32
    %358 = arith.index_cast %c6_i32 : i32 to index
    %c0_126 = arith.constant 0 : index
    %c0_127 = arith.constant 0 : index
    %359 = vector.load %arg14[%358, %c0_126, %c0_127] : memref<8x8x128xf32, #tpu.memory_space<vmem>>, vector<1x8x128xf32>
    %360 = vector.shape_cast %359 : vector<1x8x128xf32> to vector<8x128xf32>
    %361 = arith.truncf %349 : vector<8x32xf32> to vector<8x32xbf16>
    %cst_128 = arith.constant dense<0.000000e+00> : vector<8x128xf32>
    %362 = tpu.matmul %361, %10, %cst_128 {dimension_numbers = #tpu.dot_dimension_numbers<[1], [0], [0], [1], [0, 0, 1, 1], [], []>} : vector<8x32xbf16>, vector<32x128xbf16>, vector<8x128xf32> -> vector<8x128xf32>
    %363 = arith.addf %360, %362 : vector<8x128xf32>
    %364 = arith.truncf %325 : vector<8x32xf32> to vector<8x32xbf16>
    %cst_129 = arith.constant dense<0.000000e+00> : vector<8x128xf32>
    %365 = tpu.matmul %364, %11, %cst_129 {dimension_numbers = #tpu.dot_dimension_numbers<[1], [0], [0], [1], [0, 0, 1, 1], [], []>} : vector<8x32xbf16>, vector<32x128xbf16>, vector<8x128xf32> -> vector<8x128xf32>
    %366 = arith.addf %363, %365 : vector<8x128xf32>
    %367 = arith.negf %366 : vector<8x128xf32>
    %368 = math.exp %367 : vector<8x128xf32>
    %cst_130 = arith.constant 1.000000e+00 : f32
    %369 = vector.broadcast %cst_130 : f32 to vector<8x128xf32>
    %370 = arith.addf %369, %368 : vector<8x128xf32>
    %371 = arith.divf %369, %370 : vector<8x128xf32>
    %372 = vector.extract_strided_slice %371 {offsets = [0, 0], sizes = [8, 32], strides = [1, 1]} : vector<8x128xf32> to vector<8x32xf32>
    %373 = vector.extract_strided_slice %371 {offsets = [0, 32], sizes = [8, 32], strides = [1, 1]} : vector<8x128xf32> to vector<8x32xf32>
    %374 = vector.extract_strided_slice %371 {offsets = [0, 96], sizes = [8, 32], strides = [1, 1]} : vector<8x128xf32> to vector<8x32xf32>
    %375 = vector.extract_strided_slice %366 {offsets = [0, 64], sizes = [8, 32], strides = [1, 1]} : vector<8x128xf32> to vector<8x32xf32>
    %376 = math.tanh %375 : vector<8x32xf32>
    %377 = arith.mulf %373, %323 : vector<8x32xf32>
    %378 = arith.mulf %372, %376 : vector<8x32xf32>
    %379 = arith.addf %377, %378 : vector<8x32xf32>
    %380 = math.tanh %379 : vector<8x32xf32>
    %381 = arith.mulf %374, %380 : vector<8x32xf32>
    %382 = arith.truncf %381 : vector<8x32xf32> to vector<8x32xbf16>
    %cst_131 = arith.constant dense<0.000000e+00> : vector<8x32xf32>
    %383 = tpu.matmul %382, %12, %cst_131 {dimension_numbers = #tpu.dot_dimension_numbers<[1], [0], [0], [1], [0, 0, 1, 1], [], []>} : vector<8x32xbf16>, vector<32x32xbf16>, vector<8x32xf32> -> vector<8x32xf32>
    %384 = vector.shape_cast %383 : vector<8x32xf32> to vector<8x1x32xf32>
    %385 = vector.broadcast %384 : vector<8x1x32xf32> to vector<8x8x32xf32>
    %386 = arith.mulf %15, %385 : vector<8x8x32xf32>
    %cst_132 = arith.constant dense<0.000000e+00> : vector<8x8xf32>
    %387 = vector.multi_reduction <add>, %386, %cst_132 [2] : vector<8x8x32xf32> to vector<8x8xf32>
    %cst_133 = arith.constant dense<0xFF800000> : vector<8xf32>
    %388 = vector.multi_reduction <maximumf>, %387, %cst_133 [1] : vector<8x8xf32> to vector<8xf32>
    %389 = vector.shape_cast %388 : vector<8xf32> to vector<8x1xf32>
    %390 = vector.broadcast %389 : vector<8x1xf32> to vector<8x8xf32>
    %391 = arith.subf %387, %390 : vector<8x8xf32>
    %392 = math.exp %391 : vector<8x8xf32>
    %cst_134 = arith.constant dense<0.000000e+00> : vector<8xf32>
    %393 = vector.multi_reduction <add>, %392, %cst_134 [1] : vector<8x8xf32> to vector<8xf32>
    %394 = vector.shape_cast %393 : vector<8xf32> to vector<8x1xf32>
    %395 = vector.broadcast %394 : vector<8x1xf32> to vector<8x8xf32>
    %396 = arith.divf %392, %395 : vector<8x8xf32>
    %397 = vector.shape_cast %396 : vector<8x8xf32> to vector<8x8x1xf32>
    %398 = vector.broadcast %397 : vector<8x8x1xf32> to vector<8x8x32xf32>
    %399 = arith.mulf %398, %15 : vector<8x8x32xf32>
    %cst_135 = arith.constant dense<0.000000e+00> : vector<8x32xf32>
    %400 = vector.multi_reduction <add>, %399, %cst_135 [1] : vector<8x8x32xf32> to vector<8x32xf32>
    %401 = arith.truncf %400 : vector<8x32xf32> to vector<8x32xbf16>
    %cst_136 = arith.constant dense<0.000000e+00> : vector<8x32xf32>
    %402 = tpu.matmul %401, %13, %cst_136 {dimension_numbers = #tpu.dot_dimension_numbers<[1], [0], [0], [1], [0, 0, 1, 1], [], []>} : vector<8x32xbf16>, vector<32x32xbf16>, vector<8x32xf32> -> vector<8x32xf32>
    %cst_137 = arith.constant dense<0.000000e+00> : vector<8x32xf32>
    %403 = tpu.matmul %382, %14, %cst_137 {dimension_numbers = #tpu.dot_dimension_numbers<[1], [0], [0], [1], [0, 0, 1, 1], [], []>} : vector<8x32xbf16>, vector<32x32xbf16>, vector<8x32xf32> -> vector<8x32xf32>
    %404 = arith.addf %402, %403 : vector<8x32xf32>
    %405 = math.tanh %404 : vector<8x32xf32>
    %406 = arith.index_cast %c6_i32 : i32 to index
    %c0_138 = arith.constant 0 : index
    %c0_139 = arith.constant 0 : index
    %407 = vector.load %arg12[%406, %c0_138, %c0_139] : memref<8x8x32xf32, #tpu.memory_space<vmem>>, vector<1x8x32xf32>
    %408 = vector.shape_cast %407 : vector<1x8x32xf32> to vector<8x32xf32>
    %409 = vector.shape_cast %405 : vector<8x32xf32> to vector<1x8x32xf32>
    tpu.vector_store %arg12[%406, %c0_138, %c0_139], %409 {strides = array<i32>} : memref<8x8x32xf32, #tpu.memory_space<vmem>>, vector<1x8x32xf32>,
    %410 = arith.index_cast %c6_i32 : i32 to index
    %c0_140 = arith.constant 0 : index
    %c0_141 = arith.constant 0 : index
    %411 = vector.load %arg13[%410, %c0_140, %c0_141] : memref<8x8x8xf32, #tpu.memory_space<vmem>>, vector<1x8x8xf32>
    %412 = vector.shape_cast %411 : vector<1x8x8xf32> to vector<8x8xf32>
    %413 = vector.shape_cast %396 : vector<8x8xf32> to vector<1x8x8xf32>
    tpu.vector_store %arg13[%410, %c0_140, %c0_141], %413 {strides = array<i32>} : memref<8x8x8xf32, #tpu.memory_space<vmem>>, vector<1x8x8xf32>,
    %c7_i32 = arith.constant 7 : i32
    %414 = arith.index_cast %c7_i32 : i32 to index
    %c0_142 = arith.constant 0 : index
    %c0_143 = arith.constant 0 : index
    %415 = vector.load %arg14[%414, %c0_142, %c0_143] : memref<8x8x128xf32, #tpu.memory_space<vmem>>, vector<1x8x128xf32>
    %416 = vector.shape_cast %415 : vector<1x8x128xf32> to vector<8x128xf32>
    %417 = arith.truncf %405 : vector<8x32xf32> to vector<8x32xbf16>
    %cst_144 = arith.constant dense<0.000000e+00> : vector<8x128xf32>
    %418 = tpu.matmul %417, %10, %cst_144 {dimension_numbers = #tpu.dot_dimension_numbers<[1], [0], [0], [1], [0, 0, 1, 1], [], []>} : vector<8x32xbf16>, vector<32x128xbf16>, vector<8x128xf32> -> vector<8x128xf32>
    %419 = arith.addf %416, %418 : vector<8x128xf32>
    %420 = arith.truncf %381 : vector<8x32xf32> to vector<8x32xbf16>
    %cst_145 = arith.constant dense<0.000000e+00> : vector<8x128xf32>
    %421 = tpu.matmul %420, %11, %cst_145 {dimension_numbers = #tpu.dot_dimension_numbers<[1], [0], [0], [1], [0, 0, 1, 1], [], []>} : vector<8x32xbf16>, vector<32x128xbf16>, vector<8x128xf32> -> vector<8x128xf32>
    %422 = arith.addf %419, %421 : vector<8x128xf32>
    %423 = arith.negf %422 : vector<8x128xf32>
    %424 = math.exp %423 : vector<8x128xf32>
    %cst_146 = arith.constant 1.000000e+00 : f32
    %425 = vector.broadcast %cst_146 : f32 to vector<8x128xf32>
    %426 = arith.addf %425, %424 : vector<8x128xf32>
    %427 = arith.divf %425, %426 : vector<8x128xf32>
    %428 = vector.extract_strided_slice %427 {offsets = [0, 0], sizes = [8, 32], strides = [1, 1]} : vector<8x128xf32> to vector<8x32xf32>
    %429 = vector.extract_strided_slice %427 {offsets = [0, 32], sizes = [8, 32], strides = [1, 1]} : vector<8x128xf32> to vector<8x32xf32>
    %430 = vector.extract_strided_slice %427 {offsets = [0, 96], sizes = [8, 32], strides = [1, 1]} : vector<8x128xf32> to vector<8x32xf32>
    %431 = vector.extract_strided_slice %422 {offsets = [0, 64], sizes = [8, 32], strides = [1, 1]} : vector<8x128xf32> to vector<8x32xf32>
    %432 = math.tanh %431 : vector<8x32xf32>
    %433 = arith.mulf %429, %379 : vector<8x32xf32>
    %434 = arith.mulf %428, %432 : vector<8x32xf32>
    %435 = arith.addf %433, %434 : vector<8x32xf32>
    %436 = math.tanh %435 : vector<8x32xf32>
    %437 = arith.mulf %430, %436 : vector<8x32xf32>
    %438 = arith.truncf %437 : vector<8x32xf32> to vector<8x32xbf16>
    %cst_147 = arith.constant dense<0.000000e+00> : vector<8x32xf32>
    %439 = tpu.matmul %438, %12, %cst_147 {dimension_numbers = #tpu.dot_dimension_numbers<[1], [0], [0], [1], [0, 0, 1, 1], [], []>} : vector<8x32xbf16>, vector<32x32xbf16>, vector<8x32xf32> -> vector<8x32xf32>
    %440 = vector.shape_cast %439 : vector<8x32xf32> to vector<8x1x32xf32>
    %441 = vector.broadcast %440 : vector<8x1x32xf32> to vector<8x8x32xf32>
    %442 = arith.mulf %15, %441 : vector<8x8x32xf32>
    %cst_148 = arith.constant dense<0.000000e+00> : vector<8x8xf32>
    %443 = vector.multi_reduction <add>, %442, %cst_148 [2] : vector<8x8x32xf32> to vector<8x8xf32>
    %cst_149 = arith.constant dense<0xFF800000> : vector<8xf32>
    %444 = vector.multi_reduction <maximumf>, %443, %cst_149 [1] : vector<8x8xf32> to vector<8xf32>
    %445 = vector.shape_cast %444 : vector<8xf32> to vector<8x1xf32>
    %446 = vector.broadcast %445 : vector<8x1xf32> to vector<8x8xf32>
    %447 = arith.subf %443, %446 : vector<8x8xf32>
    %448 = math.exp %447 : vector<8x8xf32>
    %cst_150 = arith.constant dense<0.000000e+00> : vector<8xf32>
    %449 = vector.multi_reduction <add>, %448, %cst_150 [1] : vector<8x8xf32> to vector<8xf32>
    %450 = vector.shape_cast %449 : vector<8xf32> to vector<8x1xf32>
    %451 = vector.broadcast %450 : vector<8x1xf32> to vector<8x8xf32>
    %452 = arith.divf %448, %451 : vector<8x8xf32>
    %453 = vector.shape_cast %452 : vector<8x8xf32> to vector<8x8x1xf32>
    %454 = vector.broadcast %453 : vector<8x8x1xf32> to vector<8x8x32xf32>
    %455 = arith.mulf %454, %15 : vector<8x8x32xf32>
    %cst_151 = arith.constant dense<0.000000e+00> : vector<8x32xf32>
    %456 = vector.multi_reduction <add>, %455, %cst_151 [1] : vector<8x8x32xf32> to vector<8x32xf32>
    %457 = arith.truncf %456 : vector<8x32xf32> to vector<8x32xbf16>
    %cst_152 = arith.constant dense<0.000000e+00> : vector<8x32xf32>
    %458 = tpu.matmul %457, %13, %cst_152 {dimension_numbers = #tpu.dot_dimension_numbers<[1], [0], [0], [1], [0, 0, 1, 1], [], []>} : vector<8x32xbf16>, vector<32x32xbf16>, vector<8x32xf32> -> vector<8x32xf32>
    %cst_153 = arith.constant dense<0.000000e+00> : vector<8x32xf32>
    %459 = tpu.matmul %438, %14, %cst_153 {dimension_numbers = #tpu.dot_dimension_numbers<[1], [0], [0], [1], [0, 0, 1, 1], [], []>} : vector<8x32xbf16>, vector<32x32xbf16>, vector<8x32xf32> -> vector<8x32xf32>
    %460 = arith.addf %458, %459 : vector<8x32xf32>
    %461 = math.tanh %460 : vector<8x32xf32>
    %462 = arith.index_cast %c7_i32 : i32 to index
    %c0_154 = arith.constant 0 : index
    %c0_155 = arith.constant 0 : index
    %463 = vector.load %arg12[%462, %c0_154, %c0_155] : memref<8x8x32xf32, #tpu.memory_space<vmem>>, vector<1x8x32xf32>
    %464 = vector.shape_cast %463 : vector<1x8x32xf32> to vector<8x32xf32>
    %465 = vector.shape_cast %461 : vector<8x32xf32> to vector<1x8x32xf32>
    tpu.vector_store %arg12[%462, %c0_154, %c0_155], %465 {strides = array<i32>} : memref<8x8x32xf32, #tpu.memory_space<vmem>>, vector<1x8x32xf32>,
    %466 = arith.index_cast %c7_i32 : i32 to index
    %c0_156 = arith.constant 0 : index
    %c0_157 = arith.constant 0 : index
    %467 = vector.load %arg13[%466, %c0_156, %c0_157] : memref<8x8x8xf32, #tpu.memory_space<vmem>>, vector<1x8x8xf32>
    %468 = vector.shape_cast %467 : vector<1x8x8xf32> to vector<8x8xf32>
    %469 = vector.shape_cast %452 : vector<8x8xf32> to vector<1x8x8xf32>
    tpu.vector_store %arg13[%466, %c0_156, %c0_157], %469 {strides = array<i32>} : memref<8x8x8xf32, #tpu.memory_space<vmem>>, vector<1x8x8xf32>,
    %c8_i32 = arith.constant 8 : i32
    %c0_158 = arith.constant 0 : index
    %c0_159 = arith.constant 0 : index
    %470 = vector.load %arg15[%c0_158, %c0_159] : memref<8x32xf32, #tpu.memory_space<vmem>>, vector<8x32xf32>
    tpu.vector_store %arg15[%c0_158, %c0_159], %437 {strides = array<i32>} : memref<8x32xf32, #tpu.memory_space<vmem>>, vector<8x32xf32>,
    %c0_160 = arith.constant 0 : index
    %c0_161 = arith.constant 0 : index
    %471 = vector.load %arg16[%c0_160, %c0_161] : memref<8x32xf32, #tpu.memory_space<vmem>>, vector<8x32xf32>
    tpu.vector_store %arg16[%c0_160, %c0_161], %435 {strides = array<i32>} : memref<8x32xf32, #tpu.memory_space<vmem>>, vector<8x32xf32>,
    %c0_162 = arith.constant 0 : index
    %c0_163 = arith.constant 0 : index
    %472 = vector.load %arg17[%c0_162, %c0_163] : memref<8x32xf32, #tpu.memory_space<vmem>>, vector<8x32xf32>
    tpu.vector_store %arg17[%c0_162, %c0_163], %461 {strides = array<i32>} : memref<8x32xf32, #tpu.memory_space<vmem>>, vector<8x32xf32>,
    return
  }
  func.func @transform_0(%arg0: i32) -> (i32, i32, i32) {
    %c0_i32 = arith.constant 0 : i32
    %c0_i32_0 = arith.constant 0 : i32
    %c0_i32_1 = arith.constant 0 : i32
    return %arg0, %c0_i32, %c0_i32_0 : i32, i32, i32
  }
  func.func @transform_1(%arg0: i32) -> (i32, i32, i32) {
    %c0_i32 = arith.constant 0 : i32
    %c0_i32_0 = arith.constant 0 : i32
    %c0_i32_1 = arith.constant 0 : i32
    %c0_i32_2 = arith.constant 0 : i32
    return %c0_i32, %c0_i32_0, %c0_i32_1 : i32, i32, i32
  }
  func.func @transform_2(%arg0: i32) -> (i32, i32) {
    %c0_i32 = arith.constant 0 : i32
    %c0_i32_0 = arith.constant 0 : i32
    %c0_i32_1 = arith.constant 0 : i32
    return %c0_i32, %c0_i32_0 : i32, i32
  }
  func.func @transform_3(%arg0: i32) -> (i32, i32) {
    %c0_i32 = arith.constant 0 : i32
    %c0_i32_0 = arith.constant 0 : i32
    %c0_i32_1 = arith.constant 0 : i32
    return %c0_i32, %c0_i32_0 : i32, i32
  }
  func.func @transform_4(%arg0: i32) -> (i32, i32) {
    %c0_i32 = arith.constant 0 : i32
    %c0_i32_0 = arith.constant 0 : i32
    %c0_i32_1 = arith.constant 0 : i32
    return %c0_i32, %c0_i32_0 : i32, i32
  }
  func.func @transform_5(%arg0: i32) -> (i32, i32) {
    %c0_i32 = arith.constant 0 : i32
    %c0_i32_0 = arith.constant 0 : i32
    %c0_i32_1 = arith.constant 0 : i32
    return %c0_i32, %c0_i32_0 : i32, i32
  }
  func.func @transform_6(%arg0: i32) -> (i32, i32) {
    %c0_i32 = arith.constant 0 : i32
    %c0_i32_0 = arith.constant 0 : i32
    %c0_i32_1 = arith.constant 0 : i32
    return %c0_i32, %c0_i32_0 : i32, i32
  }
  func.func @transform_7(%arg0: i32) -> (i32, i32) {
    %c0_i32 = arith.constant 0 : i32
    %c0_i32_0 = arith.constant 0 : i32
    %c0_i32_1 = arith.constant 0 : i32
    return %c0_i32, %c0_i32_0 : i32, i32
  }
  func.func @transform_8(%arg0: i32) -> (i32, i32) {
    %c0_i32 = arith.constant 0 : i32
    %c0_i32_0 = arith.constant 0 : i32
    %c0_i32_1 = arith.constant 0 : i32
    return %c0_i32, %c0_i32_0 : i32, i32
  }
  func.func @transform_9(%arg0: i32) -> (i32, i32) {
    %c0_i32 = arith.constant 0 : i32
    %c0_i32_0 = arith.constant 0 : i32
    %c0_i32_1 = arith.constant 0 : i32
    return %c0_i32, %c0_i32_0 : i32, i32
  }
  func.func @transform_10(%arg0: i32) -> (i32, i32) {
    %c0_i32 = arith.constant 0 : i32
    %c0_i32_0 = arith.constant 0 : i32
    %c0_i32_1 = arith.constant 0 : i32
    return %c0_i32, %c0_i32_0 : i32, i32
  }
  func.func @transform_11(%arg0: i32) -> (i32, i32, i32) {
    %c0_i32 = arith.constant 0 : i32
    %c0_i32_0 = arith.constant 0 : i32
    %c0_i32_1 = arith.constant 0 : i32
    return %arg0, %c0_i32, %c0_i32_0 : i32, i32, i32
  }
  func.func @transform_12(%arg0: i32) -> (i32, i32, i32) {
    %c0_i32 = arith.constant 0 : i32
    %c0_i32_0 = arith.constant 0 : i32
    %c0_i32_1 = arith.constant 0 : i32
    return %arg0, %c0_i32, %c0_i32_0 : i32, i32, i32
  }
}

module attributes {stable_mosaic.version = 11 : i64} {
  func.func @fc_sub_lse_kernel(%arg0: i32, %arg1: i32, %arg2: memref<64x128xf32, #tpu.memory_space<vmem>>, %arg3: memref<64x1xf32, #tpu.memory_space<vmem>>, %arg4: memref<64x128xf32, #tpu.memory_space<vmem>>) attributes {dimension_semantics = [#tpu.dimension_semantics<parallel>, #tpu.dimension_semantics<parallel>], iteration_bounds = array<i64: 1, 1>, scalar_prefetch = 0 : i64, scratch_operands = 0 : i64, tpu.core_type = #tpu.core_type<tc>, window_params = [{transform_indices = @transform_0, window_bounds = array<i64: 64, 128>}, {transform_indices = @transform_1, window_bounds = array<i64: 64, 1>}, {transform_indices = @transform_2, window_bounds = array<i64: 64, 128>}]} {
    %c0 = arith.constant 0 : index
    %c0_0 = arith.constant 0 : index
    %0 = vector.load %arg2[%c0, %c0_0] : memref<64x128xf32, #tpu.memory_space<vmem>>, vector<64x128xf32>
    %c0_1 = arith.constant 0 : index
    %c0_2 = arith.constant 0 : index
    %1 = vector.load %arg3[%c0_1, %c0_2] : memref<64x1xf32, #tpu.memory_space<vmem>>, vector<64x1xf32>
    %2 = vector.broadcast %1 : vector<64x1xf32> to vector<64x128xf32>
    %3 = arith.subf %0, %2 : vector<64x128xf32>
    %c0_3 = arith.constant 0 : index
    %c0_4 = arith.constant 0 : index
    %4 = vector.load %arg4[%c0_3, %c0_4] : memref<64x128xf32, #tpu.memory_space<vmem>>, vector<64x128xf32>
    tpu.vector_store %arg4[%c0_3, %c0_4], %3 {strides = array<i32>} : memref<64x128xf32, #tpu.memory_space<vmem>>, vector<64x128xf32>,
    return
  }
  func.func @transform_0(%arg0: i32, %arg1: i32) -> (i32, i32) {
    %c0_i32 = arith.constant 0 : i32
    return %arg0, %arg1 : i32, i32
  }
  func.func @transform_1(%arg0: i32, %arg1: i32) -> (i32, i32) {
    %c0_i32 = arith.constant 0 : i32
    %c0_i32_0 = arith.constant 0 : i32
    return %arg0, %c0_i32 : i32, i32
  }
  func.func @transform_2(%arg0: i32, %arg1: i32) -> (i32, i32) {
    %c0_i32 = arith.constant 0 : i32
    return %arg0, %arg1 : i32, i32
  }
}

module attributes {stable_mosaic.version = 11 : i64} {
  func.func @fc_logits_lse_kernel(%arg0: i32, %arg1: i32, %arg2: memref<64x32xbf16, #tpu.memory_space<vmem>>, %arg3: memref<32x128xbf16, #tpu.memory_space<vmem>>, %arg4: memref<1x128xf32, #tpu.memory_space<vmem>>, %arg5: memref<64x128xf32, #tpu.memory_space<vmem>>, %arg6: memref<64x1xf32, #tpu.memory_space<vmem>>, %arg7: memref<64x1xf32, #tpu.memory_space<vmem>>, %arg8: memref<64x1xf32, #tpu.memory_space<vmem>>) attributes {dimension_semantics = [#tpu.dimension_semantics<parallel>, #tpu.dimension_semantics<arbitrary>], iteration_bounds = array<i64: 1, 1>, scalar_prefetch = 0 : i64, scratch_operands = 2 : i64, tpu.core_type = #tpu.core_type<tc>, window_params = [{transform_indices = @transform_0, window_bounds = array<i64: 64, 32>}, {transform_indices = @transform_1, window_bounds = array<i64: 32, 128>}, {transform_indices = @transform_2, window_bounds = array<i64: 1, 128>}, {transform_indices = @transform_3, window_bounds = array<i64: 64, 128>}, {transform_indices = @transform_4, window_bounds = array<i64: 64, 1>}]} {
    %c0_i32 = arith.constant 0 : i32
    %0 = arith.cmpi eq, %arg1, %c0_i32 : i32
    %1 = arith.extui %0 : i1 to i32
    %c0_i32_0 = arith.constant 0 : i32
    %2 = arith.cmpi ne, %1, %c0_i32_0 : i32
    scf.if %2 {
      %cst_22 = arith.constant 0xFF800000 : f32
      %30 = vector.broadcast %cst_22 : f32 to vector<64x1xf32>
      %c0_23 = arith.constant 0 : index
      %c0_24 = arith.constant 0 : index
      %31 = vector.load %arg7[%c0_23, %c0_24] : memref<64x1xf32, #tpu.memory_space<vmem>>, vector<64x1xf32>
      tpu.vector_store %arg7[%c0_23, %c0_24], %30 {strides = array<i32>} : memref<64x1xf32, #tpu.memory_space<vmem>>, vector<64x1xf32>,
      %cst_25 = arith.constant 0.000000e+00 : f32
      %32 = vector.broadcast %cst_25 : f32 to vector<64x1xf32>
      %c0_26 = arith.constant 0 : index
      %c0_27 = arith.constant 0 : index
      %33 = vector.load %arg8[%c0_26, %c0_27] : memref<64x1xf32, #tpu.memory_space<vmem>>, vector<64x1xf32>
      tpu.vector_store %arg8[%c0_26, %c0_27], %32 {strides = array<i32>} : memref<64x1xf32, #tpu.memory_space<vmem>>, vector<64x1xf32>,
    } else {
    }
    %c0 = arith.constant 0 : index
    %c0_1 = arith.constant 0 : index
    %3 = vector.load %arg2[%c0, %c0_1] : memref<64x32xbf16, #tpu.memory_space<vmem>>, vector<64x32xbf16>
    %c0_2 = arith.constant 0 : index
    %c0_3 = arith.constant 0 : index
    %4 = vector.load %arg3[%c0_2, %c0_3] : memref<32x128xbf16, #tpu.memory_space<vmem>>, vector<32x128xbf16>
    %cst = arith.constant dense<0.000000e+00> : vector<64x128xf32>
    %5 = tpu.matmul %3, %4, %cst {dimension_numbers = #tpu.dot_dimension_numbers<[1], [0], [0], [1], [0, 0, 1, 1], [], []>} : vector<64x32xbf16>, vector<32x128xbf16>, vector<64x128xf32> -> vector<64x128xf32>
    %c0_4 = arith.constant 0 : index
    %c0_5 = arith.constant 0 : index
    %6 = vector.load %arg4[%c0_4, %c0_5] : memref<1x128xf32, #tpu.memory_space<vmem>>, vector<1x128xf32>
    %7 = vector.broadcast %6 : vector<1x128xf32> to vector<64x128xf32>
    %8 = arith.addf %5, %7 : vector<64x128xf32>
    %c0_6 = arith.constant 0 : index
    %c0_7 = arith.constant 0 : index
    %9 = vector.load %arg5[%c0_6, %c0_7] : memref<64x128xf32, #tpu.memory_space<vmem>>, vector<64x128xf32>
    tpu.vector_store %arg5[%c0_6, %c0_7], %8 {strides = array<i32>} : memref<64x128xf32, #tpu.memory_space<vmem>>, vector<64x128xf32>,
    %cst_8 = arith.constant dense<0xFF800000> : vector<64xf32>
    %10 = vector.multi_reduction <maximumf>, %8, %cst_8 [1] : vector<64x128xf32> to vector<64xf32>
    %11 = vector.shape_cast %10 : vector<64xf32> to vector<64x1xf32>
    %c0_9 = arith.constant 0 : index
    %c0_10 = arith.constant 0 : index
    %12 = vector.load %arg7[%c0_9, %c0_10] : memref<64x1xf32, #tpu.memory_space<vmem>>, vector<64x1xf32>
    %13 = arith.maximumf %12, %11 : vector<64x1xf32>
    %c0_11 = arith.constant 0 : index
    %c0_12 = arith.constant 0 : index
    %14 = vector.load %arg8[%c0_11, %c0_12] : memref<64x1xf32, #tpu.memory_space<vmem>>, vector<64x1xf32>
    %c0_13 = arith.constant 0 : index
    %c0_14 = arith.constant 0 : index
    %15 = vector.load %arg7[%c0_13, %c0_14] : memref<64x1xf32, #tpu.memory_space<vmem>>, vector<64x1xf32>
    %16 = arith.subf %15, %13 : vector<64x1xf32>
    %17 = math.exp %16 : vector<64x1xf32>
    %18 = arith.mulf %14, %17 : vector<64x1xf32>
    %19 = vector.broadcast %13 : vector<64x1xf32> to vector<64x128xf32>
    %20 = arith.subf %8, %19 : vector<64x128xf32>
    %21 = math.exp %20 : vector<64x128xf32>
    %cst_15 = arith.constant dense<0.000000e+00> : vector<64xf32>
    %22 = vector.multi_reduction <add>, %21, %cst_15 [1] : vector<64x128xf32> to vector<64xf32>
    %23 = vector.shape_cast %22 : vector<64xf32> to vector<64x1xf32>
    %24 = arith.addf %18, %23 : vector<64x1xf32>
    %c0_16 = arith.constant 0 : index
    %c0_17 = arith.constant 0 : index
    %25 = vector.load %arg8[%c0_16, %c0_17] : memref<64x1xf32, #tpu.memory_space<vmem>>, vector<64x1xf32>
    tpu.vector_store %arg8[%c0_16, %c0_17], %24 {strides = array<i32>} : memref<64x1xf32, #tpu.memory_space<vmem>>, vector<64x1xf32>,
    %c0_18 = arith.constant 0 : index
    %c0_19 = arith.constant 0 : index
    %26 = vector.load %arg7[%c0_18, %c0_19] : memref<64x1xf32, #tpu.memory_space<vmem>>, vector<64x1xf32>
    tpu.vector_store %arg7[%c0_18, %c0_19], %13 {strides = array<i32>} : memref<64x1xf32, #tpu.memory_space<vmem>>, vector<64x1xf32>,
    %c0_i32_20 = arith.constant 0 : i32
    %27 = arith.cmpi eq, %arg1, %c0_i32_20 : i32
    %28 = arith.extui %27 : i1 to i32
    %c0_i32_21 = arith.constant 0 : i32
    %29 = arith.cmpi ne, %28, %c0_i32_21 : i32
    scf.if %29 {
      %c0_22 = arith.constant 0 : index
      %c0_23 = arith.constant 0 : index
      %30 = vector.load %arg7[%c0_22, %c0_23] : memref<64x1xf32, #tpu.memory_space<vmem>>, vector<64x1xf32>
      %c0_24 = arith.constant 0 : index
      %c0_25 = arith.constant 0 : index
      %31 = vector.load %arg8[%c0_24, %c0_25] : memref<64x1xf32, #tpu.memory_space<vmem>>, vector<64x1xf32>
      %32 = math.log %31 : vector<64x1xf32>
      %33 = arith.addf %30, %32 : vector<64x1xf32>
      %c0_26 = arith.constant 0 : index
      %c0_27 = arith.constant 0 : index
      %34 = vector.load %arg6[%c0_26, %c0_27] : memref<64x1xf32, #tpu.memory_space<vmem>>, vector<64x1xf32>
      tpu.vector_store %arg6[%c0_26, %c0_27], %33 {strides = array<i32>} : memref<64x1xf32, #tpu.memory_space<vmem>>, vector<64x1xf32>,
    } else {
    }
    return
  }
  func.func @transform_0(%arg0: i32, %arg1: i32) -> (i32, i32) {
    %c0_i32 = arith.constant 0 : i32
    %c0_i32_0 = arith.constant 0 : i32
    return %arg0, %c0_i32 : i32, i32
  }
  func.func @transform_1(%arg0: i32, %arg1: i32) -> (i32, i32) {
    %c0_i32 = arith.constant 0 : i32
    %c0_i32_0 = arith.constant 0 : i32
    return %c0_i32, %arg1 : i32, i32
  }
  func.func @transform_2(%arg0: i32, %arg1: i32) -> (i32, i32) {
    %c0_i32 = arith.constant 0 : i32
    %c0_i32_0 = arith.constant 0 : i32
    return %c0_i32, %arg1 : i32, i32
  }
  func.func @transform_3(%arg0: i32, %arg1: i32) -> (i32, i32) {
    %c0_i32 = arith.constant 0 : i32
    return %arg0, %arg1 : i32, i32
  }
  func.func @transform_4(%arg0: i32, %arg1: i32) -> (i32, i32) {
    %c0_i32 = arith.constant 0 : i32
    %c0_i32_0 = arith.constant 0 : i32
    return %arg0, %c0_i32 : i32, i32
  }
}

</mosaic_0001>

<llo_original>
// kernel: lstm_model_forward.7
$region0: #{lstm_model_forward.7}
  #allocation0 [shape = 'u32[]', space=smem, size = 0x4, offset = 0x4, fixed_abs, tag = 'smem constant byte address 0x4 - core index']
  #allocation1 [shape = 'u32[144,128]{1,0:T(1,128)}', space=vmem, size = 0x12000, scoped, tag = 'internal scratch']
  %s0 = inlined_call_operand.vmem [shape: f32[64,128], index: 0, kind: input, shape index: {}]
  %s1 = inlined_call_operand.vmem [shape: f32[64,1], index: 1, kind: input, shape index: {}]
  %s2 = inlined_call_operand.vmem [shape: f32[64,128], index: 2, kind: output, shape index: {}]
  %s3 = sld [smem:[#allocation0]]
  $region18: #{lstm_model_forward.7} parent=0
    _
  %s5 = ssub.s32 1, %s3
  %s6 = scalar_select 0, %s5, %s3
  // Predicated region
  $region2: #{lstm_model_forward.7} parent=0 // pred_check
    _
  $region3: #{lstm_model_forward.7} parent=0 // pred_check_branch
    %8 = sbr.rel (0) target = $region5
  $region4: #{lstm_model_forward.7} parent=0 // pred_region
    _
  $region5: #{lstm_model_forward.7} parent=0 // pred_fallthru
    _
  // Predicated region
  $region6: #{lstm_model_forward.7} parent=0 // pred_check
    _
  $region7: #{lstm_model_forward.7} parent=0 // pred_check_branch
    %10 = sbr.rel (0) target = $region9
  $region8: #{lstm_model_forward.7} parent=0 // pred_region
    _
  $region9: #{lstm_model_forward.7} parent=0 // pred_fallthru
    _
  %v11 = vld [vmem:[%s0] sm:$0xff]
  %v12 = vld [vmem:[%s0 + $0x8] sm:$0xff]
  %v13 = vld [vmem:[%s0 + $0x10] sm:$0xff]
  %v14 = vld [vmem:[%s0 + $0x18] sm:$0xff]
  %v15 = vld [vmem:[%s0 + $0x20] sm:$0xff]
  %v16 = vld [vmem:[%s0 + $0x28] sm:$0xff]
  %v17 = vld [vmem:[%s0 + $0x30] sm:$0xff]
  %v18 = vld [vmem:[%s0 + $0x38] sm:$0xff]
  %v19 = vld [vmem:[%s1] sm:$0xff]
  %v20 = vld [vmem:[%s1 + $0x8] sm:$0xff]
  %v21 = vld [vmem:[%s1 + $0x10] sm:$0xff]
  %v22 = vld [vmem:[%s1 + $0x18] sm:$0xff]
  %v23 = vld [vmem:[%s1 + $0x20] sm:$0xff]
  %v24 = vld [vmem:[%s1 + $0x28] sm:$0xff]
  %v25 = vld [vmem:[%s1 + $0x30] sm:$0xff]
  %v26 = vld [vmem:[%s1 + $0x38] sm:$0xff]
  %28 = vset.pattern.permute.xlu0 0
  %29 = vperm.xlu0 %28, %v19
  %v30 = vpop.permute.xlu0 %29
  %33 = vset.pattern.permute.xlu0 0
  %34 = vperm.xlu0 %33, %v20
  %v35 = vpop.permute.xlu0 %34
  %38 = vset.pattern.permute.xlu0 0
  %39 = vperm.xlu0 %38, %v21
  %v40 = vpop.permute.xlu0 %39
  %43 = vset.pattern.permute.xlu0 0
  %44 = vperm.xlu0 %43, %v22
  %v45 = vpop.permute.xlu0 %44
  %48 = vset.pattern.permute.xlu0 0
  %49 = vperm.xlu0 %48, %v23
  %v50 = vpop.permute.xlu0 %49
  %53 = vset.pattern.permute.xlu0 0
  %54 = vperm.xlu0 %53, %v24
  %v55 = vpop.permute.xlu0 %54
  %58 = vset.pattern.permute.xlu0 0
  %59 = vperm.xlu0 %58, %v25
  %v60 = vpop.permute.xlu0 %59
  %63 = vset.pattern.permute.xlu0 0
  %64 = vperm.xlu0 %63, %v26
  %v65 = vpop.permute.xlu0 %64
  %v67 = vsub.f32 %v11, %v30
  %v68 = vsub.f32 %v12, %v35
  %v69 = vsub.f32 %v13, %v40
  %v70 = vsub.f32 %v14, %v45
  %v71 = vsub.f32 %v15, %v50
  %v72 = vsub.f32 %v16, %v55
  %v73 = vsub.f32 %v17, %v60
  %v74 = vsub.f32 %v18, %v65
  %75 = vst [vmem:[%s2] sm:$0xff] %v67
  %76 = vst [vmem:[%s2 + $0x8] sm:$0xff] %v68
  %77 = vst [vmem:[%s2 + $0x10] sm:$0xff] %v69
  %78 = vst [vmem:[%s2 + $0x18] sm:$0xff] %v70
  %79 = vst [vmem:[%s2 + $0x20] sm:$0xff] %v71
  %80 = vst [vmem:[%s2 + $0x28] sm:$0xff] %v72
  %81 = vst [vmem:[%s2 + $0x30] sm:$0xff] %v73
  %82 = vst [vmem:[%s2 + $0x38] sm:$0xff] %v74
  // Predicated region
  $region10: #{lstm_model_forward.7} parent=0 // pred_check
    _
  $region11: #{lstm_model_forward.7} parent=0 // pred_check_branch
    %84 = sbr.rel (0) target = $region13
  $region12: #{lstm_model_forward.7} parent=0 // pred_region
    _
  $region13: #{lstm_model_forward.7} parent=0 // pred_fallthru
    _
  // Predicated region
  $region14: #{lstm_model_forward.7} parent=0 // pred_check
    _
  $region15: #{lstm_model_forward.7} parent=0 // pred_check_branch
    %86 = sbr.rel (0) target = $region17
  $region16: #{lstm_model_forward.7} parent=0 // pred_region
    _
  $region17: #{lstm_model_forward.7} parent=0 // pred_fallthru
    _

// kernel: lstm_model_forward.4
$region0: #{lstm_model_forward.4}
  #allocation0 [shape = 'u32[]', space=smem, size = 0x4, offset = 0x4, fixed_abs, tag = 'smem constant byte address 0x4 - core index']
  #allocation1 [shape = 'u32[144,128]{1,0:T(1,128)}', space=vmem, size = 0x12000, scoped, tag = 'internal scratch']
  #allocation2 [shape = 'f32[8,8,128]{2,1,0:T(8,128)}', space=vmem, size = 0x8000, scoped, tag = 'scratch operand']
  %s0 = inlined_call_operand.vmem [shape: f32[8,8,32], index: 0, kind: input, shape index: {}]
  %s1 = inlined_call_operand.vmem [shape: bf16[32,128], index: 1, kind: input, shape index: {}]
  %s2 = inlined_call_operand.vmem [shape: bf16[32,128], index: 2, kind: input, shape index: {}]
  %s3 = inlined_call_operand.vmem [shape: f32[1,128], index: 3, kind: input, shape index: {}]
  %s4 = inlined_call_operand.vmem [shape: f32[8,8,32], index: 4, kind: output, shape index: {0}]
  %s5 = inlined_call_operand.vmem [shape: f32[8,32], index: 5, kind: output, shape index: {1}]
  %s6 = inlined_call_operand.vmem [shape: f32[8,32], index: 6, kind: output, shape index: {2}]
  %7 = xla_tuple %s4, %s5, %s6
  %s8 = sld [smem:[#allocation0]]
  $region46: #{lstm_model_forward.4} parent=0
    _
  %s10 = ssub.s32 1, %s8
  %s11 = scalar_select 0, %s10, %s8
  // Predicated region
  $region2: #{lstm_model_forward.4} parent=0 // pred_check
    _
  $region3: #{lstm_model_forward.4} parent=0 // pred_check_branch
    %13 = sbr.rel (0) target = $region5
  $region4: #{lstm_model_forward.4} parent=0 // pred_region
    _
  $region5: #{lstm_model_forward.4} parent=0 // pred_fallthru
    _
  // Predicated region
  $region6: #{lstm_model_forward.4} parent=0 // pred_check
    _
  $region7: #{lstm_model_forward.4} parent=0 // pred_check_branch
    %15 = sbr.rel (0) target = $region9
  $region8: #{lstm_model_forward.4} parent=0 // pred_region
    _
  $region9: #{lstm_model_forward.4} parent=0 // pred_fallthru
    _
  // Predicated region
  $region10: #{lstm_model_forward.4} parent=0 // pred_check
    _
  $region11: #{lstm_model_forward.4} parent=0 // pred_check_branch
    %17 = sbr.rel (0) target = $region13
  $region12: #{lstm_model_forward.4} parent=0 // pred_region
    _
  $region13: #{lstm_model_forward.4} parent=0 // pred_fallthru
    _
  // Predicated region
  $region14: #{lstm_model_forward.4} parent=0 // pred_check
    _
  $region15: #{lstm_model_forward.4} parent=0 // pred_check_branch
    %19 = sbr.rel (0) target = $region17
  $region16: #{lstm_model_forward.4} parent=0 // pred_region
    _
  $region17: #{lstm_model_forward.4} parent=0 // pred_fallthru
    _
  %v21 = vld [vmem:[%s0] sm:$0xff]
  %v22 = vld [vmem:[%s0 + $0x8] sm:$0xff]
  %v23 = vld [vmem:[%s0 + $0x10] sm:$0xff]
  %v24 = vld [vmem:[%s0 + $0x18] sm:$0xff]
  %v25 = vld [vmem:[%s0 + $0x20] sm:$0xff]
  %v26 = vld [vmem:[%s0 + $0x28] sm:$0xff]
  %v27 = vld [vmem:[%s0 + $0x30] sm:$0xff]
  %v28 = vld [vmem:[%s0 + $0x38] sm:$0xff]
  %v29 = vpack.c.bf16 %v22, %v21
  %v30 = vpack.c.bf16 %v24, %v23
  %v31 = vpack.c.bf16 %v26, %v25
  %v32 = vpack.c.bf16 %v28, %v27
  %v33 = vld [vmem:[%s1] sm:$0xf]
  %v34 = vld [vmem:[%s1 + $0x4] sm:$0xf]
  %v35 = vld [vmem:[%s1 + $0x8] sm:$0xf]
  %v36 = vld [vmem:[%s1 + $0xc] sm:$0xf]
  %v37 = vld [vmem:[%s3] sm:$0x1]
  %v39 = vlaneseq
  %v40 = vshrl.u32 %v39, 7
  %v41 = vsub.s32 0, %v40
  %v42 = vrot.slane %v37, %v41
  %v48 = vunpack.c.l.b16 %v33
  %v49 = vunpack.c.l.b16 %v34
  %v50 = vunpack.c.l.b16 %v35
  %v51 = vunpack.c.l.b16 %v36
  %v52 = vpack.c.b16 %v49, %v48
  %v53 = vpack.c.b16 %v51, %v50
  %vm56 = vcmask 261120
  %v58 = vsel %vm56, %v29, 0
  %v61 = vsel %vm56, %v30, 0
  %v64 = vsel %vm56, %v31, 0
  %v67 = vsel %vm56, %v32, 0
  %69 = vmatprep.subr.bf16.mxu0 0
  %70 = vmatpush1.bf16.msra.mxu0 %v52
  %71 = vmatprep.subr.bf16.mxu0 0
  %72 = vmatpush1.bf16.msra.mxu0 %v53
  %73 = vmatprep.subr.bf16.mxu0 0
  %74 = vmatpush1.bf16.msra.mxu0 0
  %75 = vmatprep.subr.bf16.mxu0 0
  %76 = vmatpush1.bf16.msra.mxu0 0
  %77 = vmatprep.subr.bf16.mxu0 0
  %78 = vmatpush1.bf16.msra.mxu0 0
  %79 = vmatprep.subr.bf16.mxu0 0
  %80 = vmatpush1.bf16.msra.mxu0 0
  %81 = vmatprep.subr.bf16.mxu0 0
  %82 = vmatpush1.bf16.msra.mxu0 0
  %83 = vmatprep.subr.bf16.mxu0 0
  %84 = vmatpush1.bf16.msra.mxu0 0
  %85 = vmatprep.subr.bf16.mxu0 0
  %86 = vmatpush1.bf16.msra.mxu0 0
  %87 = vmatprep.subr.bf16.mxu0 0
  %88 = vmatpush1.bf16.msra.mxu0 0
  %89 = vmatprep.subr.bf16.mxu0 0
  %90 = vmatpush1.bf16.msra.mxu0 0
  %91 = vmatprep.subr.bf16.mxu0 0
  %92 = vmatpush1.bf16.msra.mxu0 0
  %93 = vmatprep.subr.bf16.mxu0 0
  %94 = vmatpush1.bf16.msra.mxu0 0
  %95 = vmatprep.subr.bf16.mxu0 0
  %96 = vmatpush1.bf16.msra.mxu0 0
  %97 = vmatprep.subr.bf16.mxu0 0
  %98 = vmatpush1.bf16.msra.mxu0 0
  %99 = vmatprep.subr.bf16.mxu0 0
  %100 = vmatpush1.bf16.msra.mxu0 0
  %101 = vmatprep.mubr.bf16.mxu0 0
  %102 = vmatmul.mubr.bf16.gmra.mrb[0].mxu0 %v58
  %v103 = vpop.f32.mrb[0].mxu0
  %v104 = vadd.f32 %v42, %v103
  %v105 = vpop.f32.mrb[0].mxu0
  %v106 = vpop.f32.mrb[0].mxu0
  %v107 = vadd.f32 %v42, %v106
  %v108 = vpop.f32.mrb[0].mxu0
  %109 = vmatprep.mubr.bf16.mxu0 0
  %110 = vmatmul.mubr.bf16.gmra.mrb[0].mxu0 %v61
  %v111 = vpop.f32.mrb[0].mxu0
  %v112 = vadd.f32 %v42, %v111
  %v113 = vpop.f32.mrb[0].mxu0
  %v114 = vpop.f32.mrb[0].mxu0
  %v115 = vadd.f32 %v42, %v114
  %v116 = vpop.f32.mrb[0].mxu0
  %117 = vmatprep.mubr.bf16.mxu0 0
  %118 = vmatmul.mubr.bf16.gmra.mrb[0].mxu0 %v64
  %v119 = vpop.f32.mrb[0].mxu0
  %v120 = vadd.f32 %v42, %v119
  %v121 = vpop.f32.mrb[0].mxu0
  %v122 = vpop.f32.mrb[0].mxu0
  %v123 = vadd.f32 %v42, %v122
  %v124 = vpop.f32.mrb[0].mxu0
  %125 = vmatprep.mubr.bf16.mxu0 0
  %126 = vmatmul.mubr.bf16.gmra.mrb[0].mxu0 %v67
  %v127 = vpop.f32.mrb[0].mxu0
  %v128 = vadd.f32 %v42, %v127
  %v129 = vpop.f32.mrb[0].mxu0
  %v130 = vpop.f32.mrb[0].mxu0
  %v131 = vadd.f32 %v42, %v130
  %v132 = vpop.f32.mrb[0].mxu0
  %133 = vdwg.mxu0
  %134 = vst [vmem:[#allocation2] sm:$0xff] %v104
  %135 = vst [vmem:[#allocation2 + $0x8] sm:$0xff] %v107
  %136 = vst [vmem:[#allocation2 + $0x10] sm:$0xff] %v112
  %137 = vst [vmem:[#allocation2 + $0x18] sm:$0xff] %v115
  %138 = vst [vmem:[#allocation2 + $0x20] sm:$0xff] %v120
  %139 = vst [vmem:[#allocation2 + $0x28] sm:$0xff] %v123
  %140 = vst [vmem:[#allocation2 + $0x30] sm:$0xff] %v128
  %141 = vst [vmem:[#allocation2 + $0x38] sm:$0xff] %v131
  %v142 = vld [vmem:[%s2] sm:$0xf]
  %v143 = vld [vmem:[%s2 + $0x4] sm:$0xf]
  %v144 = vld [vmem:[%s2 + $0x8] sm:$0xf]
  %v145 = vld [vmem:[%s2 + $0xc] sm:$0xf]
  %p146 = scmp.eq.s32.totalorder 0, 0
  // Predicated region
  $region18: #{lstm_model_forward.4} parent=0 // pred_check
    %p147 = pneg %p146
  $region19: #{lstm_model_forward.4} parent=0 // pred_check_branch
    %149 = sbr.rel (%p147) target = $region21
  $region20: #{lstm_model_forward.4} parent=0 // pred_region
    %150 = vst.msk [vmem:[%s5] sm:$0xff] %vm56, 0.0
    %151 = vst.msk [vmem:[%s6] sm:$0xff] %vm56, 0.0
  $region21: #{lstm_model_forward.4} parent=0 // pred_fallthru
    _
  %v152 = vld [vmem:[%s5] sm:$0xff]
  %v153 = vld [vmem:[%s6] sm:$0xff]
  %v154 = vld [vmem:[#allocation2] sm:$0xff]
  %v155 = vpack.c.bf16 %v152, %v152
  %v160 = vunpack.c.l.b16 %v142
  %v161 = vunpack.c.l.b16 %v143
  %v162 = vunpack.c.l.b16 %v144
  %v163 = vunpack.c.l.b16 %v145
  %v164 = vpack.c.b16 %v161, %v160
  %v165 = vpack.c.b16 %v163, %v162
  %v169 = vsel %vm56, %v155, 0
  %171 = vmatprep.subr.bf16.mxu0 0
  %172 = vmatpush1.bf16.msra.mxu0 %v164
  %173 = vmatprep.subr.bf16.mxu0 0
  %174 = vmatpush1.bf16.msra.mxu0 %v165
  %175 = vmatprep.subr.bf16.mxu0 0
  %176 = vmatpush1.bf16.msra.mxu0 0
  %177 = vmatprep.subr.bf16.mxu0 0
  %178 = vmatpush1.bf16.msra.mxu0 0
  %179 = vmatprep.subr.bf16.mxu0 0
  %180 = vmatpush1.bf16.msra.mxu0 0
  %181 = vmatprep.subr.bf16.mxu0 0
  %182 = vmatpush1.bf16.msra.mxu0 0
  %183 = vmatprep.subr.bf16.mxu0 0
  %184 = vmatpush1.bf16.msra.mxu0 0
  %185 = vmatprep.subr.bf16.mxu0 0
  %186 = vmatpush1.bf16.msra.mxu0 0
  %187 = vmatprep.subr.bf16.mxu0 0
  %188 = vmatpush1.bf16.msra.mxu0 0
  %189 = vmatprep.subr.bf16.mxu0 0
  %190 = vmatpush1.bf16.msra.mxu0 0
  %191 = vmatprep.subr.bf16.mxu0 0
  %192 = vmatpush1.bf16.msra.mxu0 0
  %193 = vmatprep.subr.bf16.mxu0 0
  %194 = vmatpush1.bf16.msra.mxu0 0
  %195 = vmatprep.subr.bf16.mxu0 0
  %196 = vmatpush1.bf16.msra.mxu0 0
  %197 = vmatprep.subr.bf16.mxu0 0
  %198 = vmatpush1.bf16.msra.mxu0 0
  %199 = vmatprep.subr.bf16.mxu0 0
  %200 = vmatpush1.bf16.msra.mxu0 0
  %201 = vmatprep.subr.bf16.mxu0 0
  %202 = vmatpush1.bf16.msra.mxu0 0
  %203 = vmatprep.mubr.bf16.mxu0 0
  %204 = vmatmul.mubr.bf16.gmra.mrb[0].mxu0 %v169
  %v205 = vpop.f32.mrb[0].mxu0
  %v206 = vadd.f32 0.0, %v205
  %v207 = vpop.f32.mrb[0].mxu0
  %v208 = vpop.f32.mrb[0].mxu0
  %v209 = vpop.f32.mrb[0].mxu0
  %210 = vdwg.mxu0
  %v211 = vadd.f32 %v154, %v206
  %v212 = vxor.u32 %v211, 2147483648
  %v213 = vmul.f32 %v212, 1.442695
  %v214 = vpow.pop %v213
  %v215 = vadd.f32 %v214, 1.0
  %v216 = vrcp.pop %v215
  %v217 = vmul.f32 1.0, %v216
  %v218 = vtanh.pop %v211
  %220 = vrot.lane.b32.xlu0 %v153, 32
  %v221 = vpop.permute.xlu0 %220
  %v223 = vmul.f32 %v217, %v221
  %225 = vrot.lane.b32.xlu0 %v218, 64
  %v226 = vpop.permute.xlu0 %225
  %v228 = vmul.f32 %v217, %v226
  %230 = vrot.lane.b32.xlu0 %v228, 32
  %v231 = vpop.permute.xlu0 %230
  %v233 = vadd.f32 %v223, %v231
  %v234 = vtanh.pop %v233
  %236 = vrot.lane.b32.xlu0 %v234, 64
  %v237 = vpop.permute.xlu0 %236
  %v239 = vmul.f32 %v217, %v237
  %241 = vrot.lane.b32.xlu0 %v239, 32
  %v242 = vpop.permute.xlu0 %241
  %244 = vst.msk [vmem:[%s4] sm:$0xff] %vm56, %v242
  %s245 = scalar_lea.vmem [#allocation2], 8
  %v246 = vld [vmem:[%s245] sm:$0xff]
  %v247 = vpack.c.bf16 %v239, %v239
  %249 = vrot.lane.b32.xlu0 %v247, 32
  %v250 = vpop.permute.xlu0 %249
  %v252 = vsel %vm56, %v250, 0
  %254 = vmatprep.subr.bf16.mxu0 0
  %255 = vmatpush1.bf16.msra.mxu0 %v164
  %256 = vmatprep.subr.bf16.mxu0 0
  %257 = vmatpush1.bf16.msra.mxu0 %v165
  %258 = vmatprep.subr.bf16.mxu0 0
  %259 = vmatpush1.bf16.msra.mxu0 0
  %260 = vmatprep.subr.bf16.mxu0 0
  %261 = vmatpush1.bf16.msra.mxu0 0
  %262 = vmatprep.subr.bf16.mxu0 0
  %263 = vmatpush1.bf16.msra.mxu0 0
  %264 = vmatprep.subr.bf16.mxu0 0
  %265 = vmatpush1.bf16.msra.mxu0 0
  %266 = vmatprep.subr.bf16.mxu0 0
  %267 = vmatpush1.bf16.msra.mxu0 0
  %268 = vmatprep.subr.bf16.mxu0 0
  %269 = vmatpush1.bf16.msra.mxu0 0
  %270 = vmatprep.subr.bf16.mxu0 0
  %271 = vmatpush1.bf16.msra.mxu0 0
  %272 = vmatprep.subr.bf16.mxu0 0
  %273 = vmatpush1.bf16.msra.mxu0 0
  %274 = vmatprep.subr.bf16.mxu0 0
  %275 = vmatpush1.bf16.msra.mxu0 0
  %276 = vmatprep.subr.bf16.mxu0 0
  %277 = vmatpush1.bf16.msra.mxu0 0
  %278 = vmatprep.subr.bf16.mxu0 0
  %279 = vmatpush1.bf16.msra.mxu0 0
  %280 = vmatprep.subr.bf16.mxu0 0
  %281 = vmatpush1.bf16.msra.mxu0 0
  %282 = vmatprep.subr.bf16.mxu0 0
  %283 = vmatpush1.bf16.msra.mxu0 0
  %284 = vmatprep.subr.bf16.mxu0 0
  %285 = vmatpush1.bf16.msra.mxu0 0
  %286 = vmatprep.mubr.bf16.mxu0 0
  %287 = vmatmul.mubr.bf16.gmra.mrb[0].mxu0 %v252
  %v288 = vpop.f32.mrb[0].mxu0
  %v289 = vadd.f32 0.0, %v288
  %v290 = vpop.f32.mrb[0].mxu0
  %v291 = vpop.f32.mrb[0].mxu0
  %v292 = vpop.f32.mrb[0].mxu0
  %293 = vdwg.mxu0
  %v294 = vadd.f32 %v246, %v289
  %v295 = vxor.u32 %v294, 2147483648
  %v296 = vmul.f32 %v295, 1.442695
  %v297 = vpow.pop %v296
  %v298 = vadd.f32 %v297, 1.0
  %v299 = vrcp.pop %v298
  %v300 = vmul.f32 1.0, %v299
  %v301 = vtanh.pop %v294
  %v302 = vmul.f32 %v300, %v233
  %304 = vrot.lane.b32.xlu0 %v301, 64
  %v305 = vpop.permute.xlu0 %304
  %v307 = vmul.f32 %v300, %v305
  %309 = vrot.lane.b32.xlu0 %v307, 32
  %v310 = vpop.permute.xlu0 %309
  %v312 = vadd.f32 %v302, %v310
  %v313 = vtanh.pop %v312
  %315 = vrot.lane.b32.xlu0 %v313, 64
  %v316 = vpop.permute.xlu0 %315
  %v318 = vmul.f32 %v300, %v316
  %320 = vrot.lane.b32.xlu0 %v318, 32
  %v321 = vpop.permute.xlu0 %320
  %s323 = scalar_lea.vmem %s4, 8
  %324 = vst.msk [vmem:[%s323] sm:$0xff] %vm56, %v321
  %s325 = scalar_lea.vmem [#allocation2], 16
  %v326 = vld [vmem:[%s325] sm:$0xff]
  %v327 = vpack.c.bf16 %v318, %v318
  %329 = vrot.lane.b32.xlu0 %v327, 32
  %v330 = vpop.permute.xlu0 %329
  %v332 = vsel %vm56, %v330, 0
  %334 = vmatprep.subr.bf16.mxu0 0
  %335 = vmatpush1.bf16.msra.mxu0 %v164
  %336 = vmatprep.subr.bf16.mxu0 0
  %337 = vmatpush1.bf16.msra.mxu0 %v165
  %338 = vmatprep.subr.bf16.mxu0 0
  %339 = vmatpush1.bf16.msra.mxu0 0
  %340 = vmatprep.subr.bf16.mxu0 0
  %341 = vmatpush1.bf16.msra.mxu0 0
  %342 = vmatprep.subr.bf16.mxu0 0
  %343 = vmatpush1.bf16.msra.mxu0 0
  %344 = vmatprep.subr.bf16.mxu0 0
  %345 = vmatpush1.bf16.msra.mxu0 0
  %346 = vmatprep.subr.bf16.mxu0 0
  %347 = vmatpush1.bf16.msra.mxu0 0
  %348 = vmatprep.subr.bf16.mxu0 0
  %349 = vmatpush1.bf16.msra.mxu0 0
  %350 = vmatprep.subr.bf16.mxu0 0
  %351 = vmatpush1.bf16.msra.mxu0 0
  %352 = vmatprep.subr.bf16.mxu0 0
  %353 = vmatpush1.bf16.msra.mxu0 0
  %354 = vmatprep.subr.bf16.mxu0 0
  %355 = vmatpush1.bf16.msra.mxu0 0
  %356 = vmatprep.subr.bf16.mxu0 0
  %357 = vmatpush1.bf16.msra.mxu0 0
  %358 = vmatprep.subr.bf16.mxu0 0
  %359 = vmatpush1.bf16.msra.mxu0 0
  %360 = vmatprep.subr.bf16.mxu0 0
  %361 = vmatpush1.bf16.msra.mxu0 0
  %362 = vmatprep.subr.bf16.mxu0 0
  %363 = vmatpush1.bf16.msra.mxu0 0
  %364 = vmatprep.subr.bf16.mxu0 0
  %365 = vmatpush1.bf16.msra.mxu0 0
  %366 = vmatprep.mubr.bf16.mxu0 0
  %367 = vmatmul.mubr.bf16.gmra.mrb[0].mxu0 %v332
  %v368 = vpop.f32.mrb[0].mxu0
  %v369 = vadd.f32 0.0, %v368
  %v370 = vpop.f32.mrb[0].mxu0
  %v371 = vpop.f32.mrb[0].mxu0
  %v372 = vpop.f32.mrb[0].mxu0
  %373 = vdwg.mxu0
  %v374 = vadd.f32 %v326, %v369
  %v375 = vxor.u32 %v374, 2147483648
  %v376 = vmul.f32 %v375, 1.442695
  %v377 = vpow.pop %v376
  %v378 = vadd.f32 %v377, 1.0
  %v379 = vrcp.pop %v378
  %v380 = vmul.f32 1.0, %v379
  %v381 = vtanh.pop %v374
  %v382 = vmul.f32 %v380, %v312
  %384 = vrot.lane.b32.xlu0 %v381, 64
  %v385 = vpop.permute.xlu0 %384
  %v387 = vmul.f32 %v380, %v385
  %389 = vrot.lane.b32.xlu0 %v387, 32
  %v390 = vpop.permute.xlu0 %389
  %v392 = vadd.f32 %v382, %v390
  %v393 = vtanh.pop %v392
  %395 = vrot.lane.b32.xlu0 %v393, 64
  %v396 = vpop.permute.xlu0 %395
  %v398 = vmul.f32 %v380, %v396
  %400 = vrot.lane.b32.xlu0 %v398, 32
  %v401 = vpop.permute.xlu0 %400
  %s403 = scalar_lea.vmem %s4, 16
  %404 = vst.msk [vmem:[%s403] sm:$0xff] %vm56, %v401
  %s405 = scalar_lea.vmem [#allocation2], 24
  %v406 = vld [vmem:[%s405] sm:$0xff]
  %v407 = vpack.c.bf16 %v398, %v398
  %409 = vrot.lane.b32.xlu0 %v407, 32
  %v410 = vpop.permute.xlu0 %409
  %v412 = vsel %vm56, %v410, 0
  %414 = vmatprep.subr.bf16.mxu0 0
  %415 = vmatpush1.bf16.msra.mxu0 %v164
  %416 = vmatprep.subr.bf16.mxu0 0
  %417 = vmatpush1.bf16.msra.mxu0 %v165
  %418 = vmatprep.subr.bf16.mxu0 0
  %419 = vmatpush1.bf16.msra.mxu0 0
  %420 = vmatprep.subr.bf16.mxu0 0
  %421 = vmatpush1.bf16.msra.mxu0 0
  %422 = vmatprep.subr.bf16.mxu0 0
  %423 = vmatpush1.bf16.msra.mxu0 0
  %424 = vmatprep.subr.bf16.mxu0 0
  %425 = vmatpush1.bf16.msra.mxu0 0
  %426 = vmatprep.subr.bf16.mxu0 0
  %427 = vmatpush1.bf16.msra.mxu0 0
  %428 = vmatprep.subr.bf16.mxu0 0
  %429 = vmatpush1.bf16.msra.mxu0 0
  %430 = vmatprep.subr.bf16.mxu0 0
  %431 = vmatpush1.bf16.msra.mxu0 0
  %432 = vmatprep.subr.bf16.mxu0 0
  %433 = vmatpush1.bf16.msra.mxu0 0
  %434 = vmatprep.subr.bf16.mxu0 0
  %435 = vmatpush1.bf16.msra.mxu0 0
  %436 = vmatprep.subr.bf16.mxu0 0
  %437 = vmatpush1.bf16.msra.mxu0 0
  %438 = vmatprep.subr.bf16.mxu0 0
  %439 = vmatpush1.bf16.msra.mxu0 0
  %440 = vmatprep.subr.bf16.mxu0 0
  %441 = vmatpush1.bf16.msra.mxu0 0
  %442 = vmatprep.subr.bf16.mxu0 0
  %443 = vmatpush1.bf16.msra.mxu0 0
  %444 = vmatprep.subr.bf16.mxu0 0
  %445 = vmatpush1.bf16.msra.mxu0 0
  %446 = vmatprep.mubr.bf16.mxu0 0
  %447 = vmatmul.mubr.bf16.gmra.mrb[0].mxu0 %v412
  %v448 = vpop.f32.mrb[0].mxu0
  %v449 = vadd.f32 0.0, %v448
  %v450 = vpop.f32.mrb[0].mxu0
  %v451 = vpop.f32.mrb[0].mxu0
  %v452 = vpop.f32.mrb[0].mxu0
  %453 = vdwg.mxu0
  %v454 = vadd.f32 %v406, %v449
  %v455 = vxor.u32 %v454, 2147483648
  %v456 = vmul.f32 %v455, 1.442695
  %v457 = vpow.pop %v456
  %v458 = vadd.f32 %v457, 1.0
  %v459 = vrcp.pop %v458
  %v460 = vmul.f32 1.0, %v459
  %v461 = vtanh.pop %v454
  %v462 = vmul.f32 %v460, %v392
  %464 = vrot.lane.b32.xlu0 %v461, 64
  %v465 = vpop.permute.xlu0 %464
  %v467 = vmul.f32 %v460, %v465
  %469 = vrot.lane.b32.xlu0 %v467, 32
  %v470 = vpop.permute.xlu0 %469
  %v472 = vadd.f32 %v462, %v470
  %v473 = vtanh.pop %v472
  %475 = vrot.lane.b32.xlu0 %v473, 64
  %v476 = vpop.permute.xlu0 %475
  %v478 = vmul.f32 %v460, %v476
  %480 = vrot.lane.b32.xlu0 %v478, 32
  %v481 = vpop.permute.xlu0 %480
  %s483 = scalar_lea.vmem %s4, 24
  %484 = vst.msk [vmem:[%s483] sm:$0xff] %vm56, %v481
  %s485 = scalar_lea.vmem [#allocation2], 32
  %v486 = vld [vmem:[%s485] sm:$0xff]
  %v487 = vpack.c.bf16 %v478, %v478
  %489 = vrot.lane.b32.xlu0 %v487, 32
  %v490 = vpop.permute.xlu0 %489
  %v492 = vsel %vm56, %v490, 0
  %494 = vmatprep.subr.bf16.mxu0 0
  %495 = vmatpush1.bf16.msra.mxu0 %v164
  %496 = vmatprep.subr.bf16.mxu0 0
  %497 = vmatpush1.bf16.msra.mxu0 %v165
  %498 = vmatprep.subr.bf16.mxu0 0
  %499 = vmatpush1.bf16.msra.mxu0 0
  %500 = vmatprep.subr.bf16.mxu0 0
  %501 = vmatpush1.bf16.msra.mxu0 0
  %502 = vmatprep.subr.bf16.mxu0 0
  %503 = vmatpush1.bf16.msra.mxu0 0
  %504 = vmatprep.subr.bf16.mxu0 0
  %505 = vmatpush1.bf16.msra.mxu0 0
  %506 = vmatprep.subr.bf16.mxu0 0
  %507 = vmatpush1.bf16.msra.mxu0 0
  %508 = vmatprep.subr.bf16.mxu0 0
  %509 = vmatpush1.bf16.msra.mxu0 0
  %510 = vmatprep.subr.bf16.mxu0 0
  %511 = vmatpush1.bf16.msra.mxu0 0
  %512 = vmatprep.subr.bf16.mxu0 0
  %513 = vmatpush1.bf16.msra.mxu0 0
  %514 = vmatprep.subr.bf16.mxu0 0
  %515 = vmatpush1.bf16.msra.mxu0 0
  %516 = vmatprep.subr.bf16.mxu0 0
  %517 = vmatpush1.bf16.msra.mxu0 0
  %518 = vmatprep.subr.bf16.mxu0 0
  %519 = vmatpush1.bf16.msra.mxu0 0
  %520 = vmatprep.subr.bf16.mxu0 0
  %521 = vmatpush1.bf16.msra.mxu0 0
  %522 = vmatprep.subr.bf16.mxu0 0
  %523 = vmatpush1.bf16.msra.mxu0 0
  %524 = vmatprep.subr.bf16.mxu0 0
  %525 = vmatpush1.bf16.msra.mxu0 0
  %526 = vmatprep.mubr.bf16.mxu0 0
  %527 = vmatmul.mubr.bf16.gmra.mrb[0].mxu0 %v492
  %v528 = vpop.f32.mrb[0].mxu0
  %v529 = vadd.f32 0.0, %v528
  %v530 = vpop.f32.mrb[0].mxu0
  %v531 = vpop.f32.mrb[0].mxu0
  %v532 = vpop.f32.mrb[0].mxu0
  %533 = vdwg.mxu0
  %v534 = vadd.f32 %v486, %v529
  %v535 = vxor.u32 %v534, 2147483648
  %v536 = vmul.f32 %v535, 1.442695
  %v537 = vpow.pop %v536
  %v538 = vadd.f32 %v537, 1.0
  %v539 = vrcp.pop %v538
  %v540 = vmul.f32 1.0, %v539
  %v541 = vtanh.pop %v534
  %v542 = vmul.f32 %v540, %v472
  %544 = vrot.lane.b32.xlu0 %v541, 64
  %v545 = vpop.permute.xlu0 %544
  %v547 = vmul.f32 %v540, %v545
  %549 = vrot.lane.b32.xlu0 %v547, 32
  %v550 = vpop.permute.xlu0 %549
  %v552 = vadd.f32 %v542, %v550
  %v553 = vtanh.pop %v552
  %555 = vrot.lane.b32.xlu0 %v553, 64
  %v556 = vpop.permute.xlu0 %555
  %v558 = vmul.f32 %v540, %v556
  %560 = vrot.lane.b32.xlu0 %v558, 32
  %v561 = vpop.permute.xlu0 %560
  %s563 = scalar_lea.vmem %s4, 32
  %564 = vst.msk [vmem:[%s563] sm:$0xff] %vm56, %v561
  %s565 = scalar_lea.vmem [#allocation2], 40
  %v566 = vld [vmem:[%s565] sm:$0xff]
  %v567 = vpack.c.bf16 %v558, %v558
  %569 = vrot.lane.b32.xlu0 %v567, 32
  %v570 = vpop.permute.xlu0 %569
  %v572 = vsel %vm56, %v570, 0
  %574 = vmatprep.subr.bf16.mxu0 0
  %575 = vmatpush1.bf16.msra.mxu0 %v164
  %576 = vmatprep.subr.bf16.mxu0 0
  %577 = vmatpush1.bf16.msra.mxu0 %v165
  %578 = vmatprep.subr.bf16.mxu0 0
  %579 = vmatpush1.bf16.msra.mxu0 0
  %580 = vmatprep.subr.bf16.mxu0 0
  %581 = vmatpush1.bf16.msra.mxu0 0
  %582 = vmatprep.subr.bf16.mxu0 0
  %583 = vmatpush1.bf16.msra.mxu0 0
  %584 = vmatprep.subr.bf16.mxu0 0
  %585 = vmatpush1.bf16.msra.mxu0 0
  %586 = vmatprep.subr.bf16.mxu0 0
  %587 = vmatpush1.bf16.msra.mxu0 0
  %588 = vmatprep.subr.bf16.mxu0 0
  %589 = vmatpush1.bf16.msra.mxu0 0
  %590 = vmatprep.subr.bf16.mxu0 0
  %591 = vmatpush1.bf16.msra.mxu0 0
  %592 = vmatprep.subr.bf16.mxu0 0
  %593 = vmatpush1.bf16.msra.mxu0 0
  %594 = vmatprep.subr.bf16.mxu0 0
  %595 = vmatpush1.bf16.msra.mxu0 0
  %596 = vmatprep.subr.bf16.mxu0 0
  %597 = vmatpush1.bf16.msra.mxu0 0
  %598 = vmatprep.subr.bf16.mxu0 0
  %599 = vmatpush1.bf16.msra.mxu0 0
  %600 = vmatprep.subr.bf16.mxu0 0
  %601 = vmatpush1.bf16.msra.mxu0 0
  %602 = vmatprep.subr.bf16.mxu0 0
  %603 = vmatpush1.bf16.msra.mxu0 0
  %604 = vmatprep.subr.bf16.mxu0 0
  %605 = vmatpush1.bf16.msra.mxu0 0
  %606 = vmatprep.mubr.bf16.mxu0 0
  %607 = vmatmul.mubr.bf16.gmra.mrb[0].mxu0 %v572
  %v608 = vpop.f32.mrb[0].mxu0
  %v609 = vadd.f32 0.0, %v608
  %v610 = vpop.f32.mrb[0].mxu0
  %v611 = vpop.f32.mrb[0].mxu0
  %v612 = vpop.f32.mrb[0].mxu0
  %613 = vdwg.mxu0
  %v614 = vadd.f32 %v566, %v609
  %v615 = vxor.u32 %v614, 2147483648
  %v616 = vmul.f32 %v615, 1.442695
  %v617 = vpow.pop %v616
  %v618 = vadd.f32 %v617, 1.0
  %v619 = vrcp.pop %v618
  %v620 = vmul.f32 1.0, %v619
  %v621 = vtanh.pop %v614
  %v622 = vmul.f32 %v620, %v552
  %624 = vrot.lane.b32.xlu0 %v621, 64
  %v625 = vpop.permute.xlu0 %624
  %v627 = vmul.f32 %v620, %v625
  %629 = vrot.lane.b32.xlu0 %v627, 32
  %v630 = vpop.permute.xlu0 %629
  %v632 = vadd.f32 %v622, %v630
  %v633 = vtanh.pop %v632
  %635 = vrot.lane.b32.xlu0 %v633, 64
  %v636 = vpop.permute.xlu0 %635
  %v638 = vmul.f32 %v620, %v636
  %640 = vrot.lane.b32.xlu0 %v638, 32
  %v641 = vpop.permute.xlu0 %640
  %s643 = scalar_lea.vmem %s4, 40
  %644 = vst.msk [vmem:[%s643] sm:$0xff] %vm56, %v641
  %s645 = scalar_lea.vmem [#allocation2], 48
  %v646 = vld [vmem:[%s645] sm:$0xff]
  %v647 = vpack.c.bf16 %v638, %v638
  %649 = vrot.lane.b32.xlu0 %v647, 32
  %v650 = vpop.permute.xlu0 %649
  %v652 = vsel %vm56, %v650, 0
  %654 = vmatprep.subr.bf16.mxu0 0
  %655 = vmatpush1.bf16.msra.mxu0 %v164
  %656 = vmatprep.subr.bf16.mxu0 0
  %657 = vmatpush1.bf16.msra.mxu0 %v165
  %658 = vmatprep.subr.bf16.mxu0 0
  %659 = vmatpush1.bf16.msra.mxu0 0
  %660 = vmatprep.subr.bf16.mxu0 0
  %661 = vmatpush1.bf16.msra.mxu0 0
  %662 = vmatprep.subr.bf16.mxu0 0
  %663 = vmatpush1.bf16.msra.mxu0 0
  %664 = vmatprep.subr.bf16.mxu0 0
  %665 = vmatpush1.bf16.msra.mxu0 0
  %666 = vmatprep.subr.bf16.mxu0 0
  %667 = vmatpush1.bf16.msra.mxu0 0
  %668 = vmatprep.subr.bf16.mxu0 0
  %669 = vmatpush1.bf16.msra.mxu0 0
  %670 = vmatprep.subr.bf16.mxu0 0
  %671 = vmatpush1.bf16.msra.mxu0 0
  %672 = vmatprep.subr.bf16.mxu0 0
  %673 = vmatpush1.bf16.msra.mxu0 0
  %674 = vmatprep.subr.bf16.mxu0 0
  %675 = vmatpush1.bf16.msra.mxu0 0
  %676 = vmatprep.subr.bf16.mxu0 0
  %677 = vmatpush1.bf16.msra.mxu0 0
  %678 = vmatprep.subr.bf16.mxu0 0
  %679 = vmatpush1.bf16.msra.mxu0 0
  %680 = vmatprep.subr.bf16.mxu0 0
  %681 = vmatpush1.bf16.msra.mxu0 0
  %682 = vmatprep.subr.bf16.mxu0 0
  %683 = vmatpush1.bf16.msra.mxu0 0
  %684 = vmatprep.subr.bf16.mxu0 0
  %685 = vmatpush1.bf16.msra.mxu0 0
  %686 = vmatprep.mubr.bf16.mxu0 0
  %687 = vmatmul.mubr.bf16.gmra.mrb[0].mxu0 %v652
  %v688 = vpop.f32.mrb[0].mxu0
  %v689 = vadd.f32 0.0, %v688
  %v690 = vpop.f32.mrb[0].mxu0
  %v691 = vpop.f32.mrb[0].mxu0
  %v692 = vpop.f32.mrb[0].mxu0
  %693 = vdwg.mxu0
  %v694 = vadd.f32 %v646, %v689
  %v695 = vxor.u32 %v694, 2147483648
  %v696 = vmul.f32 %v695, 1.442695
  %v697 = vpow.pop %v696
  %v698 = vadd.f32 %v697, 1.0
  %v699 = vrcp.pop %v698
  %v700 = vmul.f32 1.0, %v699
  %v701 = vtanh.pop %v694
  %v702 = vmul.f32 %v700, %v632
  %704 = vrot.lane.b32.xlu0 %v701, 64
  %v705 = vpop.permute.xlu0 %704
  %v707 = vmul.f32 %v700, %v705
  %709 = vrot.lane.b32.xlu0 %v707, 32
  %v710 = vpop.permute.xlu0 %709
  %v712 = vadd.f32 %v702, %v710
  %v713 = vtanh.pop %v712
  %715 = vrot.lane.b32.xlu0 %v713, 64
  %v716 = vpop.permute.xlu0 %715
  %v718 = vmul.f32 %v700, %v716
  %720 = vrot.lane.b32.xlu0 %v718, 32
  %v721 = vpop.permute.xlu0 %720
  %s723 = scalar_lea.vmem %s4, 48
  %724 = vst.msk [vmem:[%s723] sm:$0xff] %vm56, %v721
  %s725 = scalar_lea.vmem [#allocation2], 56
  %v726 = vld [vmem:[%s725] sm:$0xff]
  %v727 = vpack.c.bf16 %v718, %v718
  %729 = vrot.lane.b32.xlu0 %v727, 32
  %v730 = vpop.permute.xlu0 %729
  %v732 = vsel %vm56, %v730, 0
  %734 = vmatprep.subr.bf16.mxu0 0
  %735 = vmatpush1.bf16.msra.mxu0 %v164
  %736 = vmatprep.subr.bf16.mxu0 0
  %737 = vmatpush1.bf16.msra.mxu0 %v165
  %738 = vmatprep.subr.bf16.mxu0 0
  %739 = vmatpush1.bf16.msra.mxu0 0
  %740 = vmatprep.subr.bf16.mxu0 0
  %741 = vmatpush1.bf16.msra.mxu0 0
  %742 = vmatprep.subr.bf16.mxu0 0
  %743 = vmatpush1.bf16.msra.mxu0 0
  %744 = vmatprep.subr.bf16.mxu0 0
  %745 = vmatpush1.bf16.msra.mxu0 0
  %746 = vmatprep.subr.bf16.mxu0 0
  %747 = vmatpush1.bf16.msra.mxu0 0
  %748 = vmatprep.subr.bf16.mxu0 0
  %749 = vmatpush1.bf16.msra.mxu0 0
  %750 = vmatprep.subr.bf16.mxu0 0
  %751 = vmatpush1.bf16.msra.mxu0 0
  %752 = vmatprep.subr.bf16.mxu0 0
  %753 = vmatpush1.bf16.msra.mxu0 0
  %754 = vmatprep.subr.bf16.mxu0 0
  %755 = vmatpush1.bf16.msra.mxu0 0
  %756 = vmatprep.subr.bf16.mxu0 0
  %757 = vmatpush1.bf16.msra.mxu0 0
  %758 = vmatprep.subr.bf16.mxu0 0
  %759 = vmatpush1.bf16.msra.mxu0 0
  %760 = vmatprep.subr.bf16.mxu0 0
  %761 = vmatpush1.bf16.msra.mxu0 0
  %762 = vmatprep.subr.bf16.mxu0 0
  %763 = vmatpush1.bf16.msra.mxu0 0
  %764 = vmatprep.subr.bf16.mxu0 0
  %765 = vmatpush1.bf16.msra.mxu0 0
  %766 = vmatprep.mubr.bf16.mxu0 0
  %767 = vmatmul.mubr.bf16.gmra.mrb[0].mxu0 %v732
  %v768 = vpop.f32.mrb[0].mxu0
  %v769 = vadd.f32 0.0, %v768
  %v770 = vpop.f32.mrb[0].mxu0
  %v771 = vpop.f32.mrb[0].mxu0
  %v772 = vpop.f32.mrb[0].mxu0
  %773 = vdwg.mxu0
  %v774 = vadd.f32 %v726, %v769
  %v775 = vxor.u32 %v774, 2147483648
  %v776 = vmul.f32 %v775, 1.442695
  %v777 = vpow.pop %v776
  %v778 = vadd.f32 %v777, 1.0
  %v779 = vrcp.pop %v778
  %v780 = vmul.f32 1.0, %v779
  %v781 = vtanh.pop %v774
  %v782 = vmul.f32 %v780, %v712
  %784 = vrot.lane.b32.xlu0 %v781, 64
  %v785 = vpop.permute.xlu0 %784
  %v787 = vmul.f32 %v780, %v785
  %789 = vrot.lane.b32.xlu0 %v787, 32
  %v790 = vpop.permute.xlu0 %789
  %v792 = vadd.f32 %v782, %v790
  %v793 = vtanh.pop %v792
  %795 = vrot.lane.b32.xlu0 %v793, 64
  %v796 = vpop.permute.xlu0 %795
  %v798 = vmul.f32 %v780, %v796
  %800 = vrot.lane.b32.xlu0 %v798, 32
  %v801 = vpop.permute.xlu0 %800
  %s803 = scalar_lea.vmem %s4, 56
  %804 = vst.msk [vmem:[%s803] sm:$0xff] %vm56, %v801
  %805 = vst.msk [vmem:[%s5] sm:$0xff] %vm56, %v801
  %807 = vrot.lane.b32.xlu0 %v792, 96
  %v808 = vpop.permute.xlu0 %807
  %810 = vst.msk [vmem:[%s6] sm:$0xff] %vm56, %v808
  // Predicated region
  $region22: #{lstm_model_forward.4} parent=0 // pred_check
    _
  $region23: #{lstm_model_forward.4} parent=0 // pred_check_branch
    %812 = sbr.rel (0) target = $region25
  $region24: #{lstm_model_forward.4} parent=0 // pred_region
    _
  $region25: #{lstm_model_forward.4} parent=0 // pred_fallthru
    _
  // Predicated region
  $region26: #{lstm_model_forward.4} parent=0 // pred_check
    _
  $region27: #{lstm_model_forward.4} parent=0 // pred_check_branch
    %814 = sbr.rel (0) target = $region29
  $region28: #{lstm_model_forward.4} parent=0 // pred_region
    _
  $region29: #{lstm_model_forward.4} parent=0 // pred_fallthru
    _
  // Predicated region
  $region30: #{lstm_model_forward.4} parent=0 // pred_check
    _
  $region31: #{lstm_model_forward.4} parent=0 // pred_check_branch
    %816 = sbr.rel (0) target = $region33
  $region32: #{lstm_model_forward.4} parent=0 // pred_region
    _
  $region33: #{lstm_model_forward.4} parent=0 // pred_fallthru
    _
  // Predicated region
  $region34: #{lstm_model_forward.4} parent=0 // pred_check
    _
  $region35: #{lstm_model_forward.4} parent=0 // pred_check_branch
    %818 = sbr.rel (0) target = $region37
  $region36: #{lstm_model_forward.4} parent=0 // pred_region
    _
  $region37: #{lstm_model_forward.4} parent=0 // pred_fallthru
    _
  // Predicated region
  $region38: #{lstm_model_forward.4} parent=0 // pred_check
    _
  $region39: #{lstm_model_forward.4} parent=0 // pred_check_branch
    %820 = sbr.rel (0) target = $region41
  $region40: #{lstm_model_forward.4} parent=0 // pred_region
    _
  $region41: #{lstm_model_forward.4} parent=0 // pred_fallthru
    _
  // Predicated region
  $region42: #{lstm_model_forward.4} parent=0 // pred_check
    _
  $region43: #{lstm_model_forward.4} parent=0 // pred_check_branch
    %822 = sbr.rel (0) target = $region45
  $region44: #{lstm_model_forward.4} parent=0 // pred_region
    _
  $region45: #{lstm_model_forward.4} parent=0 // pred_fallthru
    _

// kernel: lstm_model_forward.6
$region0: #{lstm_model_forward.6}
  #allocation0 [shape = 'u32[]', space=smem, size = 0x4, offset = 0x4, fixed_abs, tag = 'smem constant byte address 0x4 - core index']
  #allocation1 [shape = 'u32[144,128]{1,0:T(1,128)}', space=vmem, size = 0x12000, scoped, tag = 'internal scratch']
  #allocation2 [shape = 'f32[64,1]{1,0:T(8,128)}', space=vmem, size = 0x8000, scoped, tag = 'scratch operand']
  #allocation3 [shape = 'f32[64,1]{1,0:T(8,128)}', space=vmem, size = 0x8000, scoped, tag = 'scratch operand']
  %s0 = inlined_call_operand.vmem [shape: bf16[64,32], index: 0, kind: input, shape index: {}]
  %s1 = inlined_call_operand.vmem [shape: bf16[32,128], index: 1, kind: input, shape index: {}]
  %s2 = inlined_call_operand.vmem [shape: f32[1,128], index: 2, kind: input, shape index: {}]
  %s3 = inlined_call_operand.vmem [shape: f32[64,128], index: 3, kind: output, shape index: {0}]
  %s4 = inlined_call_operand.vmem [shape: f32[64,1], index: 4, kind: output, shape index: {1}]
  %5 = xla_tuple %s3, %s4
  %s6 = sld [smem:[#allocation0]]
  $region38: #{lstm_model_forward.6} parent=0
    _
  %s8 = ssub.s32 1, %s6
  %s9 = scalar_select 0, %s8, %s6
  // Predicated region
  $region2: #{lstm_model_forward.6} parent=0 // pred_check
    _
  $region3: #{lstm_model_forward.6} parent=0 // pred_check_branch
    %11 = sbr.rel (0) target = $region5
  $region4: #{lstm_model_forward.6} parent=0 // pred_region
    _
  $region5: #{lstm_model_forward.6} parent=0 // pred_fallthru
    _
  // Predicated region
  $region6: #{lstm_model_forward.6} parent=0 // pred_check
    _
  $region7: #{lstm_model_forward.6} parent=0 // pred_check_branch
    %13 = sbr.rel (0) target = $region9
  $region8: #{lstm_model_forward.6} parent=0 // pred_region
    _
  $region9: #{lstm_model_forward.6} parent=0 // pred_fallthru
    _
  // Predicated region
  $region10: #{lstm_model_forward.6} parent=0 // pred_check
    _
  $region11: #{lstm_model_forward.6} parent=0 // pred_check_branch
    %15 = sbr.rel (0) target = $region13
  $region12: #{lstm_model_forward.6} parent=0 // pred_region
    _
  $region13: #{lstm_model_forward.6} parent=0 // pred_fallthru
    _
  %p17 = scmp.eq.s32.totalorder 0, 0
  // Predicated region
  $region14: #{lstm_model_forward.6} parent=0 // pred_check
    %p18 = pneg %p17
  $region15: #{lstm_model_forward.6} parent=0 // pred_check_branch
    %20 = sbr.rel (%p18) target = $region17
  $region16: #{lstm_model_forward.6} parent=0 // pred_region
    %vm21 = vcmask 7168
    %22 = vst.msk [vmem:[#allocation2] sm:$0xff] %vm21, -inf
    %23 = vst.msk [vmem:[#allocation2 + $0x8] sm:$0xff] %vm21, -inf
    %24 = vst.msk [vmem:[#allocation2 + $0x10] sm:$0xff] %vm21, -inf
    %25 = vst.msk [vmem:[#allocation2 + $0x18] sm:$0xff] %vm21, -inf
    %26 = vst.msk [vmem:[#allocation2 + $0x20] sm:$0xff] %vm21, -inf
    %27 = vst.msk [vmem:[#allocation2 + $0x28] sm:$0xff] %vm21, -inf
    %28 = vst.msk [vmem:[#allocation2 + $0x30] sm:$0xff] %vm21, -inf
    %29 = vst.msk [vmem:[#allocation2 + $0x38] sm:$0xff] %vm21, -inf
    %30 = vst.msk [vmem:[#allocation3] sm:$0xff] %vm21, 0.0
    %31 = vst.msk [vmem:[#allocation3 + $0x8] sm:$0xff] %vm21, 0.0
    %32 = vst.msk [vmem:[#allocation3 + $0x10] sm:$0xff] %vm21, 0.0
    %33 = vst.msk [vmem:[#allocation3 + $0x18] sm:$0xff] %vm21, 0.0
    %34 = vst.msk [vmem:[#allocation3 + $0x20] sm:$0xff] %vm21, 0.0
    %35 = vst.msk [vmem:[#allocation3 + $0x28] sm:$0xff] %vm21, 0.0
    %36 = vst.msk [vmem:[#allocation3 + $0x30] sm:$0xff] %vm21, 0.0
    %37 = vst.msk [vmem:[#allocation3 + $0x38] sm:$0xff] %vm21, 0.0
  $region17: #{lstm_model_forward.6} parent=0 // pred_fallthru
    _
  %v38 = vld [vmem:[%s0] sm:$0xf]
  %v39 = vld [vmem:[%s0 + $0x4] sm:$0xf]
  %v40 = vld [vmem:[%s0 + $0x8] sm:$0xf]
  %v41 = vld [vmem:[%s0 + $0xc] sm:$0xf]
  %v42 = vld [vmem:[%s0 + $0x10] sm:$0xf]
  %v43 = vld [vmem:[%s0 + $0x14] sm:$0xf]
  %v44 = vld [vmem:[%s0 + $0x18] sm:$0xf]
  %v45 = vld [vmem:[%s0 + $0x1c] sm:$0xf]
  %v46 = vld [vmem:[%s1] sm:$0xf]
  %v47 = vld [vmem:[%s1 + $0x4] sm:$0xf]
  %v48 = vld [vmem:[%s1 + $0x8] sm:$0xf]
  %v49 = vld [vmem:[%s1 + $0xc] sm:$0xf]
  %v50 = vld [vmem:[%s2] sm:$0x1]
  %v52 = vlaneseq
  %v53 = vshrl.u32 %v52, 7
  %v54 = vsub.s32 0, %v53
  %v55 = vrot.slane %v50, %v54
  %v65 = vunpack.c.l.b16 %v38
  %v66 = vunpack.c.l.b16 %v39
  %v67 = vunpack.c.l.b16 %v40
  %v68 = vunpack.c.l.b16 %v41
  %v69 = vunpack.c.l.b16 %v42
  %v70 = vunpack.c.l.b16 %v43
  %v71 = vunpack.c.l.b16 %v44
  %v72 = vunpack.c.l.b16 %v45
  %v73 = vpack.c.b16 %v66, %v65
  %v74 = vpack.c.b16 %v68, %v67
  %v75 = vpack.c.b16 %v70, %v69
  %v76 = vpack.c.b16 %v72, %v71
  %v81 = vunpack.c.l.b16 %v46
  %v82 = vunpack.c.l.b16 %v47
  %v83 = vunpack.c.l.b16 %v48
  %v84 = vunpack.c.l.b16 %v49
  %v85 = vpack.c.b16 %v82, %v81
  %v86 = vpack.c.b16 %v84, %v83
  %vm89 = vcmask 261120
  %v91 = vsel %vm89, %v73, 0
  %v94 = vsel %vm89, %v74, 0
  %v97 = vsel %vm89, %v75, 0
  %v100 = vsel %vm89, %v76, 0
  %102 = vmatprep.subr.bf16.mxu0 0
  %103 = vmatpush1.bf16.msra.mxu0 %v85
  %104 = vmatprep.subr.bf16.mxu0 0
  %105 = vmatpush1.bf16.msra.mxu0 %v86
  %106 = vmatprep.subr.bf16.mxu0 0
  %107 = vmatpush1.bf16.msra.mxu0 0
  %108 = vmatprep.subr.bf16.mxu0 0
  %109 = vmatpush1.bf16.msra.mxu0 0
  %110 = vmatprep.subr.bf16.mxu0 0
  %111 = vmatpush1.bf16.msra.mxu0 0
  %112 = vmatprep.subr.bf16.mxu0 0
  %113 = vmatpush1.bf16.msra.mxu0 0
  %114 = vmatprep.subr.bf16.mxu0 0
  %115 = vmatpush1.bf16.msra.mxu0 0
  %116 = vmatprep.subr.bf16.mxu0 0
  %117 = vmatpush1.bf16.msra.mxu0 0
  %118 = vmatprep.subr.bf16.mxu0 0
  %119 = vmatpush1.bf16.msra.mxu0 0
  %120 = vmatprep.subr.bf16.mxu0 0
  %121 = vmatpush1.bf16.msra.mxu0 0
  %122 = vmatprep.subr.bf16.mxu0 0
  %123 = vmatpush1.bf16.msra.mxu0 0
  %124 = vmatprep.subr.bf16.mxu0 0
  %125 = vmatpush1.bf16.msra.mxu0 0
  %126 = vmatprep.subr.bf16.mxu0 0
  %127 = vmatpush1.bf16.msra.mxu0 0
  %128 = vmatprep.subr.bf16.mxu0 0
  %129 = vmatpush1.bf16.msra.mxu0 0
  %130 = vmatprep.subr.bf16.mxu0 0
  %131 = vmatpush1.bf16.msra.mxu0 0
  %132 = vmatprep.subr.bf16.mxu0 0
  %133 = vmatpush1.bf16.msra.mxu0 0
  %134 = vmatprep.mubr.bf16.mxu0 0
  %135 = vmatmul.mubr.bf16.gmra.mrb[0].mxu0 %v91
  %v136 = vpop.f32.mrb[0].mxu0
  %v137 = vadd.f32 %v55, %v136
  %v138 = vpop.f32.mrb[0].mxu0
  %v139 = vpop.f32.mrb[0].mxu0
  %v140 = vadd.f32 %v55, %v139
  %v141 = vpop.f32.mrb[0].mxu0
  %142 = vmatprep.mubr.bf16.mxu0 0
  %143 = vmatmul.mubr.bf16.gmra.mrb[0].mxu0 %v94
  %v144 = vpop.f32.mrb[0].mxu0
  %v145 = vadd.f32 %v55, %v144
  %v146 = vpop.f32.mrb[0].mxu0
  %v147 = vpop.f32.mrb[0].mxu0
  %v148 = vadd.f32 %v55, %v147
  %v149 = vpop.f32.mrb[0].mxu0
  %150 = vmatprep.mubr.bf16.mxu0 0
  %151 = vmatmul.mubr.bf16.gmra.mrb[0].mxu0 %v97
  %v152 = vpop.f32.mrb[0].mxu0
  %v153 = vadd.f32 %v55, %v152
  %v154 = vpop.f32.mrb[0].mxu0
  %v155 = vpop.f32.mrb[0].mxu0
  %v156 = vadd.f32 %v55, %v155
  %v157 = vpop.f32.mrb[0].mxu0
  %158 = vmatprep.mubr.bf16.mxu0 0
  %159 = vmatmul.mubr.bf16.gmra.mrb[0].mxu0 %v100
  %v160 = vpop.f32.mrb[0].mxu0
  %v161 = vadd.f32 %v55, %v160
  %v162 = vpop.f32.mrb[0].mxu0
  %v163 = vpop.f32.mrb[0].mxu0
  %v164 = vadd.f32 %v55, %v163
  %v165 = vpop.f32.mrb[0].mxu0
  %166 = vdwg.mxu0
  %167 = vst [vmem:[%s3] sm:$0xff] %v137
  %168 = vst [vmem:[%s3 + $0x8] sm:$0xff] %v140
  %169 = vst [vmem:[%s3 + $0x10] sm:$0xff] %v145
  %170 = vst [vmem:[%s3 + $0x18] sm:$0xff] %v148
  %171 = vst [vmem:[%s3 + $0x20] sm:$0xff] %v153
  %172 = vst [vmem:[%s3 + $0x28] sm:$0xff] %v156
  %173 = vst [vmem:[%s3 + $0x30] sm:$0xff] %v161
  %174 = vst [vmem:[%s3 + $0x38] sm:$0xff] %v164
  %175 = vmax.xlane.f32.xlu0 %v137
  %v176 = vpop.xlane.xlu0 %175
  %177 = vmax.xlane.f32.xlu0 %v140
  %v178 = vpop.xlane.xlu0 %177
  %179 = vmax.xlane.f32.xlu0 %v145
  %v180 = vpop.xlane.xlu0 %179
  %181 = vmax.xlane.f32.xlu0 %v148
  %v182 = vpop.xlane.xlu0 %181
  %183 = vmax.xlane.f32.xlu0 %v153
  %v184 = vpop.xlane.xlu0 %183
  %185 = vmax.xlane.f32.xlu0 %v156
  %v186 = vpop.xlane.xlu0 %185
  %187 = vmax.xlane.f32.xlu0 %v161
  %v188 = vpop.xlane.xlu0 %187
  %189 = vmax.xlane.f32.xlu0 %v164
  %v190 = vpop.xlane.xlu0 %189
  %v191 = vld [vmem:[#allocation2] sm:$0xff]
  %v192 = vld [vmem:[#allocation2 + $0x8] sm:$0xff]
  %v193 = vld [vmem:[#allocation2 + $0x10] sm:$0xff]
  %v194 = vld [vmem:[#allocation2 + $0x18] sm:$0xff]
  %v195 = vld [vmem:[#allocation2 + $0x20] sm:$0xff]
  %v196 = vld [vmem:[#allocation2 + $0x28] sm:$0xff]
  %v197 = vld [vmem:[#allocation2 + $0x30] sm:$0xff]
  %v198 = vld [vmem:[#allocation2 + $0x38] sm:$0xff]
  %v199 = vmax.f32 %v191, %v176
  %v200 = vmax.f32 %v192, %v178
  %v201 = vmax.f32 %v193, %v180
  %v202 = vmax.f32 %v194, %v182
  %v203 = vmax.f32 %v195, %v184
  %v204 = vmax.f32 %v196, %v186
  %v205 = vmax.f32 %v197, %v188
  %v206 = vmax.f32 %v198, %v190
  %v207 = vld [vmem:[#allocation3] sm:$0xff]
  %v208 = vld [vmem:[#allocation3 + $0x8] sm:$0xff]
  %v209 = vld [vmem:[#allocation3 + $0x10] sm:$0xff]
  %v210 = vld [vmem:[#allocation3 + $0x18] sm:$0xff]
  %v211 = vld [vmem:[#allocation3 + $0x20] sm:$0xff]
  %v212 = vld [vmem:[#allocation3 + $0x28] sm:$0xff]
  %v213 = vld [vmem:[#allocation3 + $0x30] sm:$0xff]
  %v214 = vld [vmem:[#allocation3 + $0x38] sm:$0xff]
  %v215 = vsub.f32 %v191, %v199
  %v216 = vsub.f32 %v192, %v200
  %v217 = vsub.f32 %v193, %v201
  %v218 = vsub.f32 %v194, %v202
  %v219 = vsub.f32 %v195, %v203
  %v220 = vsub.f32 %v196, %v204
  %v221 = vsub.f32 %v197, %v205
  %v222 = vsub.f32 %v198, %v206
  %v223 = vmul.f32 %v215, 1.442695
  %v224 = vpow.pop %v223
  %v225 = vmul.f32 %v216, 1.442695
  %v226 = vpow.pop %v225
  %v227 = vmul.f32 %v217, 1.442695
  %v228 = vpow.pop %v227
  %v229 = vmul.f32 %v218, 1.442695
  %v230 = vpow.pop %v229
  %v231 = vmul.f32 %v219, 1.442695
  %v232 = vpow.pop %v231
  %v233 = vmul.f32 %v220, 1.442695
  %v234 = vpow.pop %v233
  %v235 = vmul.f32 %v221, 1.442695
  %v236 = vpow.pop %v235
  %v237 = vmul.f32 %v222, 1.442695
  %v238 = vpow.pop %v237
  %v239 = vmul.f32 %v207, %v224
  %v240 = vmul.f32 %v208, %v226
  %v241 = vmul.f32 %v209, %v228
  %v242 = vmul.f32 %v210, %v230
  %v243 = vmul.f32 %v211, %v232
  %v244 = vmul.f32 %v212, %v234
  %v245 = vmul.f32 %v213, %v236
  %v246 = vmul.f32 %v214, %v238
  %248 = vset.pattern.permute.xlu0 0
  %249 = vperm.xlu0 %248, %v199
  %v250 = vpop.permute.xlu0 %249
  %253 = vset.pattern.permute.xlu0 0
  %254 = vperm.xlu0 %253, %v200
  %v255 = vpop.permute.xlu0 %254
  %258 = vset.pattern.permute.xlu0 0
  %259 = vperm.xlu0 %258, %v201
  %v260 = vpop.permute.xlu0 %259
  %263 = vset.pattern.permute.xlu0 0
  %264 = vperm.xlu0 %263, %v202
  %v265 = vpop.permute.xlu0 %264
  %268 = vset.pattern.permute.xlu0 0
  %269 = vperm.xlu0 %268, %v203
  %v270 = vpop.permute.xlu0 %269
  %273 = vset.pattern.permute.xlu0 0
  %274 = vperm.xlu0 %273, %v204
  %v275 = vpop.permute.xlu0 %274
  %278 = vset.pattern.permute.xlu0 0
  %279 = vperm.xlu0 %278, %v205
  %v280 = vpop.permute.xlu0 %279
  %283 = vset.pattern.permute.xlu0 0
  %284 = vperm.xlu0 %283, %v206
  %v285 = vpop.permute.xlu0 %284
  %v287 = vsub.f32 %v137, %v250
  %v288 = vsub.f32 %v140, %v255
  %v289 = vsub.f32 %v145, %v260
  %v290 = vsub.f32 %v148, %v265
  %v291 = vsub.f32 %v153, %v270
  %v292 = vsub.f32 %v156, %v275
  %v293 = vsub.f32 %v161, %v280
  %v294 = vsub.f32 %v164, %v285
  %v295 = vmul.f32 %v287, 1.442695
  %v296 = vpow.pop %v295
  %v297 = vmul.f32 %v288, 1.442695
  %v298 = vpow.pop %v297
  %v299 = vmul.f32 %v289, 1.442695
  %v300 = vpow.pop %v299
  %v301 = vmul.f32 %v290, 1.442695
  %v302 = vpow.pop %v301
  %v303 = vmul.f32 %v291, 1.442695
  %v304 = vpow.pop %v303
  %v305 = vmul.f32 %v292, 1.442695
  %v306 = vpow.pop %v305
  %v307 = vmul.f32 %v293, 1.442695
  %v308 = vpow.pop %v307
  %v309 = vmul.f32 %v294, 1.442695
  %v310 = vpow.pop %v309
  %311 = vadd.xlane.f32.xlu0 %v296
  %v312 = vpop.xlane.xlu0 %311
  %313 = vadd.xlane.f32.xlu0 %v298
  %v314 = vpop.xlane.xlu0 %313
  %315 = vadd.xlane.f32.xlu0 %v300
  %v316 = vpop.xlane.xlu0 %315
  %317 = vadd.xlane.f32.xlu0 %v302
  %v318 = vpop.xlane.xlu0 %317
  %319 = vadd.xlane.f32.xlu0 %v304
  %v320 = vpop.xlane.xlu0 %319
  %321 = vadd.xlane.f32.xlu0 %v306
  %v322 = vpop.xlane.xlu0 %321
  %323 = vadd.xlane.f32.xlu0 %v308
  %v324 = vpop.xlane.xlu0 %323
  %325 = vadd.xlane.f32.xlu0 %v310
  %v326 = vpop.xlane.xlu0 %325
  %v327 = vadd.f32 %v239, %v312
  %v328 = vadd.f32 %v240, %v314
  %v329 = vadd.f32 %v241, %v316
  %v330 = vadd.f32 %v242, %v318
  %v331 = vadd.f32 %v243, %v320
  %v332 = vadd.f32 %v244, %v322
  %v333 = vadd.f32 %v245, %v324
  %v334 = vadd.f32 %v246, %v326
  %vm335 = vcmask 7168
  %336 = vst.msk [vmem:[#allocation3] sm:$0xff] %vm335, %v327
  %337 = vst.msk [vmem:[#allocation3 + $0x8] sm:$0xff] %vm335, %v328
  %338 = vst.msk [vmem:[#allocation3 + $0x10] sm:$0xff] %vm335, %v329
  %339 = vst.msk [vmem:[#allocation3 + $0x18] sm:$0xff] %vm335, %v330
  %340 = vst.msk [vmem:[#allocation3 + $0x20] sm:$0xff] %vm335, %v331
  %341 = vst.msk [vmem:[#allocation3 + $0x28] sm:$0xff] %vm335, %v332
  %342 = vst.msk [vmem:[#allocation3 + $0x30] sm:$0xff] %vm335, %v333
  %343 = vst.msk [vmem:[#allocation3 + $0x38] sm:$0xff] %vm335, %v334
  %344 = vst.msk [vmem:[#allocation2] sm:$0xff] %vm335, %v199
  %345 = vst.msk [vmem:[#allocation2 + $0x8] sm:$0xff] %vm335, %v200
  %346 = vst.msk [vmem:[#allocation2 + $0x10] sm:$0xff] %vm335, %v201
  %347 = vst.msk [vmem:[#allocation2 + $0x18] sm:$0xff] %vm335, %v202
  %348 = vst.msk [vmem:[#allocation2 + $0x20] sm:$0xff] %vm335, %v203
  %349 = vst.msk [vmem:[#allocation2 + $0x28] sm:$0xff] %vm335, %v204
  %350 = vst.msk [vmem:[#allocation2 + $0x30] sm:$0xff] %vm335, %v205
  %351 = vst.msk [vmem:[#allocation2 + $0x38] sm:$0xff] %vm335, %v206
  // Predicated region
  $region18: #{lstm_model_forward.6} parent=0 // pred_check
    %p352 = pneg %p17
  $region19: #{lstm_model_forward.6} parent=0 // pred_check_branch
    %354 = sbr.rel (%p352) target = $region21
  $region20: #{lstm_model_forward.6} parent=0 // pred_region
    %v355 = vld [vmem:[#allocation2] sm:$0xff]
    %v356 = vld [vmem:[#allocation2 + $0x8] sm:$0xff]
    %v357 = vld [vmem:[#allocation2 + $0x10] sm:$0xff]
    %v358 = vld [vmem:[#allocation2 + $0x18] sm:$0xff]
    %v359 = vld [vmem:[#allocation2 + $0x20] sm:$0xff]
    %v360 = vld [vmem:[#allocation2 + $0x28] sm:$0xff]
    %v361 = vld [vmem:[#allocation2 + $0x30] sm:$0xff]
    %v362 = vld [vmem:[#allocation2 + $0x38] sm:$0xff]
    %v363 = vld [vmem:[#allocation3] sm:$0xff]
    %v364 = vld [vmem:[#allocation3 + $0x8] sm:$0xff]
    %v365 = vld [vmem:[#allocation3 + $0x10] sm:$0xff]
    %v366 = vld [vmem:[#allocation3 + $0x18] sm:$0xff]
    %v367 = vld [vmem:[#allocation3 + $0x20] sm:$0xff]
    %v368 = vld [vmem:[#allocation3 + $0x28] sm:$0xff]
    %v369 = vld [vmem:[#allocation3 + $0x30] sm:$0xff]
    %v370 = vld [vmem:[#allocation3 + $0x38] sm:$0xff]
    %v371 = vlog2.pop %v363
    %v372 = vmul.f32 %v371, 0.6931472
    %v373 = vlog2.pop %v364
    %v374 = vmul.f32 %v373, 0.6931472
    %v375 = vlog2.pop %v365
    %v376 = vmul.f32 %v375, 0.6931472
    %v377 = vlog2.pop %v366
    %v378 = vmul.f32 %v377, 0.6931472
    %v379 = vlog2.pop %v367
    %v380 = vmul.f32 %v379, 0.6931472
    %v381 = vlog2.pop %v368
    %v382 = vmul.f32 %v381, 0.6931472
    %v383 = vlog2.pop %v369
    %v384 = vmul.f32 %v383, 0.6931472
    %v385 = vlog2.pop %v370
    %v386 = vmul.f32 %v385, 0.6931472
    %v387 = vadd.f32 %v355, %v372
    %v388 = vadd.f32 %v356, %v374
    %v389 = vadd.f32 %v357, %v376
    %v390 = vadd.f32 %v358, %v378
    %v391 = vadd.f32 %v359, %v380
    %v392 = vadd.f32 %v360, %v382
    %v393 = vadd.f32 %v361, %v384
    %v394 = vadd.f32 %v362, %v386
    %395 = vst.msk [vmem:[%s4] sm:$0xff] %vm335, %v387
    %396 = vst.msk [vmem:[%s4 + $0x8] sm:$0xff] %vm335, %v388
    %397 = vst.msk [vmem:[%s4 + $0x10] sm:$0xff] %vm335, %v389
    %398 = vst.msk [vmem:[%s4 + $0x18] sm:$0xff] %vm335, %v390
    %399 = vst.msk [vmem:[%s4 + $0x20] sm:$0xff] %vm335, %v391
    %400 = vst.msk [vmem:[%s4 + $0x28] sm:$0xff] %vm335, %v392
    %401 = vst.msk [vmem:[%s4 + $0x30] sm:$0xff] %vm335, %v393
    %402 = vst.msk [vmem:[%s4 + $0x38] sm:$0xff] %vm335, %v394
  $region21: #{lstm_model_forward.6} parent=0 // pred_fallthru
    _
  // Predicated region
  $region22: #{lstm_model_forward.6} parent=0 // pred_check
    _
  $region23: #{lstm_model_forward.6} parent=0 // pred_check_branch
    %404 = sbr.rel (0) target = $region25
  $region24: #{lstm_model_forward.6} parent=0 // pred_region
    _
  $region25: #{lstm_model_forward.6} parent=0 // pred_fallthru
    _
  // Predicated region
  $region26: #{lstm_model_forward.6} parent=0 // pred_check
    _
  $region27: #{lstm_model_forward.6} parent=0 // pred_check_branch
    %406 = sbr.rel (0) target = $region29
  $region28: #{lstm_model_forward.6} parent=0 // pred_region
    _
  $region29: #{lstm_model_forward.6} parent=0 // pred_fallthru
    _
  // Predicated region
  $region30: #{lstm_model_forward.6} parent=0 // pred_check
    _
  $region31: #{lstm_model_forward.6} parent=0 // pred_check_branch
    %408 = sbr.rel (0) target = $region33
  $region32: #{lstm_model_forward.6} parent=0 // pred_region
    _
  $region33: #{lstm_model_forward.6} parent=0 // pred_fallthru
    _
  // Predicated region
  $region34: #{lstm_model_forward.6} parent=0 // pred_check
    _
  $region35: #{lstm_model_forward.6} parent=0 // pred_check_branch
    %410 = sbr.rel (0) target = $region37
  $region36: #{lstm_model_forward.6} parent=0 // pred_region
    _
  $region37: #{lstm_model_forward.6} parent=0 // pred_fallthru
    _

// kernel: lstm_model_forward.5
$region0: #{lstm_model_forward.5}
  #allocation0 [shape = 'u32[]', space=smem, size = 0x4, offset = 0x4, fixed_abs, tag = 'smem constant byte address 0x4 - core index']
  #allocation1 [shape = 'u32[144,128]{1,0:T(1,128)}', space=vmem, size = 0x12000, scoped, tag = 'internal scratch']
  #allocation2 [shape = 'f32[8,8,128]{2,1,0:T(8,128)}', space=vmem, size = 0x8000, scoped, tag = 'scratch operand']
  #allocation3 [shape = 'f32[8,32]{1,0:T(8,128)}', space=vmem, size = 0x1000, scoped, tag = 'scratch operand']
  #allocation4 [shape = 'f32[8,32]{1,0:T(8,128)}', space=vmem, size = 0x1000, scoped, tag = 'scratch operand']
  #allocation5 [shape = 'f32[8,32]{1,0:T(8,128)}', space=vmem, size = 0x1000, scoped, tag = 'scratch operand']
  %s0 = inlined_call_operand.vmem [shape: f32[8,8,32], index: 0, kind: input, shape index: {}]
  %s1 = inlined_call_operand.vmem [shape: f32[8,8,32], index: 1, kind: input, shape index: {}]
  %s2 = inlined_call_operand.vmem [shape: f32[8,32], index: 2, kind: input, shape index: {}]
  %s3 = inlined_call_operand.vmem [shape: f32[8,32], index: 3, kind: input, shape index: {}]
  %s4 = inlined_call_operand.vmem [shape: bf16[32,128], index: 4, kind: input, shape index: {}]
  %s5 = inlined_call_operand.vmem [shape: bf16[32,128], index: 5, kind: input, shape index: {}]
  %s6 = inlined_call_operand.vmem [shape: bf16[32,128], index: 6, kind: input, shape index: {}]
  %s7 = inlined_call_operand.vmem [shape: f32[1,128], index: 7, kind: input, shape index: {}]
  %s8 = inlined_call_operand.vmem [shape: bf16[32,32], index: 8, kind: input, shape index: {}]
  %s9 = inlined_call_operand.vmem [shape: bf16[32,32], index: 9, kind: input, shape index: {}]
  %s10 = inlined_call_operand.vmem [shape: bf16[32,32], index: 10, kind: input, shape index: {}]
  %s11 = inlined_call_operand.vmem [shape: f32[8,8,32], index: 11, kind: output, shape index: {0}]
  %s12 = inlined_call_operand.vmem [shape: f32[8,8,8], index: 12, kind: output, shape index: {1}]
  %13 = xla_tuple %s11, %s12
  %s14 = sld [smem:[#allocation0]]
  $region66: #{lstm_model_forward.5} parent=0
    _
  %s16 = ssub.s32 1, %s14
  %s17 = scalar_select 0, %s16, %s14
  // Predicated region
  $region2: #{lstm_model_forward.5} parent=0 // pred_check
    _
  $region3: #{lstm_model_forward.5} parent=0 // pred_check_branch
    %19 = sbr.rel (0) target = $region5
  $region4: #{lstm_model_forward.5} parent=0 // pred_region
    _
  $region5: #{lstm_model_forward.5} parent=0 // pred_fallthru
    _
  // Predicated region
  $region6: #{lstm_model_forward.5} parent=0 // pred_check
    _
  $region7: #{lstm_model_forward.5} parent=0 // pred_check_branch
    %21 = sbr.rel (0) target = $region9
  $region8: #{lstm_model_forward.5} parent=0 // pred_region
    _
  $region9: #{lstm_model_forward.5} parent=0 // pred_fallthru
    _
  // Predicated region
  $region10: #{lstm_model_forward.5} parent=0 // pred_check
    _
  $region11: #{lstm_model_forward.5} parent=0 // pred_check_branch
    %23 = sbr.rel (0) target = $region13
  $region12: #{lstm_model_forward.5} parent=0 // pred_region
    _
  $region13: #{lstm_model_forward.5} parent=0 // pred_fallthru
    _
  // Predicated region
  $region14: #{lstm_model_forward.5} parent=0 // pred_check
    _
  $region15: #{lstm_model_forward.5} parent=0 // pred_check_branch
    %25 = sbr.rel (0) target = $region17
  $region16: #{lstm_model_forward.5} parent=0 // pred_region
    _
  $region17: #{lstm_model_forward.5} parent=0 // pred_fallthru
    _
  // Predicated region
  $region18: #{lstm_model_forward.5} parent=0 // pred_check
    _
  $region19: #{lstm_model_forward.5} parent=0 // pred_check_branch
    %27 = sbr.rel (0) target = $region21
  $region20: #{lstm_model_forward.5} parent=0 // pred_region
    _
  $region21: #{lstm_model_forward.5} parent=0 // pred_fallthru
    _
  // Predicated region
  $region22: #{lstm_model_forward.5} parent=0 // pred_check
    _
  $region23: #{lstm_model_forward.5} parent=0 // pred_check_branch
    %29 = sbr.rel (0) target = $region25
  $region24: #{lstm_model_forward.5} parent=0 // pred_region
    _
  $region25: #{lstm_model_forward.5} parent=0 // pred_fallthru
    _
  // Predicated region
  $region26: #{lstm_model_forward.5} parent=0 // pred_check
    _
  $region27: #{lstm_model_forward.5} parent=0 // pred_check_branch
    %31 = sbr.rel (0) target = $region29
  $region28: #{lstm_model_forward.5} parent=0 // pred_region
    _
  $region29: #{lstm_model_forward.5} parent=0 // pred_fallthru
    _
  // Predicated region
  $region30: #{lstm_model_forward.5} parent=0 // pred_check
    _
  $region31: #{lstm_model_forward.5} parent=0 // pred_check_branch
    %33 = sbr.rel (0) target = $region33
  $region32: #{lstm_model_forward.5} parent=0 // pred_region
    _
  $region33: #{lstm_model_forward.5} parent=0 // pred_fallthru
    _
  // Predicated region
  $region34: #{lstm_model_forward.5} parent=0 // pred_check
    _
  $region35: #{lstm_model_forward.5} parent=0 // pred_check_branch
    %35 = sbr.rel (0) target = $region37
  $region36: #{lstm_model_forward.5} parent=0 // pred_region
    _
  $region37: #{lstm_model_forward.5} parent=0 // pred_fallthru
    _
  // Predicated region
  $region38: #{lstm_model_forward.5} parent=0 // pred_check
    _
  $region39: #{lstm_model_forward.5} parent=0 // pred_check_branch
    %37 = sbr.rel (0) target = $region41
  $region40: #{lstm_model_forward.5} parent=0 // pred_region
    _
  $region41: #{lstm_model_forward.5} parent=0 // pred_fallthru
    _
  // Predicated region
  $region42: #{lstm_model_forward.5} parent=0 // pred_check
    _
  $region43: #{lstm_model_forward.5} parent=0 // pred_check_branch
    %39 = sbr.rel (0) target = $region45
  $region44: #{lstm_model_forward.5} parent=0 // pred_region
    _
  $region45: #{lstm_model_forward.5} parent=0 // pred_fallthru
    _
  %v41 = vld [vmem:[%s0] sm:$0xff]
  %v42 = vld [vmem:[%s0 + $0x8] sm:$0xff]
  %v43 = vld [vmem:[%s0 + $0x10] sm:$0xff]
  %v44 = vld [vmem:[%s0 + $0x18] sm:$0xff]
  %v45 = vld [vmem:[%s0 + $0x20] sm:$0xff]
  %v46 = vld [vmem:[%s0 + $0x28] sm:$0xff]
  %v47 = vld [vmem:[%s0 + $0x30] sm:$0xff]
  %v48 = vld [vmem:[%s0 + $0x38] sm:$0xff]
  %v49 = vpack.c.bf16 %v42, %v41
  %v50 = vpack.c.bf16 %v44, %v43
  %v51 = vpack.c.bf16 %v46, %v45
  %v52 = vpack.c.bf16 %v48, %v47
  %v53 = vld [vmem:[%s4] sm:$0xf]
  %v54 = vld [vmem:[%s4 + $0x4] sm:$0xf]
  %v55 = vld [vmem:[%s4 + $0x8] sm:$0xf]
  %v56 = vld [vmem:[%s4 + $0xc] sm:$0xf]
  %v57 = vld [vmem:[%s7] sm:$0x1]
  %v59 = vlaneseq
  %v60 = vshrl.u32 %v59, 7
  %v61 = vsub.s32 0, %v60
  %v62 = vrot.slane %v57, %v61
  %v68 = vunpack.c.l.b16 %v53
  %v69 = vunpack.c.l.b16 %v54
  %v70 = vunpack.c.l.b16 %v55
  %v71 = vunpack.c.l.b16 %v56
  %v72 = vpack.c.b16 %v69, %v68
  %v73 = vpack.c.b16 %v71, %v70
  %vm76 = vcmask 261120
  %v78 = vsel %vm76, %v49, 0
  %v81 = vsel %vm76, %v50, 0
  %v84 = vsel %vm76, %v51, 0
  %v87 = vsel %vm76, %v52, 0
  %89 = vmatprep.subr.bf16.mxu0 0
  %90 = vmatpush1.bf16.msra.mxu0 %v72
  %91 = vmatprep.subr.bf16.mxu0 0
  %92 = vmatpush1.bf16.msra.mxu0 %v73
  %93 = vmatprep.subr.bf16.mxu0 0
  %94 = vmatpush1.bf16.msra.mxu0 0
  %95 = vmatprep.subr.bf16.mxu0 0
  %96 = vmatpush1.bf16.msra.mxu0 0
  %97 = vmatprep.subr.bf16.mxu0 0
  %98 = vmatpush1.bf16.msra.mxu0 0
  %99 = vmatprep.subr.bf16.mxu0 0
  %100 = vmatpush1.bf16.msra.mxu0 0
  %101 = vmatprep.subr.bf16.mxu0 0
  %102 = vmatpush1.bf16.msra.mxu0 0
  %103 = vmatprep.subr.bf16.mxu0 0
  %104 = vmatpush1.bf16.msra.mxu0 0
  %105 = vmatprep.subr.bf16.mxu0 0
  %106 = vmatpush1.bf16.msra.mxu0 0
  %107 = vmatprep.subr.bf16.mxu0 0
  %108 = vmatpush1.bf16.msra.mxu0 0
  %109 = vmatprep.subr.bf16.mxu0 0
  %110 = vmatpush1.bf16.msra.mxu0 0
  %111 = vmatprep.subr.bf16.mxu0 0
  %112 = vmatpush1.bf16.msra.mxu0 0
  %113 = vmatprep.subr.bf16.mxu0 0
  %114 = vmatpush1.bf16.msra.mxu0 0
  %115 = vmatprep.subr.bf16.mxu0 0
  %116 = vmatpush1.bf16.msra.mxu0 0
  %117 = vmatprep.subr.bf16.mxu0 0
  %118 = vmatpush1.bf16.msra.mxu0 0
  %119 = vmatprep.subr.bf16.mxu0 0
  %120 = vmatpush1.bf16.msra.mxu0 0
  %121 = vmatprep.mubr.bf16.mxu0 0
  %122 = vmatmul.mubr.bf16.gmra.mrb[0].mxu0 %v78
  %v123 = vpop.f32.mrb[0].mxu0
  %v124 = vadd.f32 %v62, %v123
  %v125 = vpop.f32.mrb[0].mxu0
  %v126 = vpop.f32.mrb[0].mxu0
  %v127 = vadd.f32 %v62, %v126
  %v128 = vpop.f32.mrb[0].mxu0
  %129 = vmatprep.mubr.bf16.mxu0 0
  %130 = vmatmul.mubr.bf16.gmra.mrb[0].mxu0 %v81
  %v131 = vpop.f32.mrb[0].mxu0
  %v132 = vadd.f32 %v62, %v131
  %v133 = vpop.f32.mrb[0].mxu0
  %v134 = vpop.f32.mrb[0].mxu0
  %v135 = vadd.f32 %v62, %v134
  %v136 = vpop.f32.mrb[0].mxu0
  %137 = vmatprep.mubr.bf16.mxu0 0
  %138 = vmatmul.mubr.bf16.gmra.mrb[0].mxu0 %v84
  %v139 = vpop.f32.mrb[0].mxu0
  %v140 = vadd.f32 %v62, %v139
  %v141 = vpop.f32.mrb[0].mxu0
  %v142 = vpop.f32.mrb[0].mxu0
  %v143 = vadd.f32 %v62, %v142
  %v144 = vpop.f32.mrb[0].mxu0
  %145 = vmatprep.mubr.bf16.mxu0 0
  %146 = vmatmul.mubr.bf16.gmra.mrb[0].mxu0 %v87
  %v147 = vpop.f32.mrb[0].mxu0
  %v148 = vadd.f32 %v62, %v147
  %v149 = vpop.f32.mrb[0].mxu0
  %v150 = vpop.f32.mrb[0].mxu0
  %v151 = vadd.f32 %v62, %v150
  %v152 = vpop.f32.mrb[0].mxu0
  %153 = vdwg.mxu0
  %154 = vst [vmem:[#allocation2] sm:$0xff] %v124
  %155 = vst [vmem:[#allocation2 + $0x8] sm:$0xff] %v127
  %156 = vst [vmem:[#allocation2 + $0x10] sm:$0xff] %v132
  %157 = vst [vmem:[#allocation2 + $0x18] sm:$0xff] %v135
  %158 = vst [vmem:[#allocation2 + $0x20] sm:$0xff] %v140
  %159 = vst [vmem:[#allocation2 + $0x28] sm:$0xff] %v143
  %160 = vst [vmem:[#allocation2 + $0x30] sm:$0xff] %v148
  %161 = vst [vmem:[#allocation2 + $0x38] sm:$0xff] %v151
  %v162 = vld [vmem:[%s5] sm:$0xf]
  %v163 = vld [vmem:[%s5 + $0x4] sm:$0xf]
  %v164 = vld [vmem:[%s5 + $0x8] sm:$0xf]
  %v165 = vld [vmem:[%s5 + $0xc] sm:$0xf]
  %v166 = vld [vmem:[%s6] sm:$0xf]
  %v167 = vld [vmem:[%s6 + $0x4] sm:$0xf]
  %v168 = vld [vmem:[%s6 + $0x8] sm:$0xf]
  %v169 = vld [vmem:[%s6 + $0xc] sm:$0xf]
  %v170 = vld [vmem:[%s8] sm:$0xf]
  %v171 = vld [vmem:[%s8 + $0x4] sm:$0xf]
  %v172 = vld [vmem:[%s8 + $0x8] sm:$0xf]
  %v173 = vld [vmem:[%s8 + $0xc] sm:$0xf]
  %v174 = vld [vmem:[%s9] sm:$0xf]
  %v175 = vld [vmem:[%s9 + $0x4] sm:$0xf]
  %v176 = vld [vmem:[%s9 + $0x8] sm:$0xf]
  %v177 = vld [vmem:[%s9 + $0xc] sm:$0xf]
  %v178 = vld [vmem:[%s10] sm:$0xf]
  %v179 = vld [vmem:[%s10 + $0x4] sm:$0xf]
  %v180 = vld [vmem:[%s10 + $0x8] sm:$0xf]
  %v181 = vld [vmem:[%s10 + $0xc] sm:$0xf]
  %v182 = vld [vmem:[%s1] sm:$0xff]
  %v183 = vld [vmem:[%s1 + $0x8] sm:$0xff]
  %v184 = vld [vmem:[%s1 + $0x10] sm:$0xff]
  %v185 = vld [vmem:[%s1 + $0x18] sm:$0xff]
  %v186 = vld [vmem:[%s1 + $0x20] sm:$0xff]
  %v187 = vld [vmem:[%s1 + $0x28] sm:$0xff]
  %v188 = vld [vmem:[%s1 + $0x30] sm:$0xff]
  %v189 = vld [vmem:[%s1 + $0x38] sm:$0xff]
  %p190 = scmp.eq.s32.totalorder 0, 0
  // Predicated region
  $region46: #{lstm_model_forward.5} parent=0 // pred_check
    %p191 = pneg %p190
  $region47: #{lstm_model_forward.5} parent=0 // pred_check_branch
    %193 = sbr.rel (%p191) target = $region49
  $region48: #{lstm_model_forward.5} parent=0 // pred_region
    %v194 = vld [vmem:[%s2] sm:$0xff]
    %195 = vst.msk [vmem:[#allocation3] sm:$0xff] %vm76, %v194
    %v196 = vld [vmem:[%s3] sm:$0xff]
    %197 = vst.msk [vmem:[#allocation4] sm:$0xff] %vm76, %v196
    %198 = vst.msk [vmem:[#allocation5] sm:$0xff] %vm76, 0.0
  $region49: #{lstm_model_forward.5} parent=0 // pred_fallthru
    _
  %v199 = vld [vmem:[#allocation3] sm:$0xff]
  %v200 = vld [vmem:[#allocation4] sm:$0xff]
  %v201 = vld [vmem:[#allocation5] sm:$0xff]
  %v202 = vld [vmem:[#allocation2] sm:$0xff]
  %v203 = vpack.c.bf16 %v201, %v201
  %v208 = vunpack.c.l.b16 %v162
  %v209 = vunpack.c.l.b16 %v163
  %v210 = vunpack.c.l.b16 %v164
  %v211 = vunpack.c.l.b16 %v165
  %v212 = vpack.c.b16 %v209, %v208
  %v213 = vpack.c.b16 %v211, %v210
  %v217 = vsel %vm76, %v203, 0
  %219 = vmatprep.subr.bf16.mxu0 0
  %220 = vmatpush1.bf16.msra.mxu0 %v212
  %221 = vmatprep.subr.bf16.mxu0 0
  %222 = vmatpush1.bf16.msra.mxu0 %v213
  %223 = vmatprep.subr.bf16.mxu0 0
  %224 = vmatpush1.bf16.msra.mxu0 0
  %225 = vmatprep.subr.bf16.mxu0 0
  %226 = vmatpush1.bf16.msra.mxu0 0
  %227 = vmatprep.subr.bf16.mxu0 0
  %228 = vmatpush1.bf16.msra.mxu0 0
  %229 = vmatprep.subr.bf16.mxu0 0
  %230 = vmatpush1.bf16.msra.mxu0 0
  %231 = vmatprep.subr.bf16.mxu0 0
  %232 = vmatpush1.bf16.msra.mxu0 0
  %233 = vmatprep.subr.bf16.mxu0 0
  %234 = vmatpush1.bf16.msra.mxu0 0
  %235 = vmatprep.subr.bf16.mxu0 0
  %236 = vmatpush1.bf16.msra.mxu0 0
  %237 = vmatprep.subr.bf16.mxu0 0
  %238 = vmatpush1.bf16.msra.mxu0 0
  %239 = vmatprep.subr.bf16.mxu0 0
  %240 = vmatpush1.bf16.msra.mxu0 0
  %241 = vmatprep.subr.bf16.mxu0 0
  %242 = vmatpush1.bf16.msra.mxu0 0
  %243 = vmatprep.subr.bf16.mxu0 0
  %244 = vmatpush1.bf16.msra.mxu0 0
  %245 = vmatprep.subr.bf16.mxu0 0
  %246 = vmatpush1.bf16.msra.mxu0 0
  %247 = vmatprep.subr.bf16.mxu0 0
  %248 = vmatpush1.bf16.msra.mxu0 0
  %249 = vmatprep.subr.bf16.mxu0 0
  %250 = vmatpush1.bf16.msra.mxu0 0
  %251 = vmatprep.mubr.bf16.mxu0 0
  %252 = vmatmul.mubr.bf16.gmra.mrb[0].mxu0 %v217
  %v253 = vpop.f32.mrb[0].mxu0
  %v254 = vadd.f32 0.0, %v253
  %v255 = vpop.f32.mrb[0].mxu0
  %v256 = vpop.f32.mrb[0].mxu0
  %v257 = vpop.f32.mrb[0].mxu0
  %258 = vdwg.mxu0
  %v259 = vadd.f32 %v202, %v254
  %v260 = vpack.c.bf16 %v199, %v199
  %v265 = vunpack.c.l.b16 %v166
  %v266 = vunpack.c.l.b16 %v167
  %v267 = vunpack.c.l.b16 %v168
  %v268 = vunpack.c.l.b16 %v169
  %v269 = vpack.c.b16 %v266, %v265
  %v270 = vpack.c.b16 %v268, %v267
  %v274 = vsel %vm76, %v260, 0
  %276 = vmatprep.subr.bf16.mxu0 0
  %277 = vmatpush1.bf16.msra.mxu0 %v269
  %278 = vmatprep.subr.bf16.mxu0 0
  %279 = vmatpush1.bf16.msra.mxu0 %v270
  %280 = vmatprep.subr.bf16.mxu0 0
  %281 = vmatpush1.bf16.msra.mxu0 0
  %282 = vmatprep.subr.bf16.mxu0 0
  %283 = vmatpush1.bf16.msra.mxu0 0
  %284 = vmatprep.subr.bf16.mxu0 0
  %285 = vmatpush1.bf16.msra.mxu0 0
  %286 = vmatprep.subr.bf16.mxu0 0
  %287 = vmatpush1.bf16.msra.mxu0 0
  %288 = vmatprep.subr.bf16.mxu0 0
  %289 = vmatpush1.bf16.msra.mxu0 0
  %290 = vmatprep.subr.bf16.mxu0 0
  %291 = vmatpush1.bf16.msra.mxu0 0
  %292 = vmatprep.subr.bf16.mxu0 0
  %293 = vmatpush1.bf16.msra.mxu0 0
  %294 = vmatprep.subr.bf16.mxu0 0
  %295 = vmatpush1.bf16.msra.mxu0 0
  %296 = vmatprep.subr.bf16.mxu0 0
  %297 = vmatpush1.bf16.msra.mxu0 0
  %298 = vmatprep.subr.bf16.mxu0 0
  %299 = vmatpush1.bf16.msra.mxu0 0
  %300 = vmatprep.subr.bf16.mxu0 0
  %301 = vmatpush1.bf16.msra.mxu0 0
  %302 = vmatprep.subr.bf16.mxu0 0
  %303 = vmatpush1.bf16.msra.mxu0 0
  %304 = vmatprep.subr.bf16.mxu0 0
  %305 = vmatpush1.bf16.msra.mxu0 0
  %306 = vmatprep.subr.bf16.mxu0 0
  %307 = vmatpush1.bf16.msra.mxu0 0
  %308 = vmatprep.mubr.bf16.mxu0 0
  %309 = vmatmul.mubr.bf16.gmra.mrb[0].mxu0 %v274
  %v310 = vpop.f32.mrb[0].mxu0
  %v311 = vadd.f32 0.0, %v310
  %v312 = vpop.f32.mrb[0].mxu0
  %v313 = vpop.f32.mrb[0].mxu0
  %v314 = vpop.f32.mrb[0].mxu0
  %315 = vdwg.mxu0
  %v316 = vadd.f32 %v259, %v311
  %v317 = vxor.u32 %v316, 2147483648
  %v318 = vmul.f32 %v317, 1.442695
  %v319 = vpow.pop %v318
  %v320 = vadd.f32 %v319, 1.0
  %v321 = vrcp.pop %v320
  %v322 = vmul.f32 1.0, %v321
  %v323 = vtanh.pop %v316
  %325 = vrot.lane.b32.xlu0 %v200, 32
  %v326 = vpop.permute.xlu0 %325
  %v328 = vmul.f32 %v322, %v326
  %330 = vrot.lane.b32.xlu0 %v323, 64
  %v331 = vpop.permute.xlu0 %330
  %v333 = vmul.f32 %v322, %v331
  %335 = vrot.lane.b32.xlu0 %v333, 32
  %v336 = vpop.permute.xlu0 %335
  %v338 = vadd.f32 %v328, %v336
  %v339 = vtanh.pop %v338
  %341 = vrot.lane.b32.xlu0 %v339, 64
  %v342 = vpop.permute.xlu0 %341
  %v344 = vmul.f32 %v322, %v342
  %v345 = vpack.c.bf16 %v344, %v344
  %347 = vrot.lane.b32.xlu0 %v345, 32
  %v348 = vpop.permute.xlu0 %347
  %v353 = vunpack.c.l.b16 %v170
  %v354 = vunpack.c.l.b16 %v171
  %v355 = vunpack.c.l.b16 %v172
  %v356 = vunpack.c.l.b16 %v173
  %v357 = vpack.c.b16 %v354, %v353
  %v358 = vpack.c.b16 %v356, %v355
  %v362 = vsel %vm76, %v348, 0
  %364 = vmatprep.subr.bf16.mxu0 0
  %365 = vmatpush1.bf16.msra.mxu0 %v357
  %366 = vmatprep.subr.bf16.mxu0 0
  %367 = vmatpush1.bf16.msra.mxu0 %v358
  %368 = vmatprep.subr.bf16.mxu0 0
  %369 = vmatpush1.bf16.msra.mxu0 0
  %370 = vmatprep.subr.bf16.mxu0 0
  %371 = vmatpush1.bf16.msra.mxu0 0
  %372 = vmatprep.subr.bf16.mxu0 0
  %373 = vmatpush1.bf16.msra.mxu0 0
  %374 = vmatprep.subr.bf16.mxu0 0
  %375 = vmatpush1.bf16.msra.mxu0 0
  %376 = vmatprep.subr.bf16.mxu0 0
  %377 = vmatpush1.bf16.msra.mxu0 0
  %378 = vmatprep.subr.bf16.mxu0 0
  %379 = vmatpush1.bf16.msra.mxu0 0
  %380 = vmatprep.subr.bf16.mxu0 0
  %381 = vmatpush1.bf16.msra.mxu0 0
  %382 = vmatprep.subr.bf16.mxu0 0
  %383 = vmatpush1.bf16.msra.mxu0 0
  %384 = vmatprep.subr.bf16.mxu0 0
  %385 = vmatpush1.bf16.msra.mxu0 0
  %386 = vmatprep.subr.bf16.mxu0 0
  %387 = vmatpush1.bf16.msra.mxu0 0
  %388 = vmatprep.subr.bf16.mxu0 0
  %389 = vmatpush1.bf16.msra.mxu0 0
  %390 = vmatprep.subr.bf16.mxu0 0
  %391 = vmatpush1.bf16.msra.mxu0 0
  %392 = vmatprep.subr.bf16.mxu0 0
  %393 = vmatpush1.bf16.msra.mxu0 0
  %394 = vmatprep.subr.bf16.mxu0 0
  %395 = vmatpush1.bf16.msra.mxu0 0
  %396 = vmatprep.mubr.bf16.mxu0 0
  %397 = vmatmul.mubr.bf16.gmra.mrb[0].mxu0 %v362
  %v398 = vpop.f32.mrb[0].mxu0
  %v399 = vadd.f32 0.0, %v398
  %v400 = vpop.f32.mrb[0].mxu0
  %v401 = vpop.f32.mrb[0].mxu0
  %v402 = vpop.f32.mrb[0].mxu0
  %403 = vdwg.mxu0
  %v405 = vcombine.high %v399, %v399
  %v407 = vunpack.c.l.s4 1966171168
  %v408 = vunpack.c.0.s8 %v407
  %v409 = vlaneseq
  %v410 = vshrl.u32 %v409, 7
  %v411 = vsub.s32 %v408, %v410
  %v412 = vrot.slane %v399, %v411
  %v414 = vunpack.c.l.s4 1966171168
  %v415 = vunpack.c.0.s8 %v414
  %v416 = vlaneseq
  %v417 = vshrl.u32 %v416, 7
  %v418 = vsub.s32 %v415, %v417
  %v419 = vrot.slane %v405, %v418
  %v420 = vcombine.high %v412, %v412
  %v421 = vcombine.high %v419, %v419
  %v423 = vunpack.c.l.s4 1966171168
  %v424 = vunpack.c.0.s8 %v423
  %v425 = vlaneseq
  %v426 = vshrl.u32 %v425, 7
  %v427 = vsub.s32 %v424, %v426
  %v428 = vrot.slane %v412, %v427
  %v430 = vunpack.c.l.s4 1966171168
  %v431 = vunpack.c.0.s8 %v430
  %v432 = vlaneseq
  %v433 = vshrl.u32 %v432, 7
  %v434 = vsub.s32 %v431, %v433
  %v435 = vrot.slane %v419, %v434
  %v437 = vunpack.c.l.s4 1966171168
  %v438 = vunpack.c.0.s8 %v437
  %v439 = vlaneseq
  %v440 = vshrl.u32 %v439, 7
  %v441 = vsub.s32 %v438, %v440
  %v442 = vrot.slane %v420, %v441
  %v444 = vunpack.c.l.s4 1966171168
  %v445 = vunpack.c.0.s8 %v444
  %v446 = vlaneseq
  %v447 = vshrl.u32 %v446, 7
  %v448 = vsub.s32 %v445, %v447
  %v449 = vrot.slane %v421, %v448
  %v450 = vcombine.high %v428, %v428
  %v451 = vcombine.high %v435, %v435
  %v452 = vcombine.high %v442, %v442
  %v453 = vcombine.high %v449, %v449
  %v454 = vlaneseq
  %v455 = vshrl.u32 %v454, 7
  %v456 = vsub.s32 0, %v455
  %v457 = vrot.slane %v428, %v456
  %v458 = vlaneseq
  %v459 = vshrl.u32 %v458, 7
  %v460 = vsub.s32 0, %v459
  %v461 = vrot.slane %v442, %v460
  %v462 = vlaneseq
  %v463 = vshrl.u32 %v462, 7
  %v464 = vsub.s32 0, %v463
  %v465 = vrot.slane %v450, %v464
  %v466 = vlaneseq
  %v467 = vshrl.u32 %v466, 7
  %v468 = vsub.s32 0, %v467
  %v469 = vrot.slane %v452, %v468
  %v470 = vlaneseq
  %v471 = vshrl.u32 %v470, 7
  %v472 = vsub.s32 0, %v471
  %v473 = vrot.slane %v435, %v472
  %v474 = vlaneseq
  %v475 = vshrl.u32 %v474, 7
  %v476 = vsub.s32 0, %v475
  %v477 = vrot.slane %v449, %v476
  %v478 = vlaneseq
  %v479 = vshrl.u32 %v478, 7
  %v480 = vsub.s32 0, %v479
  %v481 = vrot.slane %v451, %v480
  %v482 = vlaneseq
  %v483 = vshrl.u32 %v482, 7
  %v484 = vsub.s32 0, %v483
  %v485 = vrot.slane %v453, %v484
  %v494 = vmul.f32 %v182, %v457
  %v495 = vmul.f32 %v183, %v461
  %v496 = vmul.f32 %v184, %v465
  %v497 = vmul.f32 %v185, %v469
  %v498 = vmul.f32 %v186, %v473
  %v499 = vmul.f32 %v187, %v477
  %v500 = vmul.f32 %v188, %v481
  %v501 = vmul.f32 %v189, %v485
  %v502 = vsel %vm76, %v494, 0.0
  %503 = vadd.xlane.f32.xlu0 %v502
  %v504 = vpop.xlane.xlu0 %503
  %v505 = vsel %vm76, %v495, 0.0
  %506 = vadd.xlane.f32.xlu0 %v505
  %v507 = vpop.xlane.xlu0 %506
  %v508 = vsel %vm76, %v496, 0.0
  %509 = vadd.xlane.f32.xlu0 %v508
  %v510 = vpop.xlane.xlu0 %509
  %v511 = vsel %vm76, %v497, 0.0
  %512 = vadd.xlane.f32.xlu0 %v511
  %v513 = vpop.xlane.xlu0 %512
  %v514 = vsel %vm76, %v498, 0.0
  %515 = vadd.xlane.f32.xlu0 %v514
  %v516 = vpop.xlane.xlu0 %515
  %v517 = vsel %vm76, %v499, 0.0
  %518 = vadd.xlane.f32.xlu0 %v517
  %v519 = vpop.xlane.xlu0 %518
  %v520 = vsel %vm76, %v500, 0.0
  %521 = vadd.xlane.f32.xlu0 %v520
  %v522 = vpop.xlane.xlu0 %521
  %v523 = vsel %vm76, %v501, 0.0
  %524 = vadd.xlane.f32.xlu0 %v523
  %v525 = vpop.xlane.xlu0 %524
  %v534 = vlaneseq
  %v535 = vand.u32 %v534, 127
  %v536 = vlaneseq
  %v537 = vshrl.u32 %v536, 7
  %v538 = vsub.s32 %v535, %v537
  %v539 = vrot.slane %v504, %v538
  %v540 = vlaneseq
  %v541 = vshrl.u32 %v540, 7
  %v542 = vsub.s32 %v535, %v541
  %v543 = vrot.slane %v507, %v542
  %v544 = vlaneseq
  %v545 = vshrl.u32 %v544, 7
  %v546 = vsub.s32 %v535, %v545
  %v547 = vrot.slane %v510, %v546
  %v548 = vlaneseq
  %v549 = vshrl.u32 %v548, 7
  %v550 = vsub.s32 %v535, %v549
  %v551 = vrot.slane %v513, %v550
  %v552 = vlaneseq
  %v553 = vshrl.u32 %v552, 7
  %v554 = vsub.s32 %v535, %v553
  %v555 = vrot.slane %v516, %v554
  %v556 = vlaneseq
  %v557 = vshrl.u32 %v556, 7
  %v558 = vsub.s32 %v535, %v557
  %v559 = vrot.slane %v519, %v558
  %v560 = vlaneseq
  %v561 = vshrl.u32 %v560, 7
  %v562 = vsub.s32 %v535, %v561
  %v563 = vrot.slane %v522, %v562
  %v564 = vlaneseq
  %v565 = vshrl.u32 %v564, 7
  %v566 = vsub.s32 %v535, %v565
  %v567 = vrot.slane %v525, %v566
  %vm568 = vcmask 1041409
  %v569 = vsel %vm568, %v543, %v539
  %vm570 = vcmask 1042434
  %v571 = vsel %vm570, %v547, %v569
  %vm572 = vcmask 1043459
  %v573 = vsel %vm572, %v551, %v571
  %vm574 = vcmask 1044484
  %v575 = vsel %vm574, %v555, %v573
  %vm576 = vcmask 1045509
  %v577 = vsel %vm576, %v559, %v575
  %vm578 = vcmask 1046534
  %v579 = vsel %vm578, %v563, %v577
  %vm580 = vcmask 1047559
  %v581 = vsel %vm580, %v567, %v579
  %vm583 = vcmask 64512
  %v584 = vsel %vm583, %v581, -inf
  %585 = vmax.xlane.f32.xlu0 %v584
  %v586 = vpop.xlane.xlu0 %585
  %v588 = vlaneseq
  %v589 = vshrl.u32 %v588, 7
  %v590 = vsub.s32 0, %v589
  %v591 = vrot.slane %v586, %v590
  %v592 = vlaneseq
  %v593 = vshrl.u32 %v592, 7
  %v594 = vsub.s32 1, %v593
  %v595 = vrot.slane %v586, %v594
  %v596 = vlaneseq
  %v597 = vshrl.u32 %v596, 7
  %v598 = vsub.s32 2, %v597
  %v599 = vrot.slane %v586, %v598
  %v600 = vlaneseq
  %v601 = vshrl.u32 %v600, 7
  %v602 = vsub.s32 3, %v601
  %v603 = vrot.slane %v586, %v602
  %v604 = vlaneseq
  %v605 = vshrl.u32 %v604, 7
  %v606 = vsub.s32 4, %v605
  %v607 = vrot.slane %v586, %v606
  %v608 = vlaneseq
  %v609 = vshrl.u32 %v608, 7
  %v610 = vsub.s32 5, %v609
  %v611 = vrot.slane %v586, %v610
  %v612 = vlaneseq
  %v613 = vshrl.u32 %v612, 7
  %v614 = vsub.s32 6, %v613
  %v615 = vrot.slane %v586, %v614
  %v616 = vlaneseq
  %v617 = vshrl.u32 %v616, 7
  %v618 = vsub.s32 7, %v617
  %v619 = vrot.slane %v586, %v618
  %v628 = vsub.f32 %v504, %v591
  %v629 = vsub.f32 %v507, %v595
  %v630 = vsub.f32 %v510, %v599
  %v631 = vsub.f32 %v513, %v603
  %v632 = vsub.f32 %v516, %v607
  %v633 = vsub.f32 %v519, %v611
  %v634 = vsub.f32 %v522, %v615
  %v635 = vsub.f32 %v525, %v619
  %v636 = vmul.f32 %v628, 1.442695
  %v637 = vpow.pop %v636
  %v638 = vmul.f32 %v629, 1.442695
  %v639 = vpow.pop %v638
  %v640 = vmul.f32 %v630, 1.442695
  %v641 = vpow.pop %v640
  %v642 = vmul.f32 %v631, 1.442695
  %v643 = vpow.pop %v642
  %v644 = vmul.f32 %v632, 1.442695
  %v645 = vpow.pop %v644
  %v646 = vmul.f32 %v633, 1.442695
  %v647 = vpow.pop %v646
  %v648 = vmul.f32 %v634, 1.442695
  %v649 = vpow.pop %v648
  %v650 = vmul.f32 %v635, 1.442695
  %v651 = vpow.pop %v650
  %660 = vset.pattern.permute.xlu0 0
  %661 = vperm.xlu0 %660, %v637
  %v662 = vpop.permute.xlu0 %661
  %663 = vset.pattern.permute.xlu0 0
  %664 = vperm.xlu0 %663, %v639
  %v665 = vpop.permute.xlu0 %664
  %666 = vset.pattern.permute.xlu0 0
  %667 = vperm.xlu0 %666, %v641
  %v668 = vpop.permute.xlu0 %667
  %669 = vset.pattern.permute.xlu0 0
  %670 = vperm.xlu0 %669, %v643
  %v671 = vpop.permute.xlu0 %670
  %672 = vset.pattern.permute.xlu0 0
  %673 = vperm.xlu0 %672, %v645
  %v674 = vpop.permute.xlu0 %673
  %675 = vset.pattern.permute.xlu0 0
  %676 = vperm.xlu0 %675, %v647
  %v677 = vpop.permute.xlu0 %676
  %678 = vset.pattern.permute.xlu0 0
  %679 = vperm.xlu0 %678, %v649
  %v680 = vpop.permute.xlu0 %679
  %681 = vset.pattern.permute.xlu0 0
  %682 = vperm.xlu0 %681, %v651
  %v683 = vpop.permute.xlu0 %682
  %v684 = vlaneseq
  %v685 = vshrl.u32 %v684, 7
  %v686 = vsub.s32 %v535, %v685
  %v687 = vrot.slane %v662, %v686
  %v688 = vlaneseq
  %v689 = vshrl.u32 %v688, 7
  %v690 = vsub.s32 %v535, %v689
  %v691 = vrot.slane %v665, %v690
  %v692 = vlaneseq
  %v693 = vshrl.u32 %v692, 7
  %v694 = vsub.s32 %v535, %v693
  %v695 = vrot.slane %v668, %v694
  %v696 = vlaneseq
  %v697 = vshrl.u32 %v696, 7
  %v698 = vsub.s32 %v535, %v697
  %v699 = vrot.slane %v671, %v698
  %v700 = vlaneseq
  %v701 = vshrl.u32 %v700, 7
  %v702 = vsub.s32 %v535, %v701
  %v703 = vrot.slane %v674, %v702
  %v704 = vlaneseq
  %v705 = vshrl.u32 %v704, 7
  %v706 = vsub.s32 %v535, %v705
  %v707 = vrot.slane %v677, %v706
  %v708 = vlaneseq
  %v709 = vshrl.u32 %v708, 7
  %v710 = vsub.s32 %v535, %v709
  %v711 = vrot.slane %v680, %v710
  %v712 = vlaneseq
  %v713 = vshrl.u32 %v712, 7
  %v714 = vsub.s32 %v535, %v713
  %v715 = vrot.slane %v683, %v714
  %v716 = vsel %vm568, %v691, %v687
  %v717 = vsel %vm570, %v695, %v716
  %v718 = vsel %vm572, %v699, %v717
  %v719 = vsel %vm574, %v703, %v718
  %v720 = vsel %vm576, %v707, %v719
  %v721 = vsel %vm578, %v711, %v720
  %v722 = vsel %vm580, %v715, %v721
  %v724 = vsel %vm583, %v722, 0.0
  %725 = vadd.xlane.f32.xlu0 %v724
  %v726 = vpop.xlane.xlu0 %725
  %v728 = vlaneseq
  %v729 = vshrl.u32 %v728, 7
  %v730 = vsub.s32 0, %v729
  %v731 = vrot.slane %v726, %v730
  %v732 = vlaneseq
  %v733 = vshrl.u32 %v732, 7
  %v734 = vsub.s32 1, %v733
  %v735 = vrot.slane %v726, %v734
  %v736 = vlaneseq
  %v737 = vshrl.u32 %v736, 7
  %v738 = vsub.s32 2, %v737
  %v739 = vrot.slane %v726, %v738
  %v740 = vlaneseq
  %v741 = vshrl.u32 %v740, 7
  %v742 = vsub.s32 3, %v741
  %v743 = vrot.slane %v726, %v742
  %v744 = vlaneseq
  %v745 = vshrl.u32 %v744, 7
  %v746 = vsub.s32 4, %v745
  %v747 = vrot.slane %v726, %v746
  %v748 = vlaneseq
  %v749 = vshrl.u32 %v748, 7
  %v750 = vsub.s32 5, %v749
  %v751 = vrot.slane %v726, %v750
  %v752 = vlaneseq
  %v753 = vshrl.u32 %v752, 7
  %v754 = vsub.s32 6, %v753
  %v755 = vrot.slane %v726, %v754
  %v756 = vlaneseq
  %v757 = vshrl.u32 %v756, 7
  %v758 = vsub.s32 7, %v757
  %v759 = vrot.slane %v726, %v758
  %v768 = vrcp.pop %v731
  %v769 = vmul.f32 %v637, %v768
  %v770 = vrcp.pop %v735
  %v771 = vmul.f32 %v639, %v770
  %v772 = vrcp.pop %v739
  %v773 = vmul.f32 %v641, %v772
  %v774 = vrcp.pop %v743
  %v775 = vmul.f32 %v643, %v774
  %v776 = vrcp.pop %v747
  %v777 = vmul.f32 %v645, %v776
  %v778 = vrcp.pop %v751
  %v779 = vmul.f32 %v647, %v778
  %v780 = vrcp.pop %v755
  %v781 = vmul.f32 %v649, %v780
  %v782 = vrcp.pop %v759
  %v783 = vmul.f32 %v651, %v782
  %785 = vset.pattern.permute.xlu0 0
  %786 = vperm.xlu0 %785, %v769
  %v787 = vpop.permute.xlu0 %786
  %790 = vset.pattern.permute.xlu0 0
  %791 = vperm.xlu0 %790, %v771
  %v792 = vpop.permute.xlu0 %791
  %795 = vset.pattern.permute.xlu0 0
  %796 = vperm.xlu0 %795, %v773
  %v797 = vpop.permute.xlu0 %796
  %800 = vset.pattern.permute.xlu0 0
  %801 = vperm.xlu0 %800, %v775
  %v802 = vpop.permute.xlu0 %801
  %805 = vset.pattern.permute.xlu0 0
  %806 = vperm.xlu0 %805, %v777
  %v807 = vpop.permute.xlu0 %806
  %810 = vset.pattern.permute.xlu0 0
  %811 = vperm.xlu0 %810, %v779
  %v812 = vpop.permute.xlu0 %811
  %815 = vset.pattern.permute.xlu0 0
  %816 = vperm.xlu0 %815, %v781
  %v817 = vpop.permute.xlu0 %816
  %820 = vset.pattern.permute.xlu0 0
  %821 = vperm.xlu0 %820, %v783
  %v822 = vpop.permute.xlu0 %821
  %v824 = vmul.f32 %v787, %v182
  %v825 = vmul.f32 %v792, %v183
  %v826 = vmul.f32 %v797, %v184
  %v827 = vmul.f32 %v802, %v185
  %v828 = vmul.f32 %v807, %v186
  %v829 = vmul.f32 %v812, %v187
  %v830 = vmul.f32 %v817, %v188
  %v831 = vmul.f32 %v822, %v189
  %v832 = vsel %vm76, %v824, 0.0
  %v833 = vrot.slane %v832, 4
  %v834 = vadd.f32 %v832, %v833
  %v835 = vrot.slane %v834, 2
  %v836 = vadd.f32 %v834, %v835
  %v837 = vrot.slane %v836, 1
  %v838 = vadd.f32 %v836, %v837
  %v839 = vsel %vm76, %v825, 0.0
  %v840 = vrot.slane %v839, 4
  %v841 = vadd.f32 %v839, %v840
  %v842 = vrot.slane %v841, 2
  %v843 = vadd.f32 %v841, %v842
  %v844 = vrot.slane %v843, 1
  %v845 = vadd.f32 %v843, %v844
  %v846 = vsel %vm76, %v826, 0.0
  %v847 = vrot.slane %v846, 4
  %v848 = vadd.f32 %v846, %v847
  %v849 = vrot.slane %v848, 2
  %v850 = vadd.f32 %v848, %v849
  %v851 = vrot.slane %v850, 1
  %v852 = vadd.f32 %v850, %v851
  %v853 = vsel %vm76, %v827, 0.0
  %v854 = vrot.slane %v853, 4
  %v855 = vadd.f32 %v853, %v854
  %v856 = vrot.slane %v855, 2
  %v857 = vadd.f32 %v855, %v856
  %v858 = vrot.slane %v857, 1
  %v859 = vadd.f32 %v857, %v858
  %v860 = vsel %vm76, %v828, 0.0
  %v861 = vrot.slane %v860, 4
  %v862 = vadd.f32 %v860, %v861
  %v863 = vrot.slane %v862, 2
  %v864 = vadd.f32 %v862, %v863
  %v865 = vrot.slane %v864, 1
  %v866 = vadd.f32 %v864, %v865
  %v867 = vsel %vm76, %v829, 0.0
  %v868 = vrot.slane %v867, 4
  %v869 = vadd.f32 %v867, %v868
  %v870 = vrot.slane %v869, 2
  %v871 = vadd.f32 %v869, %v870
  %v872 = vrot.slane %v871, 1
  %v873 = vadd.f32 %v871, %v872
  %v874 = vsel %vm76, %v830, 0.0
  %v875 = vrot.slane %v874, 4
  %v876 = vadd.f32 %v874, %v875
  %v877 = vrot.slane %v876, 2
  %v878 = vadd.f32 %v876, %v877
  %v879 = vrot.slane %v878, 1
  %v880 = vadd.f32 %v878, %v879
  %v881 = vsel %vm76, %v831, 0.0
  %v882 = vrot.slane %v881, 4
  %v883 = vadd.f32 %v881, %v882
  %v884 = vrot.slane %v883, 2
  %v885 = vadd.f32 %v883, %v884
  %v886 = vrot.slane %v885, 1
  %v887 = vadd.f32 %v885, %v886
  %v888 = vpack.c.bf16 %v838, %v838
  %v889 = vpack.c.bf16 %v845, %v845
  %v890 = vpack.c.bf16 %v852, %v852
  %v891 = vpack.c.bf16 %v859, %v859
  %v892 = vpack.c.bf16 %v866, %v866
  %v893 = vpack.c.bf16 %v873, %v873
  %v894 = vpack.c.bf16 %v880, %v880
  %v895 = vpack.c.bf16 %v887, %v887
  %v900 = vunpack.c.l.b16 %v178
  %v901 = vunpack.c.l.b16 %v179
  %v902 = vunpack.c.l.b16 %v180
  %v903 = vunpack.c.l.b16 %v181
  %v904 = vpack.c.b16 %v901, %v900
  %v905 = vpack.c.b16 %v903, %v902
  %908 = vmatprep.subr.bf16.mxu0 0
  %909 = vmatpush1.bf16.msra.mxu0 %v904
  %910 = vmatprep.subr.bf16.mxu0 0
  %911 = vmatpush1.bf16.msra.mxu0 %v905
  %912 = vmatprep.subr.bf16.mxu0 0
  %913 = vmatpush1.bf16.msra.mxu0 0
  %914 = vmatprep.subr.bf16.mxu0 0
  %915 = vmatpush1.bf16.msra.mxu0 0
  %916 = vmatprep.subr.bf16.mxu0 0
  %917 = vmatpush1.bf16.msra.mxu0 0
  %918 = vmatprep.subr.bf16.mxu0 0
  %919 = vmatpush1.bf16.msra.mxu0 0
  %920 = vmatprep.subr.bf16.mxu0 0
  %921 = vmatpush1.bf16.msra.mxu0 0
  %922 = vmatprep.subr.bf16.mxu0 0
  %923 = vmatpush1.bf16.msra.mxu0 0
  %924 = vmatprep.subr.bf16.mxu0 0
  %925 = vmatpush1.bf16.msra.mxu0 0
  %926 = vmatprep.subr.bf16.mxu0 0
  %927 = vmatpush1.bf16.msra.mxu0 0
  %928 = vmatprep.subr.bf16.mxu0 0
  %929 = vmatpush1.bf16.msra.mxu0 0
  %930 = vmatprep.subr.bf16.mxu0 0
  %931 = vmatpush1.bf16.msra.mxu0 0
  %932 = vmatprep.subr.bf16.mxu0 0
  %933 = vmatpush1.bf16.msra.mxu0 0
  %934 = vmatprep.subr.bf16.mxu0 0
  %935 = vmatpush1.bf16.msra.mxu0 0
  %936 = vmatprep.subr.bf16.mxu0 0
  %937 = vmatpush1.bf16.msra.mxu0 0
  %938 = vmatprep.subr.bf16.mxu0 0
  %939 = vmatpush1.bf16.msra.mxu0 0
  %940 = vmatprep.mubr.bf16.mxu0 0
  %941 = vmatmul.mubr.bf16.gmra.mrb[0].mxu0 %v362
  %v942 = vpop.f32.mrb[0].mxu0
  %v943 = vadd.f32 0.0, %v942
  %v944 = vpop.f32.mrb[0].mxu0
  %v945 = vpop.f32.mrb[0].mxu0
  %v946 = vpop.f32.mrb[0].mxu0
  %947 = vdwg.mxu0
  %v956 = vunpack.c.l.b16 %v888
  %v957 = vunpack.c.l.b16 %v889
  %v958 = vunpack.c.l.b16 %v890
  %v959 = vunpack.c.l.b16 %v891
  %v960 = vunpack.c.l.b16 %v892
  %v961 = vunpack.c.l.b16 %v893
  %v962 = vunpack.c.l.b16 %v894
  %v963 = vunpack.c.l.b16 %v895
  %v964 = vsel %vm568, %v957, %v956
  %v965 = vsel %vm570, %v958, %v964
  %v966 = vsel %vm572, %v959, %v965
  %v967 = vsel %vm574, %v960, %v966
  %v968 = vsel %vm576, %v961, %v967
  %v969 = vsel %vm578, %v962, %v968
  %v970 = vsel %vm580, %v963, %v969
  %v971 = vpack.c.b16 %v970, %v970
  %v976 = vunpack.c.l.b16 %v174
  %v977 = vunpack.c.l.b16 %v175
  %v978 = vunpack.c.l.b16 %v176
  %v979 = vunpack.c.l.b16 %v177
  %v980 = vpack.c.b16 %v977, %v976
  %v981 = vpack.c.b16 %v979, %v978
  %v985 = vsel %vm76, %v971, 0
  %987 = vmatprep.subr.bf16.mxu0 0
  %988 = vmatpush1.bf16.msra.mxu0 %v980
  %989 = vmatprep.subr.bf16.mxu0 0
  %990 = vmatpush1.bf16.msra.mxu0 %v981
  %991 = vmatprep.subr.bf16.mxu0 0
  %992 = vmatpush1.bf16.msra.mxu0 0
  %993 = vmatprep.subr.bf16.mxu0 0
  %994 = vmatpush1.bf16.msra.mxu0 0
  %995 = vmatprep.subr.bf16.mxu0 0
  %996 = vmatpush1.bf16.msra.mxu0 0
  %997 = vmatprep.subr.bf16.mxu0 0
  %998 = vmatpush1.bf16.msra.mxu0 0
  %999 = vmatprep.subr.bf16.mxu0 0
  %1000 = vmatpush1.bf16.msra.mxu0 0
  %1001 = vmatprep.subr.bf16.mxu0 0
  %1002 = vmatpush1.bf16.msra.mxu0 0
  %1003 = vmatprep.subr.bf16.mxu0 0
  %1004 = vmatpush1.bf16.msra.mxu0 0
  %1005 = vmatprep.subr.bf16.mxu0 0
  %1006 = vmatpush1.bf16.msra.mxu0 0
  %1007 = vmatprep.subr.bf16.mxu0 0
  %1008 = vmatpush1.bf16.msra.mxu0 0
  %1009 = vmatprep.subr.bf16.mxu0 0
  %1010 = vmatpush1.bf16.msra.mxu0 0
  %1011 = vmatprep.subr.bf16.mxu0 0
  %1012 = vmatpush1.bf16.msra.mxu0 0
  %1013 = vmatprep.subr.bf16.mxu0 0
  %1014 = vmatpush1.bf16.msra.mxu0 0
  %1015 = vmatprep.subr.bf16.mxu0 0
  %1016 = vmatpush1.bf16.msra.mxu0 0
  %1017 = vmatprep.subr.bf16.mxu0 0
  %1018 = vmatpush1.bf16.msra.mxu0 0
  %1019 = vmatprep.mubr.bf16.mxu0 0
  %1020 = vmatmul.mubr.bf16.gmra.mrb[0].mxu0 %v985
  %v1021 = vpop.f32.mrb[0].mxu0
  %v1022 = vadd.f32 %v943, %v1021
  %v1023 = vpop.f32.mrb[0].mxu0
  %v1024 = vpop.f32.mrb[0].mxu0
  %v1025 = vpop.f32.mrb[0].mxu0
  %1026 = vdwg.mxu0
  %v1027 = vtanh.pop %v1022
  %1028 = vst.msk [vmem:[%s11] sm:$0xff] %vm76, %v1027
  %v1029 = vlaneseq
  %v1030 = vshrl.u32 %v1029, 7
  %v1031 = vsub.s32 %v535, %v1030
  %v1032 = vrot.slane %v787, %v1031
  %v1033 = vlaneseq
  %v1034 = vshrl.u32 %v1033, 7
  %v1035 = vsub.s32 %v535, %v1034
  %v1036 = vrot.slane %v792, %v1035
  %v1037 = vlaneseq
  %v1038 = vshrl.u32 %v1037, 7
  %v1039 = vsub.s32 %v535, %v1038
  %v1040 = vrot.slane %v797, %v1039
  %v1041 = vlaneseq
  %v1042 = vshrl.u32 %v1041, 7
  %v1043 = vsub.s32 %v535, %v1042
  %v1044 = vrot.slane %v802, %v1043
  %v1045 = vlaneseq
  %v1046 = vshrl.u32 %v1045, 7
  %v1047 = vsub.s32 %v535, %v1046
  %v1048 = vrot.slane %v807, %v1047
  %v1049 = vlaneseq
  %v1050 = vshrl.u32 %v1049, 7
  %v1051 = vsub.s32 %v535, %v1050
  %v1052 = vrot.slane %v812, %v1051
  %v1053 = vlaneseq
  %v1054 = vshrl.u32 %v1053, 7
  %v1055 = vsub.s32 %v535, %v1054
  %v1056 = vrot.slane %v817, %v1055
  %v1057 = vlaneseq
  %v1058 = vshrl.u32 %v1057, 7
  %v1059 = vsub.s32 %v535, %v1058
  %v1060 = vrot.slane %v822, %v1059
  %v1061 = vsel %vm568, %v1036, %v1032
  %v1062 = vsel %vm570, %v1040, %v1061
  %v1063 = vsel %vm572, %v1044, %v1062
  %v1064 = vsel %vm574, %v1048, %v1063
  %v1065 = vsel %vm576, %v1052, %v1064
  %v1066 = vsel %vm578, %v1056, %v1065
  %v1067 = vsel %vm580, %v1060, %v1066
  %1069 = vst.msk [vmem:[%s12] sm:$0xff] %vm583, %v1067
  %s1070 = scalar_lea.vmem [#allocation2], 8
  %v1071 = vld [vmem:[%s1070] sm:$0xff]
  %v1072 = vpack.c.bf16 %v1027, %v1027
  %v1074 = vsel %vm76, %v1072, 0
  %1076 = vmatprep.subr.bf16.mxu0 0
  %1077 = vmatpush1.bf16.msra.mxu0 %v212
  %1078 = vmatprep.subr.bf16.mxu0 0
  %1079 = vmatpush1.bf16.msra.mxu0 %v213
  %1080 = vmatprep.subr.bf16.mxu0 0
  %1081 = vmatpush1.bf16.msra.mxu0 0
  %1082 = vmatprep.subr.bf16.mxu0 0
  %1083 = vmatpush1.bf16.msra.mxu0 0
  %1084 = vmatprep.subr.bf16.mxu0 0
  %1085 = vmatpush1.bf16.msra.mxu0 0
  %1086 = vmatprep.subr.bf16.mxu0 0
  %1087 = vmatpush1.bf16.msra.mxu0 0
  %1088 = vmatprep.subr.bf16.mxu0 0
  %1089 = vmatpush1.bf16.msra.mxu0 0
  %1090 = vmatprep.subr.bf16.mxu0 0
  %1091 = vmatpush1.bf16.msra.mxu0 0
  %1092 = vmatprep.subr.bf16.mxu0 0
  %1093 = vmatpush1.bf16.msra.mxu0 0
  %1094 = vmatprep.subr.bf16.mxu0 0
  %1095 = vmatpush1.bf16.msra.mxu0 0
  %1096 = vmatprep.subr.bf16.mxu0 0
  %1097 = vmatpush1.bf16.msra.mxu0 0
  %1098 = vmatprep.subr.bf16.mxu0 0
  %1099 = vmatpush1.bf16.msra.mxu0 0
  %1100 = vmatprep.subr.bf16.mxu0 0
  %1101 = vmatpush1.bf16.msra.mxu0 0
  %1102 = vmatprep.subr.bf16.mxu0 0
  %1103 = vmatpush1.bf16.msra.mxu0 0
  %1104 = vmatprep.subr.bf16.mxu0 0
  %1105 = vmatpush1.bf16.msra.mxu0 0
  %1106 = vmatprep.subr.bf16.mxu0 0
  %1107 = vmatpush1.bf16.msra.mxu0 0
  %1108 = vmatprep.mubr.bf16.mxu0 0
  %1109 = vmatmul.mubr.bf16.gmra.mrb[0].mxu0 %v1074
  %v1110 = vpop.f32.mrb[0].mxu0
  %v1111 = vadd.f32 0.0, %v1110
  %v1112 = vpop.f32.mrb[0].mxu0
  %v1113 = vpop.f32.mrb[0].mxu0
  %v1114 = vpop.f32.mrb[0].mxu0
  %1115 = vdwg.mxu0
  %v1116 = vadd.f32 %v1071, %v1111
  %1117 = vmatprep.subr.bf16.mxu0 0
  %1118 = vmatpush1.bf16.msra.mxu0 %v269
  %1119 = vmatprep.subr.bf16.mxu0 0
  %1120 = vmatpush1.bf16.msra.mxu0 %v270
  %1121 = vmatprep.subr.bf16.mxu0 0
  %1122 = vmatpush1.bf16.msra.mxu0 0
  %1123 = vmatprep.subr.bf16.mxu0 0
  %1124 = vmatpush1.bf16.msra.mxu0 0
  %1125 = vmatprep.subr.bf16.mxu0 0
  %1126 = vmatpush1.bf16.msra.mxu0 0
  %1127 = vmatprep.subr.bf16.mxu0 0
  %1128 = vmatpush1.bf16.msra.mxu0 0
  %1129 = vmatprep.subr.bf16.mxu0 0
  %1130 = vmatpush1.bf16.msra.mxu0 0
  %1131 = vmatprep.subr.bf16.mxu0 0
  %1132 = vmatpush1.bf16.msra.mxu0 0
  %1133 = vmatprep.subr.bf16.mxu0 0
  %1134 = vmatpush1.bf16.msra.mxu0 0
  %1135 = vmatprep.subr.bf16.mxu0 0
  %1136 = vmatpush1.bf16.msra.mxu0 0
  %1137 = vmatprep.subr.bf16.mxu0 0
  %1138 = vmatpush1.bf16.msra.mxu0 0
  %1139 = vmatprep.subr.bf16.mxu0 0
  %1140 = vmatpush1.bf16.msra.mxu0 0
  %1141 = vmatprep.subr.bf16.mxu0 0
  %1142 = vmatpush1.bf16.msra.mxu0 0
  %1143 = vmatprep.subr.bf16.mxu0 0
  %1144 = vmatpush1.bf16.msra.mxu0 0
  %1145 = vmatprep.subr.bf16.mxu0 0
  %1146 = vmatpush1.bf16.msra.mxu0 0
  %1147 = vmatprep.subr.bf16.mxu0 0
  %1148 = vmatpush1.bf16.msra.mxu0 0
  %1149 = vmatprep.mubr.bf16.mxu0 0
  %1150 = vmatmul.mubr.bf16.gmra.mrb[0].mxu0 %v362
  %v1151 = vpop.f32.mrb[0].mxu0
  %v1152 = vadd.f32 0.0, %v1151
  %v1153 = vpop.f32.mrb[0].mxu0
  %v1154 = vpop.f32.mrb[0].mxu0
  %v1155 = vpop.f32.mrb[0].mxu0
  %1156 = vdwg.mxu0
  %v1157 = vadd.f32 %v1116, %v1152
  %v1158 = vxor.u32 %v1157, 2147483648
  %v1159 = vmul.f32 %v1158, 1.442695
  %v1160 = vpow.pop %v1159
  %v1161 = vadd.f32 %v1160, 1.0
  %v1162 = vrcp.pop %v1161
  %v1163 = vmul.f32 1.0, %v1162
  %v1164 = vtanh.pop %v1157
  %v1165 = vmul.f32 %v1163, %v338
  %1167 = vrot.lane.b32.xlu0 %v1164, 64
  %v1168 = vpop.permute.xlu0 %1167
  %v1170 = vmul.f32 %v1163, %v1168
  %1172 = vrot.lane.b32.xlu0 %v1170, 32
  %v1173 = vpop.permute.xlu0 %1172
  %v1175 = vadd.f32 %v1165, %v1173
  %v1176 = vtanh.pop %v1175
  %1178 = vrot.lane.b32.xlu0 %v1176, 64
  %v1179 = vpop.permute.xlu0 %1178
  %v1181 = vmul.f32 %v1163, %v1179
  %v1182 = vpack.c.bf16 %v1181, %v1181
  %1184 = vrot.lane.b32.xlu0 %v1182, 32
  %v1185 = vpop.permute.xlu0 %1184
  %v1187 = vsel %vm76, %v1185, 0
  %1189 = vmatprep.subr.bf16.mxu0 0
  %1190 = vmatpush1.bf16.msra.mxu0 %v357
  %1191 = vmatprep.subr.bf16.mxu0 0
  %1192 = vmatpush1.bf16.msra.mxu0 %v358
  %1193 = vmatprep.subr.bf16.mxu0 0
  %1194 = vmatpush1.bf16.msra.mxu0 0
  %1195 = vmatprep.subr.bf16.mxu0 0
  %1196 = vmatpush1.bf16.msra.mxu0 0
  %1197 = vmatprep.subr.bf16.mxu0 0
  %1198 = vmatpush1.bf16.msra.mxu0 0
  %1199 = vmatprep.subr.bf16.mxu0 0
  %1200 = vmatpush1.bf16.msra.mxu0 0
  %1201 = vmatprep.subr.bf16.mxu0 0
  %1202 = vmatpush1.bf16.msra.mxu0 0
  %1203 = vmatprep.subr.bf16.mxu0 0
  %1204 = vmatpush1.bf16.msra.mxu0 0
  %1205 = vmatprep.subr.bf16.mxu0 0
  %1206 = vmatpush1.bf16.msra.mxu0 0
  %1207 = vmatprep.subr.bf16.mxu0 0
  %1208 = vmatpush1.bf16.msra.mxu0 0
  %1209 = vmatprep.subr.bf16.mxu0 0
  %1210 = vmatpush1.bf16.msra.mxu0 0
  %1211 = vmatprep.subr.bf16.mxu0 0
  %1212 = vmatpush1.bf16.msra.mxu0 0
  %1213 = vmatprep.subr.bf16.mxu0 0
  %1214 = vmatpush1.bf16.msra.mxu0 0
  %1215 = vmatprep.subr.bf16.mxu0 0
  %1216 = vmatpush1.bf16.msra.mxu0 0
  %1217 = vmatprep.subr.bf16.mxu0 0
  %1218 = vmatpush1.bf16.msra.mxu0 0
  %1219 = vmatprep.subr.bf16.mxu0 0
  %1220 = vmatpush1.bf16.msra.mxu0 0
  %1221 = vmatprep.mubr.bf16.mxu0 0
  %1222 = vmatmul.mubr.bf16.gmra.mrb[0].mxu0 %v1187
  %v1223 = vpop.f32.mrb[0].mxu0
  %v1224 = vadd.f32 0.0, %v1223
  %v1225 = vpop.f32.mrb[0].mxu0
  %v1226 = vpop.f32.mrb[0].mxu0
  %v1227 = vpop.f32.mrb[0].mxu0
  %1228 = vdwg.mxu0
  %v1230 = vcombine.high %v1224, %v1224
  %v1232 = vunpack.c.l.s4 1966171168
  %v1233 = vunpack.c.0.s8 %v1232
  %v1234 = vlaneseq
  %v1235 = vshrl.u32 %v1234, 7
  %v1236 = vsub.s32 %v1233, %v1235
  %v1237 = vrot.slane %v1224, %v1236
  %v1239 = vunpack.c.l.s4 1966171168
  %v1240 = vunpack.c.0.s8 %v1239
  %v1241 = vlaneseq
  %v1242 = vshrl.u32 %v1241, 7
  %v1243 = vsub.s32 %v1240, %v1242
  %v1244 = vrot.slane %v1230, %v1243
  %v1245 = vcombine.high %v1237, %v1237
  %v1246 = vcombine.high %v1244, %v1244
  %v1248 = vunpack.c.l.s4 1966171168
  %v1249 = vunpack.c.0.s8 %v1248
  %v1250 = vlaneseq
  %v1251 = vshrl.u32 %v1250, 7
  %v1252 = vsub.s32 %v1249, %v1251
  %v1253 = vrot.slane %v1237, %v1252
  %v1255 = vunpack.c.l.s4 1966171168
  %v1256 = vunpack.c.0.s8 %v1255
  %v1257 = vlaneseq
  %v1258 = vshrl.u32 %v1257, 7
  %v1259 = vsub.s32 %v1256, %v1258
  %v1260 = vrot.slane %v1244, %v1259
  %v1262 = vunpack.c.l.s4 1966171168
  %v1263 = vunpack.c.0.s8 %v1262
  %v1264 = vlaneseq
  %v1265 = vshrl.u32 %v1264, 7
  %v1266 = vsub.s32 %v1263, %v1265
  %v1267 = vrot.slane %v1245, %v1266
  %v1269 = vunpack.c.l.s4 1966171168
  %v1270 = vunpack.c.0.s8 %v1269
  %v1271 = vlaneseq
  %v1272 = vshrl.u32 %v1271, 7
  %v1273 = vsub.s32 %v1270, %v1272
  %v1274 = vrot.slane %v1246, %v1273
  %v1275 = vcombine.high %v1253, %v1253
  %v1276 = vcombine.high %v1260, %v1260
  %v1277 = vcombine.high %v1267, %v1267
  %v1278 = vcombine.high %v1274, %v1274
  %v1279 = vlaneseq
  %v1280 = vshrl.u32 %v1279, 7
  %v1281 = vsub.s32 0, %v1280
  %v1282 = vrot.slane %v1253, %v1281
  %v1283 = vlaneseq
  %v1284 = vshrl.u32 %v1283, 7
  %v1285 = vsub.s32 0, %v1284
  %v1286 = vrot.slane %v1267, %v1285
  %v1287 = vlaneseq
  %v1288 = vshrl.u32 %v1287, 7
  %v1289 = vsub.s32 0, %v1288
  %v1290 = vrot.slane %v1275, %v1289
  %v1291 = vlaneseq
  %v1292 = vshrl.u32 %v1291, 7
  %v1293 = vsub.s32 0, %v1292
  %v1294 = vrot.slane %v1277, %v1293
  %v1295 = vlaneseq
  %v1296 = vshrl.u32 %v1295, 7
  %v1297 = vsub.s32 0, %v1296
  %v1298 = vrot.slane %v1260, %v1297
  %v1299 = vlaneseq
  %v1300 = vshrl.u32 %v1299, 7
  %v1301 = vsub.s32 0, %v1300
  %v1302 = vrot.slane %v1274, %v1301
  %v1303 = vlaneseq
  %v1304 = vshrl.u32 %v1303, 7
  %v1305 = vsub.s32 0, %v1304
  %v1306 = vrot.slane %v1276, %v1305
  %v1307 = vlaneseq
  %v1308 = vshrl.u32 %v1307, 7
  %v1309 = vsub.s32 0, %v1308
  %v1310 = vrot.slane %v1278, %v1309
  %v1319 = vmul.f32 %v182, %v1282
  %v1320 = vmul.f32 %v183, %v1286
  %v1321 = vmul.f32 %v184, %v1290
  %v1322 = vmul.f32 %v185, %v1294
  %v1323 = vmul.f32 %v186, %v1298
  %v1324 = vmul.f32 %v187, %v1302
  %v1325 = vmul.f32 %v188, %v1306
  %v1326 = vmul.f32 %v189, %v1310
  %v1327 = vsel %vm76, %v1319, 0.0
  %1328 = vadd.xlane.f32.xlu0 %v1327
  %v1329 = vpop.xlane.xlu0 %1328
  %v1330 = vsel %vm76, %v1320, 0.0
  %1331 = vadd.xlane.f32.xlu0 %v1330
  %v1332 = vpop.xlane.xlu0 %1331
  %v1333 = vsel %vm76, %v1321, 0.0
  %1334 = vadd.xlane.f32.xlu0 %v1333
  %v1335 = vpop.xlane.xlu0 %1334
  %v1336 = vsel %vm76, %v1322, 0.0
  %1337 = vadd.xlane.f32.xlu0 %v1336
  %v1338 = vpop.xlane.xlu0 %1337
  %v1339 = vsel %vm76, %v1323, 0.0
  %1340 = vadd.xlane.f32.xlu0 %v1339
  %v1341 = vpop.xlane.xlu0 %1340
  %v1342 = vsel %vm76, %v1324, 0.0
  %1343 = vadd.xlane.f32.xlu0 %v1342
  %v1344 = vpop.xlane.xlu0 %1343
  %v1345 = vsel %vm76, %v1325, 0.0
  %1346 = vadd.xlane.f32.xlu0 %v1345
  %v1347 = vpop.xlane.xlu0 %1346
  %v1348 = vsel %vm76, %v1326, 0.0
  %1349 = vadd.xlane.f32.xlu0 %v1348
  %v1350 = vpop.xlane.xlu0 %1349
  %v1359 = vlaneseq
  %v1360 = vshrl.u32 %v1359, 7
  %v1361 = vsub.s32 %v535, %v1360
  %v1362 = vrot.slane %v1329, %v1361
  %v1363 = vlaneseq
  %v1364 = vshrl.u32 %v1363, 7
  %v1365 = vsub.s32 %v535, %v1364
  %v1366 = vrot.slane %v1332, %v1365
  %v1367 = vlaneseq
  %v1368 = vshrl.u32 %v1367, 7
  %v1369 = vsub.s32 %v535, %v1368
  %v1370 = vrot.slane %v1335, %v1369
  %v1371 = vlaneseq
  %v1372 = vshrl.u32 %v1371, 7
  %v1373 = vsub.s32 %v535, %v1372
  %v1374 = vrot.slane %v1338, %v1373
  %v1375 = vlaneseq
  %v1376 = vshrl.u32 %v1375, 7
  %v1377 = vsub.s32 %v535, %v1376
  %v1378 = vrot.slane %v1341, %v1377
  %v1379 = vlaneseq
  %v1380 = vshrl.u32 %v1379, 7
  %v1381 = vsub.s32 %v535, %v1380
  %v1382 = vrot.slane %v1344, %v1381
  %v1383 = vlaneseq
  %v1384 = vshrl.u32 %v1383, 7
  %v1385 = vsub.s32 %v535, %v1384
  %v1386 = vrot.slane %v1347, %v1385
  %v1387 = vlaneseq
  %v1388 = vshrl.u32 %v1387, 7
  %v1389 = vsub.s32 %v535, %v1388
  %v1390 = vrot.slane %v1350, %v1389
  %v1391 = vsel %vm568, %v1366, %v1362
  %v1392 = vsel %vm570, %v1370, %v1391
  %v1393 = vsel %vm572, %v1374, %v1392
  %v1394 = vsel %vm574, %v1378, %v1393
  %v1395 = vsel %vm576, %v1382, %v1394
  %v1396 = vsel %vm578, %v1386, %v1395
  %v1397 = vsel %vm580, %v1390, %v1396
  %v1399 = vsel %vm583, %v1397, -inf
  %1400 = vmax.xlane.f32.xlu0 %v1399
  %v1401 = vpop.xlane.xlu0 %1400
  %v1403 = vlaneseq
  %v1404 = vshrl.u32 %v1403, 7
  %v1405 = vsub.s32 0, %v1404
  %v1406 = vrot.slane %v1401, %v1405
  %v1407 = vlaneseq
  %v1408 = vshrl.u32 %v1407, 7
  %v1409 = vsub.s32 1, %v1408
  %v1410 = vrot.slane %v1401, %v1409
  %v1411 = vlaneseq
  %v1412 = vshrl.u32 %v1411, 7
  %v1413 = vsub.s32 2, %v1412
  %v1414 = vrot.slane %v1401, %v1413
  %v1415 = vlaneseq
  %v1416 = vshrl.u32 %v1415, 7
  %v1417 = vsub.s32 3, %v1416
  %v1418 = vrot.slane %v1401, %v1417
  %v1419 = vlaneseq
  %v1420 = vshrl.u32 %v1419, 7
  %v1421 = vsub.s32 4, %v1420
  %v1422 = vrot.slane %v1401, %v1421
  %v1423 = vlaneseq
  %v1424 = vshrl.u32 %v1423, 7
  %v1425 = vsub.s32 5, %v1424
  %v1426 = vrot.slane %v1401, %v1425
  %v1427 = vlaneseq
  %v1428 = vshrl.u32 %v1427, 7
  %v1429 = vsub.s32 6, %v1428
  %v1430 = vrot.slane %v1401, %v1429
  %v1431 = vlaneseq
  %v1432 = vshrl.u32 %v1431, 7
  %v1433 = vsub.s32 7, %v1432
  %v1434 = vrot.slane %v1401, %v1433
  %v1443 = vsub.f32 %v1329, %v1406
  %v1444 = vsub.f32 %v1332, %v1410
  %v1445 = vsub.f32 %v1335, %v1414
  %v1446 = vsub.f32 %v1338, %v1418
  %v1447 = vsub.f32 %v1341, %v1422
  %v1448 = vsub.f32 %v1344, %v1426
  %v1449 = vsub.f32 %v1347, %v1430
  %v1450 = vsub.f32 %v1350, %v1434
  %v1451 = vmul.f32 %v1443, 1.442695
  %v1452 = vpow.pop %v1451
  %v1453 = vmul.f32 %v1444, 1.442695
  %v1454 = vpow.pop %v1453
  %v1455 = vmul.f32 %v1445, 1.442695
  %v1456 = vpow.pop %v1455
  %v1457 = vmul.f32 %v1446, 1.442695
  %v1458 = vpow.pop %v1457
  %v1459 = vmul.f32 %v1447, 1.442695
  %v1460 = vpow.pop %v1459
  %v1461 = vmul.f32 %v1448, 1.442695
  %v1462 = vpow.pop %v1461
  %v1463 = vmul.f32 %v1449, 1.442695
  %v1464 = vpow.pop %v1463
  %v1465 = vmul.f32 %v1450, 1.442695
  %v1466 = vpow.pop %v1465
  %1475 = vset.pattern.permute.xlu0 0
  %1476 = vperm.xlu0 %1475, %v1452
  %v1477 = vpop.permute.xlu0 %1476
  %1478 = vset.pattern.permute.xlu0 0
  %1479 = vperm.xlu0 %1478, %v1454
  %v1480 = vpop.permute.xlu0 %1479
  %1481 = vset.pattern.permute.xlu0 0
  %1482 = vperm.xlu0 %1481, %v1456
  %v1483 = vpop.permute.xlu0 %1482
  %1484 = vset.pattern.permute.xlu0 0
  %1485 = vperm.xlu0 %1484, %v1458
  %v1486 = vpop.permute.xlu0 %1485
  %1487 = vset.pattern.permute.xlu0 0
  %1488 = vperm.xlu0 %1487, %v1460
  %v1489 = vpop.permute.xlu0 %1488
  %1490 = vset.pattern.permute.xlu0 0
  %1491 = vperm.xlu0 %1490, %v1462
  %v1492 = vpop.permute.xlu0 %1491
  %1493 = vset.pattern.permute.xlu0 0
  %1494 = vperm.xlu0 %1493, %v1464
  %v1495 = vpop.permute.xlu0 %1494
  %1496 = vset.pattern.permute.xlu0 0
  %1497 = vperm.xlu0 %1496, %v1466
  %v1498 = vpop.permute.xlu0 %1497
  %v1499 = vlaneseq
  %v1500 = vshrl.u32 %v1499, 7
  %v1501 = vsub.s32 %v535, %v1500
  %v1502 = vrot.slane %v1477, %v1501
  %v1503 = vlaneseq
  %v1504 = vshrl.u32 %v1503, 7
  %v1505 = vsub.s32 %v535, %v1504
  %v1506 = vrot.slane %v1480, %v1505
  %v1507 = vlaneseq
  %v1508 = vshrl.u32 %v1507, 7
  %v1509 = vsub.s32 %v535, %v1508
  %v1510 = vrot.slane %v1483, %v1509
  %v1511 = vlaneseq
  %v1512 = vshrl.u32 %v1511, 7
  %v1513 = vsub.s32 %v535, %v1512
  %v1514 = vrot.slane %v1486, %v1513
  %v1515 = vlaneseq
  %v1516 = vshrl.u32 %v1515, 7
  %v1517 = vsub.s32 %v535, %v1516
  %v1518 = vrot.slane %v1489, %v1517
  %v1519 = vlaneseq
  %v1520 = vshrl.u32 %v1519, 7
  %v1521 = vsub.s32 %v535, %v1520
  %v1522 = vrot.slane %v1492, %v1521
  %v1523 = vlaneseq
  %v1524 = vshrl.u32 %v1523, 7
  %v1525 = vsub.s32 %v535, %v1524
  %v1526 = vrot.slane %v1495, %v1525
  %v1527 = vlaneseq
  %v1528 = vshrl.u32 %v1527, 7
  %v1529 = vsub.s32 %v535, %v1528
  %v1530 = vrot.slane %v1498, %v1529
  %v1531 = vsel %vm568, %v1506, %v1502
  %v1532 = vsel %vm570, %v1510, %v1531
  %v1533 = vsel %vm572, %v1514, %v1532
  %v1534 = vsel %vm574, %v1518, %v1533
  %v1535 = vsel %vm576, %v1522, %v1534
  %v1536 = vsel %vm578, %v1526, %v1535
  %v1537 = vsel %vm580, %v1530, %v1536
  %v1539 = vsel %vm583, %v1537, 0.0
  %1540 = vadd.xlane.f32.xlu0 %v1539
  %v1541 = vpop.xlane.xlu0 %1540
  %v1543 = vlaneseq
  %v1544 = vshrl.u32 %v1543, 7
  %v1545 = vsub.s32 0, %v1544
  %v1546 = vrot.slane %v1541, %v1545
  %v1547 = vlaneseq
  %v1548 = vshrl.u32 %v1547, 7
  %v1549 = vsub.s32 1, %v1548
  %v1550 = vrot.slane %v1541, %v1549
  %v1551 = vlaneseq
  %v1552 = vshrl.u32 %v1551, 7
  %v1553 = vsub.s32 2, %v1552
  %v1554 = vrot.slane %v1541, %v1553
  %v1555 = vlaneseq
  %v1556 = vshrl.u32 %v1555, 7
  %v1557 = vsub.s32 3, %v1556
  %v1558 = vrot.slane %v1541, %v1557
  %v1559 = vlaneseq
  %v1560 = vshrl.u32 %v1559, 7
  %v1561 = vsub.s32 4, %v1560
  %v1562 = vrot.slane %v1541, %v1561
  %v1563 = vlaneseq
  %v1564 = vshrl.u32 %v1563, 7
  %v1565 = vsub.s32 5, %v1564
  %v1566 = vrot.slane %v1541, %v1565
  %v1567 = vlaneseq
  %v1568 = vshrl.u32 %v1567, 7
  %v1569 = vsub.s32 6, %v1568
  %v1570 = vrot.slane %v1541, %v1569
  %v1571 = vlaneseq
  %v1572 = vshrl.u32 %v1571, 7
  %v1573 = vsub.s32 7, %v1572
  %v1574 = vrot.slane %v1541, %v1573
  %v1583 = vrcp.pop %v1546
  %v1584 = vmul.f32 %v1452, %v1583
  %v1585 = vrcp.pop %v1550
  %v1586 = vmul.f32 %v1454, %v1585
  %v1587 = vrcp.pop %v1554
  %v1588 = vmul.f32 %v1456, %v1587
  %v1589 = vrcp.pop %v1558
  %v1590 = vmul.f32 %v1458, %v1589
  %v1591 = vrcp.pop %v1562
  %v1592 = vmul.f32 %v1460, %v1591
  %v1593 = vrcp.pop %v1566
  %v1594 = vmul.f32 %v1462, %v1593
  %v1595 = vrcp.pop %v1570
  %v1596 = vmul.f32 %v1464, %v1595
  %v1597 = vrcp.pop %v1574
  %v1598 = vmul.f32 %v1466, %v1597
  %1600 = vset.pattern.permute.xlu0 0
  %1601 = vperm.xlu0 %1600, %v1584
  %v1602 = vpop.permute.xlu0 %1601
  %1605 = vset.pattern.permute.xlu0 0
  %1606 = vperm.xlu0 %1605, %v1586
  %v1607 = vpop.permute.xlu0 %1606
  %1610 = vset.pattern.permute.xlu0 0
  %1611 = vperm.xlu0 %1610, %v1588
  %v1612 = vpop.permute.xlu0 %1611
  %1615 = vset.pattern.permute.xlu0 0
  %1616 = vperm.xlu0 %1615, %v1590
  %v1617 = vpop.permute.xlu0 %1616
  %1620 = vset.pattern.permute.xlu0 0
  %1621 = vperm.xlu0 %1620, %v1592
  %v1622 = vpop.permute.xlu0 %1621
  %1625 = vset.pattern.permute.xlu0 0
  %1626 = vperm.xlu0 %1625, %v1594
  %v1627 = vpop.permute.xlu0 %1626
  %1630 = vset.pattern.permute.xlu0 0
  %1631 = vperm.xlu0 %1630, %v1596
  %v1632 = vpop.permute.xlu0 %1631
  %1635 = vset.pattern.permute.xlu0 0
  %1636 = vperm.xlu0 %1635, %v1598
  %v1637 = vpop.permute.xlu0 %1636
  %v1639 = vmul.f32 %v1602, %v182
  %v1640 = vmul.f32 %v1607, %v183
  %v1641 = vmul.f32 %v1612, %v184
  %v1642 = vmul.f32 %v1617, %v185
  %v1643 = vmul.f32 %v1622, %v186
  %v1644 = vmul.f32 %v1627, %v187
  %v1645 = vmul.f32 %v1632, %v188
  %v1646 = vmul.f32 %v1637, %v189
  %v1647 = vsel %vm76, %v1639, 0.0
  %v1648 = vrot.slane %v1647, 4
  %v1649 = vadd.f32 %v1647, %v1648
  %v1650 = vrot.slane %v1649, 2
  %v1651 = vadd.f32 %v1649, %v1650
  %v1652 = vrot.slane %v1651, 1
  %v1653 = vadd.f32 %v1651, %v1652
  %v1654 = vsel %vm76, %v1640, 0.0
  %v1655 = vrot.slane %v1654, 4
  %v1656 = vadd.f32 %v1654, %v1655
  %v1657 = vrot.slane %v1656, 2
  %v1658 = vadd.f32 %v1656, %v1657
  %v1659 = vrot.slane %v1658, 1
  %v1660 = vadd.f32 %v1658, %v1659
  %v1661 = vsel %vm76, %v1641, 0.0
  %v1662 = vrot.slane %v1661, 4
  %v1663 = vadd.f32 %v1661, %v1662
  %v1664 = vrot.slane %v1663, 2
  %v1665 = vadd.f32 %v1663, %v1664
  %v1666 = vrot.slane %v1665, 1
  %v1667 = vadd.f32 %v1665, %v1666
  %v1668 = vsel %vm76, %v1642, 0.0
  %v1669 = vrot.slane %v1668, 4
  %v1670 = vadd.f32 %v1668, %v1669
  %v1671 = vrot.slane %v1670, 2
  %v1672 = vadd.f32 %v1670, %v1671
  %v1673 = vrot.slane %v1672, 1
  %v1674 = vadd.f32 %v1672, %v1673
  %v1675 = vsel %vm76, %v1643, 0.0
  %v1676 = vrot.slane %v1675, 4
  %v1677 = vadd.f32 %v1675, %v1676
  %v1678 = vrot.slane %v1677, 2
  %v1679 = vadd.f32 %v1677, %v1678
  %v1680 = vrot.slane %v1679, 1
  %v1681 = vadd.f32 %v1679, %v1680
  %v1682 = vsel %vm76, %v1644, 0.0
  %v1683 = vrot.slane %v1682, 4
  %v1684 = vadd.f32 %v1682, %v1683
  %v1685 = vrot.slane %v1684, 2
  %v1686 = vadd.f32 %v1684, %v1685
  %v1687 = vrot.slane %v1686, 1
  %v1688 = vadd.f32 %v1686, %v1687
  %v1689 = vsel %vm76, %v1645, 0.0
  %v1690 = vrot.slane %v1689, 4
  %v1691 = vadd.f32 %v1689, %v1690
  %v1692 = vrot.slane %v1691, 2
  %v1693 = vadd.f32 %v1691, %v1692
  %v1694 = vrot.slane %v1693, 1
  %v1695 = vadd.f32 %v1693, %v1694
  %v1696 = vsel %vm76, %v1646, 0.0
  %v1697 = vrot.slane %v1696, 4
  %v1698 = vadd.f32 %v1696, %v1697
  %v1699 = vrot.slane %v1698, 2
  %v1700 = vadd.f32 %v1698, %v1699
  %v1701 = vrot.slane %v1700, 1
  %v1702 = vadd.f32 %v1700, %v1701
  %v1703 = vpack.c.bf16 %v1653, %v1653
  %v1704 = vpack.c.bf16 %v1660, %v1660
  %v1705 = vpack.c.bf16 %v1667, %v1667
  %v1706 = vpack.c.bf16 %v1674, %v1674
  %v1707 = vpack.c.bf16 %v1681, %v1681
  %v1708 = vpack.c.bf16 %v1688, %v1688
  %v1709 = vpack.c.bf16 %v1695, %v1695
  %v1710 = vpack.c.bf16 %v1702, %v1702
  %1711 = vmatprep.subr.bf16.mxu0 0
  %1712 = vmatpush1.bf16.msra.mxu0 %v904
  %1713 = vmatprep.subr.bf16.mxu0 0
  %1714 = vmatpush1.bf16.msra.mxu0 %v905
  %1715 = vmatprep.subr.bf16.mxu0 0
  %1716 = vmatpush1.bf16.msra.mxu0 0
  %1717 = vmatprep.subr.bf16.mxu0 0
  %1718 = vmatpush1.bf16.msra.mxu0 0
  %1719 = vmatprep.subr.bf16.mxu0 0
  %1720 = vmatpush1.bf16.msra.mxu0 0
  %1721 = vmatprep.subr.bf16.mxu0 0
  %1722 = vmatpush1.bf16.msra.mxu0 0
  %1723 = vmatprep.subr.bf16.mxu0 0
  %1724 = vmatpush1.bf16.msra.mxu0 0
  %1725 = vmatprep.subr.bf16.mxu0 0
  %1726 = vmatpush1.bf16.msra.mxu0 0
  %1727 = vmatprep.subr.bf16.mxu0 0
  %1728 = vmatpush1.bf16.msra.mxu0 0
  %1729 = vmatprep.subr.bf16.mxu0 0
  %1730 = vmatpush1.bf16.msra.mxu0 0
  %1731 = vmatprep.subr.bf16.mxu0 0
  %1732 = vmatpush1.bf16.msra.mxu0 0
  %1733 = vmatprep.subr.bf16.mxu0 0
  %1734 = vmatpush1.bf16.msra.mxu0 0
  %1735 = vmatprep.subr.bf16.mxu0 0
  %1736 = vmatpush1.bf16.msra.mxu0 0
  %1737 = vmatprep.subr.bf16.mxu0 0
  %1738 = vmatpush1.bf16.msra.mxu0 0
  %1739 = vmatprep.subr.bf16.mxu0 0
  %1740 = vmatpush1.bf16.msra.mxu0 0
  %1741 = vmatprep.subr.bf16.mxu0 0
  %1742 = vmatpush1.bf16.msra.mxu0 0
  %1743 = vmatprep.mubr.bf16.mxu0 0
  %1744 = vmatmul.mubr.bf16.gmra.mrb[0].mxu0 %v1187
  %v1745 = vpop.f32.mrb[0].mxu0
  %v1746 = vadd.f32 0.0, %v1745
  %v1747 = vpop.f32.mrb[0].mxu0
  %v1748 = vpop.f32.mrb[0].mxu0
  %v1749 = vpop.f32.mrb[0].mxu0
  %1750 = vdwg.mxu0
  %v1759 = vunpack.c.l.b16 %v1703
  %v1760 = vunpack.c.l.b16 %v1704
  %v1761 = vunpack.c.l.b16 %v1705
  %v1762 = vunpack.c.l.b16 %v1706
  %v1763 = vunpack.c.l.b16 %v1707
  %v1764 = vunpack.c.l.b16 %v1708
  %v1765 = vunpack.c.l.b16 %v1709
  %v1766 = vunpack.c.l.b16 %v1710
  %v1767 = vsel %vm568, %v1760, %v1759
  %v1768 = vsel %vm570, %v1761, %v1767
  %v1769 = vsel %vm572, %v1762, %v1768
  %v1770 = vsel %vm574, %v1763, %v1769
  %v1771 = vsel %vm576, %v1764, %v1770
  %v1772 = vsel %vm578, %v1765, %v1771
  %v1773 = vsel %vm580, %v1766, %v1772
  %v1774 = vpack.c.b16 %v1773, %v1773
  %v1776 = vsel %vm76, %v1774, 0
  %1778 = vmatprep.subr.bf16.mxu0 0
  %1779 = vmatpush1.bf16.msra.mxu0 %v980
  %1780 = vmatprep.subr.bf16.mxu0 0
  %1781 = vmatpush1.bf16.msra.mxu0 %v981
  %1782 = vmatprep.subr.bf16.mxu0 0
  %1783 = vmatpush1.bf16.msra.mxu0 0
  %1784 = vmatprep.subr.bf16.mxu0 0
  %1785 = vmatpush1.bf16.msra.mxu0 0
  %1786 = vmatprep.subr.bf16.mxu0 0
  %1787 = vmatpush1.bf16.msra.mxu0 0
  %1788 = vmatprep.subr.bf16.mxu0 0
  %1789 = vmatpush1.bf16.msra.mxu0 0
  %1790 = vmatprep.subr.bf16.mxu0 0
  %1791 = vmatpush1.bf16.msra.mxu0 0
  %1792 = vmatprep.subr.bf16.mxu0 0
  %1793 = vmatpush1.bf16.msra.mxu0 0
  %1794 = vmatprep.subr.bf16.mxu0 0
  %1795 = vmatpush1.bf16.msra.mxu0 0
  %1796 = vmatprep.subr.bf16.mxu0 0
  %1797 = vmatpush1.bf16.msra.mxu0 0
  %1798 = vmatprep.subr.bf16.mxu0 0
  %1799 = vmatpush1.bf16.msra.mxu0 0
  %1800 = vmatprep.subr.bf16.mxu0 0
  %1801 = vmatpush1.bf16.msra.mxu0 0
  %1802 = vmatprep.subr.bf16.mxu0 0
  %1803 = vmatpush1.bf16.msra.mxu0 0
  %1804 = vmatprep.subr.bf16.mxu0 0
  %1805 = vmatpush1.bf16.msra.mxu0 0
  %1806 = vmatprep.subr.bf16.mxu0 0
  %1807 = vmatpush1.bf16.msra.mxu0 0
  %1808 = vmatprep.subr.bf16.mxu0 0
  %1809 = vmatpush1.bf16.msra.mxu0 0
  %1810 = vmatprep.mubr.bf16.mxu0 0
  %1811 = vmatmul.mubr.bf16.gmra.mrb[0].mxu0 %v1776
  %v1812 = vpop.f32.mrb[0].mxu0
  %v1813 = vadd.f32 %v1746, %v1812
  %v1814 = vpop.f32.mrb[0].mxu0
  %v1815 = vpop.f32.mrb[0].mxu0
  %v1816 = vpop.f32.mrb[0].mxu0
  %1817 = vdwg.mxu0
  %v1818 = vtanh.pop %v1813
  %s1819 = scalar_lea.vmem %s11, 8
  %1820 = vst.msk [vmem:[%s1819] sm:$0xff] %vm76, %v1818
  %v1821 = vlaneseq
  %v1822 = vshrl.u32 %v1821, 7
  %v1823 = vsub.s32 %v535, %v1822
  %v1824 = vrot.slane %v1602, %v1823
  %v1825 = vlaneseq
  %v1826 = vshrl.u32 %v1825, 7
  %v1827 = vsub.s32 %v535, %v1826
  %v1828 = vrot.slane %v1607, %v1827
  %v1829 = vlaneseq
  %v1830 = vshrl.u32 %v1829, 7
  %v1831 = vsub.s32 %v535, %v1830
  %v1832 = vrot.slane %v1612, %v1831
  %v1833 = vlaneseq
  %v1834 = vshrl.u32 %v1833, 7
  %v1835 = vsub.s32 %v535, %v1834
  %v1836 = vrot.slane %v1617, %v1835
  %v1837 = vlaneseq
  %v1838 = vshrl.u32 %v1837, 7
  %v1839 = vsub.s32 %v535, %v1838
  %v1840 = vrot.slane %v1622, %v1839
  %v1841 = vlaneseq
  %v1842 = vshrl.u32 %v1841, 7
  %v1843 = vsub.s32 %v535, %v1842
  %v1844 = vrot.slane %v1627, %v1843
  %v1845 = vlaneseq
  %v1846 = vshrl.u32 %v1845, 7
  %v1847 = vsub.s32 %v535, %v1846
  %v1848 = vrot.slane %v1632, %v1847
  %v1849 = vlaneseq
  %v1850 = vshrl.u32 %v1849, 7
  %v1851 = vsub.s32 %v535, %v1850
  %v1852 = vrot.slane %v1637, %v1851
  %v1853 = vsel %vm568, %v1828, %v1824
  %v1854 = vsel %vm570, %v1832, %v1853
  %v1855 = vsel %vm572, %v1836, %v1854
  %v1856 = vsel %vm574, %v1840, %v1855
  %v1857 = vsel %vm576, %v1844, %v1856
  %v1858 = vsel %vm578, %v1848, %v1857
  %v1859 = vsel %vm580, %v1852, %v1858
  %s1861 = scalar_lea.vmem %s12, 8
  %1862 = vst.msk [vmem:[%s1861] sm:$0xff] %vm583, %v1859
  %s1863 = scalar_lea.vmem [#allocation2], 16
  %v1864 = vld [vmem:[%s1863] sm:$0xff]
  %v1865 = vpack.c.bf16 %v1818, %v1818
  %v1867 = vsel %vm76, %v1865, 0
  %1869 = vmatprep.subr.bf16.mxu0 0
  %1870 = vmatpush1.bf16.msra.mxu0 %v212
  %1871 = vmatprep.subr.bf16.mxu0 0
  %1872 = vmatpush1.bf16.msra.mxu0 %v213
  %1873 = vmatprep.subr.bf16.mxu0 0
  %1874 = vmatpush1.bf16.msra.mxu0 0
  %1875 = vmatprep.subr.bf16.mxu0 0
  %1876 = vmatpush1.bf16.msra.mxu0 0
  %1877 = vmatprep.subr.bf16.mxu0 0
  %1878 = vmatpush1.bf16.msra.mxu0 0
  %1879 = vmatprep.subr.bf16.mxu0 0
  %1880 = vmatpush1.bf16.msra.mxu0 0
  %1881 = vmatprep.subr.bf16.mxu0 0
  %1882 = vmatpush1.bf16.msra.mxu0 0
  %1883 = vmatprep.subr.bf16.mxu0 0
  %1884 = vmatpush1.bf16.msra.mxu0 0
  %1885 = vmatprep.subr.bf16.mxu0 0
  %1886 = vmatpush1.bf16.msra.mxu0 0
  %1887 = vmatprep.subr.bf16.mxu0 0
  %1888 = vmatpush1.bf16.msra.mxu0 0
  %1889 = vmatprep.subr.bf16.mxu0 0
  %1890 = vmatpush1.bf16.msra.mxu0 0
  %1891 = vmatprep.subr.bf16.mxu0 0
  %1892 = vmatpush1.bf16.msra.mxu0 0
  %1893 = vmatprep.subr.bf16.mxu0 0
  %1894 = vmatpush1.bf16.msra.mxu0 0
  %1895 = vmatprep.subr.bf16.mxu0 0
  %1896 = vmatpush1.bf16.msra.mxu0 0
  %1897 = vmatprep.subr.bf16.mxu0 0
  %1898 = vmatpush1.bf16.msra.mxu0 0
  %1899 = vmatprep.subr.bf16.mxu0 0
  %1900 = vmatpush1.bf16.msra.mxu0 0
  %1901 = vmatprep.mubr.bf16.mxu0 0
  %1902 = vmatmul.mubr.bf16.gmra.mrb[0].mxu0 %v1867
  %v1903 = vpop.f32.mrb[0].mxu0
  %v1904 = vadd.f32 0.0, %v1903
  %v1905 = vpop.f32.mrb[0].mxu0
  %v1906 = vpop.f32.mrb[0].mxu0
  %v1907 = vpop.f32.mrb[0].mxu0
  %1908 = vdwg.mxu0
  %v1909 = vadd.f32 %v1864, %v1904
  %1910 = vmatprep.subr.bf16.mxu0 0
  %1911 = vmatpush1.bf16.msra.mxu0 %v269
  %1912 = vmatprep.subr.bf16.mxu0 0
  %1913 = vmatpush1.bf16.msra.mxu0 %v270
  %1914 = vmatprep.subr.bf16.mxu0 0
  %1915 = vmatpush1.bf16.msra.mxu0 0
  %1916 = vmatprep.subr.bf16.mxu0 0
  %1917 = vmatpush1.bf16.msra.mxu0 0
  %1918 = vmatprep.subr.bf16.mxu0 0
  %1919 = vmatpush1.bf16.msra.mxu0 0
  %1920 = vmatprep.subr.bf16.mxu0 0
  %1921 = vmatpush1.bf16.msra.mxu0 0
  %1922 = vmatprep.subr.bf16.mxu0 0
  %1923 = vmatpush1.bf16.msra.mxu0 0
  %1924 = vmatprep.subr.bf16.mxu0 0
  %1925 = vmatpush1.bf16.msra.mxu0 0
  %1926 = vmatprep.subr.bf16.mxu0 0
  %1927 = vmatpush1.bf16.msra.mxu0 0
  %1928 = vmatprep.subr.bf16.mxu0 0
  %1929 = vmatpush1.bf16.msra.mxu0 0
  %1930 = vmatprep.subr.bf16.mxu0 0
  %1931 = vmatpush1.bf16.msra.mxu0 0
  %1932 = vmatprep.subr.bf16.mxu0 0
  %1933 = vmatpush1.bf16.msra.mxu0 0
  %1934 = vmatprep.subr.bf16.mxu0 0
  %1935 = vmatpush1.bf16.msra.mxu0 0
  %1936 = vmatprep.subr.bf16.mxu0 0
  %1937 = vmatpush1.bf16.msra.mxu0 0
  %1938 = vmatprep.subr.bf16.mxu0 0
  %1939 = vmatpush1.bf16.msra.mxu0 0
  %1940 = vmatprep.subr.bf16.mxu0 0
  %1941 = vmatpush1.bf16.msra.mxu0 0
  %1942 = vmatprep.mubr.bf16.mxu0 0
  %1943 = vmatmul.mubr.bf16.gmra.mrb[0].mxu0 %v1187
  %v1944 = vpop.f32.mrb[0].mxu0
  %v1945 = vadd.f32 0.0, %v1944
  %v1946 = vpop.f32.mrb[0].mxu0
  %v1947 = vpop.f32.mrb[0].mxu0
  %v1948 = vpop.f32.mrb[0].mxu0
  %1949 = vdwg.mxu0
  %v1950 = vadd.f32 %v1909, %v1945
  %v1951 = vxor.u32 %v1950, 2147483648
  %v1952 = vmul.f32 %v1951, 1.442695
  %v1953 = vpow.pop %v1952
  %v1954 = vadd.f32 %v1953, 1.0
  %v1955 = vrcp.pop %v1954
  %v1956 = vmul.f32 1.0, %v1955
  %v1957 = vtanh.pop %v1950
  %v1958 = vmul.f32 %v1956, %v1175
  %1960 = vrot.lane.b32.xlu0 %v1957, 64
  %v1961 = vpop.permute.xlu0 %1960
  %v1963 = vmul.f32 %v1956, %v1961
  %1965 = vrot.lane.b32.xlu0 %v1963, 32
  %v1966 = vpop.permute.xlu0 %1965
  %v1968 = vadd.f32 %v1958, %v1966
  %v1969 = vtanh.pop %v1968
  %1971 = vrot.lane.b32.xlu0 %v1969, 64
  %v1972 = vpop.permute.xlu0 %1971
  %v1974 = vmul.f32 %v1956, %v1972
  %v1975 = vpack.c.bf16 %v1974, %v1974
  %1977 = vrot.lane.b32.xlu0 %v1975, 32
  %v1978 = vpop.permute.xlu0 %1977
  %v1980 = vsel %vm76, %v1978, 0
  %1982 = vmatprep.subr.bf16.mxu0 0
  %1983 = vmatpush1.bf16.msra.mxu0 %v357
  %1984 = vmatprep.subr.bf16.mxu0 0
  %1985 = vmatpush1.bf16.msra.mxu0 %v358
  %1986 = vmatprep.subr.bf16.mxu0 0
  %1987 = vmatpush1.bf16.msra.mxu0 0
  %1988 = vmatprep.subr.bf16.mxu0 0
  %1989 = vmatpush1.bf16.msra.mxu0 0
  %1990 = vmatprep.subr.bf16.mxu0 0
  %1991 = vmatpush1.bf16.msra.mxu0 0
  %1992 = vmatprep.subr.bf16.mxu0 0
  %1993 = vmatpush1.bf16.msra.mxu0 0
  %1994 = vmatprep.subr.bf16.mxu0 0
  %1995 = vmatpush1.bf16.msra.mxu0 0
  %1996 = vmatprep.subr.bf16.mxu0 0
  %1997 = vmatpush1.bf16.msra.mxu0 0
  %1998 = vmatprep.subr.bf16.mxu0 0
  %1999 = vmatpush1.bf16.msra.mxu0 0
  %2000 = vmatprep.subr.bf16.mxu0 0
  %2001 = vmatpush1.bf16.msra.mxu0 0
  %2002 = vmatprep.subr.bf16.mxu0 0
  %2003 = vmatpush1.bf16.msra.mxu0 0
  %2004 = vmatprep.subr.bf16.mxu0 0
  %2005 = vmatpush1.bf16.msra.mxu0 0
  %2006 = vmatprep.subr.bf16.mxu0 0
  %2007 = vmatpush1.bf16.msra.mxu0 0
  %2008 = vmatprep.subr.bf16.mxu0 0
  %2009 = vmatpush1.bf16.msra.mxu0 0
  %2010 = vmatprep.subr.bf16.mxu0 0
  %2011 = vmatpush1.bf16.msra.mxu0 0
  %2012 = vmatprep.subr.bf16.mxu0 0
  %2013 = vmatpush1.bf16.msra.mxu0 0
  %2014 = vmatprep.mubr.bf16.mxu0 0
  %2015 = vmatmul.mubr.bf16.gmra.mrb[0].mxu0 %v1980
  %v2016 = vpop.f32.mrb[0].mxu0
  %v2017 = vadd.f32 0.0, %v2016
  %v2018 = vpop.f32.mrb[0].mxu0
  %v2019 = vpop.f32.mrb[0].mxu0
  %v2020 = vpop.f32.mrb[0].mxu0
  %2021 = vdwg.mxu0
  %v2023 = vcombine.high %v2017, %v2017
  %v2025 = vunpack.c.l.s4 1966171168
  %v2026 = vunpack.c.0.s8 %v2025
  %v2027 = vlaneseq
  %v2028 = vshrl.u32 %v2027, 7
  %v2029 = vsub.s32 %v2026, %v2028
  %v2030 = vrot.slane %v2017, %v2029
  %v2032 = vunpack.c.l.s4 1966171168
  %v2033 = vunpack.c.0.s8 %v2032
  %v2034 = vlaneseq
  %v2035 = vshrl.u32 %v2034, 7
  %v2036 = vsub.s32 %v2033, %v2035
  %v2037 = vrot.slane %v2023, %v2036
  %v2038 = vcombine.high %v2030, %v2030
  %v2039 = vcombine.high %v2037, %v2037
  %v2041 = vunpack.c.l.s4 1966171168
  %v2042 = vunpack.c.0.s8 %v2041
  %v2043 = vlaneseq
  %v2044 = vshrl.u32 %v2043, 7
  %v2045 = vsub.s32 %v2042, %v2044
  %v2046 = vrot.slane %v2030, %v2045
  %v2048 = vunpack.c.l.s4 1966171168
  %v2049 = vunpack.c.0.s8 %v2048
  %v2050 = vlaneseq
  %v2051 = vshrl.u32 %v2050, 7
  %v2052 = vsub.s32 %v2049, %v2051
  %v2053 = vrot.slane %v2037, %v2052
  %v2055 = vunpack.c.l.s4 1966171168
  %v2056 = vunpack.c.0.s8 %v2055
  %v2057 = vlaneseq
  %v2058 = vshrl.u32 %v2057, 7
  %v2059 = vsub.s32 %v2056, %v2058
  %v2060 = vrot.slane %v2038, %v2059
  %v2062 = vunpack.c.l.s4 1966171168
  %v2063 = vunpack.c.0.s8 %v2062
  %v2064 = vlaneseq
  %v2065 = vshrl.u32 %v2064, 7
  %v2066 = vsub.s32 %v2063, %v2065
  %v2067 = vrot.slane %v2039, %v2066
  %v2068 = vcombine.high %v2046, %v2046
  %v2069 = vcombine.high %v2053, %v2053
  %v2070 = vcombine.high %v2060, %v2060
  %v2071 = vcombine.high %v2067, %v2067
  %v2072 = vlaneseq
  %v2073 = vshrl.u32 %v2072, 7
  %v2074 = vsub.s32 0, %v2073
  %v2075 = vrot.slane %v2046, %v2074
  %v2076 = vlaneseq
  %v2077 = vshrl.u32 %v2076, 7
  %v2078 = vsub.s32 0, %v2077
  %v2079 = vrot.slane %v2060, %v2078
  %v2080 = vlaneseq
  %v2081 = vshrl.u32 %v2080, 7
  %v2082 = vsub.s32 0, %v2081
  %v2083 = vrot.slane %v2068, %v2082
  %v2084 = vlaneseq
  %v2085 = vshrl.u32 %v2084, 7
  %v2086 = vsub.s32 0, %v2085
  %v2087 = vrot.slane %v2070, %v2086
  %v2088 = vlaneseq
  %v2089 = vshrl.u32 %v2088, 7
  %v2090 = vsub.s32 0, %v2089
  %v2091 = vrot.slane %v2053, %v2090
  %v2092 = vlaneseq
  %v2093 = vshrl.u32 %v2092, 7
  %v2094 = vsub.s32 0, %v2093
  %v2095 = vrot.slane %v2067, %v2094
  %v2096 = vlaneseq
  %v2097 = vshrl.u32 %v2096, 7
  %v2098 = vsub.s32 0, %v2097
  %v2099 = vrot.slane %v2069, %v2098
  %v2100 = vlaneseq
  %v2101 = vshrl.u32 %v2100, 7
  %v2102 = vsub.s32 0, %v2101
  %v2103 = vrot.slane %v2071, %v2102
  %v2112 = vmul.f32 %v182, %v2075
  %v2113 = vmul.f32 %v183, %v2079
  %v2114 = vmul.f32 %v184, %v2083
  %v2115 = vmul.f32 %v185, %v2087
  %v2116 = vmul.f32 %v186, %v2091
  %v2117 = vmul.f32 %v187, %v2095
  %v2118 = vmul.f32 %v188, %v2099
  %v2119 = vmul.f32 %v189, %v2103
  %v2120 = vsel %vm76, %v2112, 0.0
  %2121 = vadd.xlane.f32.xlu0 %v2120
  %v2122 = vpop.xlane.xlu0 %2121
  %v2123 = vsel %vm76, %v2113, 0.0
  %2124 = vadd.xlane.f32.xlu0 %v2123
  %v2125 = vpop.xlane.xlu0 %2124
  %v2126 = vsel %vm76, %v2114, 0.0
  %2127 = vadd.xlane.f32.xlu0 %v2126
  %v2128 = vpop.xlane.xlu0 %2127
  %v2129 = vsel %vm76, %v2115, 0.0
  %2130 = vadd.xlane.f32.xlu0 %v2129
  %v2131 = vpop.xlane.xlu0 %2130
  %v2132 = vsel %vm76, %v2116, 0.0
  %2133 = vadd.xlane.f32.xlu0 %v2132
  %v2134 = vpop.xlane.xlu0 %2133
  %v2135 = vsel %vm76, %v2117, 0.0
  %2136 = vadd.xlane.f32.xlu0 %v2135
  %v2137 = vpop.xlane.xlu0 %2136
  %v2138 = vsel %vm76, %v2118, 0.0
  %2139 = vadd.xlane.f32.xlu0 %v2138
  %v2140 = vpop.xlane.xlu0 %2139
  %v2141 = vsel %vm76, %v2119, 0.0
  %2142 = vadd.xlane.f32.xlu0 %v2141
  %v2143 = vpop.xlane.xlu0 %2142
  %v2152 = vlaneseq
  %v2153 = vshrl.u32 %v2152, 7
  %v2154 = vsub.s32 %v535, %v2153
  %v2155 = vrot.slane %v2122, %v2154
  %v2156 = vlaneseq
  %v2157 = vshrl.u32 %v2156, 7
  %v2158 = vsub.s32 %v535, %v2157
  %v2159 = vrot.slane %v2125, %v2158
  %v2160 = vlaneseq
  %v2161 = vshrl.u32 %v2160, 7
  %v2162 = vsub.s32 %v535, %v2161
  %v2163 = vrot.slane %v2128, %v2162
  %v2164 = vlaneseq
  %v2165 = vshrl.u32 %v2164, 7
  %v2166 = vsub.s32 %v535, %v2165
  %v2167 = vrot.slane %v2131, %v2166
  %v2168 = vlaneseq
  %v2169 = vshrl.u32 %v2168, 7
  %v2170 = vsub.s32 %v535, %v2169
  %v2171 = vrot.slane %v2134, %v2170
  %v2172 = vlaneseq
  %v2173 = vshrl.u32 %v2172, 7
  %v2174 = vsub.s32 %v535, %v2173
  %v2175 = vrot.slane %v2137, %v2174
  %v2176 = vlaneseq
  %v2177 = vshrl.u32 %v2176, 7
  %v2178 = vsub.s32 %v535, %v2177
  %v2179 = vrot.slane %v2140, %v2178
  %v2180 = vlaneseq
  %v2181 = vshrl.u32 %v2180, 7
  %v2182 = vsub.s32 %v535, %v2181
  %v2183 = vrot.slane %v2143, %v2182
  %v2184 = vsel %vm568, %v2159, %v2155
  %v2185 = vsel %vm570, %v2163, %v2184
  %v2186 = vsel %vm572, %v2167, %v2185
  %v2187 = vsel %vm574, %v2171, %v2186
  %v2188 = vsel %vm576, %v2175, %v2187
  %v2189 = vsel %vm578, %v2179, %v2188
  %v2190 = vsel %vm580, %v2183, %v2189
  %v2192 = vsel %vm583, %v2190, -inf
  %2193 = vmax.xlane.f32.xlu0 %v2192
  %v2194 = vpop.xlane.xlu0 %2193
  %v2196 = vlaneseq
  %v2197 = vshrl.u32 %v2196, 7
  %v2198 = vsub.s32 0, %v2197
  %v2199 = vrot.slane %v2194, %v2198
  %v2200 = vlaneseq
  %v2201 = vshrl.u32 %v2200, 7
  %v2202 = vsub.s32 1, %v2201
  %v2203 = vrot.slane %v2194, %v2202
  %v2204 = vlaneseq
  %v2205 = vshrl.u32 %v2204, 7
  %v2206 = vsub.s32 2, %v2205
  %v2207 = vrot.slane %v2194, %v2206
  %v2208 = vlaneseq
  %v2209 = vshrl.u32 %v2208, 7
  %v2210 = vsub.s32 3, %v2209
  %v2211 = vrot.slane %v2194, %v2210
  %v2212 = vlaneseq
  %v2213 = vshrl.u32 %v2212, 7
  %v2214 = vsub.s32 4, %v2213
  %v2215 = vrot.slane %v2194, %v2214
  %v2216 = vlaneseq
  %v2217 = vshrl.u32 %v2216, 7
  %v2218 = vsub.s32 5, %v2217
  %v2219 = vrot.slane %v2194, %v2218
  %v2220 = vlaneseq
  %v2221 = vshrl.u32 %v2220, 7
  %v2222 = vsub.s32 6, %v2221
  %v2223 = vrot.slane %v2194, %v2222
  %v2224 = vlaneseq
  %v2225 = vshrl.u32 %v2224, 7
  %v2226 = vsub.s32 7, %v2225
  %v2227 = vrot.slane %v2194, %v2226
  %v2236 = vsub.f32 %v2122, %v2199
  %v2237 = vsub.f32 %v2125, %v2203
  %v2238 = vsub.f32 %v2128, %v2207
  %v2239 = vsub.f32 %v2131, %v2211
  %v2240 = vsub.f32 %v2134, %v2215
  %v2241 = vsub.f32 %v2137, %v2219
  %v2242 = vsub.f32 %v2140, %v2223
  %v2243 = vsub.f32 %v2143, %v2227
  %v2244 = vmul.f32 %v2236, 1.442695
  %v2245 = vpow.pop %v2244
  %v2246 = vmul.f32 %v2237, 1.442695
  %v2247 = vpow.pop %v2246
  %v2248 = vmul.f32 %v2238, 1.442695
  %v2249 = vpow.pop %v2248
  %v2250 = vmul.f32 %v2239, 1.442695
  %v2251 = vpow.pop %v2250
  %v2252 = vmul.f32 %v2240, 1.442695
  %v2253 = vpow.pop %v2252
  %v2254 = vmul.f32 %v2241, 1.442695
  %v2255 = vpow.pop %v2254
  %v2256 = vmul.f32 %v2242, 1.442695
  %v2257 = vpow.pop %v2256
  %v2258 = vmul.f32 %v2243, 1.442695
  %v2259 = vpow.pop %v2258
  %2268 = vset.pattern.permute.xlu0 0
  %2269 = vperm.xlu0 %2268, %v2245
  %v2270 = vpop.permute.xlu0 %2269
  %2271 = vset.pattern.permute.xlu0 0
  %2272 = vperm.xlu0 %2271, %v2247
  %v2273 = vpop.permute.xlu0 %2272
  %2274 = vset.pattern.permute.xlu0 0
  %2275 = vperm.xlu0 %2274, %v2249
  %v2276 = vpop.permute.xlu0 %2275
  %2277 = vset.pattern.permute.xlu0 0
  %2278 = vperm.xlu0 %2277, %v2251
  %v2279 = vpop.permute.xlu0 %2278
  %2280 = vset.pattern.permute.xlu0 0
  %2281 = vperm.xlu0 %2280, %v2253
  %v2282 = vpop.permute.xlu0 %2281
  %2283 = vset.pattern.permute.xlu0 0
  %2284 = vperm.xlu0 %2283, %v2255
  %v2285 = vpop.permute.xlu0 %2284
  %2286 = vset.pattern.permute.xlu0 0
  %2287 = vperm.xlu0 %2286, %v2257
  %v2288 = vpop.permute.xlu0 %2287
  %2289 = vset.pattern.permute.xlu0 0
  %2290 = vperm.xlu0 %2289, %v2259
  %v2291 = vpop.permute.xlu0 %2290
  %v2292 = vlaneseq
  %v2293 = vshrl.u32 %v2292, 7
  %v2294 = vsub.s32 %v535, %v2293
  %v2295 = vrot.slane %v2270, %v2294
  %v2296 = vlaneseq
  %v2297 = vshrl.u32 %v2296, 7
  %v2298 = vsub.s32 %v535, %v2297
  %v2299 = vrot.slane %v2273, %v2298
  %v2300 = vlaneseq
  %v2301 = vshrl.u32 %v2300, 7
  %v2302 = vsub.s32 %v535, %v2301
  %v2303 = vrot.slane %v2276, %v2302
  %v2304 = vlaneseq
  %v2305 = vshrl.u32 %v2304, 7
  %v2306 = vsub.s32 %v535, %v2305
  %v2307 = vrot.slane %v2279, %v2306
  %v2308 = vlaneseq
  %v2309 = vshrl.u32 %v2308, 7
  %v2310 = vsub.s32 %v535, %v2309
  %v2311 = vrot.slane %v2282, %v2310
  %v2312 = vlaneseq
  %v2313 = vshrl.u32 %v2312, 7
  %v2314 = vsub.s32 %v535, %v2313
  %v2315 = vrot.slane %v2285, %v2314
  %v2316 = vlaneseq
  %v2317 = vshrl.u32 %v2316, 7
  %v2318 = vsub.s32 %v535, %v2317
  %v2319 = vrot.slane %v2288, %v2318
  %v2320 = vlaneseq
  %v2321 = vshrl.u32 %v2320, 7
  %v2322 = vsub.s32 %v535, %v2321
  %v2323 = vrot.slane %v2291, %v2322
  %v2324 = vsel %vm568, %v2299, %v2295
  %v2325 = vsel %vm570, %v2303, %v2324
  %v2326 = vsel %vm572, %v2307, %v2325
  %v2327 = vsel %vm574, %v2311, %v2326
  %v2328 = vsel %vm576, %v2315, %v2327
  %v2329 = vsel %vm578, %v2319, %v2328
  %v2330 = vsel %vm580, %v2323, %v2329
  %v2332 = vsel %vm583, %v2330, 0.0
  %2333 = vadd.xlane.f32.xlu0 %v2332
  %v2334 = vpop.xlane.xlu0 %2333
  %v2336 = vlaneseq
  %v2337 = vshrl.u32 %v2336, 7
  %v2338 = vsub.s32 0, %v2337
  %v2339 = vrot.slane %v2334, %v2338
  %v2340 = vlaneseq
  %v2341 = vshrl.u32 %v2340, 7
  %v2342 = vsub.s32 1, %v2341
  %v2343 = vrot.slane %v2334, %v2342
  %v2344 = vlaneseq
  %v2345 = vshrl.u32 %v2344, 7
  %v2346 = vsub.s32 2, %v2345
  %v2347 = vrot.slane %v2334, %v2346
  %v2348 = vlaneseq
  %v2349 = vshrl.u32 %v2348, 7
  %v2350 = vsub.s32 3, %v2349
  %v2351 = vrot.slane %v2334, %v2350
  %v2352 = vlaneseq
  %v2353 = vshrl.u32 %v2352, 7
  %v2354 = vsub.s32 4, %v2353
  %v2355 = vrot.slane %v2334, %v2354
  %v2356 = vlaneseq
  %v2357 = vshrl.u32 %v2356, 7
  %v2358 = vsub.s32 5, %v2357
  %v2359 = vrot.slane %v2334, %v2358
  %v2360 = vlaneseq
  %v2361 = vshrl.u32 %v2360, 7
  %v2362 = vsub.s32 6, %v2361
  %v2363 = vrot.slane %v2334, %v2362
  %v2364 = vlaneseq
  %v2365 = vshrl.u32 %v2364, 7
  %v2366 = vsub.s32 7, %v2365
  %v2367 = vrot.slane %v2334, %v2366
  %v2376 = vrcp.pop %v2339
  %v2377 = vmul.f32 %v2245, %v2376
  %v2378 = vrcp.pop %v2343
  %v2379 = vmul.f32 %v2247, %v2378
  %v2380 = vrcp.pop %v2347
  %v2381 = vmul.f32 %v2249, %v2380
  %v2382 = vrcp.pop %v2351
  %v2383 = vmul.f32 %v2251, %v2382
  %v2384 = vrcp.pop %v2355
  %v2385 = vmul.f32 %v2253, %v2384
  %v2386 = vrcp.pop %v2359
  %v2387 = vmul.f32 %v2255, %v2386
  %v2388 = vrcp.pop %v2363
  %v2389 = vmul.f32 %v2257, %v2388
  %v2390 = vrcp.pop %v2367
  %v2391 = vmul.f32 %v2259, %v2390
  %2393 = vset.pattern.permute.xlu0 0
  %2394 = vperm.xlu0 %2393, %v2377
  %v2395 = vpop.permute.xlu0 %2394
  %2398 = vset.pattern.permute.xlu0 0
  %2399 = vperm.xlu0 %2398, %v2379
  %v2400 = vpop.permute.xlu0 %2399
  %2403 = vset.pattern.permute.xlu0 0
  %2404 = vperm.xlu0 %2403, %v2381
  %v2405 = vpop.permute.xlu0 %2404
  %2408 = vset.pattern.permute.xlu0 0
  %2409 = vperm.xlu0 %2408, %v2383
  %v2410 = vpop.permute.xlu0 %2409
  %2413 = vset.pattern.permute.xlu0 0
  %2414 = vperm.xlu0 %2413, %v2385
  %v2415 = vpop.permute.xlu0 %2414
  %2418 = vset.pattern.permute.xlu0 0
  %2419 = vperm.xlu0 %2418, %v2387
  %v2420 = vpop.permute.xlu0 %2419
  %2423 = vset.pattern.permute.xlu0 0
  %2424 = vperm.xlu0 %2423, %v2389
  %v2425 = vpop.permute.xlu0 %2424
  %2428 = vset.pattern.permute.xlu0 0
  %2429 = vperm.xlu0 %2428, %v2391
  %v2430 = vpop.permute.xlu0 %2429
  %v2432 = vmul.f32 %v2395, %v182
  %v2433 = vmul.f32 %v2400, %v183
  %v2434 = vmul.f32 %v2405, %v184
  %v2435 = vmul.f32 %v2410, %v185
  %v2436 = vmul.f32 %v2415, %v186
  %v2437 = vmul.f32 %v2420, %v187
  %v2438 = vmul.f32 %v2425, %v188
  %v2439 = vmul.f32 %v2430, %v189
  %v2440 = vsel %vm76, %v2432, 0.0
  %v2441 = vrot.slane %v2440, 4
  %v2442 = vadd.f32 %v2440, %v2441
  %v2443 = vrot.slane %v2442, 2
  %v2444 = vadd.f32 %v2442, %v2443
  %v2445 = vrot.slane %v2444, 1
  %v2446 = vadd.f32 %v2444, %v2445
  %v2447 = vsel %vm76, %v2433, 0.0
  %v2448 = vrot.slane %v2447, 4
  %v2449 = vadd.f32 %v2447, %v2448
  %v2450 = vrot.slane %v2449, 2
  %v2451 = vadd.f32 %v2449, %v2450
  %v2452 = vrot.slane %v2451, 1
  %v2453 = vadd.f32 %v2451, %v2452
  %v2454 = vsel %vm76, %v2434, 0.0
  %v2455 = vrot.slane %v2454, 4
  %v2456 = vadd.f32 %v2454, %v2455
  %v2457 = vrot.slane %v2456, 2
  %v2458 = vadd.f32 %v2456, %v2457
  %v2459 = vrot.slane %v2458, 1
  %v2460 = vadd.f32 %v2458, %v2459
  %v2461 = vsel %vm76, %v2435, 0.0
  %v2462 = vrot.slane %v2461, 4
  %v2463 = vadd.f32 %v2461, %v2462
  %v2464 = vrot.slane %v2463, 2
  %v2465 = vadd.f32 %v2463, %v2464
  %v2466 = vrot.slane %v2465, 1
  %v2467 = vadd.f32 %v2465, %v2466
  %v2468 = vsel %vm76, %v2436, 0.0
  %v2469 = vrot.slane %v2468, 4
  %v2470 = vadd.f32 %v2468, %v2469
  %v2471 = vrot.slane %v2470, 2
  %v2472 = vadd.f32 %v2470, %v2471
  %v2473 = vrot.slane %v2472, 1
  %v2474 = vadd.f32 %v2472, %v2473
  %v2475 = vsel %vm76, %v2437, 0.0
  %v2476 = vrot.slane %v2475, 4
  %v2477 = vadd.f32 %v2475, %v2476
  %v2478 = vrot.slane %v2477, 2
  %v2479 = vadd.f32 %v2477, %v2478
  %v2480 = vrot.slane %v2479, 1
  %v2481 = vadd.f32 %v2479, %v2480
  %v2482 = vsel %vm76, %v2438, 0.0
  %v2483 = vrot.slane %v2482, 4
  %v2484 = vadd.f32 %v2482, %v2483
  %v2485 = vrot.slane %v2484, 2
  %v2486 = vadd.f32 %v2484, %v2485
  %v2487 = vrot.slane %v2486, 1
  %v2488 = vadd.f32 %v2486, %v2487
  %v2489 = vsel %vm76, %v2439, 0.0
  %v2490 = vrot.slane %v2489, 4
  %v2491 = vadd.f32 %v2489, %v2490
  %v2492 = vrot.slane %v2491, 2
  %v2493 = vadd.f32 %v2491, %v2492
  %v2494 = vrot.slane %v2493, 1
  %v2495 = vadd.f32 %v2493, %v2494
  %v2496 = vpack.c.bf16 %v2446, %v2446
  %v2497 = vpack.c.bf16 %v2453, %v2453
  %v2498 = vpack.c.bf16 %v2460, %v2460
  %v2499 = vpack.c.bf16 %v2467, %v2467
  %v2500 = vpack.c.bf16 %v2474, %v2474
  %v2501 = vpack.c.bf16 %v2481, %v2481
  %v2502 = vpack.c.bf16 %v2488, %v2488
  %v2503 = vpack.c.bf16 %v2495, %v2495
  %2504 = vmatprep.subr.bf16.mxu0 0
  %2505 = vmatpush1.bf16.msra.mxu0 %v904
  %2506 = vmatprep.subr.bf16.mxu0 0
  %2507 = vmatpush1.bf16.msra.mxu0 %v905
  %2508 = vmatprep.subr.bf16.mxu0 0
  %2509 = vmatpush1.bf16.msra.mxu0 0
  %2510 = vmatprep.subr.bf16.mxu0 0
  %2511 = vmatpush1.bf16.msra.mxu0 0
  %2512 = vmatprep.subr.bf16.mxu0 0
  %2513 = vmatpush1.bf16.msra.mxu0 0
  %2514 = vmatprep.subr.bf16.mxu0 0
  %2515 = vmatpush1.bf16.msra.mxu0 0
  %2516 = vmatprep.subr.bf16.mxu0 0
  %2517 = vmatpush1.bf16.msra.mxu0 0
  %2518 = vmatprep.subr.bf16.mxu0 0
  %2519 = vmatpush1.bf16.msra.mxu0 0
  %2520 = vmatprep.subr.bf16.mxu0 0
  %2521 = vmatpush1.bf16.msra.mxu0 0
  %2522 = vmatprep.subr.bf16.mxu0 0
  %2523 = vmatpush1.bf16.msra.mxu0 0
  %2524 = vmatprep.subr.bf16.mxu0 0
  %2525 = vmatpush1.bf16.msra.mxu0 0
  %2526 = vmatprep.subr.bf16.mxu0 0
  %2527 = vmatpush1.bf16.msra.mxu0 0
  %2528 = vmatprep.subr.bf16.mxu0 0
  %2529 = vmatpush1.bf16.msra.mxu0 0
  %2530 = vmatprep.subr.bf16.mxu0 0
  %2531 = vmatpush1.bf16.msra.mxu0 0
  %2532 = vmatprep.subr.bf16.mxu0 0
  %2533 = vmatpush1.bf16.msra.mxu0 0
  %2534 = vmatprep.subr.bf16.mxu0 0
  %2535 = vmatpush1.bf16.msra.mxu0 0
  %2536 = vmatprep.mubr.bf16.mxu0 0
  %2537 = vmatmul.mubr.bf16.gmra.mrb[0].mxu0 %v1980
  %v2538 = vpop.f32.mrb[0].mxu0
  %v2539 = vadd.f32 0.0, %v2538
  %v2540 = vpop.f32.mrb[0].mxu0
  %v2541 = vpop.f32.mrb[0].mxu0
  %v2542 = vpop.f32.mrb[0].mxu0
  %2543 = vdwg.mxu0
  %v2552 = vunpack.c.l.b16 %v2496
  %v2553 = vunpack.c.l.b16 %v2497
  %v2554 = vunpack.c.l.b16 %v2498
  %v2555 = vunpack.c.l.b16 %v2499
  %v2556 = vunpack.c.l.b16 %v2500
  %v2557 = vunpack.c.l.b16 %v2501
  %v2558 = vunpack.c.l.b16 %v2502
  %v2559 = vunpack.c.l.b16 %v2503
  %v2560 = vsel %vm568, %v2553, %v2552
  %v2561 = vsel %vm570, %v2554, %v2560
  %v2562 = vsel %vm572, %v2555, %v2561
  %v2563 = vsel %vm574, %v2556, %v2562
  %v2564 = vsel %vm576, %v2557, %v2563
  %v2565 = vsel %vm578, %v2558, %v2564
  %v2566 = vsel %vm580, %v2559, %v2565
  %v2567 = vpack.c.b16 %v2566, %v2566
  %v2569 = vsel %vm76, %v2567, 0
  %2571 = vmatprep.subr.bf16.mxu0 0
  %2572 = vmatpush1.bf16.msra.mxu0 %v980
  %2573 = vmatprep.subr.bf16.mxu0 0
  %2574 = vmatpush1.bf16.msra.mxu0 %v981
  %2575 = vmatprep.subr.bf16.mxu0 0
  %2576 = vmatpush1.bf16.msra.mxu0 0
  %2577 = vmatprep.subr.bf16.mxu0 0
  %2578 = vmatpush1.bf16.msra.mxu0 0
  %2579 = vmatprep.subr.bf16.mxu0 0
  %2580 = vmatpush1.bf16.msra.mxu0 0
  %2581 = vmatprep.subr.bf16.mxu0 0
  %2582 = vmatpush1.bf16.msra.mxu0 0
  %2583 = vmatprep.subr.bf16.mxu0 0
  %2584 = vmatpush1.bf16.msra.mxu0 0
  %2585 = vmatprep.subr.bf16.mxu0 0
  %2586 = vmatpush1.bf16.msra.mxu0 0
  %2587 = vmatprep.subr.bf16.mxu0 0
  %2588 = vmatpush1.bf16.msra.mxu0 0
  %2589 = vmatprep.subr.bf16.mxu0 0
  %2590 = vmatpush1.bf16.msra.mxu0 0
  %2591 = vmatprep.subr.bf16.mxu0 0
  %2592 = vmatpush1.bf16.msra.mxu0 0
  %2593 = vmatprep.subr.bf16.mxu0 0
  %2594 = vmatpush1.bf16.msra.mxu0 0
  %2595 = vmatprep.subr.bf16.mxu0 0
  %2596 = vmatpush1.bf16.msra.mxu0 0
  %2597 = vmatprep.subr.bf16.mxu0 0
  %2598 = vmatpush1.bf16.msra.mxu0 0
  %2599 = vmatprep.subr.bf16.mxu0 0
  %2600 = vmatpush1.bf16.msra.mxu0 0
  %2601 = vmatprep.subr.bf16.mxu0 0
  %2602 = vmatpush1.bf16.msra.mxu0 0
  %2603 = vmatprep.mubr.bf16.mxu0 0
  %2604 = vmatmul.mubr.bf16.gmra.mrb[0].mxu0 %v2569
  %v2605 = vpop.f32.mrb[0].mxu0
  %v2606 = vadd.f32 %v2539, %v2605
  %v2607 = vpop.f32.mrb[0].mxu0
  %v2608 = vpop.f32.mrb[0].mxu0
  %v2609 = vpop.f32.mrb[0].mxu0
  %2610 = vdwg.mxu0
  %v2611 = vtanh.pop %v2606
  %s2612 = scalar_lea.vmem %s11, 16
  %2613 = vst.msk [vmem:[%s2612] sm:$0xff] %vm76, %v2611
  %v2614 = vlaneseq
  %v2615 = vshrl.u32 %v2614, 7
  %v2616 = vsub.s32 %v535, %v2615
  %v2617 = vrot.slane %v2395, %v2616
  %v2618 = vlaneseq
  %v2619 = vshrl.u32 %v2618, 7
  %v2620 = vsub.s32 %v535, %v2619
  %v2621 = vrot.slane %v2400, %v2620
  %v2622 = vlaneseq
  %v2623 = vshrl.u32 %v2622, 7
  %v2624 = vsub.s32 %v535, %v2623
  %v2625 = vrot.slane %v2405, %v2624
  %v2626 = vlaneseq
  %v2627 = vshrl.u32 %v2626, 7
  %v2628 = vsub.s32 %v535, %v2627
  %v2629 = vrot.slane %v2410, %v2628
  %v2630 = vlaneseq
  %v2631 = vshrl.u32 %v2630, 7
  %v2632 = vsub.s32 %v535, %v2631
  %v2633 = vrot.slane %v2415, %v2632
  %v2634 = vlaneseq
  %v2635 = vshrl.u32 %v2634, 7
  %v2636 = vsub.s32 %v535, %v2635
  %v2637 = vrot.slane %v2420, %v2636
  %v2638 = vlaneseq
  %v2639 = vshrl.u32 %v2638, 7
  %v2640 = vsub.s32 %v535, %v2639
  %v2641 = vrot.slane %v2425, %v2640
  %v2642 = vlaneseq
  %v2643 = vshrl.u32 %v2642, 7
  %v2644 = vsub.s32 %v535, %v2643
  %v2645 = vrot.slane %v2430, %v2644
  %v2646 = vsel %vm568, %v2621, %v2617
  %v2647 = vsel %vm570, %v2625, %v2646
  %v2648 = vsel %vm572, %v2629, %v2647
  %v2649 = vsel %vm574, %v2633, %v2648
  %v2650 = vsel %vm576, %v2637, %v2649
  %v2651 = vsel %vm578, %v2641, %v2650
  %v2652 = vsel %vm580, %v2645, %v2651
  %s2654 = scalar_lea.vmem %s12, 16
  %2655 = vst.msk [vmem:[%s2654] sm:$0xff] %vm583, %v2652
  %s2656 = scalar_lea.vmem [#allocation2], 24
  %v2657 = vld [vmem:[%s2656] sm:$0xff]
  %v2658 = vpack.c.bf16 %v2611, %v2611
  %v2660 = vsel %vm76, %v2658, 0
  %2662 = vmatprep.subr.bf16.mxu0 0
  %2663 = vmatpush1.bf16.msra.mxu0 %v212
  %2664 = vmatprep.subr.bf16.mxu0 0
  %2665 = vmatpush1.bf16.msra.mxu0 %v213
  %2666 = vmatprep.subr.bf16.mxu0 0
  %2667 = vmatpush1.bf16.msra.mxu0 0
  %2668 = vmatprep.subr.bf16.mxu0 0
  %2669 = vmatpush1.bf16.msra.mxu0 0
  %2670 = vmatprep.subr.bf16.mxu0 0
  %2671 = vmatpush1.bf16.msra.mxu0 0
  %2672 = vmatprep.subr.bf16.mxu0 0
  %2673 = vmatpush1.bf16.msra.mxu0 0
  %2674 = vmatprep.subr.bf16.mxu0 0
  %2675 = vmatpush1.bf16.msra.mxu0 0
  %2676 = vmatprep.subr.bf16.mxu0 0
  %2677 = vmatpush1.bf16.msra.mxu0 0
  %2678 = vmatprep.subr.bf16.mxu0 0
  %2679 = vmatpush1.bf16.msra.mxu0 0
  %2680 = vmatprep.subr.bf16.mxu0 0
  %2681 = vmatpush1.bf16.msra.mxu0 0
  %2682 = vmatprep.subr.bf16.mxu0 0
  %2683 = vmatpush1.bf16.msra.mxu0 0
  %2684 = vmatprep.subr.bf16.mxu0 0
  %2685 = vmatpush1.bf16.msra.mxu0 0
  %2686 = vmatprep.subr.bf16.mxu0 0
  %2687 = vmatpush1.bf16.msra.mxu0 0
  %2688 = vmatprep.subr.bf16.mxu0 0
  %2689 = vmatpush1.bf16.msra.mxu0 0
  %2690 = vmatprep.subr.bf16.mxu0 0
  %2691 = vmatpush1.bf16.msra.mxu0 0
  %2692 = vmatprep.subr.bf16.mxu0 0
  %2693 = vmatpush1.bf16.msra.mxu0 0
  %2694 = vmatprep.mubr.bf16.mxu0 0
  %2695 = vmatmul.mubr.bf16.gmra.mrb[0].mxu0 %v2660
  %v2696 = vpop.f32.mrb[0].mxu0
  %v2697 = vadd.f32 0.0, %v2696
  %v2698 = vpop.f32.mrb[0].mxu0
  %v2699 = vpop.f32.mrb[0].mxu0
  %v2700 = vpop.f32.mrb[0].mxu0
  %2701 = vdwg.mxu0
  %v2702 = vadd.f32 %v2657, %v2697
  %2703 = vmatprep.subr.bf16.mxu0 0
  %2704 = vmatpush1.bf16.msra.mxu0 %v269
  %2705 = vmatprep.subr.bf16.mxu0 0
  %2706 = vmatpush1.bf16.msra.mxu0 %v270
  %2707 = vmatprep.subr.bf16.mxu0 0
  %2708 = vmatpush1.bf16.msra.mxu0 0
  %2709 = vmatprep.subr.bf16.mxu0 0
  %2710 = vmatpush1.bf16.msra.mxu0 0
  %2711 = vmatprep.subr.bf16.mxu0 0
  %2712 = vmatpush1.bf16.msra.mxu0 0
  %2713 = vmatprep.subr.bf16.mxu0 0
  %2714 = vmatpush1.bf16.msra.mxu0 0
  %2715 = vmatprep.subr.bf16.mxu0 0
  %2716 = vmatpush1.bf16.msra.mxu0 0
  %2717 = vmatprep.subr.bf16.mxu0 0
  %2718 = vmatpush1.bf16.msra.mxu0 0
  %2719 = vmatprep.subr.bf16.mxu0 0
  %2720 = vmatpush1.bf16.msra.mxu0 0
  %2721 = vmatprep.subr.bf16.mxu0 0
  %2722 = vmatpush1.bf16.msra.mxu0 0
  %2723 = vmatprep.subr.bf16.mxu0 0
  %2724 = vmatpush1.bf16.msra.mxu0 0
  %2725 = vmatprep.subr.bf16.mxu0 0
  %2726 = vmatpush1.bf16.msra.mxu0 0
  %2727 = vmatprep.subr.bf16.mxu0 0
  %2728 = vmatpush1.bf16.msra.mxu0 0
  %2729 = vmatprep.subr.bf16.mxu0 0
  %2730 = vmatpush1.bf16.msra.mxu0 0
  %2731 = vmatprep.subr.bf16.mxu0 0
  %2732 = vmatpush1.bf16.msra.mxu0 0
  %2733 = vmatprep.subr.bf16.mxu0 0
  %2734 = vmatpush1.bf16.msra.mxu0 0
  %2735 = vmatprep.mubr.bf16.mxu0 0
  %2736 = vmatmul.mubr.bf16.gmra.mrb[0].mxu0 %v1980
  %v2737 = vpop.f32.mrb[0].mxu0
  %v2738 = vadd.f32 0.0, %v2737
  %v2739 = vpop.f32.mrb[0].mxu0
  %v2740 = vpop.f32.mrb[0].mxu0
  %v2741 = vpop.f32.mrb[0].mxu0
  %2742 = vdwg.mxu0
  %v2743 = vadd.f32 %v2702, %v2738
  %v2744 = vxor.u32 %v2743, 2147483648
  %v2745 = vmul.f32 %v2744, 1.442695
  %v2746 = vpow.pop %v2745
  %v2747 = vadd.f32 %v2746, 1.0
  %v2748 = vrcp.pop %v2747
  %v2749 = vmul.f32 1.0, %v2748
  %v2750 = vtanh.pop %v2743
  %v2751 = vmul.f32 %v2749, %v1968
  %2753 = vrot.lane.b32.xlu0 %v2750, 64
  %v2754 = vpop.permute.xlu0 %2753
  %v2756 = vmul.f32 %v2749, %v2754
  %2758 = vrot.lane.b32.xlu0 %v2756, 32
  %v2759 = vpop.permute.xlu0 %2758
  %v2761 = vadd.f32 %v2751, %v2759
  %v2762 = vtanh.pop %v2761
  %2764 = vrot.lane.b32.xlu0 %v2762, 64
  %v2765 = vpop.permute.xlu0 %2764
  %v2767 = vmul.f32 %v2749, %v2765
  %v2768 = vpack.c.bf16 %v2767, %v2767
  %2770 = vrot.lane.b32.xlu0 %v2768, 32
  %v2771 = vpop.permute.xlu0 %2770
  %v2773 = vsel %vm76, %v2771, 0
  %2775 = vmatprep.subr.bf16.mxu0 0
  %2776 = vmatpush1.bf16.msra.mxu0 %v357
  %2777 = vmatprep.subr.bf16.mxu0 0
  %2778 = vmatpush1.bf16.msra.mxu0 %v358
  %2779 = vmatprep.subr.bf16.mxu0 0
  %2780 = vmatpush1.bf16.msra.mxu0 0
  %2781 = vmatprep.subr.bf16.mxu0 0
  %2782 = vmatpush1.bf16.msra.mxu0 0
  %2783 = vmatprep.subr.bf16.mxu0 0
  %2784 = vmatpush1.bf16.msra.mxu0 0
  %2785 = vmatprep.subr.bf16.mxu0 0
  %2786 = vmatpush1.bf16.msra.mxu0 0
  %2787 = vmatprep.subr.bf16.mxu0 0
  %2788 = vmatpush1.bf16.msra.mxu0 0
  %2789 = vmatprep.subr.bf16.mxu0 0
  %2790 = vmatpush1.bf16.msra.mxu0 0
  %2791 = vmatprep.subr.bf16.mxu0 0
  %2792 = vmatpush1.bf16.msra.mxu0 0
  %2793 = vmatprep.subr.bf16.mxu0 0
  %2794 = vmatpush1.bf16.msra.mxu0 0
  %2795 = vmatprep.subr.bf16.mxu0 0
  %2796 = vmatpush1.bf16.msra.mxu0 0
  %2797 = vmatprep.subr.bf16.mxu0 0
  %2798 = vmatpush1.bf16.msra.mxu0 0
  %2799 = vmatprep.subr.bf16.mxu0 0
  %2800 = vmatpush1.bf16.msra.mxu0 0
  %2801 = vmatprep.subr.bf16.mxu0 0
  %2802 = vmatpush1.bf16.msra.mxu0 0
  %2803 = vmatprep.subr.bf16.mxu0 0
  %2804 = vmatpush1.bf16.msra.mxu0 0
  %2805 = vmatprep.subr.bf16.mxu0 0
  %2806 = vmatpush1.bf16.msra.mxu0 0
  %2807 = vmatprep.mubr.bf16.mxu0 0
  %2808 = vmatmul.mubr.bf16.gmra.mrb[0].mxu0 %v2773
  %v2809 = vpop.f32.mrb[0].mxu0
  %v2810 = vadd.f32 0.0, %v2809
  %v2811 = vpop.f32.mrb[0].mxu0
  %v2812 = vpop.f32.mrb[0].mxu0
  %v2813 = vpop.f32.mrb[0].mxu0
  %2814 = vdwg.mxu0
  %v2816 = vcombine.high %v2810, %v2810
  %v2818 = vunpack.c.l.s4 1966171168
  %v2819 = vunpack.c.0.s8 %v2818
  %v2820 = vlaneseq
  %v2821 = vshrl.u32 %v2820, 7
  %v2822 = vsub.s32 %v2819, %v2821
  %v2823 = vrot.slane %v2810, %v2822
  %v2825 = vunpack.c.l.s4 1966171168
  %v2826 = vunpack.c.0.s8 %v2825
  %v2827 = vlaneseq
  %v2828 = vshrl.u32 %v2827, 7
  %v2829 = vsub.s32 %v2826, %v2828
  %v2830 = vrot.slane %v2816, %v2829
  %v2831 = vcombine.high %v2823, %v2823
  %v2832 = vcombine.high %v2830, %v2830
  %v2834 = vunpack.c.l.s4 1966171168
  %v2835 = vunpack.c.0.s8 %v2834
  %v2836 = vlaneseq
  %v2837 = vshrl.u32 %v2836, 7
  %v2838 = vsub.s32 %v2835, %v2837
  %v2839 = vrot.slane %v2823, %v2838
  %v2841 = vunpack.c.l.s4 1966171168
  %v2842 = vunpack.c.0.s8 %v2841
  %v2843 = vlaneseq
  %v2844 = vshrl.u32 %v2843, 7
  %v2845 = vsub.s32 %v2842, %v2844
  %v2846 = vrot.slane %v2830, %v2845
  %v2848 = vunpack.c.l.s4 1966171168
  %v2849 = vunpack.c.0.s8 %v2848
  %v2850 = vlaneseq
  %v2851 = vshrl.u32 %v2850, 7
  %v2852 = vsub.s32 %v2849, %v2851
  %v2853 = vrot.slane %v2831, %v2852
  %v2855 = vunpack.c.l.s4 1966171168
  %v2856 = vunpack.c.0.s8 %v2855
  %v2857 = vlaneseq
  %v2858 = vshrl.u32 %v2857, 7
  %v2859 = vsub.s32 %v2856, %v2858
  %v2860 = vrot.slane %v2832, %v2859
  %v2861 = vcombine.high %v2839, %v2839
  %v2862 = vcombine.high %v2846, %v2846
  %v2863 = vcombine.high %v2853, %v2853
  %v2864 = vcombine.high %v2860, %v2860
  %v2865 = vlaneseq
  %v2866 = vshrl.u32 %v2865, 7
  %v2867 = vsub.s32 0, %v2866
  %v2868 = vrot.slane %v2839, %v2867
  %v2869 = vlaneseq
  %v2870 = vshrl.u32 %v2869, 7
  %v2871 = vsub.s32 0, %v2870
  %v2872 = vrot.slane %v2853, %v2871
  %v2873 = vlaneseq
  %v2874 = vshrl.u32 %v2873, 7
  %v2875 = vsub.s32 0, %v2874
  %v2876 = vrot.slane %v2861, %v2875
  %v2877 = vlaneseq
  %v2878 = vshrl.u32 %v2877, 7
  %v2879 = vsub.s32 0, %v2878
  %v2880 = vrot.slane %v2863, %v2879
  %v2881 = vlaneseq
  %v2882 = vshrl.u32 %v2881, 7
  %v2883 = vsub.s32 0, %v2882
  %v2884 = vrot.slane %v2846, %v2883
  %v2885 = vlaneseq
  %v2886 = vshrl.u32 %v2885, 7
  %v2887 = vsub.s32 0, %v2886
  %v2888 = vrot.slane %v2860, %v2887
  %v2889 = vlaneseq
  %v2890 = vshrl.u32 %v2889, 7
  %v2891 = vsub.s32 0, %v2890
  %v2892 = vrot.slane %v2862, %v2891
  %v2893 = vlaneseq
  %v2894 = vshrl.u32 %v2893, 7
  %v2895 = vsub.s32 0, %v2894
  %v2896 = vrot.slane %v2864, %v2895
  %v2905 = vmul.f32 %v182, %v2868
  %v2906 = vmul.f32 %v183, %v2872
  %v2907 = vmul.f32 %v184, %v2876
  %v2908 = vmul.f32 %v185, %v2880
  %v2909 = vmul.f32 %v186, %v2884
  %v2910 = vmul.f32 %v187, %v2888
  %v2911 = vmul.f32 %v188, %v2892
  %v2912 = vmul.f32 %v189, %v2896
  %v2913 = vsel %vm76, %v2905, 0.0
  %2914 = vadd.xlane.f32.xlu0 %v2913
  %v2915 = vpop.xlane.xlu0 %2914
  %v2916 = vsel %vm76, %v2906, 0.0
  %2917 = vadd.xlane.f32.xlu0 %v2916
  %v2918 = vpop.xlane.xlu0 %2917
  %v2919 = vsel %vm76, %v2907, 0.0
  %2920 = vadd.xlane.f32.xlu0 %v2919
  %v2921 = vpop.xlane.xlu0 %2920
  %v2922 = vsel %vm76, %v2908, 0.0
  %2923 = vadd.xlane.f32.xlu0 %v2922
  %v2924 = vpop.xlane.xlu0 %2923
  %v2925 = vsel %vm76, %v2909, 0.0
  %2926 = vadd.xlane.f32.xlu0 %v2925
  %v2927 = vpop.xlane.xlu0 %2926
  %v2928 = vsel %vm76, %v2910, 0.0
  %2929 = vadd.xlane.f32.xlu0 %v2928
  %v2930 = vpop.xlane.xlu0 %2929
  %v2931 = vsel %vm76, %v2911, 0.0
  %2932 = vadd.xlane.f32.xlu0 %v2931
  %v2933 = vpop.xlane.xlu0 %2932
  %v2934 = vsel %vm76, %v2912, 0.0
  %2935 = vadd.xlane.f32.xlu0 %v2934
  %v2936 = vpop.xlane.xlu0 %2935
  %v2945 = vlaneseq
  %v2946 = vshrl.u32 %v2945, 7
  %v2947 = vsub.s32 %v535, %v2946
  %v2948 = vrot.slane %v2915, %v2947
  %v2949 = vlaneseq
  %v2950 = vshrl.u32 %v2949, 7
  %v2951 = vsub.s32 %v535, %v2950
  %v2952 = vrot.slane %v2918, %v2951
  %v2953 = vlaneseq
  %v2954 = vshrl.u32 %v2953, 7
  %v2955 = vsub.s32 %v535, %v2954
  %v2956 = vrot.slane %v2921, %v2955
  %v2957 = vlaneseq
  %v2958 = vshrl.u32 %v2957, 7
  %v2959 = vsub.s32 %v535, %v2958
  %v2960 = vrot.slane %v2924, %v2959
  %v2961 = vlaneseq
  %v2962 = vshrl.u32 %v2961, 7
  %v2963 = vsub.s32 %v535, %v2962
  %v2964 = vrot.slane %v2927, %v2963
  %v2965 = vlaneseq
  %v2966 = vshrl.u32 %v2965, 7
  %v2967 = vsub.s32 %v535, %v2966
  %v2968 = vrot.slane %v2930, %v2967
  %v2969 = vlaneseq
  %v2970 = vshrl.u32 %v2969, 7
  %v2971 = vsub.s32 %v535, %v2970
  %v2972 = vrot.slane %v2933, %v2971
  %v2973 = vlaneseq
  %v2974 = vshrl.u32 %v2973, 7
  %v2975 = vsub.s32 %v535, %v2974
  %v2976 = vrot.slane %v2936, %v2975
  %v2977 = vsel %vm568, %v2952, %v2948
  %v2978 = vsel %vm570, %v2956, %v2977
  %v2979 = vsel %vm572, %v2960, %v2978
  %v2980 = vsel %vm574, %v2964, %v2979
  %v2981 = vsel %vm576, %v2968, %v2980
  %v2982 = vsel %vm578, %v2972, %v2981
  %v2983 = vsel %vm580, %v2976, %v2982
  %v2985 = vsel %vm583, %v2983, -inf
  %2986 = vmax.xlane.f32.xlu0 %v2985
  %v2987 = vpop.xlane.xlu0 %2986
  %v2989 = vlaneseq
  %v2990 = vshrl.u32 %v2989, 7
  %v2991 = vsub.s32 0, %v2990
  %v2992 = vrot.slane %v2987, %v2991
  %v2993 = vlaneseq
  %v2994 = vshrl.u32 %v2993, 7
  %v2995 = vsub.s32 1, %v2994
  %v2996 = vrot.slane %v2987, %v2995
  %v2997 = vlaneseq
  %v2998 = vshrl.u32 %v2997, 7
  %v2999 = vsub.s32 2, %v2998
  %v3000 = vrot.slane %v2987, %v2999
  %v3001 = vlaneseq
  %v3002 = vshrl.u32 %v3001, 7
  %v3003 = vsub.s32 3, %v3002
  %v3004 = vrot.slane %v2987, %v3003
  %v3005 = vlaneseq
  %v3006 = vshrl.u32 %v3005, 7
  %v3007 = vsub.s32 4, %v3006
  %v3008 = vrot.slane %v2987, %v3007
  %v3009 = vlaneseq
  %v3010 = vshrl.u32 %v3009, 7
  %v3011 = vsub.s32 5, %v3010
  %v3012 = vrot.slane %v2987, %v3011
  %v3013 = vlaneseq
  %v3014 = vshrl.u32 %v3013, 7
  %v3015 = vsub.s32 6, %v3014
  %v3016 = vrot.slane %v2987, %v3015
  %v3017 = vlaneseq
  %v3018 = vshrl.u32 %v3017, 7
  %v3019 = vsub.s32 7, %v3018
  %v3020 = vrot.slane %v2987, %v3019
  %v3029 = vsub.f32 %v2915, %v2992
  %v3030 = vsub.f32 %v2918, %v2996
  %v3031 = vsub.f32 %v2921, %v3000
  %v3032 = vsub.f32 %v2924, %v3004
  %v3033 = vsub.f32 %v2927, %v3008
  %v3034 = vsub.f32 %v2930, %v3012
  %v3035 = vsub.f32 %v2933, %v3016
  %v3036 = vsub.f32 %v2936, %v3020
  %v3037 = vmul.f32 %v3029, 1.442695
  %v3038 = vpow.pop %v3037
  %v3039 = vmul.f32 %v3030, 1.442695
  %v3040 = vpow.pop %v3039
  %v3041 = vmul.f32 %v3031, 1.442695
  %v3042 = vpow.pop %v3041
  %v3043 = vmul.f32 %v3032, 1.442695
  %v3044 = vpow.pop %v3043
  %v3045 = vmul.f32 %v3033, 1.442695
  %v3046 = vpow.pop %v3045
  %v3047 = vmul.f32 %v3034, 1.442695
  %v3048 = vpow.pop %v3047
  %v3049 = vmul.f32 %v3035, 1.442695
  %v3050 = vpow.pop %v3049
  %v3051 = vmul.f32 %v3036, 1.442695
  %v3052 = vpow.pop %v3051
  %3061 = vset.pattern.permute.xlu0 0
  %3062 = vperm.xlu0 %3061, %v3038
  %v3063 = vpop.permute.xlu0 %3062
  %3064 = vset.pattern.permute.xlu0 0
  %3065 = vperm.xlu0 %3064, %v3040
  %v3066 = vpop.permute.xlu0 %3065
  %3067 = vset.pattern.permute.xlu0 0
  %3068 = vperm.xlu0 %3067, %v3042
  %v3069 = vpop.permute.xlu0 %3068
  %3070 = vset.pattern.permute.xlu0 0
  %3071 = vperm.xlu0 %3070, %v3044
  %v3072 = vpop.permute.xlu0 %3071
  %3073 = vset.pattern.permute.xlu0 0
  %3074 = vperm.xlu0 %3073, %v3046
  %v3075 = vpop.permute.xlu0 %3074
  %3076 = vset.pattern.permute.xlu0 0
  %3077 = vperm.xlu0 %3076, %v3048
  %v3078 = vpop.permute.xlu0 %3077
  %3079 = vset.pattern.permute.xlu0 0
  %3080 = vperm.xlu0 %3079, %v3050
  %v3081 = vpop.permute.xlu0 %3080
  %3082 = vset.pattern.permute.xlu0 0
  %3083 = vperm.xlu0 %3082, %v3052
  %v3084 = vpop.permute.xlu0 %3083
  %v3085 = vlaneseq
  %v3086 = vshrl.u32 %v3085, 7
  %v3087 = vsub.s32 %v535, %v3086
  %v3088 = vrot.slane %v3063, %v3087
  %v3089 = vlaneseq
  %v3090 = vshrl.u32 %v3089, 7
  %v3091 = vsub.s32 %v535, %v3090
  %v3092 = vrot.slane %v3066, %v3091
  %v3093 = vlaneseq
  %v3094 = vshrl.u32 %v3093, 7
  %v3095 = vsub.s32 %v535, %v3094
  %v3096 = vrot.slane %v3069, %v3095
  %v3097 = vlaneseq
  %v3098 = vshrl.u32 %v3097, 7
  %v3099 = vsub.s32 %v535, %v3098
  %v3100 = vrot.slane %v3072, %v3099
  %v3101 = vlaneseq
  %v3102 = vshrl.u32 %v3101, 7
  %v3103 = vsub.s32 %v535, %v3102
  %v3104 = vrot.slane %v3075, %v3103
  %v3105 = vlaneseq
  %v3106 = vshrl.u32 %v3105, 7
  %v3107 = vsub.s32 %v535, %v3106
  %v3108 = vrot.slane %v3078, %v3107
  %v3109 = vlaneseq
  %v3110 = vshrl.u32 %v3109, 7
  %v3111 = vsub.s32 %v535, %v3110
  %v3112 = vrot.slane %v3081, %v3111
  %v3113 = vlaneseq
  %v3114 = vshrl.u32 %v3113, 7
  %v3115 = vsub.s32 %v535, %v3114
  %v3116 = vrot.slane %v3084, %v3115
  %v3117 = vsel %vm568, %v3092, %v3088
  %v3118 = vsel %vm570, %v3096, %v3117
  %v3119 = vsel %vm572, %v3100, %v3118
  %v3120 = vsel %vm574, %v3104, %v3119
  %v3121 = vsel %vm576, %v3108, %v3120
  %v3122 = vsel %vm578, %v3112, %v3121
  %v3123 = vsel %vm580, %v3116, %v3122
  %v3125 = vsel %vm583, %v3123, 0.0
  %3126 = vadd.xlane.f32.xlu0 %v3125
  %v3127 = vpop.xlane.xlu0 %3126
  %v3129 = vlaneseq
  %v3130 = vshrl.u32 %v3129, 7
  %v3131 = vsub.s32 0, %v3130
  %v3132 = vrot.slane %v3127, %v3131
  %v3133 = vlaneseq
  %v3134 = vshrl.u32 %v3133, 7
  %v3135 = vsub.s32 1, %v3134
  %v3136 = vrot.slane %v3127, %v3135
  %v3137 = vlaneseq
  %v3138 = vshrl.u32 %v3137, 7
  %v3139 = vsub.s32 2, %v3138
  %v3140 = vrot.slane %v3127, %v3139
  %v3141 = vlaneseq
  %v3142 = vshrl.u32 %v3141, 7
  %v3143 = vsub.s32 3, %v3142
  %v3144 = vrot.slane %v3127, %v3143
  %v3145 = vlaneseq
  %v3146 = vshrl.u32 %v3145, 7
  %v3147 = vsub.s32 4, %v3146
  %v3148 = vrot.slane %v3127, %v3147
  %v3149 = vlaneseq
  %v3150 = vshrl.u32 %v3149, 7
  %v3151 = vsub.s32 5, %v3150
  %v3152 = vrot.slane %v3127, %v3151
  %v3153 = vlaneseq
  %v3154 = vshrl.u32 %v3153, 7
  %v3155 = vsub.s32 6, %v3154
  %v3156 = vrot.slane %v3127, %v3155
  %v3157 = vlaneseq
  %v3158 = vshrl.u32 %v3157, 7
  %v3159 = vsub.s32 7, %v3158
  %v3160 = vrot.slane %v3127, %v3159
  %v3169 = vrcp.pop %v3132
  %v3170 = vmul.f32 %v3038, %v3169
  %v3171 = vrcp.pop %v3136
  %v3172 = vmul.f32 %v3040, %v3171
  %v3173 = vrcp.pop %v3140
  %v3174 = vmul.f32 %v3042, %v3173
  %v3175 = vrcp.pop %v3144
  %v3176 = vmul.f32 %v3044, %v3175
  %v3177 = vrcp.pop %v3148
  %v3178 = vmul.f32 %v3046, %v3177
  %v3179 = vrcp.pop %v3152
  %v3180 = vmul.f32 %v3048, %v3179
  %v3181 = vrcp.pop %v3156
  %v3182 = vmul.f32 %v3050, %v3181
  %v3183 = vrcp.pop %v3160
  %v3184 = vmul.f32 %v3052, %v3183
  %3186 = vset.pattern.permute.xlu0 0
  %3187 = vperm.xlu0 %3186, %v3170
  %v3188 = vpop.permute.xlu0 %3187
  %3191 = vset.pattern.permute.xlu0 0
  %3192 = vperm.xlu0 %3191, %v3172
  %v3193 = vpop.permute.xlu0 %3192
  %3196 = vset.pattern.permute.xlu0 0
  %3197 = vperm.xlu0 %3196, %v3174
  %v3198 = vpop.permute.xlu0 %3197
  %3201 = vset.pattern.permute.xlu0 0
  %3202 = vperm.xlu0 %3201, %v3176
  %v3203 = vpop.permute.xlu0 %3202
  %3206 = vset.pattern.permute.xlu0 0
  %3207 = vperm.xlu0 %3206, %v3178
  %v3208 = vpop.permute.xlu0 %3207
  %3211 = vset.pattern.permute.xlu0 0
  %3212 = vperm.xlu0 %3211, %v3180
  %v3213 = vpop.permute.xlu0 %3212
  %3216 = vset.pattern.permute.xlu0 0
  %3217 = vperm.xlu0 %3216, %v3182
  %v3218 = vpop.permute.xlu0 %3217
  %3221 = vset.pattern.permute.xlu0 0
  %3222 = vperm.xlu0 %3221, %v3184
  %v3223 = vpop.permute.xlu0 %3222
  %v3225 = vmul.f32 %v3188, %v182
  %v3226 = vmul.f32 %v3193, %v183
  %v3227 = vmul.f32 %v3198, %v184
  %v3228 = vmul.f32 %v3203, %v185
  %v3229 = vmul.f32 %v3208, %v186
  %v3230 = vmul.f32 %v3213, %v187
  %v3231 = vmul.f32 %v3218, %v188
  %v3232 = vmul.f32 %v3223, %v189
  %v3233 = vsel %vm76, %v3225, 0.0
  %v3234 = vrot.slane %v3233, 4
  %v3235 = vadd.f32 %v3233, %v3234
  %v3236 = vrot.slane %v3235, 2
  %v3237 = vadd.f32 %v3235, %v3236
  %v3238 = vrot.slane %v3237, 1
  %v3239 = vadd.f32 %v3237, %v3238
  %v3240 = vsel %vm76, %v3226, 0.0
  %v3241 = vrot.slane %v3240, 4
  %v3242 = vadd.f32 %v3240, %v3241
  %v3243 = vrot.slane %v3242, 2
  %v3244 = vadd.f32 %v3242, %v3243
  %v3245 = vrot.slane %v3244, 1
  %v3246 = vadd.f32 %v3244, %v3245
  %v3247 = vsel %vm76, %v3227, 0.0
  %v3248 = vrot.slane %v3247, 4
  %v3249 = vadd.f32 %v3247, %v3248
  %v3250 = vrot.slane %v3249, 2
  %v3251 = vadd.f32 %v3249, %v3250
  %v3252 = vrot.slane %v3251, 1
  %v3253 = vadd.f32 %v3251, %v3252
  %v3254 = vsel %vm76, %v3228, 0.0
  %v3255 = vrot.slane %v3254, 4
  %v3256 = vadd.f32 %v3254, %v3255
  %v3257 = vrot.slane %v3256, 2
  %v3258 = vadd.f32 %v3256, %v3257
  %v3259 = vrot.slane %v3258, 1
  %v3260 = vadd.f32 %v3258, %v3259
  %v3261 = vsel %vm76, %v3229, 0.0
  %v3262 = vrot.slane %v3261, 4
  %v3263 = vadd.f32 %v3261, %v3262
  %v3264 = vrot.slane %v3263, 2
  %v3265 = vadd.f32 %v3263, %v3264
  %v3266 = vrot.slane %v3265, 1
  %v3267 = vadd.f32 %v3265, %v3266
  %v3268 = vsel %vm76, %v3230, 0.0
  %v3269 = vrot.slane %v3268, 4
  %v3270 = vadd.f32 %v3268, %v3269
  %v3271 = vrot.slane %v3270, 2
  %v3272 = vadd.f32 %v3270, %v3271
  %v3273 = vrot.slane %v3272, 1
  %v3274 = vadd.f32 %v3272, %v3273
  %v3275 = vsel %vm76, %v3231, 0.0
  %v3276 = vrot.slane %v3275, 4
  %v3277 = vadd.f32 %v3275, %v3276
  %v3278 = vrot.slane %v3277, 2
  %v3279 = vadd.f32 %v3277, %v3278
  %v3280 = vrot.slane %v3279, 1
  %v3281 = vadd.f32 %v3279, %v3280
  %v3282 = vsel %vm76, %v3232, 0.0
  %v3283 = vrot.slane %v3282, 4
  %v3284 = vadd.f32 %v3282, %v3283
  %v3285 = vrot.slane %v3284, 2
  %v3286 = vadd.f32 %v3284, %v3285
  %v3287 = vrot.slane %v3286, 1
  %v3288 = vadd.f32 %v3286, %v3287
  %v3289 = vpack.c.bf16 %v3239, %v3239
  %v3290 = vpack.c.bf16 %v3246, %v3246
  %v3291 = vpack.c.bf16 %v3253, %v3253
  %v3292 = vpack.c.bf16 %v3260, %v3260
  %v3293 = vpack.c.bf16 %v3267, %v3267
  %v3294 = vpack.c.bf16 %v3274, %v3274
  %v3295 = vpack.c.bf16 %v3281, %v3281
  %v3296 = vpack.c.bf16 %v3288, %v3288
  %3297 = vmatprep.subr.bf16.mxu0 0
  %3298 = vmatpush1.bf16.msra.mxu0 %v904
  %3299 = vmatprep.subr.bf16.mxu0 0
  %3300 = vmatpush1.bf16.msra.mxu0 %v905
  %3301 = vmatprep.subr.bf16.mxu0 0
  %3302 = vmatpush1.bf16.msra.mxu0 0
  %3303 = vmatprep.subr.bf16.mxu0 0
  %3304 = vmatpush1.bf16.msra.mxu0 0
  %3305 = vmatprep.subr.bf16.mxu0 0
  %3306 = vmatpush1.bf16.msra.mxu0 0
  %3307 = vmatprep.subr.bf16.mxu0 0
  %3308 = vmatpush1.bf16.msra.mxu0 0
  %3309 = vmatprep.subr.bf16.mxu0 0
  %3310 = vmatpush1.bf16.msra.mxu0 0
  %3311 = vmatprep.subr.bf16.mxu0 0
  %3312 = vmatpush1.bf16.msra.mxu0 0
  %3313 = vmatprep.subr.bf16.mxu0 0
  %3314 = vmatpush1.bf16.msra.mxu0 0
  %3315 = vmatprep.subr.bf16.mxu0 0
  %3316 = vmatpush1.bf16.msra.mxu0 0
  %3317 = vmatprep.subr.bf16.mxu0 0
  %3318 = vmatpush1.bf16.msra.mxu0 0
  %3319 = vmatprep.subr.bf16.mxu0 0
  %3320 = vmatpush1.bf16.msra.mxu0 0
  %3321 = vmatprep.subr.bf16.mxu0 0
  %3322 = vmatpush1.bf16.msra.mxu0 0
  %3323 = vmatprep.subr.bf16.mxu0 0
  %3324 = vmatpush1.bf16.msra.mxu0 0
  %3325 = vmatprep.subr.bf16.mxu0 0
  %3326 = vmatpush1.bf16.msra.mxu0 0
  %3327 = vmatprep.subr.bf16.mxu0 0
  %3328 = vmatpush1.bf16.msra.mxu0 0
  %3329 = vmatprep.mubr.bf16.mxu0 0
  %3330 = vmatmul.mubr.bf16.gmra.mrb[0].mxu0 %v2773
  %v3331 = vpop.f32.mrb[0].mxu0
  %v3332 = vadd.f32 0.0, %v3331
  %v3333 = vpop.f32.mrb[0].mxu0
  %v3334 = vpop.f32.mrb[0].mxu0
  %v3335 = vpop.f32.mrb[0].mxu0
  %3336 = vdwg.mxu0
  %v3345 = vunpack.c.l.b16 %v3289
  %v3346 = vunpack.c.l.b16 %v3290
  %v3347 = vunpack.c.l.b16 %v3291
  %v3348 = vunpack.c.l.b16 %v3292
  %v3349 = vunpack.c.l.b16 %v3293
  %v3350 = vunpack.c.l.b16 %v3294
  %v3351 = vunpack.c.l.b16 %v3295
  %v3352 = vunpack.c.l.b16 %v3296
  %v3353 = vsel %vm568, %v3346, %v3345
  %v3354 = vsel %vm570, %v3347, %v3353
  %v3355 = vsel %vm572, %v3348, %v3354
  %v3356 = vsel %vm574, %v3349, %v3355
  %v3357 = vsel %vm576, %v3350, %v3356
  %v3358 = vsel %vm578, %v3351, %v3357
  %v3359 = vsel %vm580, %v3352, %v3358
  %v3360 = vpack.c.b16 %v3359, %v3359
  %v3362 = vsel %vm76, %v3360, 0
  %3364 = vmatprep.subr.bf16.mxu0 0
  %3365 = vmatpush1.bf16.msra.mxu0 %v980
  %3366 = vmatprep.subr.bf16.mxu0 0
  %3367 = vmatpush1.bf16.msra.mxu0 %v981
  %3368 = vmatprep.subr.bf16.mxu0 0
  %3369 = vmatpush1.bf16.msra.mxu0 0
  %3370 = vmatprep.subr.bf16.mxu0 0
  %3371 = vmatpush1.bf16.msra.mxu0 0
  %3372 = vmatprep.subr.bf16.mxu0 0
  %3373 = vmatpush1.bf16.msra.mxu0 0
  %3374 = vmatprep.subr.bf16.mxu0 0
  %3375 = vmatpush1.bf16.msra.mxu0 0
  %3376 = vmatprep.subr.bf16.mxu0 0
  %3377 = vmatpush1.bf16.msra.mxu0 0
  %3378 = vmatprep.subr.bf16.mxu0 0
  %3379 = vmatpush1.bf16.msra.mxu0 0
  %3380 = vmatprep.subr.bf16.mxu0 0
  %3381 = vmatpush1.bf16.msra.mxu0 0
  %3382 = vmatprep.subr.bf16.mxu0 0
  %3383 = vmatpush1.bf16.msra.mxu0 0
  %3384 = vmatprep.subr.bf16.mxu0 0
  %3385 = vmatpush1.bf16.msra.mxu0 0
  %3386 = vmatprep.subr.bf16.mxu0 0
  %3387 = vmatpush1.bf16.msra.mxu0 0
  %3388 = vmatprep.subr.bf16.mxu0 0
  %3389 = vmatpush1.bf16.msra.mxu0 0
  %3390 = vmatprep.subr.bf16.mxu0 0
  %3391 = vmatpush1.bf16.msra.mxu0 0
  %3392 = vmatprep.subr.bf16.mxu0 0
  %3393 = vmatpush1.bf16.msra.mxu0 0
  %3394 = vmatprep.subr.bf16.mxu0 0
  %3395 = vmatpush1.bf16.msra.mxu0 0
  %3396 = vmatprep.mubr.bf16.mxu0 0
  %3397 = vmatmul.mubr.bf16.gmra.mrb[0].mxu0 %v3362
  %v3398 = vpop.f32.mrb[0].mxu0
  %v3399 = vadd.f32 %v3332, %v3398
  %v3400 = vpop.f32.mrb[0].mxu0
  %v3401 = vpop.f32.mrb[0].mxu0
  %v3402 = vpop.f32.mrb[0].mxu0
  %3403 = vdwg.mxu0
  %v3404 = vtanh.pop %v3399
  %s3405 = scalar_lea.vmem %s11, 24
  %3406 = vst.msk [vmem:[%s3405] sm:$0xff] %vm76, %v3404
  %v3407 = vlaneseq
  %v3408 = vshrl.u32 %v3407, 7
  %v3409 = vsub.s32 %v535, %v3408
  %v3410 = vrot.slane %v3188, %v3409
  %v3411 = vlaneseq
  %v3412 = vshrl.u32 %v3411, 7
  %v3413 = vsub.s32 %v535, %v3412
  %v3414 = vrot.slane %v3193, %v3413
  %v3415 = vlaneseq
  %v3416 = vshrl.u32 %v3415, 7
  %v3417 = vsub.s32 %v535, %v3416
  %v3418 = vrot.slane %v3198, %v3417
  %v3419 = vlaneseq
  %v3420 = vshrl.u32 %v3419, 7
  %v3421 = vsub.s32 %v535, %v3420
  %v3422 = vrot.slane %v3203, %v3421
  %v3423 = vlaneseq
  %v3424 = vshrl.u32 %v3423, 7
  %v3425 = vsub.s32 %v535, %v3424
  %v3426 = vrot.slane %v3208, %v3425
  %v3427 = vlaneseq
  %v3428 = vshrl.u32 %v3427, 7
  %v3429 = vsub.s32 %v535, %v3428
  %v3430 = vrot.slane %v3213, %v3429
  %v3431 = vlaneseq
  %v3432 = vshrl.u32 %v3431, 7
  %v3433 = vsub.s32 %v535, %v3432
  %v3434 = vrot.slane %v3218, %v3433
  %v3435 = vlaneseq
  %v3436 = vshrl.u32 %v3435, 7
  %v3437 = vsub.s32 %v535, %v3436
  %v3438 = vrot.slane %v3223, %v3437
  %v3439 = vsel %vm568, %v3414, %v3410
  %v3440 = vsel %vm570, %v3418, %v3439
  %v3441 = vsel %vm572, %v3422, %v3440
  %v3442 = vsel %vm574, %v3426, %v3441
  %v3443 = vsel %vm576, %v3430, %v3442
  %v3444 = vsel %vm578, %v3434, %v3443
  %v3445 = vsel %vm580, %v3438, %v3444
  %s3447 = scalar_lea.vmem %s12, 24
  %3448 = vst.msk [vmem:[%s3447] sm:$0xff] %vm583, %v3445
  %s3449 = scalar_lea.vmem [#allocation2], 32
  %v3450 = vld [vmem:[%s3449] sm:$0xff]
  %v3451 = vpack.c.bf16 %v3404, %v3404
  %v3453 = vsel %vm76, %v3451, 0
  %3455 = vmatprep.subr.bf16.mxu0 0
  %3456 = vmatpush1.bf16.msra.mxu0 %v212
  %3457 = vmatprep.subr.bf16.mxu0 0
  %3458 = vmatpush1.bf16.msra.mxu0 %v213
  %3459 = vmatprep.subr.bf16.mxu0 0
  %3460 = vmatpush1.bf16.msra.mxu0 0
  %3461 = vmatprep.subr.bf16.mxu0 0
  %3462 = vmatpush1.bf16.msra.mxu0 0
  %3463 = vmatprep.subr.bf16.mxu0 0
  %3464 = vmatpush1.bf16.msra.mxu0 0
  %3465 = vmatprep.subr.bf16.mxu0 0
  %3466 = vmatpush1.bf16.msra.mxu0 0
  %3467 = vmatprep.subr.bf16.mxu0 0
  %3468 = vmatpush1.bf16.msra.mxu0 0
  %3469 = vmatprep.subr.bf16.mxu0 0
  %3470 = vmatpush1.bf16.msra.mxu0 0
  %3471 = vmatprep.subr.bf16.mxu0 0
  %3472 = vmatpush1.bf16.msra.mxu0 0
  %3473 = vmatprep.subr.bf16.mxu0 0
  %3474 = vmatpush1.bf16.msra.mxu0 0
  %3475 = vmatprep.subr.bf16.mxu0 0
  %3476 = vmatpush1.bf16.msra.mxu0 0
  %3477 = vmatprep.subr.bf16.mxu0 0
  %3478 = vmatpush1.bf16.msra.mxu0 0
  %3479 = vmatprep.subr.bf16.mxu0 0
  %3480 = vmatpush1.bf16.msra.mxu0 0
  %3481 = vmatprep.subr.bf16.mxu0 0
  %3482 = vmatpush1.bf16.msra.mxu0 0
  %3483 = vmatprep.subr.bf16.mxu0 0
  %3484 = vmatpush1.bf16.msra.mxu0 0
  %3485 = vmatprep.subr.bf16.mxu0 0
  %3486 = vmatpush1.bf16.msra.mxu0 0
  %3487 = vmatprep.mubr.bf16.mxu0 0
  %3488 = vmatmul.mubr.bf16.gmra.mrb[0].mxu0 %v3453
  %v3489 = vpop.f32.mrb[0].mxu0
  %v3490 = vadd.f32 0.0, %v3489
  %v3491 = vpop.f32.mrb[0].mxu0
  %v3492 = vpop.f32.mrb[0].mxu0
  %v3493 = vpop.f32.mrb[0].mxu0
  %3494 = vdwg.mxu0
  %v3495 = vadd.f32 %v3450, %v3490
  %3496 = vmatprep.subr.bf16.mxu0 0
  %3497 = vmatpush1.bf16.msra.mxu0 %v269
  %3498 = vmatprep.subr.bf16.mxu0 0
  %3499 = vmatpush1.bf16.msra.mxu0 %v270
  %3500 = vmatprep.subr.bf16.mxu0 0
  %3501 = vmatpush1.bf16.msra.mxu0 0
  %3502 = vmatprep.subr.bf16.mxu0 0
  %3503 = vmatpush1.bf16.msra.mxu0 0
  %3504 = vmatprep.subr.bf16.mxu0 0
  %3505 = vmatpush1.bf16.msra.mxu0 0
  %3506 = vmatprep.subr.bf16.mxu0 0
  %3507 = vmatpush1.bf16.msra.mxu0 0
  %3508 = vmatprep.subr.bf16.mxu0 0
  %3509 = vmatpush1.bf16.msra.mxu0 0
  %3510 = vmatprep.subr.bf16.mxu0 0
  %3511 = vmatpush1.bf16.msra.mxu0 0
  %3512 = vmatprep.subr.bf16.mxu0 0
  %3513 = vmatpush1.bf16.msra.mxu0 0
  %3514 = vmatprep.subr.bf16.mxu0 0
  %3515 = vmatpush1.bf16.msra.mxu0 0
  %3516 = vmatprep.subr.bf16.mxu0 0
  %3517 = vmatpush1.bf16.msra.mxu0 0
  %3518 = vmatprep.subr.bf16.mxu0 0
  %3519 = vmatpush1.bf16.msra.mxu0 0
  %3520 = vmatprep.subr.bf16.mxu0 0
  %3521 = vmatpush1.bf16.msra.mxu0 0
  %3522 = vmatprep.subr.bf16.mxu0 0
  %3523 = vmatpush1.bf16.msra.mxu0 0
  %3524 = vmatprep.subr.bf16.mxu0 0
  %3525 = vmatpush1.bf16.msra.mxu0 0
  %3526 = vmatprep.subr.bf16.mxu0 0
  %3527 = vmatpush1.bf16.msra.mxu0 0
  %3528 = vmatprep.mubr.bf16.mxu0 0
  %3529 = vmatmul.mubr.bf16.gmra.mrb[0].mxu0 %v2773
  %v3530 = vpop.f32.mrb[0].mxu0
  %v3531 = vadd.f32 0.0, %v3530
  %v3532 = vpop.f32.mrb[0].mxu0
  %v3533 = vpop.f32.mrb[0].mxu0
  %v3534 = vpop.f32.mrb[0].mxu0
  %3535 = vdwg.mxu0
  %v3536 = vadd.f32 %v3495, %v3531
  %v3537 = vxor.u32 %v3536, 2147483648
  %v3538 = vmul.f32 %v3537, 1.442695
  %v3539 = vpow.pop %v3538
  %v3540 = vadd.f32 %v3539, 1.0
  %v3541 = vrcp.pop %v3540
  %v3542 = vmul.f32 1.0, %v3541
  %v3543 = vtanh.pop %v3536
  %v3544 = vmul.f32 %v3542, %v2761
  %3546 = vrot.lane.b32.xlu0 %v3543, 64
  %v3547 = vpop.permute.xlu0 %3546
  %v3549 = vmul.f32 %v3542, %v3547
  %3551 = vrot.lane.b32.xlu0 %v3549, 32
  %v3552 = vpop.permute.xlu0 %3551
  %v3554 = vadd.f32 %v3544, %v3552
  %v3555 = vtanh.pop %v3554
  %3557 = vrot.lane.b32.xlu0 %v3555, 64
  %v3558 = vpop.permute.xlu0 %3557
  %v3560 = vmul.f32 %v3542, %v3558
  %v3561 = vpack.c.bf16 %v3560, %v3560
  %3563 = vrot.lane.b32.xlu0 %v3561, 32
  %v3564 = vpop.permute.xlu0 %3563
  %v3566 = vsel %vm76, %v3564, 0
  %3568 = vmatprep.subr.bf16.mxu0 0
  %3569 = vmatpush1.bf16.msra.mxu0 %v357
  %3570 = vmatprep.subr.bf16.mxu0 0
  %3571 = vmatpush1.bf16.msra.mxu0 %v358
  %3572 = vmatprep.subr.bf16.mxu0 0
  %3573 = vmatpush1.bf16.msra.mxu0 0
  %3574 = vmatprep.subr.bf16.mxu0 0
  %3575 = vmatpush1.bf16.msra.mxu0 0
  %3576 = vmatprep.subr.bf16.mxu0 0
  %3577 = vmatpush1.bf16.msra.mxu0 0
  %3578 = vmatprep.subr.bf16.mxu0 0
  %3579 = vmatpush1.bf16.msra.mxu0 0
  %3580 = vmatprep.subr.bf16.mxu0 0
  %3581 = vmatpush1.bf16.msra.mxu0 0
  %3582 = vmatprep.subr.bf16.mxu0 0
  %3583 = vmatpush1.bf16.msra.mxu0 0
  %3584 = vmatprep.subr.bf16.mxu0 0
  %3585 = vmatpush1.bf16.msra.mxu0 0
  %3586 = vmatprep.subr.bf16.mxu0 0
  %3587 = vmatpush1.bf16.msra.mxu0 0
  %3588 = vmatprep.subr.bf16.mxu0 0
  %3589 = vmatpush1.bf16.msra.mxu0 0
  %3590 = vmatprep.subr.bf16.mxu0 0
  %3591 = vmatpush1.bf16.msra.mxu0 0
  %3592 = vmatprep.subr.bf16.mxu0 0
  %3593 = vmatpush1.bf16.msra.mxu0 0
  %3594 = vmatprep.subr.bf16.mxu0 0
  %3595 = vmatpush1.bf16.msra.mxu0 0
  %3596 = vmatprep.subr.bf16.mxu0 0
  %3597 = vmatpush1.bf16.msra.mxu0 0
  %3598 = vmatprep.subr.bf16.mxu0 0
  %3599 = vmatpush1.bf16.msra.mxu0 0
  %3600 = vmatprep.mubr.bf16.mxu0 0
  %3601 = vmatmul.mubr.bf16.gmra.mrb[0].mxu0 %v3566
  %v3602 = vpop.f32.mrb[0].mxu0
  %v3603 = vadd.f32 0.0, %v3602
  %v3604 = vpop.f32.mrb[0].mxu0
  %v3605 = vpop.f32.mrb[0].mxu0
  %v3606 = vpop.f32.mrb[0].mxu0
  %3607 = vdwg.mxu0
  %v3609 = vcombine.high %v3603, %v3603
  %v3611 = vunpack.c.l.s4 1966171168
  %v3612 = vunpack.c.0.s8 %v3611
  %v3613 = vlaneseq
  %v3614 = vshrl.u32 %v3613, 7
  %v3615 = vsub.s32 %v3612, %v3614
  %v3616 = vrot.slane %v3603, %v3615
  %v3618 = vunpack.c.l.s4 1966171168
  %v3619 = vunpack.c.0.s8 %v3618
  %v3620 = vlaneseq
  %v3621 = vshrl.u32 %v3620, 7
  %v3622 = vsub.s32 %v3619, %v3621
  %v3623 = vrot.slane %v3609, %v3622
  %v3624 = vcombine.high %v3616, %v3616
  %v3625 = vcombine.high %v3623, %v3623
  %v3627 = vunpack.c.l.s4 1966171168
  %v3628 = vunpack.c.0.s8 %v3627
  %v3629 = vlaneseq
  %v3630 = vshrl.u32 %v3629, 7
  %v3631 = vsub.s32 %v3628, %v3630
  %v3632 = vrot.slane %v3616, %v3631
  %v3634 = vunpack.c.l.s4 1966171168
  %v3635 = vunpack.c.0.s8 %v3634
  %v3636 = vlaneseq
  %v3637 = vshrl.u32 %v3636, 7
  %v3638 = vsub.s32 %v3635, %v3637
  %v3639 = vrot.slane %v3623, %v3638
  %v3641 = vunpack.c.l.s4 1966171168
  %v3642 = vunpack.c.0.s8 %v3641
  %v3643 = vlaneseq
  %v3644 = vshrl.u32 %v3643, 7
  %v3645 = vsub.s32 %v3642, %v3644
  %v3646 = vrot.slane %v3624, %v3645
  %v3648 = vunpack.c.l.s4 1966171168
  %v3649 = vunpack.c.0.s8 %v3648
  %v3650 = vlaneseq
  %v3651 = vshrl.u32 %v3650, 7
  %v3652 = vsub.s32 %v3649, %v3651
  %v3653 = vrot.slane %v3625, %v3652
  %v3654 = vcombine.high %v3632, %v3632
  %v3655 = vcombine.high %v3639, %v3639
  %v3656 = vcombine.high %v3646, %v3646
  %v3657 = vcombine.high %v3653, %v3653
  %v3658 = vlaneseq
  %v3659 = vshrl.u32 %v3658, 7
  %v3660 = vsub.s32 0, %v3659
  %v3661 = vrot.slane %v3632, %v3660
  %v3662 = vlaneseq
  %v3663 = vshrl.u32 %v3662, 7
  %v3664 = vsub.s32 0, %v3663
  %v3665 = vrot.slane %v3646, %v3664
  %v3666 = vlaneseq
  %v3667 = vshrl.u32 %v3666, 7
  %v3668 = vsub.s32 0, %v3667
  %v3669 = vrot.slane %v3654, %v3668
  %v3670 = vlaneseq
  %v3671 = vshrl.u32 %v3670, 7
  %v3672 = vsub.s32 0, %v3671
  %v3673 = vrot.slane %v3656, %v3672
  %v3674 = vlaneseq
  %v3675 = vshrl.u32 %v3674, 7
  %v3676 = vsub.s32 0, %v3675
  %v3677 = vrot.slane %v3639, %v3676
  %v3678 = vlaneseq
  %v3679 = vshrl.u32 %v3678, 7
  %v3680 = vsub.s32 0, %v3679
  %v3681 = vrot.slane %v3653, %v3680
  %v3682 = vlaneseq
  %v3683 = vshrl.u32 %v3682, 7
  %v3684 = vsub.s32 0, %v3683
  %v3685 = vrot.slane %v3655, %v3684
  %v3686 = vlaneseq
  %v3687 = vshrl.u32 %v3686, 7
  %v3688 = vsub.s32 0, %v3687
  %v3689 = vrot.slane %v3657, %v3688
  %v3698 = vmul.f32 %v182, %v3661
  %v3699 = vmul.f32 %v183, %v3665
  %v3700 = vmul.f32 %v184, %v3669
  %v3701 = vmul.f32 %v185, %v3673
  %v3702 = vmul.f32 %v186, %v3677
  %v3703 = vmul.f32 %v187, %v3681
  %v3704 = vmul.f32 %v188, %v3685
  %v3705 = vmul.f32 %v189, %v3689
  %v3706 = vsel %vm76, %v3698, 0.0
  %3707 = vadd.xlane.f32.xlu0 %v3706
  %v3708 = vpop.xlane.xlu0 %3707
  %v3709 = vsel %vm76, %v3699, 0.0
  %3710 = vadd.xlane.f32.xlu0 %v3709
  %v3711 = vpop.xlane.xlu0 %3710
  %v3712 = vsel %vm76, %v3700, 0.0
  %3713 = vadd.xlane.f32.xlu0 %v3712
  %v3714 = vpop.xlane.xlu0 %3713
  %v3715 = vsel %vm76, %v3701, 0.0
  %3716 = vadd.xlane.f32.xlu0 %v3715
  %v3717 = vpop.xlane.xlu0 %3716
  %v3718 = vsel %vm76, %v3702, 0.0
  %3719 = vadd.xlane.f32.xlu0 %v3718
  %v3720 = vpop.xlane.xlu0 %3719
  %v3721 = vsel %vm76, %v3703, 0.0
  %3722 = vadd.xlane.f32.xlu0 %v3721
  %v3723 = vpop.xlane.xlu0 %3722
  %v3724 = vsel %vm76, %v3704, 0.0
  %3725 = vadd.xlane.f32.xlu0 %v3724
  %v3726 = vpop.xlane.xlu0 %3725
  %v3727 = vsel %vm76, %v3705, 0.0
  %3728 = vadd.xlane.f32.xlu0 %v3727
  %v3729 = vpop.xlane.xlu0 %3728
  %v3738 = vlaneseq
  %v3739 = vshrl.u32 %v3738, 7
  %v3740 = vsub.s32 %v535, %v3739
  %v3741 = vrot.slane %v3708, %v3740
  %v3742 = vlaneseq
  %v3743 = vshrl.u32 %v3742, 7
  %v3744 = vsub.s32 %v535, %v3743
  %v3745 = vrot.slane %v3711, %v3744
  %v3746 = vlaneseq
  %v3747 = vshrl.u32 %v3746, 7
  %v3748 = vsub.s32 %v535, %v3747
  %v3749 = vrot.slane %v3714, %v3748
  %v3750 = vlaneseq
  %v3751 = vshrl.u32 %v3750, 7
  %v3752 = vsub.s32 %v535, %v3751
  %v3753 = vrot.slane %v3717, %v3752
  %v3754 = vlaneseq
  %v3755 = vshrl.u32 %v3754, 7
  %v3756 = vsub.s32 %v535, %v3755
  %v3757 = vrot.slane %v3720, %v3756
  %v3758 = vlaneseq
  %v3759 = vshrl.u32 %v3758, 7
  %v3760 = vsub.s32 %v535, %v3759
  %v3761 = vrot.slane %v3723, %v3760
  %v3762 = vlaneseq
  %v3763 = vshrl.u32 %v3762, 7
  %v3764 = vsub.s32 %v535, %v3763
  %v3765 = vrot.slane %v3726, %v3764
  %v3766 = vlaneseq
  %v3767 = vshrl.u32 %v3766, 7
  %v3768 = vsub.s32 %v535, %v3767
  %v3769 = vrot.slane %v3729, %v3768
  %v3770 = vsel %vm568, %v3745, %v3741
  %v3771 = vsel %vm570, %v3749, %v3770
  %v3772 = vsel %vm572, %v3753, %v3771
  %v3773 = vsel %vm574, %v3757, %v3772
  %v3774 = vsel %vm576, %v3761, %v3773
  %v3775 = vsel %vm578, %v3765, %v3774
  %v3776 = vsel %vm580, %v3769, %v3775
  %v3778 = vsel %vm583, %v3776, -inf
  %3779 = vmax.xlane.f32.xlu0 %v3778
  %v3780 = vpop.xlane.xlu0 %3779
  %v3782 = vlaneseq
  %v3783 = vshrl.u32 %v3782, 7
  %v3784 = vsub.s32 0, %v3783
  %v3785 = vrot.slane %v3780, %v3784
  %v3786 = vlaneseq
  %v3787 = vshrl.u32 %v3786, 7
  %v3788 = vsub.s32 1, %v3787
  %v3789 = vrot.slane %v3780, %v3788
  %v3790 = vlaneseq
  %v3791 = vshrl.u32 %v3790, 7
  %v3792 = vsub.s32 2, %v3791
  %v3793 = vrot.slane %v3780, %v3792
  %v3794 = vlaneseq
  %v3795 = vshrl.u32 %v3794, 7
  %v3796 = vsub.s32 3, %v3795
  %v3797 = vrot.slane %v3780, %v3796
  %v3798 = vlaneseq
  %v3799 = vshrl.u32 %v3798, 7
  %v3800 = vsub.s32 4, %v3799
  %v3801 = vrot.slane %v3780, %v3800
  %v3802 = vlaneseq
  %v3803 = vshrl.u32 %v3802, 7
  %v3804 = vsub.s32 5, %v3803
  %v3805 = vrot.slane %v3780, %v3804
  %v3806 = vlaneseq
  %v3807 = vshrl.u32 %v3806, 7
  %v3808 = vsub.s32 6, %v3807
  %v3809 = vrot.slane %v3780, %v3808
  %v3810 = vlaneseq
  %v3811 = vshrl.u32 %v3810, 7
  %v3812 = vsub.s32 7, %v3811
  %v3813 = vrot.slane %v3780, %v3812
  %v3822 = vsub.f32 %v3708, %v3785
  %v3823 = vsub.f32 %v3711, %v3789
  %v3824 = vsub.f32 %v3714, %v3793
  %v3825 = vsub.f32 %v3717, %v3797
  %v3826 = vsub.f32 %v3720, %v3801
  %v3827 = vsub.f32 %v3723, %v3805
  %v3828 = vsub.f32 %v3726, %v3809
  %v3829 = vsub.f32 %v3729, %v3813
  %v3830 = vmul.f32 %v3822, 1.442695
  %v3831 = vpow.pop %v3830
  %v3832 = vmul.f32 %v3823, 1.442695
  %v3833 = vpow.pop %v3832
  %v3834 = vmul.f32 %v3824, 1.442695
  %v3835 = vpow.pop %v3834
  %v3836 = vmul.f32 %v3825, 1.442695
  %v3837 = vpow.pop %v3836
  %v3838 = vmul.f32 %v3826, 1.442695
  %v3839 = vpow.pop %v3838
  %v3840 = vmul.f32 %v3827, 1.442695
  %v3841 = vpow.pop %v3840
  %v3842 = vmul.f32 %v3828, 1.442695
  %v3843 = vpow.pop %v3842
  %v3844 = vmul.f32 %v3829, 1.442695
  %v3845 = vpow.pop %v3844
  %3854 = vset.pattern.permute.xlu0 0
  %3855 = vperm.xlu0 %3854, %v3831
  %v3856 = vpop.permute.xlu0 %3855
  %3857 = vset.pattern.permute.xlu0 0
  %3858 = vperm.xlu0 %3857, %v3833
  %v3859 = vpop.permute.xlu0 %3858
  %3860 = vset.pattern.permute.xlu0 0
  %3861 = vperm.xlu0 %3860, %v3835
  %v3862 = vpop.permute.xlu0 %3861
  %3863 = vset.pattern.permute.xlu0 0
  %3864 = vperm.xlu0 %3863, %v3837
  %v3865 = vpop.permute.xlu0 %3864
  %3866 = vset.pattern.permute.xlu0 0
  %3867 = vperm.xlu0 %3866, %v3839
  %v3868 = vpop.permute.xlu0 %3867
  %3869 = vset.pattern.permute.xlu0 0
  %3870 = vperm.xlu0 %3869, %v3841
  %v3871 = vpop.permute.xlu0 %3870
  %3872 = vset.pattern.permute.xlu0 0
  %3873 = vperm.xlu0 %3872, %v3843
  %v3874 = vpop.permute.xlu0 %3873
  %3875 = vset.pattern.permute.xlu0 0
  %3876 = vperm.xlu0 %3875, %v3845
  %v3877 = vpop.permute.xlu0 %3876
  %v3878 = vlaneseq
  %v3879 = vshrl.u32 %v3878, 7
  %v3880 = vsub.s32 %v535, %v3879
  %v3881 = vrot.slane %v3856, %v3880
  %v3882 = vlaneseq
  %v3883 = vshrl.u32 %v3882, 7
  %v3884 = vsub.s32 %v535, %v3883
  %v3885 = vrot.slane %v3859, %v3884
  %v3886 = vlaneseq
  %v3887 = vshrl.u32 %v3886, 7
  %v3888 = vsub.s32 %v535, %v3887
  %v3889 = vrot.slane %v3862, %v3888
  %v3890 = vlaneseq
  %v3891 = vshrl.u32 %v3890, 7
  %v3892 = vsub.s32 %v535, %v3891
  %v3893 = vrot.slane %v3865, %v3892
  %v3894 = vlaneseq
  %v3895 = vshrl.u32 %v3894, 7
  %v3896 = vsub.s32 %v535, %v3895
  %v3897 = vrot.slane %v3868, %v3896
  %v3898 = vlaneseq
  %v3899 = vshrl.u32 %v3898, 7
  %v3900 = vsub.s32 %v535, %v3899
  %v3901 = vrot.slane %v3871, %v3900
  %v3902 = vlaneseq
  %v3903 = vshrl.u32 %v3902, 7
  %v3904 = vsub.s32 %v535, %v3903
  %v3905 = vrot.slane %v3874, %v3904
  %v3906 = vlaneseq
  %v3907 = vshrl.u32 %v3906, 7
  %v3908 = vsub.s32 %v535, %v3907
  %v3909 = vrot.slane %v3877, %v3908
  %v3910 = vsel %vm568, %v3885, %v3881
  %v3911 = vsel %vm570, %v3889, %v3910
  %v3912 = vsel %vm572, %v3893, %v3911
  %v3913 = vsel %vm574, %v3897, %v3912
  %v3914 = vsel %vm576, %v3901, %v3913
  %v3915 = vsel %vm578, %v3905, %v3914
  %v3916 = vsel %vm580, %v3909, %v3915
  %v3918 = vsel %vm583, %v3916, 0.0
  %3919 = vadd.xlane.f32.xlu0 %v3918
  %v3920 = vpop.xlane.xlu0 %3919
  %v3922 = vlaneseq
  %v3923 = vshrl.u32 %v3922, 7
  %v3924 = vsub.s32 0, %v3923
  %v3925 = vrot.slane %v3920, %v3924
  %v3926 = vlaneseq
  %v3927 = vshrl.u32 %v3926, 7
  %v3928 = vsub.s32 1, %v3927
  %v3929 = vrot.slane %v3920, %v3928
  %v3930 = vlaneseq
  %v3931 = vshrl.u32 %v3930, 7
  %v3932 = vsub.s32 2, %v3931
  %v3933 = vrot.slane %v3920, %v3932
  %v3934 = vlaneseq
  %v3935 = vshrl.u32 %v3934, 7
  %v3936 = vsub.s32 3, %v3935
  %v3937 = vrot.slane %v3920, %v3936
  %v3938 = vlaneseq
  %v3939 = vshrl.u32 %v3938, 7
  %v3940 = vsub.s32 4, %v3939
  %v3941 = vrot.slane %v3920, %v3940
  %v3942 = vlaneseq
  %v3943 = vshrl.u32 %v3942, 7
  %v3944 = vsub.s32 5, %v3943
  %v3945 = vrot.slane %v3920, %v3944
  %v3946 = vlaneseq
  %v3947 = vshrl.u32 %v3946, 7
  %v3948 = vsub.s32 6, %v3947
  %v3949 = vrot.slane %v3920, %v3948
  %v3950 = vlaneseq
  %v3951 = vshrl.u32 %v3950, 7
  %v3952 = vsub.s32 7, %v3951
  %v3953 = vrot.slane %v3920, %v3952
  %v3962 = vrcp.pop %v3925
  %v3963 = vmul.f32 %v3831, %v3962
  %v3964 = vrcp.pop %v3929
  %v3965 = vmul.f32 %v3833, %v3964
  %v3966 = vrcp.pop %v3933
  %v3967 = vmul.f32 %v3835, %v3966
  %v3968 = vrcp.pop %v3937
  %v3969 = vmul.f32 %v3837, %v3968
  %v3970 = vrcp.pop %v3941
  %v3971 = vmul.f32 %v3839, %v3970
  %v3972 = vrcp.pop %v3945
  %v3973 = vmul.f32 %v3841, %v3972
  %v3974 = vrcp.pop %v3949
  %v3975 = vmul.f32 %v3843, %v3974
  %v3976 = vrcp.pop %v3953
  %v3977 = vmul.f32 %v3845, %v3976
  %3979 = vset.pattern.permute.xlu0 0
  %3980 = vperm.xlu0 %3979, %v3963
  %v3981 = vpop.permute.xlu0 %3980
  %3984 = vset.pattern.permute.xlu0 0
  %3985 = vperm.xlu0 %3984, %v3965
  %v3986 = vpop.permute.xlu0 %3985
  %3989 = vset.pattern.permute.xlu0 0
  %3990 = vperm.xlu0 %3989, %v3967
  %v3991 = vpop.permute.xlu0 %3990
  %3994 = vset.pattern.permute.xlu0 0
  %3995 = vperm.xlu0 %3994, %v3969
  %v3996 = vpop.permute.xlu0 %3995
  %3999 = vset.pattern.permute.xlu0 0
  %4000 = vperm.xlu0 %3999, %v3971
  %v4001 = vpop.permute.xlu0 %4000
  %4004 = vset.pattern.permute.xlu0 0
  %4005 = vperm.xlu0 %4004, %v3973
  %v4006 = vpop.permute.xlu0 %4005
  %4009 = vset.pattern.permute.xlu0 0
  %4010 = vperm.xlu0 %4009, %v3975
  %v4011 = vpop.permute.xlu0 %4010
  %4014 = vset.pattern.permute.xlu0 0
  %4015 = vperm.xlu0 %4014, %v3977
  %v4016 = vpop.permute.xlu0 %4015
  %v4018 = vmul.f32 %v3981, %v182
  %v4019 = vmul.f32 %v3986, %v183
  %v4020 = vmul.f32 %v3991, %v184
  %v4021 = vmul.f32 %v3996, %v185
  %v4022 = vmul.f32 %v4001, %v186
  %v4023 = vmul.f32 %v4006, %v187
  %v4024 = vmul.f32 %v4011, %v188
  %v4025 = vmul.f32 %v4016, %v189
  %v4026 = vsel %vm76, %v4018, 0.0
  %v4027 = vrot.slane %v4026, 4
  %v4028 = vadd.f32 %v4026, %v4027
  %v4029 = vrot.slane %v4028, 2
  %v4030 = vadd.f32 %v4028, %v4029
  %v4031 = vrot.slane %v4030, 1
  %v4032 = vadd.f32 %v4030, %v4031
  %v4033 = vsel %vm76, %v4019, 0.0
  %v4034 = vrot.slane %v4033, 4
  %v4035 = vadd.f32 %v4033, %v4034
  %v4036 = vrot.slane %v4035, 2
  %v4037 = vadd.f32 %v4035, %v4036
  %v4038 = vrot.slane %v4037, 1
  %v4039 = vadd.f32 %v4037, %v4038
  %v4040 = vsel %vm76, %v4020, 0.0
  %v4041 = vrot.slane %v4040, 4
  %v4042 = vadd.f32 %v4040, %v4041
  %v4043 = vrot.slane %v4042, 2
  %v4044 = vadd.f32 %v4042, %v4043
  %v4045 = vrot.slane %v4044, 1
  %v4046 = vadd.f32 %v4044, %v4045
  %v4047 = vsel %vm76, %v4021, 0.0
  %v4048 = vrot.slane %v4047, 4
  %v4049 = vadd.f32 %v4047, %v4048
  %v4050 = vrot.slane %v4049, 2
  %v4051 = vadd.f32 %v4049, %v4050
  %v4052 = vrot.slane %v4051, 1
  %v4053 = vadd.f32 %v4051, %v4052
  %v4054 = vsel %vm76, %v4022, 0.0
  %v4055 = vrot.slane %v4054, 4
  %v4056 = vadd.f32 %v4054, %v4055
  %v4057 = vrot.slane %v4056, 2
  %v4058 = vadd.f32 %v4056, %v4057
  %v4059 = vrot.slane %v4058, 1
  %v4060 = vadd.f32 %v4058, %v4059
  %v4061 = vsel %vm76, %v4023, 0.0
  %v4062 = vrot.slane %v4061, 4
  %v4063 = vadd.f32 %v4061, %v4062
  %v4064 = vrot.slane %v4063, 2
  %v4065 = vadd.f32 %v4063, %v4064
  %v4066 = vrot.slane %v4065, 1
  %v4067 = vadd.f32 %v4065, %v4066
  %v4068 = vsel %vm76, %v4024, 0.0
  %v4069 = vrot.slane %v4068, 4
  %v4070 = vadd.f32 %v4068, %v4069
  %v4071 = vrot.slane %v4070, 2
  %v4072 = vadd.f32 %v4070, %v4071
  %v4073 = vrot.slane %v4072, 1
  %v4074 = vadd.f32 %v4072, %v4073
  %v4075 = vsel %vm76, %v4025, 0.0
  %v4076 = vrot.slane %v4075, 4
  %v4077 = vadd.f32 %v4075, %v4076
  %v4078 = vrot.slane %v4077, 2
  %v4079 = vadd.f32 %v4077, %v4078
  %v4080 = vrot.slane %v4079, 1
  %v4081 = vadd.f32 %v4079, %v4080
  %v4082 = vpack.c.bf16 %v4032, %v4032
  %v4083 = vpack.c.bf16 %v4039, %v4039
  %v4084 = vpack.c.bf16 %v4046, %v4046
  %v4085 = vpack.c.bf16 %v4053, %v4053
  %v4086 = vpack.c.bf16 %v4060, %v4060
  %v4087 = vpack.c.bf16 %v4067, %v4067
  %v4088 = vpack.c.bf16 %v4074, %v4074
  %v4089 = vpack.c.bf16 %v4081, %v4081
  %4090 = vmatprep.subr.bf16.mxu0 0
  %4091 = vmatpush1.bf16.msra.mxu0 %v904
  %4092 = vmatprep.subr.bf16.mxu0 0
  %4093 = vmatpush1.bf16.msra.mxu0 %v905
  %4094 = vmatprep.subr.bf16.mxu0 0
  %4095 = vmatpush1.bf16.msra.mxu0 0
  %4096 = vmatprep.subr.bf16.mxu0 0
  %4097 = vmatpush1.bf16.msra.mxu0 0
  %4098 = vmatprep.subr.bf16.mxu0 0
  %4099 = vmatpush1.bf16.msra.mxu0 0
  %4100 = vmatprep.subr.bf16.mxu0 0
  %4101 = vmatpush1.bf16.msra.mxu0 0
  %4102 = vmatprep.subr.bf16.mxu0 0
  %4103 = vmatpush1.bf16.msra.mxu0 0
  %4104 = vmatprep.subr.bf16.mxu0 0
  %4105 = vmatpush1.bf16.msra.mxu0 0
  %4106 = vmatprep.subr.bf16.mxu0 0
  %4107 = vmatpush1.bf16.msra.mxu0 0
  %4108 = vmatprep.subr.bf16.mxu0 0
  %4109 = vmatpush1.bf16.msra.mxu0 0
  %4110 = vmatprep.subr.bf16.mxu0 0
  %4111 = vmatpush1.bf16.msra.mxu0 0
  %4112 = vmatprep.subr.bf16.mxu0 0
  %4113 = vmatpush1.bf16.msra.mxu0 0
  %4114 = vmatprep.subr.bf16.mxu0 0
  %4115 = vmatpush1.bf16.msra.mxu0 0
  %4116 = vmatprep.subr.bf16.mxu0 0
  %4117 = vmatpush1.bf16.msra.mxu0 0
  %4118 = vmatprep.subr.bf16.mxu0 0
  %4119 = vmatpush1.bf16.msra.mxu0 0
  %4120 = vmatprep.subr.bf16.mxu0 0
  %4121 = vmatpush1.bf16.msra.mxu0 0
  %4122 = vmatprep.mubr.bf16.mxu0 0
  %4123 = vmatmul.mubr.bf16.gmra.mrb[0].mxu0 %v3566
  %v4124 = vpop.f32.mrb[0].mxu0
  %v4125 = vadd.f32 0.0, %v4124
  %v4126 = vpop.f32.mrb[0].mxu0
  %v4127 = vpop.f32.mrb[0].mxu0
  %v4128 = vpop.f32.mrb[0].mxu0
  %4129 = vdwg.mxu0
  %v4138 = vunpack.c.l.b16 %v4082
  %v4139 = vunpack.c.l.b16 %v4083
  %v4140 = vunpack.c.l.b16 %v4084
  %v4141 = vunpack.c.l.b16 %v4085
  %v4142 = vunpack.c.l.b16 %v4086
  %v4143 = vunpack.c.l.b16 %v4087
  %v4144 = vunpack.c.l.b16 %v4088
  %v4145 = vunpack.c.l.b16 %v4089
  %v4146 = vsel %vm568, %v4139, %v4138
  %v4147 = vsel %vm570, %v4140, %v4146
  %v4148 = vsel %vm572, %v4141, %v4147
  %v4149 = vsel %vm574, %v4142, %v4148
  %v4150 = vsel %vm576, %v4143, %v4149
  %v4151 = vsel %vm578, %v4144, %v4150
  %v4152 = vsel %vm580, %v4145, %v4151
  %v4153 = vpack.c.b16 %v4152, %v4152
  %v4155 = vsel %vm76, %v4153, 0
  %4157 = vmatprep.subr.bf16.mxu0 0
  %4158 = vmatpush1.bf16.msra.mxu0 %v980
  %4159 = vmatprep.subr.bf16.mxu0 0
  %4160 = vmatpush1.bf16.msra.mxu0 %v981
  %4161 = vmatprep.subr.bf16.mxu0 0
  %4162 = vmatpush1.bf16.msra.mxu0 0
  %4163 = vmatprep.subr.bf16.mxu0 0
  %4164 = vmatpush1.bf16.msra.mxu0 0
  %4165 = vmatprep.subr.bf16.mxu0 0
  %4166 = vmatpush1.bf16.msra.mxu0 0
  %4167 = vmatprep.subr.bf16.mxu0 0
  %4168 = vmatpush1.bf16.msra.mxu0 0
  %4169 = vmatprep.subr.bf16.mxu0 0
  %4170 = vmatpush1.bf16.msra.mxu0 0
  %4171 = vmatprep.subr.bf16.mxu0 0
  %4172 = vmatpush1.bf16.msra.mxu0 0
  %4173 = vmatprep.subr.bf16.mxu0 0
  %4174 = vmatpush1.bf16.msra.mxu0 0
  %4175 = vmatprep.subr.bf16.mxu0 0
  %4176 = vmatpush1.bf16.msra.mxu0 0
  %4177 = vmatprep.subr.bf16.mxu0 0
  %4178 = vmatpush1.bf16.msra.mxu0 0
  %4179 = vmatprep.subr.bf16.mxu0 0
  %4180 = vmatpush1.bf16.msra.mxu0 0
  %4181 = vmatprep.subr.bf16.mxu0 0
  %4182 = vmatpush1.bf16.msra.mxu0 0
  %4183 = vmatprep.subr.bf16.mxu0 0
  %4184 = vmatpush1.bf16.msra.mxu0 0
  %4185 = vmatprep.subr.bf16.mxu0 0
  %4186 = vmatpush1.bf16.msra.mxu0 0
  %4187 = vmatprep.subr.bf16.mxu0 0
  %4188 = vmatpush1.bf16.msra.mxu0 0
  %4189 = vmatprep.mubr.bf16.mxu0 0
  %4190 = vmatmul.mubr.bf16.gmra.mrb[0].mxu0 %v4155
  %v4191 = vpop.f32.mrb[0].mxu0
  %v4192 = vadd.f32 %v4125, %v4191
  %v4193 = vpop.f32.mrb[0].mxu0
  %v4194 = vpop.f32.mrb[0].mxu0
  %v4195 = vpop.f32.mrb[0].mxu0
  %4196 = vdwg.mxu0
  %v4197 = vtanh.pop %v4192
  %s4198 = scalar_lea.vmem %s11, 32
  %4199 = vst.msk [vmem:[%s4198] sm:$0xff] %vm76, %v4197
  %v4200 = vlaneseq
  %v4201 = vshrl.u32 %v4200, 7
  %v4202 = vsub.s32 %v535, %v4201
  %v4203 = vrot.slane %v3981, %v4202
  %v4204 = vlaneseq
  %v4205 = vshrl.u32 %v4204, 7
  %v4206 = vsub.s32 %v535, %v4205
  %v4207 = vrot.slane %v3986, %v4206
  %v4208 = vlaneseq
  %v4209 = vshrl.u32 %v4208, 7
  %v4210 = vsub.s32 %v535, %v4209
  %v4211 = vrot.slane %v3991, %v4210
  %v4212 = vlaneseq
  %v4213 = vshrl.u32 %v4212, 7
  %v4214 = vsub.s32 %v535, %v4213
  %v4215 = vrot.slane %v3996, %v4214
  %v4216 = vlaneseq
  %v4217 = vshrl.u32 %v4216, 7
  %v4218 = vsub.s32 %v535, %v4217
  %v4219 = vrot.slane %v4001, %v4218
  %v4220 = vlaneseq
  %v4221 = vshrl.u32 %v4220, 7
  %v4222 = vsub.s32 %v535, %v4221
  %v4223 = vrot.slane %v4006, %v4222
  %v4224 = vlaneseq
  %v4225 = vshrl.u32 %v4224, 7
  %v4226 = vsub.s32 %v535, %v4225
  %v4227 = vrot.slane %v4011, %v4226
  %v4228 = vlaneseq
  %v4229 = vshrl.u32 %v4228, 7
  %v4230 = vsub.s32 %v535, %v4229
  %v4231 = vrot.slane %v4016, %v4230
  %v4232 = vsel %vm568, %v4207, %v4203
  %v4233 = vsel %vm570, %v4211, %v4232
  %v4234 = vsel %vm572, %v4215, %v4233
  %v4235 = vsel %vm574, %v4219, %v4234
  %v4236 = vsel %vm576, %v4223, %v4235
  %v4237 = vsel %vm578, %v4227, %v4236
  %v4238 = vsel %vm580, %v4231, %v4237
  %s4240 = scalar_lea.vmem %s12, 32
  %4241 = vst.msk [vmem:[%s4240] sm:$0xff] %vm583, %v4238
  %s4242 = scalar_lea.vmem [#allocation2], 40
  %v4243 = vld [vmem:[%s4242] sm:$0xff]
  %v4244 = vpack.c.bf16 %v4197, %v4197
  %v4246 = vsel %vm76, %v4244, 0
  %4248 = vmatprep.subr.bf16.mxu0 0
  %4249 = vmatpush1.bf16.msra.mxu0 %v212
  %4250 = vmatprep.subr.bf16.mxu0 0
  %4251 = vmatpush1.bf16.msra.mxu0 %v213
  %4252 = vmatprep.subr.bf16.mxu0 0
  %4253 = vmatpush1.bf16.msra.mxu0 0
  %4254 = vmatprep.subr.bf16.mxu0 0
  %4255 = vmatpush1.bf16.msra.mxu0 0
  %4256 = vmatprep.subr.bf16.mxu0 0
  %4257 = vmatpush1.bf16.msra.mxu0 0
  %4258 = vmatprep.subr.bf16.mxu0 0
  %4259 = vmatpush1.bf16.msra.mxu0 0
  %4260 = vmatprep.subr.bf16.mxu0 0
  %4261 = vmatpush1.bf16.msra.mxu0 0
  %4262 = vmatprep.subr.bf16.mxu0 0
  %4263 = vmatpush1.bf16.msra.mxu0 0
  %4264 = vmatprep.subr.bf16.mxu0 0
  %4265 = vmatpush1.bf16.msra.mxu0 0
  %4266 = vmatprep.subr.bf16.mxu0 0
  %4267 = vmatpush1.bf16.msra.mxu0 0
  %4268 = vmatprep.subr.bf16.mxu0 0
  %4269 = vmatpush1.bf16.msra.mxu0 0
  %4270 = vmatprep.subr.bf16.mxu0 0
  %4271 = vmatpush1.bf16.msra.mxu0 0
  %4272 = vmatprep.subr.bf16.mxu0 0
  %4273 = vmatpush1.bf16.msra.mxu0 0
  %4274 = vmatprep.subr.bf16.mxu0 0
  %4275 = vmatpush1.bf16.msra.mxu0 0
  %4276 = vmatprep.subr.bf16.mxu0 0
  %4277 = vmatpush1.bf16.msra.mxu0 0
  %4278 = vmatprep.subr.bf16.mxu0 0
  %4279 = vmatpush1.bf16.msra.mxu0 0
  %4280 = vmatprep.mubr.bf16.mxu0 0
  %4281 = vmatmul.mubr.bf16.gmra.mrb[0].mxu0 %v4246
  %v4282 = vpop.f32.mrb[0].mxu0
  %v4283 = vadd.f32 0.0, %v4282
  %v4284 = vpop.f32.mrb[0].mxu0
  %v4285 = vpop.f32.mrb[0].mxu0
  %v4286 = vpop.f32.mrb[0].mxu0
  %4287 = vdwg.mxu0
  %v4288 = vadd.f32 %v4243, %v4283
  %4289 = vmatprep.subr.bf16.mxu0 0
  %4290 = vmatpush1.bf16.msra.mxu0 %v269
  %4291 = vmatprep.subr.bf16.mxu0 0
  %4292 = vmatpush1.bf16.msra.mxu0 %v270
  %4293 = vmatprep.subr.bf16.mxu0 0
  %4294 = vmatpush1.bf16.msra.mxu0 0
  %4295 = vmatprep.subr.bf16.mxu0 0
  %4296 = vmatpush1.bf16.msra.mxu0 0
  %4297 = vmatprep.subr.bf16.mxu0 0
  %4298 = vmatpush1.bf16.msra.mxu0 0
  %4299 = vmatprep.subr.bf16.mxu0 0
  %4300 = vmatpush1.bf16.msra.mxu0 0
  %4301 = vmatprep.subr.bf16.mxu0 0
  %4302 = vmatpush1.bf16.msra.mxu0 0
  %4303 = vmatprep.subr.bf16.mxu0 0
  %4304 = vmatpush1.bf16.msra.mxu0 0
  %4305 = vmatprep.subr.bf16.mxu0 0
  %4306 = vmatpush1.bf16.msra.mxu0 0
  %4307 = vmatprep.subr.bf16.mxu0 0
  %4308 = vmatpush1.bf16.msra.mxu0 0
  %4309 = vmatprep.subr.bf16.mxu0 0
  %4310 = vmatpush1.bf16.msra.mxu0 0
  %4311 = vmatprep.subr.bf16.mxu0 0
  %4312 = vmatpush1.bf16.msra.mxu0 0
  %4313 = vmatprep.subr.bf16.mxu0 0
  %4314 = vmatpush1.bf16.msra.mxu0 0
  %4315 = vmatprep.subr.bf16.mxu0 0
  %4316 = vmatpush1.bf16.msra.mxu0 0
  %4317 = vmatprep.subr.bf16.mxu0 0
  %4318 = vmatpush1.bf16.msra.mxu0 0
  %4319 = vmatprep.subr.bf16.mxu0 0
  %4320 = vmatpush1.bf16.msra.mxu0 0
  %4321 = vmatprep.mubr.bf16.mxu0 0
  %4322 = vmatmul.mubr.bf16.gmra.mrb[0].mxu0 %v3566
  %v4323 = vpop.f32.mrb[0].mxu0
  %v4324 = vadd.f32 0.0, %v4323
  %v4325 = vpop.f32.mrb[0].mxu0
  %v4326 = vpop.f32.mrb[0].mxu0
  %v4327 = vpop.f32.mrb[0].mxu0
  %4328 = vdwg.mxu0
  %v4329 = vadd.f32 %v4288, %v4324
  %v4330 = vxor.u32 %v4329, 2147483648
  %v4331 = vmul.f32 %v4330, 1.442695
  %v4332 = vpow.pop %v4331
  %v4333 = vadd.f32 %v4332, 1.0
  %v4334 = vrcp.pop %v4333
  %v4335 = vmul.f32 1.0, %v4334
  %v4336 = vtanh.pop %v4329
  %v4337 = vmul.f32 %v4335, %v3554
  %4339 = vrot.lane.b32.xlu0 %v4336, 64
  %v4340 = vpop.permute.xlu0 %4339
  %v4342 = vmul.f32 %v4335, %v4340
  %4344 = vrot.lane.b32.xlu0 %v4342, 32
  %v4345 = vpop.permute.xlu0 %4344
  %v4347 = vadd.f32 %v4337, %v4345
  %v4348 = vtanh.pop %v4347
  %4350 = vrot.lane.b32.xlu0 %v4348, 64
  %v4351 = vpop.permute.xlu0 %4350
  %v4353 = vmul.f32 %v4335, %v4351
  %v4354 = vpack.c.bf16 %v4353, %v4353
  %4356 = vrot.lane.b32.xlu0 %v4354, 32
  %v4357 = vpop.permute.xlu0 %4356
  %v4359 = vsel %vm76, %v4357, 0
  %4361 = vmatprep.subr.bf16.mxu0 0
  %4362 = vmatpush1.bf16.msra.mxu0 %v357
  %4363 = vmatprep.subr.bf16.mxu0 0
  %4364 = vmatpush1.bf16.msra.mxu0 %v358
  %4365 = vmatprep.subr.bf16.mxu0 0
  %4366 = vmatpush1.bf16.msra.mxu0 0
  %4367 = vmatprep.subr.bf16.mxu0 0
  %4368 = vmatpush1.bf16.msra.mxu0 0
  %4369 = vmatprep.subr.bf16.mxu0 0
  %4370 = vmatpush1.bf16.msra.mxu0 0
  %4371 = vmatprep.subr.bf16.mxu0 0
  %4372 = vmatpush1.bf16.msra.mxu0 0
  %4373 = vmatprep.subr.bf16.mxu0 0
  %4374 = vmatpush1.bf16.msra.mxu0 0
  %4375 = vmatprep.subr.bf16.mxu0 0
  %4376 = vmatpush1.bf16.msra.mxu0 0
  %4377 = vmatprep.subr.bf16.mxu0 0
  %4378 = vmatpush1.bf16.msra.mxu0 0
  %4379 = vmatprep.subr.bf16.mxu0 0
  %4380 = vmatpush1.bf16.msra.mxu0 0
  %4381 = vmatprep.subr.bf16.mxu0 0
  %4382 = vmatpush1.bf16.msra.mxu0 0
  %4383 = vmatprep.subr.bf16.mxu0 0
  %4384 = vmatpush1.bf16.msra.mxu0 0
  %4385 = vmatprep.subr.bf16.mxu0 0
  %4386 = vmatpush1.bf16.msra.mxu0 0
  %4387 = vmatprep.subr.bf16.mxu0 0
  %4388 = vmatpush1.bf16.msra.mxu0 0
  %4389 = vmatprep.subr.bf16.mxu0 0
  %4390 = vmatpush1.bf16.msra.mxu0 0
  %4391 = vmatprep.subr.bf16.mxu0 0
  %4392 = vmatpush1.bf16.msra.mxu0 0
  %4393 = vmatprep.mubr.bf16.mxu0 0
  %4394 = vmatmul.mubr.bf16.gmra.mrb[0].mxu0 %v4359
  %v4395 = vpop.f32.mrb[0].mxu0
  %v4396 = vadd.f32 0.0, %v4395
  %v4397 = vpop.f32.mrb[0].mxu0
  %v4398 = vpop.f32.mrb[0].mxu0
  %v4399 = vpop.f32.mrb[0].mxu0
  %4400 = vdwg.mxu0
  %v4402 = vcombine.high %v4396, %v4396
  %v4404 = vunpack.c.l.s4 1966171168
  %v4405 = vunpack.c.0.s8 %v4404
  %v4406 = vlaneseq
  %v4407 = vshrl.u32 %v4406, 7
  %v4408 = vsub.s32 %v4405, %v4407
  %v4409 = vrot.slane %v4396, %v4408
  %v4411 = vunpack.c.l.s4 1966171168
  %v4412 = vunpack.c.0.s8 %v4411
  %v4413 = vlaneseq
  %v4414 = vshrl.u32 %v4413, 7
  %v4415 = vsub.s32 %v4412, %v4414
  %v4416 = vrot.slane %v4402, %v4415
  %v4417 = vcombine.high %v4409, %v4409
  %v4418 = vcombine.high %v4416, %v4416
  %v4420 = vunpack.c.l.s4 1966171168
  %v4421 = vunpack.c.0.s8 %v4420
  %v4422 = vlaneseq
  %v4423 = vshrl.u32 %v4422, 7
  %v4424 = vsub.s32 %v4421, %v4423
  %v4425 = vrot.slane %v4409, %v4424
  %v4427 = vunpack.c.l.s4 1966171168
  %v4428 = vunpack.c.0.s8 %v4427
  %v4429 = vlaneseq
  %v4430 = vshrl.u32 %v4429, 7
  %v4431 = vsub.s32 %v4428, %v4430
  %v4432 = vrot.slane %v4416, %v4431
  %v4434 = vunpack.c.l.s4 1966171168
  %v4435 = vunpack.c.0.s8 %v4434
  %v4436 = vlaneseq
  %v4437 = vshrl.u32 %v4436, 7
  %v4438 = vsub.s32 %v4435, %v4437
  %v4439 = vrot.slane %v4417, %v4438
  %v4441 = vunpack.c.l.s4 1966171168
  %v4442 = vunpack.c.0.s8 %v4441
  %v4443 = vlaneseq
  %v4444 = vshrl.u32 %v4443, 7
  %v4445 = vsub.s32 %v4442, %v4444
  %v4446 = vrot.slane %v4418, %v4445
  %v4447 = vcombine.high %v4425, %v4425
  %v4448 = vcombine.high %v4432, %v4432
  %v4449 = vcombine.high %v4439, %v4439
  %v4450 = vcombine.high %v4446, %v4446
  %v4451 = vlaneseq
  %v4452 = vshrl.u32 %v4451, 7
  %v4453 = vsub.s32 0, %v4452
  %v4454 = vrot.slane %v4425, %v4453
  %v4455 = vlaneseq
  %v4456 = vshrl.u32 %v4455, 7
  %v4457 = vsub.s32 0, %v4456
  %v4458 = vrot.slane %v4439, %v4457
  %v4459 = vlaneseq
  %v4460 = vshrl.u32 %v4459, 7
  %v4461 = vsub.s32 0, %v4460
  %v4462 = vrot.slane %v4447, %v4461
  %v4463 = vlaneseq
  %v4464 = vshrl.u32 %v4463, 7
  %v4465 = vsub.s32 0, %v4464
  %v4466 = vrot.slane %v4449, %v4465
  %v4467 = vlaneseq
  %v4468 = vshrl.u32 %v4467, 7
  %v4469 = vsub.s32 0, %v4468
  %v4470 = vrot.slane %v4432, %v4469
  %v4471 = vlaneseq
  %v4472 = vshrl.u32 %v4471, 7
  %v4473 = vsub.s32 0, %v4472
  %v4474 = vrot.slane %v4446, %v4473
  %v4475 = vlaneseq
  %v4476 = vshrl.u32 %v4475, 7
  %v4477 = vsub.s32 0, %v4476
  %v4478 = vrot.slane %v4448, %v4477
  %v4479 = vlaneseq
  %v4480 = vshrl.u32 %v4479, 7
  %v4481 = vsub.s32 0, %v4480
  %v4482 = vrot.slane %v4450, %v4481
  %v4491 = vmul.f32 %v182, %v4454
  %v4492 = vmul.f32 %v183, %v4458
  %v4493 = vmul.f32 %v184, %v4462
  %v4494 = vmul.f32 %v185, %v4466
  %v4495 = vmul.f32 %v186, %v4470
  %v4496 = vmul.f32 %v187, %v4474
  %v4497 = vmul.f32 %v188, %v4478
  %v4498 = vmul.f32 %v189, %v4482
  %v4499 = vsel %vm76, %v4491, 0.0
  %4500 = vadd.xlane.f32.xlu0 %v4499
  %v4501 = vpop.xlane.xlu0 %4500
  %v4502 = vsel %vm76, %v4492, 0.0
  %4503 = vadd.xlane.f32.xlu0 %v4502
  %v4504 = vpop.xlane.xlu0 %4503
  %v4505 = vsel %vm76, %v4493, 0.0
  %4506 = vadd.xlane.f32.xlu0 %v4505
  %v4507 = vpop.xlane.xlu0 %4506
  %v4508 = vsel %vm76, %v4494, 0.0
  %4509 = vadd.xlane.f32.xlu0 %v4508
  %v4510 = vpop.xlane.xlu0 %4509
  %v4511 = vsel %vm76, %v4495, 0.0
  %4512 = vadd.xlane.f32.xlu0 %v4511
  %v4513 = vpop.xlane.xlu0 %4512
  %v4514 = vsel %vm76, %v4496, 0.0
  %4515 = vadd.xlane.f32.xlu0 %v4514
  %v4516 = vpop.xlane.xlu0 %4515
  %v4517 = vsel %vm76, %v4497, 0.0
  %4518 = vadd.xlane.f32.xlu0 %v4517
  %v4519 = vpop.xlane.xlu0 %4518
  %v4520 = vsel %vm76, %v4498, 0.0
  %4521 = vadd.xlane.f32.xlu0 %v4520
  %v4522 = vpop.xlane.xlu0 %4521
  %v4531 = vlaneseq
  %v4532 = vshrl.u32 %v4531, 7
  %v4533 = vsub.s32 %v535, %v4532
  %v4534 = vrot.slane %v4501, %v4533
  %v4535 = vlaneseq
  %v4536 = vshrl.u32 %v4535, 7
  %v4537 = vsub.s32 %v535, %v4536
  %v4538 = vrot.slane %v4504, %v4537
  %v4539 = vlaneseq
  %v4540 = vshrl.u32 %v4539, 7
  %v4541 = vsub.s32 %v535, %v4540
  %v4542 = vrot.slane %v4507, %v4541
  %v4543 = vlaneseq
  %v4544 = vshrl.u32 %v4543, 7
  %v4545 = vsub.s32 %v535, %v4544
  %v4546 = vrot.slane %v4510, %v4545
  %v4547 = vlaneseq
  %v4548 = vshrl.u32 %v4547, 7
  %v4549 = vsub.s32 %v535, %v4548
  %v4550 = vrot.slane %v4513, %v4549
  %v4551 = vlaneseq
  %v4552 = vshrl.u32 %v4551, 7
  %v4553 = vsub.s32 %v535, %v4552
  %v4554 = vrot.slane %v4516, %v4553
  %v4555 = vlaneseq
  %v4556 = vshrl.u32 %v4555, 7
  %v4557 = vsub.s32 %v535, %v4556
  %v4558 = vrot.slane %v4519, %v4557
  %v4559 = vlaneseq
  %v4560 = vshrl.u32 %v4559, 7
  %v4561 = vsub.s32 %v535, %v4560
  %v4562 = vrot.slane %v4522, %v4561
  %v4563 = vsel %vm568, %v4538, %v4534
  %v4564 = vsel %vm570, %v4542, %v4563
  %v4565 = vsel %vm572, %v4546, %v4564
  %v4566 = vsel %vm574, %v4550, %v4565
  %v4567 = vsel %vm576, %v4554, %v4566
  %v4568 = vsel %vm578, %v4558, %v4567
  %v4569 = vsel %vm580, %v4562, %v4568
  %v4571 = vsel %vm583, %v4569, -inf
  %4572 = vmax.xlane.f32.xlu0 %v4571
  %v4573 = vpop.xlane.xlu0 %4572
  %v4575 = vlaneseq
  %v4576 = vshrl.u32 %v4575, 7
  %v4577 = vsub.s32 0, %v4576
  %v4578 = vrot.slane %v4573, %v4577
  %v4579 = vlaneseq
  %v4580 = vshrl.u32 %v4579, 7
  %v4581 = vsub.s32 1, %v4580
  %v4582 = vrot.slane %v4573, %v4581
  %v4583 = vlaneseq
  %v4584 = vshrl.u32 %v4583, 7
  %v4585 = vsub.s32 2, %v4584
  %v4586 = vrot.slane %v4573, %v4585
  %v4587 = vlaneseq
  %v4588 = vshrl.u32 %v4587, 7
  %v4589 = vsub.s32 3, %v4588
  %v4590 = vrot.slane %v4573, %v4589
  %v4591 = vlaneseq
  %v4592 = vshrl.u32 %v4591, 7
  %v4593 = vsub.s32 4, %v4592
  %v4594 = vrot.slane %v4573, %v4593
  %v4595 = vlaneseq
  %v4596 = vshrl.u32 %v4595, 7
  %v4597 = vsub.s32 5, %v4596
  %v4598 = vrot.slane %v4573, %v4597
  %v4599 = vlaneseq
  %v4600 = vshrl.u32 %v4599, 7
  %v4601 = vsub.s32 6, %v4600
  %v4602 = vrot.slane %v4573, %v4601
  %v4603 = vlaneseq
  %v4604 = vshrl.u32 %v4603, 7
  %v4605 = vsub.s32 7, %v4604
  %v4606 = vrot.slane %v4573, %v4605
  %v4615 = vsub.f32 %v4501, %v4578
  %v4616 = vsub.f32 %v4504, %v4582
  %v4617 = vsub.f32 %v4507, %v4586
  %v4618 = vsub.f32 %v4510, %v4590
  %v4619 = vsub.f32 %v4513, %v4594
  %v4620 = vsub.f32 %v4516, %v4598
  %v4621 = vsub.f32 %v4519, %v4602
  %v4622 = vsub.f32 %v4522, %v4606
  %v4623 = vmul.f32 %v4615, 1.442695
  %v4624 = vpow.pop %v4623
  %v4625 = vmul.f32 %v4616, 1.442695
  %v4626 = vpow.pop %v4625
  %v4627 = vmul.f32 %v4617, 1.442695
  %v4628 = vpow.pop %v4627
  %v4629 = vmul.f32 %v4618, 1.442695
  %v4630 = vpow.pop %v4629
  %v4631 = vmul.f32 %v4619, 1.442695
  %v4632 = vpow.pop %v4631
  %v4633 = vmul.f32 %v4620, 1.442695
  %v4634 = vpow.pop %v4633
  %v4635 = vmul.f32 %v4621, 1.442695
  %v4636 = vpow.pop %v4635
  %v4637 = vmul.f32 %v4622, 1.442695
  %v4638 = vpow.pop %v4637
  %4647 = vset.pattern.permute.xlu0 0
  %4648 = vperm.xlu0 %4647, %v4624
  %v4649 = vpop.permute.xlu0 %4648
  %4650 = vset.pattern.permute.xlu0 0
  %4651 = vperm.xlu0 %4650, %v4626
  %v4652 = vpop.permute.xlu0 %4651
  %4653 = vset.pattern.permute.xlu0 0
  %4654 = vperm.xlu0 %4653, %v4628
  %v4655 = vpop.permute.xlu0 %4654
  %4656 = vset.pattern.permute.xlu0 0
  %4657 = vperm.xlu0 %4656, %v4630
  %v4658 = vpop.permute.xlu0 %4657
  %4659 = vset.pattern.permute.xlu0 0
  %4660 = vperm.xlu0 %4659, %v4632
  %v4661 = vpop.permute.xlu0 %4660
  %4662 = vset.pattern.permute.xlu0 0
  %4663 = vperm.xlu0 %4662, %v4634
  %v4664 = vpop.permute.xlu0 %4663
  %4665 = vset.pattern.permute.xlu0 0
  %4666 = vperm.xlu0 %4665, %v4636
  %v4667 = vpop.permute.xlu0 %4666
  %4668 = vset.pattern.permute.xlu0 0
  %4669 = vperm.xlu0 %4668, %v4638
  %v4670 = vpop.permute.xlu0 %4669
  %v4671 = vlaneseq
  %v4672 = vshrl.u32 %v4671, 7
  %v4673 = vsub.s32 %v535, %v4672
  %v4674 = vrot.slane %v4649, %v4673
  %v4675 = vlaneseq
  %v4676 = vshrl.u32 %v4675, 7
  %v4677 = vsub.s32 %v535, %v4676
  %v4678 = vrot.slane %v4652, %v4677
  %v4679 = vlaneseq
  %v4680 = vshrl.u32 %v4679, 7
  %v4681 = vsub.s32 %v535, %v4680
  %v4682 = vrot.slane %v4655, %v4681
  %v4683 = vlaneseq
  %v4684 = vshrl.u32 %v4683, 7
  %v4685 = vsub.s32 %v535, %v4684
  %v4686 = vrot.slane %v4658, %v4685
  %v4687 = vlaneseq
  %v4688 = vshrl.u32 %v4687, 7
  %v4689 = vsub.s32 %v535, %v4688
  %v4690 = vrot.slane %v4661, %v4689
  %v4691 = vlaneseq
  %v4692 = vshrl.u32 %v4691, 7
  %v4693 = vsub.s32 %v535, %v4692
  %v4694 = vrot.slane %v4664, %v4693
  %v4695 = vlaneseq
  %v4696 = vshrl.u32 %v4695, 7
  %v4697 = vsub.s32 %v535, %v4696
  %v4698 = vrot.slane %v4667, %v4697
  %v4699 = vlaneseq
  %v4700 = vshrl.u32 %v4699, 7
  %v4701 = vsub.s32 %v535, %v4700
  %v4702 = vrot.slane %v4670, %v4701
  %v4703 = vsel %vm568, %v4678, %v4674
  %v4704 = vsel %vm570, %v4682, %v4703
  %v4705 = vsel %vm572, %v4686, %v4704
  %v4706 = vsel %vm574, %v4690, %v4705
  %v4707 = vsel %vm576, %v4694, %v4706
  %v4708 = vsel %vm578, %v4698, %v4707
  %v4709 = vsel %vm580, %v4702, %v4708
  %v4711 = vsel %vm583, %v4709, 0.0
  %4712 = vadd.xlane.f32.xlu0 %v4711
  %v4713 = vpop.xlane.xlu0 %4712
  %v4715 = vlaneseq
  %v4716 = vshrl.u32 %v4715, 7
  %v4717 = vsub.s32 0, %v4716
  %v4718 = vrot.slane %v4713, %v4717
  %v4719 = vlaneseq
  %v4720 = vshrl.u32 %v4719, 7
  %v4721 = vsub.s32 1, %v4720
  %v4722 = vrot.slane %v4713, %v4721
  %v4723 = vlaneseq
  %v4724 = vshrl.u32 %v4723, 7
  %v4725 = vsub.s32 2, %v4724
  %v4726 = vrot.slane %v4713, %v4725
  %v4727 = vlaneseq
  %v4728 = vshrl.u32 %v4727, 7
  %v4729 = vsub.s32 3, %v4728
  %v4730 = vrot.slane %v4713, %v4729
  %v4731 = vlaneseq
  %v4732 = vshrl.u32 %v4731, 7
  %v4733 = vsub.s32 4, %v4732
  %v4734 = vrot.slane %v4713, %v4733
  %v4735 = vlaneseq
  %v4736 = vshrl.u32 %v4735, 7
  %v4737 = vsub.s32 5, %v4736
  %v4738 = vrot.slane %v4713, %v4737
  %v4739 = vlaneseq
  %v4740 = vshrl.u32 %v4739, 7
  %v4741 = vsub.s32 6, %v4740
  %v4742 = vrot.slane %v4713, %v4741
  %v4743 = vlaneseq
  %v4744 = vshrl.u32 %v4743, 7
  %v4745 = vsub.s32 7, %v4744
  %v4746 = vrot.slane %v4713, %v4745
  %v4755 = vrcp.pop %v4718
  %v4756 = vmul.f32 %v4624, %v4755
  %v4757 = vrcp.pop %v4722
  %v4758 = vmul.f32 %v4626, %v4757
  %v4759 = vrcp.pop %v4726
  %v4760 = vmul.f32 %v4628, %v4759
  %v4761 = vrcp.pop %v4730
  %v4762 = vmul.f32 %v4630, %v4761
  %v4763 = vrcp.pop %v4734
  %v4764 = vmul.f32 %v4632, %v4763
  %v4765 = vrcp.pop %v4738
  %v4766 = vmul.f32 %v4634, %v4765
  %v4767 = vrcp.pop %v4742
  %v4768 = vmul.f32 %v4636, %v4767
  %v4769 = vrcp.pop %v4746
  %v4770 = vmul.f32 %v4638, %v4769
  %4772 = vset.pattern.permute.xlu0 0
  %4773 = vperm.xlu0 %4772, %v4756
  %v4774 = vpop.permute.xlu0 %4773
  %4777 = vset.pattern.permute.xlu0 0
  %4778 = vperm.xlu0 %4777, %v4758
  %v4779 = vpop.permute.xlu0 %4778
  %4782 = vset.pattern.permute.xlu0 0
  %4783 = vperm.xlu0 %4782, %v4760
  %v4784 = vpop.permute.xlu0 %4783
  %4787 = vset.pattern.permute.xlu0 0
  %4788 = vperm.xlu0 %4787, %v4762
  %v4789 = vpop.permute.xlu0 %4788
  %4792 = vset.pattern.permute.xlu0 0
  %4793 = vperm.xlu0 %4792, %v4764
  %v4794 = vpop.permute.xlu0 %4793
  %4797 = vset.pattern.permute.xlu0 0
  %4798 = vperm.xlu0 %4797, %v4766
  %v4799 = vpop.permute.xlu0 %4798
  %4802 = vset.pattern.permute.xlu0 0
  %4803 = vperm.xlu0 %4802, %v4768
  %v4804 = vpop.permute.xlu0 %4803
  %4807 = vset.pattern.permute.xlu0 0
  %4808 = vperm.xlu0 %4807, %v4770
  %v4809 = vpop.permute.xlu0 %4808
  %v4811 = vmul.f32 %v4774, %v182
  %v4812 = vmul.f32 %v4779, %v183
  %v4813 = vmul.f32 %v4784, %v184
  %v4814 = vmul.f32 %v4789, %v185
  %v4815 = vmul.f32 %v4794, %v186
  %v4816 = vmul.f32 %v4799, %v187
  %v4817 = vmul.f32 %v4804, %v188
  %v4818 = vmul.f32 %v4809, %v189
  %v4819 = vsel %vm76, %v4811, 0.0
  %v4820 = vrot.slane %v4819, 4
  %v4821 = vadd.f32 %v4819, %v4820
  %v4822 = vrot.slane %v4821, 2
  %v4823 = vadd.f32 %v4821, %v4822
  %v4824 = vrot.slane %v4823, 1
  %v4825 = vadd.f32 %v4823, %v4824
  %v4826 = vsel %vm76, %v4812, 0.0
  %v4827 = vrot.slane %v4826, 4
  %v4828 = vadd.f32 %v4826, %v4827
  %v4829 = vrot.slane %v4828, 2
  %v4830 = vadd.f32 %v4828, %v4829
  %v4831 = vrot.slane %v4830, 1
  %v4832 = vadd.f32 %v4830, %v4831
  %v4833 = vsel %vm76, %v4813, 0.0
  %v4834 = vrot.slane %v4833, 4
  %v4835 = vadd.f32 %v4833, %v4834
  %v4836 = vrot.slane %v4835, 2
  %v4837 = vadd.f32 %v4835, %v4836
  %v4838 = vrot.slane %v4837, 1
  %v4839 = vadd.f32 %v4837, %v4838
  %v4840 = vsel %vm76, %v4814, 0.0
  %v4841 = vrot.slane %v4840, 4
  %v4842 = vadd.f32 %v4840, %v4841
  %v4843 = vrot.slane %v4842, 2
  %v4844 = vadd.f32 %v4842, %v4843
  %v4845 = vrot.slane %v4844, 1
  %v4846 = vadd.f32 %v4844, %v4845
  %v4847 = vsel %vm76, %v4815, 0.0
  %v4848 = vrot.slane %v4847, 4
  %v4849 = vadd.f32 %v4847, %v4848
  %v4850 = vrot.slane %v4849, 2
  %v4851 = vadd.f32 %v4849, %v4850
  %v4852 = vrot.slane %v4851, 1
  %v4853 = vadd.f32 %v4851, %v4852
  %v4854 = vsel %vm76, %v4816, 0.0
  %v4855 = vrot.slane %v4854, 4
  %v4856 = vadd.f32 %v4854, %v4855
  %v4857 = vrot.slane %v4856, 2
  %v4858 = vadd.f32 %v4856, %v4857
  %v4859 = vrot.slane %v4858, 1
  %v4860 = vadd.f32 %v4858, %v4859
  %v4861 = vsel %vm76, %v4817, 0.0
  %v4862 = vrot.slane %v4861, 4
  %v4863 = vadd.f32 %v4861, %v4862
  %v4864 = vrot.slane %v4863, 2
  %v4865 = vadd.f32 %v4863, %v4864
  %v4866 = vrot.slane %v4865, 1
  %v4867 = vadd.f32 %v4865, %v4866
  %v4868 = vsel %vm76, %v4818, 0.0
  %v4869 = vrot.slane %v4868, 4
  %v4870 = vadd.f32 %v4868, %v4869
  %v4871 = vrot.slane %v4870, 2
  %v4872 = vadd.f32 %v4870, %v4871
  %v4873 = vrot.slane %v4872, 1
  %v4874 = vadd.f32 %v4872, %v4873
  %v4875 = vpack.c.bf16 %v4825, %v4825
  %v4876 = vpack.c.bf16 %v4832, %v4832
  %v4877 = vpack.c.bf16 %v4839, %v4839
  %v4878 = vpack.c.bf16 %v4846, %v4846
  %v4879 = vpack.c.bf16 %v4853, %v4853
  %v4880 = vpack.c.bf16 %v4860, %v4860
  %v4881 = vpack.c.bf16 %v4867, %v4867
  %v4882 = vpack.c.bf16 %v4874, %v4874
  %4883 = vmatprep.subr.bf16.mxu0 0
  %4884 = vmatpush1.bf16.msra.mxu0 %v904
  %4885 = vmatprep.subr.bf16.mxu0 0
  %4886 = vmatpush1.bf16.msra.mxu0 %v905
  %4887 = vmatprep.subr.bf16.mxu0 0
  %4888 = vmatpush1.bf16.msra.mxu0 0
  %4889 = vmatprep.subr.bf16.mxu0 0
  %4890 = vmatpush1.bf16.msra.mxu0 0
  %4891 = vmatprep.subr.bf16.mxu0 0
  %4892 = vmatpush1.bf16.msra.mxu0 0
  %4893 = vmatprep.subr.bf16.mxu0 0
  %4894 = vmatpush1.bf16.msra.mxu0 0
  %4895 = vmatprep.subr.bf16.mxu0 0
  %4896 = vmatpush1.bf16.msra.mxu0 0
  %4897 = vmatprep.subr.bf16.mxu0 0
  %4898 = vmatpush1.bf16.msra.mxu0 0
  %4899 = vmatprep.subr.bf16.mxu0 0
  %4900 = vmatpush1.bf16.msra.mxu0 0
  %4901 = vmatprep.subr.bf16.mxu0 0
  %4902 = vmatpush1.bf16.msra.mxu0 0
  %4903 = vmatprep.subr.bf16.mxu0 0
  %4904 = vmatpush1.bf16.msra.mxu0 0
  %4905 = vmatprep.subr.bf16.mxu0 0
  %4906 = vmatpush1.bf16.msra.mxu0 0
  %4907 = vmatprep.subr.bf16.mxu0 0
  %4908 = vmatpush1.bf16.msra.mxu0 0
  %4909 = vmatprep.subr.bf16.mxu0 0
  %4910 = vmatpush1.bf16.msra.mxu0 0
  %4911 = vmatprep.subr.bf16.mxu0 0
  %4912 = vmatpush1.bf16.msra.mxu0 0
  %4913 = vmatprep.subr.bf16.mxu0 0
  %4914 = vmatpush1.bf16.msra.mxu0 0
  %4915 = vmatprep.mubr.bf16.mxu0 0
  %4916 = vmatmul.mubr.bf16.gmra.mrb[0].mxu0 %v4359
  %v4917 = vpop.f32.mrb[0].mxu0
  %v4918 = vadd.f32 0.0, %v4917
  %v4919 = vpop.f32.mrb[0].mxu0
  %v4920 = vpop.f32.mrb[0].mxu0
  %v4921 = vpop.f32.mrb[0].mxu0
  %4922 = vdwg.mxu0
  %v4931 = vunpack.c.l.b16 %v4875
  %v4932 = vunpack.c.l.b16 %v4876
  %v4933 = vunpack.c.l.b16 %v4877
  %v4934 = vunpack.c.l.b16 %v4878
  %v4935 = vunpack.c.l.b16 %v4879
  %v4936 = vunpack.c.l.b16 %v4880
  %v4937 = vunpack.c.l.b16 %v4881
  %v4938 = vunpack.c.l.b16 %v4882
  %v4939 = vsel %vm568, %v4932, %v4931
  %v4940 = vsel %vm570, %v4933, %v4939
  %v4941 = vsel %vm572, %v4934, %v4940
  %v4942 = vsel %vm574, %v4935, %v4941
  %v4943 = vsel %vm576, %v4936, %v4942
  %v4944 = vsel %vm578, %v4937, %v4943
  %v4945 = vsel %vm580, %v4938, %v4944
  %v4946 = vpack.c.b16 %v4945, %v4945
  %v4948 = vsel %vm76, %v4946, 0
  %4950 = vmatprep.subr.bf16.mxu0 0
  %4951 = vmatpush1.bf16.msra.mxu0 %v980
  %4952 = vmatprep.subr.bf16.mxu0 0
  %4953 = vmatpush1.bf16.msra.mxu0 %v981
  %4954 = vmatprep.subr.bf16.mxu0 0
  %4955 = vmatpush1.bf16.msra.mxu0 0
  %4956 = vmatprep.subr.bf16.mxu0 0
  %4957 = vmatpush1.bf16.msra.mxu0 0
  %4958 = vmatprep.subr.bf16.mxu0 0
  %4959 = vmatpush1.bf16.msra.mxu0 0
  %4960 = vmatprep.subr.bf16.mxu0 0
  %4961 = vmatpush1.bf16.msra.mxu0 0
  %4962 = vmatprep.subr.bf16.mxu0 0
  %4963 = vmatpush1.bf16.msra.mxu0 0
  %4964 = vmatprep.subr.bf16.mxu0 0
  %4965 = vmatpush1.bf16.msra.mxu0 0
  %4966 = vmatprep.subr.bf16.mxu0 0
  %4967 = vmatpush1.bf16.msra.mxu0 0
  %4968 = vmatprep.subr.bf16.mxu0 0
  %4969 = vmatpush1.bf16.msra.mxu0 0
  %4970 = vmatprep.subr.bf16.mxu0 0
  %4971 = vmatpush1.bf16.msra.mxu0 0
  %4972 = vmatprep.subr.bf16.mxu0 0
  %4973 = vmatpush1.bf16.msra.mxu0 0
  %4974 = vmatprep.subr.bf16.mxu0 0
  %4975 = vmatpush1.bf16.msra.mxu0 0
  %4976 = vmatprep.subr.bf16.mxu0 0
  %4977 = vmatpush1.bf16.msra.mxu0 0
  %4978 = vmatprep.subr.bf16.mxu0 0
  %4979 = vmatpush1.bf16.msra.mxu0 0
  %4980 = vmatprep.subr.bf16.mxu0 0
  %4981 = vmatpush1.bf16.msra.mxu0 0
  %4982 = vmatprep.mubr.bf16.mxu0 0
  %4983 = vmatmul.mubr.bf16.gmra.mrb[0].mxu0 %v4948
  %v4984 = vpop.f32.mrb[0].mxu0
  %v4985 = vadd.f32 %v4918, %v4984
  %v4986 = vpop.f32.mrb[0].mxu0
  %v4987 = vpop.f32.mrb[0].mxu0
  %v4988 = vpop.f32.mrb[0].mxu0
  %4989 = vdwg.mxu0
  %v4990 = vtanh.pop %v4985
  %s4991 = scalar_lea.vmem %s11, 40
  %4992 = vst.msk [vmem:[%s4991] sm:$0xff] %vm76, %v4990
  %v4993 = vlaneseq
  %v4994 = vshrl.u32 %v4993, 7
  %v4995 = vsub.s32 %v535, %v4994
  %v4996 = vrot.slane %v4774, %v4995
  %v4997 = vlaneseq
  %v4998 = vshrl.u32 %v4997, 7
  %v4999 = vsub.s32 %v535, %v4998
  %v5000 = vrot.slane %v4779, %v4999
  %v5001 = vlaneseq
  %v5002 = vshrl.u32 %v5001, 7
  %v5003 = vsub.s32 %v535, %v5002
  %v5004 = vrot.slane %v4784, %v5003
  %v5005 = vlaneseq
  %v5006 = vshrl.u32 %v5005, 7
  %v5007 = vsub.s32 %v535, %v5006
  %v5008 = vrot.slane %v4789, %v5007
  %v5009 = vlaneseq
  %v5010 = vshrl.u32 %v5009, 7
  %v5011 = vsub.s32 %v535, %v5010
  %v5012 = vrot.slane %v4794, %v5011
  %v5013 = vlaneseq
  %v5014 = vshrl.u32 %v5013, 7
  %v5015 = vsub.s32 %v535, %v5014
  %v5016 = vrot.slane %v4799, %v5015
  %v5017 = vlaneseq
  %v5018 = vshrl.u32 %v5017, 7
  %v5019 = vsub.s32 %v535, %v5018
  %v5020 = vrot.slane %v4804, %v5019
  %v5021 = vlaneseq
  %v5022 = vshrl.u32 %v5021, 7
  %v5023 = vsub.s32 %v535, %v5022
  %v5024 = vrot.slane %v4809, %v5023
  %v5025 = vsel %vm568, %v5000, %v4996
  %v5026 = vsel %vm570, %v5004, %v5025
  %v5027 = vsel %vm572, %v5008, %v5026
  %v5028 = vsel %vm574, %v5012, %v5027
  %v5029 = vsel %vm576, %v5016, %v5028
  %v5030 = vsel %vm578, %v5020, %v5029
  %v5031 = vsel %vm580, %v5024, %v5030
  %s5033 = scalar_lea.vmem %s12, 40
  %5034 = vst.msk [vmem:[%s5033] sm:$0xff] %vm583, %v5031
  %s5035 = scalar_lea.vmem [#allocation2], 48
  %v5036 = vld [vmem:[%s5035] sm:$0xff]
  %v5037 = vpack.c.bf16 %v4990, %v4990
  %v5039 = vsel %vm76, %v5037, 0
  %5041 = vmatprep.subr.bf16.mxu0 0
  %5042 = vmatpush1.bf16.msra.mxu0 %v212
  %5043 = vmatprep.subr.bf16.mxu0 0
  %5044 = vmatpush1.bf16.msra.mxu0 %v213
  %5045 = vmatprep.subr.bf16.mxu0 0
  %5046 = vmatpush1.bf16.msra.mxu0 0
  %5047 = vmatprep.subr.bf16.mxu0 0
  %5048 = vmatpush1.bf16.msra.mxu0 0
  %5049 = vmatprep.subr.bf16.mxu0 0
  %5050 = vmatpush1.bf16.msra.mxu0 0
  %5051 = vmatprep.subr.bf16.mxu0 0
  %5052 = vmatpush1.bf16.msra.mxu0 0
  %5053 = vmatprep.subr.bf16.mxu0 0
  %5054 = vmatpush1.bf16.msra.mxu0 0
  %5055 = vmatprep.subr.bf16.mxu0 0
  %5056 = vmatpush1.bf16.msra.mxu0 0
  %5057 = vmatprep.subr.bf16.mxu0 0
  %5058 = vmatpush1.bf16.msra.mxu0 0
  %5059 = vmatprep.subr.bf16.mxu0 0
  %5060 = vmatpush1.bf16.msra.mxu0 0
  %5061 = vmatprep.subr.bf16.mxu0 0
  %5062 = vmatpush1.bf16.msra.mxu0 0
  %5063 = vmatprep.subr.bf16.mxu0 0
  %5064 = vmatpush1.bf16.msra.mxu0 0
  %5065 = vmatprep.subr.bf16.mxu0 0
  %5066 = vmatpush1.bf16.msra.mxu0 0
  %5067 = vmatprep.subr.bf16.mxu0 0
  %5068 = vmatpush1.bf16.msra.mxu0 0
  %5069 = vmatprep.subr.bf16.mxu0 0
  %5070 = vmatpush1.bf16.msra.mxu0 0
  %5071 = vmatprep.subr.bf16.mxu0 0
  %5072 = vmatpush1.bf16.msra.mxu0 0
  %5073 = vmatprep.mubr.bf16.mxu0 0
  %5074 = vmatmul.mubr.bf16.gmra.mrb[0].mxu0 %v5039
  %v5075 = vpop.f32.mrb[0].mxu0
  %v5076 = vadd.f32 0.0, %v5075
  %v5077 = vpop.f32.mrb[0].mxu0
  %v5078 = vpop.f32.mrb[0].mxu0
  %v5079 = vpop.f32.mrb[0].mxu0
  %5080 = vdwg.mxu0
  %v5081 = vadd.f32 %v5036, %v5076
  %5082 = vmatprep.subr.bf16.mxu0 0
  %5083 = vmatpush1.bf16.msra.mxu0 %v269
  %5084 = vmatprep.subr.bf16.mxu0 0
  %5085 = vmatpush1.bf16.msra.mxu0 %v270
  %5086 = vmatprep.subr.bf16.mxu0 0
  %5087 = vmatpush1.bf16.msra.mxu0 0
  %5088 = vmatprep.subr.bf16.mxu0 0
  %5089 = vmatpush1.bf16.msra.mxu0 0
  %5090 = vmatprep.subr.bf16.mxu0 0
  %5091 = vmatpush1.bf16.msra.mxu0 0
  %5092 = vmatprep.subr.bf16.mxu0 0
  %5093 = vmatpush1.bf16.msra.mxu0 0
  %5094 = vmatprep.subr.bf16.mxu0 0
  %5095 = vmatpush1.bf16.msra.mxu0 0
  %5096 = vmatprep.subr.bf16.mxu0 0
  %5097 = vmatpush1.bf16.msra.mxu0 0
  %5098 = vmatprep.subr.bf16.mxu0 0
  %5099 = vmatpush1.bf16.msra.mxu0 0
  %5100 = vmatprep.subr.bf16.mxu0 0
  %5101 = vmatpush1.bf16.msra.mxu0 0
  %5102 = vmatprep.subr.bf16.mxu0 0
  %5103 = vmatpush1.bf16.msra.mxu0 0
  %5104 = vmatprep.subr.bf16.mxu0 0
  %5105 = vmatpush1.bf16.msra.mxu0 0
  %5106 = vmatprep.subr.bf16.mxu0 0
  %5107 = vmatpush1.bf16.msra.mxu0 0
  %5108 = vmatprep.subr.bf16.mxu0 0
  %5109 = vmatpush1.bf16.msra.mxu0 0
  %5110 = vmatprep.subr.bf16.mxu0 0
  %5111 = vmatpush1.bf16.msra.mxu0 0
  %5112 = vmatprep.subr.bf16.mxu0 0
  %5113 = vmatpush1.bf16.msra.mxu0 0
  %5114 = vmatprep.mubr.bf16.mxu0 0
  %5115 = vmatmul.mubr.bf16.gmra.mrb[0].mxu0 %v4359
  %v5116 = vpop.f32.mrb[0].mxu0
  %v5117 = vadd.f32 0.0, %v5116
  %v5118 = vpop.f32.mrb[0].mxu0
  %v5119 = vpop.f32.mrb[0].mxu0
  %v5120 = vpop.f32.mrb[0].mxu0
  %5121 = vdwg.mxu0
  %v5122 = vadd.f32 %v5081, %v5117
  %v5123 = vxor.u32 %v5122, 2147483648
  %v5124 = vmul.f32 %v5123, 1.442695
  %v5125 = vpow.pop %v5124
  %v5126 = vadd.f32 %v5125, 1.0
  %v5127 = vrcp.pop %v5126
  %v5128 = vmul.f32 1.0, %v5127
  %v5129 = vtanh.pop %v5122
  %v5130 = vmul.f32 %v5128, %v4347
  %5132 = vrot.lane.b32.xlu0 %v5129, 64
  %v5133 = vpop.permute.xlu0 %5132
  %v5135 = vmul.f32 %v5128, %v5133
  %5137 = vrot.lane.b32.xlu0 %v5135, 32
  %v5138 = vpop.permute.xlu0 %5137
  %v5140 = vadd.f32 %v5130, %v5138
  %v5141 = vtanh.pop %v5140
  %5143 = vrot.lane.b32.xlu0 %v5141, 64
  %v5144 = vpop.permute.xlu0 %5143
  %v5146 = vmul.f32 %v5128, %v5144
  %v5147 = vpack.c.bf16 %v5146, %v5146
  %5149 = vrot.lane.b32.xlu0 %v5147, 32
  %v5150 = vpop.permute.xlu0 %5149
  %v5152 = vsel %vm76, %v5150, 0
  %5154 = vmatprep.subr.bf16.mxu0 0
  %5155 = vmatpush1.bf16.msra.mxu0 %v357
  %5156 = vmatprep.subr.bf16.mxu0 0
  %5157 = vmatpush1.bf16.msra.mxu0 %v358
  %5158 = vmatprep.subr.bf16.mxu0 0
  %5159 = vmatpush1.bf16.msra.mxu0 0
  %5160 = vmatprep.subr.bf16.mxu0 0
  %5161 = vmatpush1.bf16.msra.mxu0 0
  %5162 = vmatprep.subr.bf16.mxu0 0
  %5163 = vmatpush1.bf16.msra.mxu0 0
  %5164 = vmatprep.subr.bf16.mxu0 0
  %5165 = vmatpush1.bf16.msra.mxu0 0
  %5166 = vmatprep.subr.bf16.mxu0 0
  %5167 = vmatpush1.bf16.msra.mxu0 0
  %5168 = vmatprep.subr.bf16.mxu0 0
  %5169 = vmatpush1.bf16.msra.mxu0 0
  %5170 = vmatprep.subr.bf16.mxu0 0
  %5171 = vmatpush1.bf16.msra.mxu0 0
  %5172 = vmatprep.subr.bf16.mxu0 0
  %5173 = vmatpush1.bf16.msra.mxu0 0
  %5174 = vmatprep.subr.bf16.mxu0 0
  %5175 = vmatpush1.bf16.msra.mxu0 0
  %5176 = vmatprep.subr.bf16.mxu0 0
  %5177 = vmatpush1.bf16.msra.mxu0 0
  %5178 = vmatprep.subr.bf16.mxu0 0
  %5179 = vmatpush1.bf16.msra.mxu0 0
  %5180 = vmatprep.subr.bf16.mxu0 0
  %5181 = vmatpush1.bf16.msra.mxu0 0
  %5182 = vmatprep.subr.bf16.mxu0 0
  %5183 = vmatpush1.bf16.msra.mxu0 0
  %5184 = vmatprep.subr.bf16.mxu0 0
  %5185 = vmatpush1.bf16.msra.mxu0 0
  %5186 = vmatprep.mubr.bf16.mxu0 0
  %5187 = vmatmul.mubr.bf16.gmra.mrb[0].mxu0 %v5152
  %v5188 = vpop.f32.mrb[0].mxu0
  %v5189 = vadd.f32 0.0, %v5188
  %v5190 = vpop.f32.mrb[0].mxu0
  %v5191 = vpop.f32.mrb[0].mxu0
  %v5192 = vpop.f32.mrb[0].mxu0
  %5193 = vdwg.mxu0
  %v5195 = vcombine.high %v5189, %v5189
  %v5197 = vunpack.c.l.s4 1966171168
  %v5198 = vunpack.c.0.s8 %v5197
  %v5199 = vlaneseq
  %v5200 = vshrl.u32 %v5199, 7
  %v5201 = vsub.s32 %v5198, %v5200
  %v5202 = vrot.slane %v5189, %v5201
  %v5204 = vunpack.c.l.s4 1966171168
  %v5205 = vunpack.c.0.s8 %v5204
  %v5206 = vlaneseq
  %v5207 = vshrl.u32 %v5206, 7
  %v5208 = vsub.s32 %v5205, %v5207
  %v5209 = vrot.slane %v5195, %v5208
  %v5210 = vcombine.high %v5202, %v5202
  %v5211 = vcombine.high %v5209, %v5209
  %v5213 = vunpack.c.l.s4 1966171168
  %v5214 = vunpack.c.0.s8 %v5213
  %v5215 = vlaneseq
  %v5216 = vshrl.u32 %v5215, 7
  %v5217 = vsub.s32 %v5214, %v5216
  %v5218 = vrot.slane %v5202, %v5217
  %v5220 = vunpack.c.l.s4 1966171168
  %v5221 = vunpack.c.0.s8 %v5220
  %v5222 = vlaneseq
  %v5223 = vshrl.u32 %v5222, 7
  %v5224 = vsub.s32 %v5221, %v5223
  %v5225 = vrot.slane %v5209, %v5224
  %v5227 = vunpack.c.l.s4 1966171168
  %v5228 = vunpack.c.0.s8 %v5227
  %v5229 = vlaneseq
  %v5230 = vshrl.u32 %v5229, 7
  %v5231 = vsub.s32 %v5228, %v5230
  %v5232 = vrot.slane %v5210, %v5231
  %v5234 = vunpack.c.l.s4 1966171168
  %v5235 = vunpack.c.0.s8 %v5234
  %v5236 = vlaneseq
  %v5237 = vshrl.u32 %v5236, 7
  %v5238 = vsub.s32 %v5235, %v5237
  %v5239 = vrot.slane %v5211, %v5238
  %v5240 = vcombine.high %v5218, %v5218
  %v5241 = vcombine.high %v5225, %v5225
  %v5242 = vcombine.high %v5232, %v5232
  %v5243 = vcombine.high %v5239, %v5239
  %v5244 = vlaneseq
  %v5245 = vshrl.u32 %v5244, 7
  %v5246 = vsub.s32 0, %v5245
  %v5247 = vrot.slane %v5218, %v5246
  %v5248 = vlaneseq
  %v5249 = vshrl.u32 %v5248, 7
  %v5250 = vsub.s32 0, %v5249
  %v5251 = vrot.slane %v5232, %v5250
  %v5252 = vlaneseq
  %v5253 = vshrl.u32 %v5252, 7
  %v5254 = vsub.s32 0, %v5253
  %v5255 = vrot.slane %v5240, %v5254
  %v5256 = vlaneseq
  %v5257 = vshrl.u32 %v5256, 7
  %v5258 = vsub.s32 0, %v5257
  %v5259 = vrot.slane %v5242, %v5258
  %v5260 = vlaneseq
  %v5261 = vshrl.u32 %v5260, 7
  %v5262 = vsub.s32 0, %v5261
  %v5263 = vrot.slane %v5225, %v5262
  %v5264 = vlaneseq
  %v5265 = vshrl.u32 %v5264, 7
  %v5266 = vsub.s32 0, %v5265
  %v5267 = vrot.slane %v5239, %v5266
  %v5268 = vlaneseq
  %v5269 = vshrl.u32 %v5268, 7
  %v5270 = vsub.s32 0, %v5269
  %v5271 = vrot.slane %v5241, %v5270
  %v5272 = vlaneseq
  %v5273 = vshrl.u32 %v5272, 7
  %v5274 = vsub.s32 0, %v5273
  %v5275 = vrot.slane %v5243, %v5274
  %v5284 = vmul.f32 %v182, %v5247
  %v5285 = vmul.f32 %v183, %v5251
  %v5286 = vmul.f32 %v184, %v5255
  %v5287 = vmul.f32 %v185, %v5259
  %v5288 = vmul.f32 %v186, %v5263
  %v5289 = vmul.f32 %v187, %v5267
  %v5290 = vmul.f32 %v188, %v5271
  %v5291 = vmul.f32 %v189, %v5275
  %v5292 = vsel %vm76, %v5284, 0.0
  %5293 = vadd.xlane.f32.xlu0 %v5292
  %v5294 = vpop.xlane.xlu0 %5293
  %v5295 = vsel %vm76, %v5285, 0.0
  %5296 = vadd.xlane.f32.xlu0 %v5295
  %v5297 = vpop.xlane.xlu0 %5296
  %v5298 = vsel %vm76, %v5286, 0.0
  %5299 = vadd.xlane.f32.xlu0 %v5298
  %v5300 = vpop.xlane.xlu0 %5299
  %v5301 = vsel %vm76, %v5287, 0.0
  %5302 = vadd.xlane.f32.xlu0 %v5301
  %v5303 = vpop.xlane.xlu0 %5302
  %v5304 = vsel %vm76, %v5288, 0.0
  %5305 = vadd.xlane.f32.xlu0 %v5304
  %v5306 = vpop.xlane.xlu0 %5305
  %v5307 = vsel %vm76, %v5289, 0.0
  %5308 = vadd.xlane.f32.xlu0 %v5307
  %v5309 = vpop.xlane.xlu0 %5308
  %v5310 = vsel %vm76, %v5290, 0.0
  %5311 = vadd.xlane.f32.xlu0 %v5310
  %v5312 = vpop.xlane.xlu0 %5311
  %v5313 = vsel %vm76, %v5291, 0.0
  %5314 = vadd.xlane.f32.xlu0 %v5313
  %v5315 = vpop.xlane.xlu0 %5314
  %v5324 = vlaneseq
  %v5325 = vshrl.u32 %v5324, 7
  %v5326 = vsub.s32 %v535, %v5325
  %v5327 = vrot.slane %v5294, %v5326
  %v5328 = vlaneseq
  %v5329 = vshrl.u32 %v5328, 7
  %v5330 = vsub.s32 %v535, %v5329
  %v5331 = vrot.slane %v5297, %v5330
  %v5332 = vlaneseq
  %v5333 = vshrl.u32 %v5332, 7
  %v5334 = vsub.s32 %v535, %v5333
  %v5335 = vrot.slane %v5300, %v5334
  %v5336 = vlaneseq
  %v5337 = vshrl.u32 %v5336, 7
  %v5338 = vsub.s32 %v535, %v5337
  %v5339 = vrot.slane %v5303, %v5338
  %v5340 = vlaneseq
  %v5341 = vshrl.u32 %v5340, 7
  %v5342 = vsub.s32 %v535, %v5341
  %v5343 = vrot.slane %v5306, %v5342
  %v5344 = vlaneseq
  %v5345 = vshrl.u32 %v5344, 7
  %v5346 = vsub.s32 %v535, %v5345
  %v5347 = vrot.slane %v5309, %v5346
  %v5348 = vlaneseq
  %v5349 = vshrl.u32 %v5348, 7
  %v5350 = vsub.s32 %v535, %v5349
  %v5351 = vrot.slane %v5312, %v5350
  %v5352 = vlaneseq
  %v5353 = vshrl.u32 %v5352, 7
  %v5354 = vsub.s32 %v535, %v5353
  %v5355 = vrot.slane %v5315, %v5354
  %v5356 = vsel %vm568, %v5331, %v5327
  %v5357 = vsel %vm570, %v5335, %v5356
  %v5358 = vsel %vm572, %v5339, %v5357
  %v5359 = vsel %vm574, %v5343, %v5358
  %v5360 = vsel %vm576, %v5347, %v5359
  %v5361 = vsel %vm578, %v5351, %v5360
  %v5362 = vsel %vm580, %v5355, %v5361
  %v5364 = vsel %vm583, %v5362, -inf
  %5365 = vmax.xlane.f32.xlu0 %v5364
  %v5366 = vpop.xlane.xlu0 %5365
  %v5368 = vlaneseq
  %v5369 = vshrl.u32 %v5368, 7
  %v5370 = vsub.s32 0, %v5369
  %v5371 = vrot.slane %v5366, %v5370
  %v5372 = vlaneseq
  %v5373 = vshrl.u32 %v5372, 7
  %v5374 = vsub.s32 1, %v5373
  %v5375 = vrot.slane %v5366, %v5374
  %v5376 = vlaneseq
  %v5377 = vshrl.u32 %v5376, 7
  %v5378 = vsub.s32 2, %v5377
  %v5379 = vrot.slane %v5366, %v5378
  %v5380 = vlaneseq
  %v5381 = vshrl.u32 %v5380, 7
  %v5382 = vsub.s32 3, %v5381
  %v5383 = vrot.slane %v5366, %v5382
  %v5384 = vlaneseq
  %v5385 = vshrl.u32 %v5384, 7
  %v5386 = vsub.s32 4, %v5385
  %v5387 = vrot.slane %v5366, %v5386
  %v5388 = vlaneseq
  %v5389 = vshrl.u32 %v5388, 7
  %v5390 = vsub.s32 5, %v5389
  %v5391 = vrot.slane %v5366, %v5390
  %v5392 = vlaneseq
  %v5393 = vshrl.u32 %v5392, 7
  %v5394 = vsub.s32 6, %v5393
  %v5395 = vrot.slane %v5366, %v5394
  %v5396 = vlaneseq
  %v5397 = vshrl.u32 %v5396, 7
  %v5398 = vsub.s32 7, %v5397
  %v5399 = vrot.slane %v5366, %v5398
  %v5408 = vsub.f32 %v5294, %v5371
  %v5409 = vsub.f32 %v5297, %v5375
  %v5410 = vsub.f32 %v5300, %v5379
  %v5411 = vsub.f32 %v5303, %v5383
  %v5412 = vsub.f32 %v5306, %v5387
  %v5413 = vsub.f32 %v5309, %v5391
  %v5414 = vsub.f32 %v5312, %v5395
  %v5415 = vsub.f32 %v5315, %v5399
  %v5416 = vmul.f32 %v5408, 1.442695
  %v5417 = vpow.pop %v5416
  %v5418 = vmul.f32 %v5409, 1.442695
  %v5419 = vpow.pop %v5418
  %v5420 = vmul.f32 %v5410, 1.442695
  %v5421 = vpow.pop %v5420
  %v5422 = vmul.f32 %v5411, 1.442695
  %v5423 = vpow.pop %v5422
  %v5424 = vmul.f32 %v5412, 1.442695
  %v5425 = vpow.pop %v5424
  %v5426 = vmul.f32 %v5413, 1.442695
  %v5427 = vpow.pop %v5426
  %v5428 = vmul.f32 %v5414, 1.442695
  %v5429 = vpow.pop %v5428
  %v5430 = vmul.f32 %v5415, 1.442695
  %v5431 = vpow.pop %v5430
  %5440 = vset.pattern.permute.xlu0 0
  %5441 = vperm.xlu0 %5440, %v5417
  %v5442 = vpop.permute.xlu0 %5441
  %5443 = vset.pattern.permute.xlu0 0
  %5444 = vperm.xlu0 %5443, %v5419
  %v5445 = vpop.permute.xlu0 %5444
  %5446 = vset.pattern.permute.xlu0 0
  %5447 = vperm.xlu0 %5446, %v5421
  %v5448 = vpop.permute.xlu0 %5447
  %5449 = vset.pattern.permute.xlu0 0
  %5450 = vperm.xlu0 %5449, %v5423
  %v5451 = vpop.permute.xlu0 %5450
  %5452 = vset.pattern.permute.xlu0 0
  %5453 = vperm.xlu0 %5452, %v5425
  %v5454 = vpop.permute.xlu0 %5453
  %5455 = vset.pattern.permute.xlu0 0
  %5456 = vperm.xlu0 %5455, %v5427
  %v5457 = vpop.permute.xlu0 %5456
  %5458 = vset.pattern.permute.xlu0 0
  %5459 = vperm.xlu0 %5458, %v5429
  %v5460 = vpop.permute.xlu0 %5459
  %5461 = vset.pattern.permute.xlu0 0
  %5462 = vperm.xlu0 %5461, %v5431
  %v5463 = vpop.permute.xlu0 %5462
  %v5464 = vlaneseq
  %v5465 = vshrl.u32 %v5464, 7
  %v5466 = vsub.s32 %v535, %v5465
  %v5467 = vrot.slane %v5442, %v5466
  %v5468 = vlaneseq
  %v5469 = vshrl.u32 %v5468, 7
  %v5470 = vsub.s32 %v535, %v5469
  %v5471 = vrot.slane %v5445, %v5470
  %v5472 = vlaneseq
  %v5473 = vshrl.u32 %v5472, 7
  %v5474 = vsub.s32 %v535, %v5473
  %v5475 = vrot.slane %v5448, %v5474
  %v5476 = vlaneseq
  %v5477 = vshrl.u32 %v5476, 7
  %v5478 = vsub.s32 %v535, %v5477
  %v5479 = vrot.slane %v5451, %v5478
  %v5480 = vlaneseq
  %v5481 = vshrl.u32 %v5480, 7
  %v5482 = vsub.s32 %v535, %v5481
  %v5483 = vrot.slane %v5454, %v5482
  %v5484 = vlaneseq
  %v5485 = vshrl.u32 %v5484, 7
  %v5486 = vsub.s32 %v535, %v5485
  %v5487 = vrot.slane %v5457, %v5486
  %v5488 = vlaneseq
  %v5489 = vshrl.u32 %v5488, 7
  %v5490 = vsub.s32 %v535, %v5489
  %v5491 = vrot.slane %v5460, %v5490
  %v5492 = vlaneseq
  %v5493 = vshrl.u32 %v5492, 7
  %v5494 = vsub.s32 %v535, %v5493
  %v5495 = vrot.slane %v5463, %v5494
  %v5496 = vsel %vm568, %v5471, %v5467
  %v5497 = vsel %vm570, %v5475, %v5496
  %v5498 = vsel %vm572, %v5479, %v5497
  %v5499 = vsel %vm574, %v5483, %v5498
  %v5500 = vsel %vm576, %v5487, %v5499
  %v5501 = vsel %vm578, %v5491, %v5500
  %v5502 = vsel %vm580, %v5495, %v5501
  %v5504 = vsel %vm583, %v5502, 0.0
  %5505 = vadd.xlane.f32.xlu0 %v5504
  %v5506 = vpop.xlane.xlu0 %5505
  %v5508 = vlaneseq
  %v5509 = vshrl.u32 %v5508, 7
  %v5510 = vsub.s32 0, %v5509
  %v5511 = vrot.slane %v5506, %v5510
  %v5512 = vlaneseq
  %v5513 = vshrl.u32 %v5512, 7
  %v5514 = vsub.s32 1, %v5513
  %v5515 = vrot.slane %v5506, %v5514
  %v5516 = vlaneseq
  %v5517 = vshrl.u32 %v5516, 7
  %v5518 = vsub.s32 2, %v5517
  %v5519 = vrot.slane %v5506, %v5518
  %v5520 = vlaneseq
  %v5521 = vshrl.u32 %v5520, 7
  %v5522 = vsub.s32 3, %v5521
  %v5523 = vrot.slane %v5506, %v5522
  %v5524 = vlaneseq
  %v5525 = vshrl.u32 %v5524, 7
  %v5526 = vsub.s32 4, %v5525
  %v5527 = vrot.slane %v5506, %v5526
  %v5528 = vlaneseq
  %v5529 = vshrl.u32 %v5528, 7
  %v5530 = vsub.s32 5, %v5529
  %v5531 = vrot.slane %v5506, %v5530
  %v5532 = vlaneseq
  %v5533 = vshrl.u32 %v5532, 7
  %v5534 = vsub.s32 6, %v5533
  %v5535 = vrot.slane %v5506, %v5534
  %v5536 = vlaneseq
  %v5537 = vshrl.u32 %v5536, 7
  %v5538 = vsub.s32 7, %v5537
  %v5539 = vrot.slane %v5506, %v5538
  %v5548 = vrcp.pop %v5511
  %v5549 = vmul.f32 %v5417, %v5548
  %v5550 = vrcp.pop %v5515
  %v5551 = vmul.f32 %v5419, %v5550
  %v5552 = vrcp.pop %v5519
  %v5553 = vmul.f32 %v5421, %v5552
  %v5554 = vrcp.pop %v5523
  %v5555 = vmul.f32 %v5423, %v5554
  %v5556 = vrcp.pop %v5527
  %v5557 = vmul.f32 %v5425, %v5556
  %v5558 = vrcp.pop %v5531
  %v5559 = vmul.f32 %v5427, %v5558
  %v5560 = vrcp.pop %v5535
  %v5561 = vmul.f32 %v5429, %v5560
  %v5562 = vrcp.pop %v5539
  %v5563 = vmul.f32 %v5431, %v5562
  %5565 = vset.pattern.permute.xlu0 0
  %5566 = vperm.xlu0 %5565, %v5549
  %v5567 = vpop.permute.xlu0 %5566
  %5570 = vset.pattern.permute.xlu0 0
  %5571 = vperm.xlu0 %5570, %v5551
  %v5572 = vpop.permute.xlu0 %5571
  %5575 = vset.pattern.permute.xlu0 0
  %5576 = vperm.xlu0 %5575, %v5553
  %v5577 = vpop.permute.xlu0 %5576
  %5580 = vset.pattern.permute.xlu0 0
  %5581 = vperm.xlu0 %5580, %v5555
  %v5582 = vpop.permute.xlu0 %5581
  %5585 = vset.pattern.permute.xlu0 0
  %5586 = vperm.xlu0 %5585, %v5557
  %v5587 = vpop.permute.xlu0 %5586
  %5590 = vset.pattern.permute.xlu0 0
  %5591 = vperm.xlu0 %5590, %v5559
  %v5592 = vpop.permute.xlu0 %5591
  %5595 = vset.pattern.permute.xlu0 0
  %5596 = vperm.xlu0 %5595, %v5561
  %v5597 = vpop.permute.xlu0 %5596
  %5600 = vset.pattern.permute.xlu0 0
  %5601 = vperm.xlu0 %5600, %v5563
  %v5602 = vpop.permute.xlu0 %5601
  %v5604 = vmul.f32 %v5567, %v182
  %v5605 = vmul.f32 %v5572, %v183
  %v5606 = vmul.f32 %v5577, %v184
  %v5607 = vmul.f32 %v5582, %v185
  %v5608 = vmul.f32 %v5587, %v186
  %v5609 = vmul.f32 %v5592, %v187
  %v5610 = vmul.f32 %v5597, %v188
  %v5611 = vmul.f32 %v5602, %v189
  %v5612 = vsel %vm76, %v5604, 0.0
  %v5613 = vrot.slane %v5612, 4
  %v5614 = vadd.f32 %v5612, %v5613
  %v5615 = vrot.slane %v5614, 2
  %v5616 = vadd.f32 %v5614, %v5615
  %v5617 = vrot.slane %v5616, 1
  %v5618 = vadd.f32 %v5616, %v5617
  %v5619 = vsel %vm76, %v5605, 0.0
  %v5620 = vrot.slane %v5619, 4
  %v5621 = vadd.f32 %v5619, %v5620
  %v5622 = vrot.slane %v5621, 2
  %v5623 = vadd.f32 %v5621, %v5622
  %v5624 = vrot.slane %v5623, 1
  %v5625 = vadd.f32 %v5623, %v5624
  %v5626 = vsel %vm76, %v5606, 0.0
  %v5627 = vrot.slane %v5626, 4
  %v5628 = vadd.f32 %v5626, %v5627
  %v5629 = vrot.slane %v5628, 2
  %v5630 = vadd.f32 %v5628, %v5629
  %v5631 = vrot.slane %v5630, 1
  %v5632 = vadd.f32 %v5630, %v5631
  %v5633 = vsel %vm76, %v5607, 0.0
  %v5634 = vrot.slane %v5633, 4
  %v5635 = vadd.f32 %v5633, %v5634
  %v5636 = vrot.slane %v5635, 2
  %v5637 = vadd.f32 %v5635, %v5636
  %v5638 = vrot.slane %v5637, 1
  %v5639 = vadd.f32 %v5637, %v5638
  %v5640 = vsel %vm76, %v5608, 0.0
  %v5641 = vrot.slane %v5640, 4
  %v5642 = vadd.f32 %v5640, %v5641
  %v5643 = vrot.slane %v5642, 2
  %v5644 = vadd.f32 %v5642, %v5643
  %v5645 = vrot.slane %v5644, 1
  %v5646 = vadd.f32 %v5644, %v5645
  %v5647 = vsel %vm76, %v5609, 0.0
  %v5648 = vrot.slane %v5647, 4
  %v5649 = vadd.f32 %v5647, %v5648
  %v5650 = vrot.slane %v5649, 2
  %v5651 = vadd.f32 %v5649, %v5650
  %v5652 = vrot.slane %v5651, 1
  %v5653 = vadd.f32 %v5651, %v5652
  %v5654 = vsel %vm76, %v5610, 0.0
  %v5655 = vrot.slane %v5654, 4
  %v5656 = vadd.f32 %v5654, %v5655
  %v5657 = vrot.slane %v5656, 2
  %v5658 = vadd.f32 %v5656, %v5657
  %v5659 = vrot.slane %v5658, 1
  %v5660 = vadd.f32 %v5658, %v5659
  %v5661 = vsel %vm76, %v5611, 0.0
  %v5662 = vrot.slane %v5661, 4
  %v5663 = vadd.f32 %v5661, %v5662
  %v5664 = vrot.slane %v5663, 2
  %v5665 = vadd.f32 %v5663, %v5664
  %v5666 = vrot.slane %v5665, 1
  %v5667 = vadd.f32 %v5665, %v5666
  %v5668 = vpack.c.bf16 %v5618, %v5618
  %v5669 = vpack.c.bf16 %v5625, %v5625
  %v5670 = vpack.c.bf16 %v5632, %v5632
  %v5671 = vpack.c.bf16 %v5639, %v5639
  %v5672 = vpack.c.bf16 %v5646, %v5646
  %v5673 = vpack.c.bf16 %v5653, %v5653
  %v5674 = vpack.c.bf16 %v5660, %v5660
  %v5675 = vpack.c.bf16 %v5667, %v5667
  %5676 = vmatprep.subr.bf16.mxu0 0
  %5677 = vmatpush1.bf16.msra.mxu0 %v904
  %5678 = vmatprep.subr.bf16.mxu0 0
  %5679 = vmatpush1.bf16.msra.mxu0 %v905
  %5680 = vmatprep.subr.bf16.mxu0 0
  %5681 = vmatpush1.bf16.msra.mxu0 0
  %5682 = vmatprep.subr.bf16.mxu0 0
  %5683 = vmatpush1.bf16.msra.mxu0 0
  %5684 = vmatprep.subr.bf16.mxu0 0
  %5685 = vmatpush1.bf16.msra.mxu0 0
  %5686 = vmatprep.subr.bf16.mxu0 0
  %5687 = vmatpush1.bf16.msra.mxu0 0
  %5688 = vmatprep.subr.bf16.mxu0 0
  %5689 = vmatpush1.bf16.msra.mxu0 0
  %5690 = vmatprep.subr.bf16.mxu0 0
  %5691 = vmatpush1.bf16.msra.mxu0 0
  %5692 = vmatprep.subr.bf16.mxu0 0
  %5693 = vmatpush1.bf16.msra.mxu0 0
  %5694 = vmatprep.subr.bf16.mxu0 0
  %5695 = vmatpush1.bf16.msra.mxu0 0
  %5696 = vmatprep.subr.bf16.mxu0 0
  %5697 = vmatpush1.bf16.msra.mxu0 0
  %5698 = vmatprep.subr.bf16.mxu0 0
  %5699 = vmatpush1.bf16.msra.mxu0 0
  %5700 = vmatprep.subr.bf16.mxu0 0
  %5701 = vmatpush1.bf16.msra.mxu0 0
  %5702 = vmatprep.subr.bf16.mxu0 0
  %5703 = vmatpush1.bf16.msra.mxu0 0
  %5704 = vmatprep.subr.bf16.mxu0 0
  %5705 = vmatpush1.bf16.msra.mxu0 0
  %5706 = vmatprep.subr.bf16.mxu0 0
  %5707 = vmatpush1.bf16.msra.mxu0 0
  %5708 = vmatprep.mubr.bf16.mxu0 0
  %5709 = vmatmul.mubr.bf16.gmra.mrb[0].mxu0 %v5152
  %v5710 = vpop.f32.mrb[0].mxu0
  %v5711 = vadd.f32 0.0, %v5710
  %v5712 = vpop.f32.mrb[0].mxu0
  %v5713 = vpop.f32.mrb[0].mxu0
  %v5714 = vpop.f32.mrb[0].mxu0
  %5715 = vdwg.mxu0
  %v5724 = vunpack.c.l.b16 %v5668
  %v5725 = vunpack.c.l.b16 %v5669
  %v5726 = vunpack.c.l.b16 %v5670
  %v5727 = vunpack.c.l.b16 %v5671
  %v5728 = vunpack.c.l.b16 %v5672
  %v5729 = vunpack.c.l.b16 %v5673
  %v5730 = vunpack.c.l.b16 %v5674
  %v5731 = vunpack.c.l.b16 %v5675
  %v5732 = vsel %vm568, %v5725, %v5724
  %v5733 = vsel %vm570, %v5726, %v5732
  %v5734 = vsel %vm572, %v5727, %v5733
  %v5735 = vsel %vm574, %v5728, %v5734
  %v5736 = vsel %vm576, %v5729, %v5735
  %v5737 = vsel %vm578, %v5730, %v5736
  %v5738 = vsel %vm580, %v5731, %v5737
  %v5739 = vpack.c.b16 %v5738, %v5738
  %v5741 = vsel %vm76, %v5739, 0
  %5743 = vmatprep.subr.bf16.mxu0 0
  %5744 = vmatpush1.bf16.msra.mxu0 %v980
  %5745 = vmatprep.subr.bf16.mxu0 0
  %5746 = vmatpush1.bf16.msra.mxu0 %v981
  %5747 = vmatprep.subr.bf16.mxu0 0
  %5748 = vmatpush1.bf16.msra.mxu0 0
  %5749 = vmatprep.subr.bf16.mxu0 0
  %5750 = vmatpush1.bf16.msra.mxu0 0
  %5751 = vmatprep.subr.bf16.mxu0 0
  %5752 = vmatpush1.bf16.msra.mxu0 0
  %5753 = vmatprep.subr.bf16.mxu0 0
  %5754 = vmatpush1.bf16.msra.mxu0 0
  %5755 = vmatprep.subr.bf16.mxu0 0
  %5756 = vmatpush1.bf16.msra.mxu0 0
  %5757 = vmatprep.subr.bf16.mxu0 0
  %5758 = vmatpush1.bf16.msra.mxu0 0
  %5759 = vmatprep.subr.bf16.mxu0 0
  %5760 = vmatpush1.bf16.msra.mxu0 0
  %5761 = vmatprep.subr.bf16.mxu0 0
  %5762 = vmatpush1.bf16.msra.mxu0 0
  %5763 = vmatprep.subr.bf16.mxu0 0
  %5764 = vmatpush1.bf16.msra.mxu0 0
  %5765 = vmatprep.subr.bf16.mxu0 0
  %5766 = vmatpush1.bf16.msra.mxu0 0
  %5767 = vmatprep.subr.bf16.mxu0 0
  %5768 = vmatpush1.bf16.msra.mxu0 0
  %5769 = vmatprep.subr.bf16.mxu0 0
  %5770 = vmatpush1.bf16.msra.mxu0 0
  %5771 = vmatprep.subr.bf16.mxu0 0
  %5772 = vmatpush1.bf16.msra.mxu0 0
  %5773 = vmatprep.subr.bf16.mxu0 0
  %5774 = vmatpush1.bf16.msra.mxu0 0
  %5775 = vmatprep.mubr.bf16.mxu0 0
  %5776 = vmatmul.mubr.bf16.gmra.mrb[0].mxu0 %v5741
  %v5777 = vpop.f32.mrb[0].mxu0
  %v5778 = vadd.f32 %v5711, %v5777
  %v5779 = vpop.f32.mrb[0].mxu0
  %v5780 = vpop.f32.mrb[0].mxu0
  %v5781 = vpop.f32.mrb[0].mxu0
  %5782 = vdwg.mxu0
  %v5783 = vtanh.pop %v5778
  %s5784 = scalar_lea.vmem %s11, 48
  %5785 = vst.msk [vmem:[%s5784] sm:$0xff] %vm76, %v5783
  %v5786 = vlaneseq
  %v5787 = vshrl.u32 %v5786, 7
  %v5788 = vsub.s32 %v535, %v5787
  %v5789 = vrot.slane %v5567, %v5788
  %v5790 = vlaneseq
  %v5791 = vshrl.u32 %v5790, 7
  %v5792 = vsub.s32 %v535, %v5791
  %v5793 = vrot.slane %v5572, %v5792
  %v5794 = vlaneseq
  %v5795 = vshrl.u32 %v5794, 7
  %v5796 = vsub.s32 %v535, %v5795
  %v5797 = vrot.slane %v5577, %v5796
  %v5798 = vlaneseq
  %v5799 = vshrl.u32 %v5798, 7
  %v5800 = vsub.s32 %v535, %v5799
  %v5801 = vrot.slane %v5582, %v5800
  %v5802 = vlaneseq
  %v5803 = vshrl.u32 %v5802, 7
  %v5804 = vsub.s32 %v535, %v5803
  %v5805 = vrot.slane %v5587, %v5804
  %v5806 = vlaneseq
  %v5807 = vshrl.u32 %v5806, 7
  %v5808 = vsub.s32 %v535, %v5807
  %v5809 = vrot.slane %v5592, %v5808
  %v5810 = vlaneseq
  %v5811 = vshrl.u32 %v5810, 7
  %v5812 = vsub.s32 %v535, %v5811
  %v5813 = vrot.slane %v5597, %v5812
  %v5814 = vlaneseq
  %v5815 = vshrl.u32 %v5814, 7
  %v5816 = vsub.s32 %v535, %v5815
  %v5817 = vrot.slane %v5602, %v5816
  %v5818 = vsel %vm568, %v5793, %v5789
  %v5819 = vsel %vm570, %v5797, %v5818
  %v5820 = vsel %vm572, %v5801, %v5819
  %v5821 = vsel %vm574, %v5805, %v5820
  %v5822 = vsel %vm576, %v5809, %v5821
  %v5823 = vsel %vm578, %v5813, %v5822
  %v5824 = vsel %vm580, %v5817, %v5823
  %s5826 = scalar_lea.vmem %s12, 48
  %5827 = vst.msk [vmem:[%s5826] sm:$0xff] %vm583, %v5824
  %s5828 = scalar_lea.vmem [#allocation2], 56
  %v5829 = vld [vmem:[%s5828] sm:$0xff]
  %v5830 = vpack.c.bf16 %v5783, %v5783
  %v5832 = vsel %vm76, %v5830, 0
  %5834 = vmatprep.subr.bf16.mxu0 0
  %5835 = vmatpush1.bf16.msra.mxu0 %v212
  %5836 = vmatprep.subr.bf16.mxu0 0
  %5837 = vmatpush1.bf16.msra.mxu0 %v213
  %5838 = vmatprep.subr.bf16.mxu0 0
  %5839 = vmatpush1.bf16.msra.mxu0 0
  %5840 = vmatprep.subr.bf16.mxu0 0
  %5841 = vmatpush1.bf16.msra.mxu0 0
  %5842 = vmatprep.subr.bf16.mxu0 0
  %5843 = vmatpush1.bf16.msra.mxu0 0
  %5844 = vmatprep.subr.bf16.mxu0 0
  %5845 = vmatpush1.bf16.msra.mxu0 0
  %5846 = vmatprep.subr.bf16.mxu0 0
  %5847 = vmatpush1.bf16.msra.mxu0 0
  %5848 = vmatprep.subr.bf16.mxu0 0
  %5849 = vmatpush1.bf16.msra.mxu0 0
  %5850 = vmatprep.subr.bf16.mxu0 0
  %5851 = vmatpush1.bf16.msra.mxu0 0
  %5852 = vmatprep.subr.bf16.mxu0 0
  %5853 = vmatpush1.bf16.msra.mxu0 0
  %5854 = vmatprep.subr.bf16.mxu0 0
  %5855 = vmatpush1.bf16.msra.mxu0 0
  %5856 = vmatprep.subr.bf16.mxu0 0
  %5857 = vmatpush1.bf16.msra.mxu0 0
  %5858 = vmatprep.subr.bf16.mxu0 0
  %5859 = vmatpush1.bf16.msra.mxu0 0
  %5860 = vmatprep.subr.bf16.mxu0 0
  %5861 = vmatpush1.bf16.msra.mxu0 0
  %5862 = vmatprep.subr.bf16.mxu0 0
  %5863 = vmatpush1.bf16.msra.mxu0 0
  %5864 = vmatprep.subr.bf16.mxu0 0
  %5865 = vmatpush1.bf16.msra.mxu0 0
  %5866 = vmatprep.mubr.bf16.mxu0 0
  %5867 = vmatmul.mubr.bf16.gmra.mrb[0].mxu0 %v5832
  %v5868 = vpop.f32.mrb[0].mxu0
  %v5869 = vadd.f32 0.0, %v5868
  %v5870 = vpop.f32.mrb[0].mxu0
  %v5871 = vpop.f32.mrb[0].mxu0
  %v5872 = vpop.f32.mrb[0].mxu0
  %5873 = vdwg.mxu0
  %v5874 = vadd.f32 %v5829, %v5869
  %5875 = vmatprep.subr.bf16.mxu0 0
  %5876 = vmatpush1.bf16.msra.mxu0 %v269
  %5877 = vmatprep.subr.bf16.mxu0 0
  %5878 = vmatpush1.bf16.msra.mxu0 %v270
  %5879 = vmatprep.subr.bf16.mxu0 0
  %5880 = vmatpush1.bf16.msra.mxu0 0
  %5881 = vmatprep.subr.bf16.mxu0 0
  %5882 = vmatpush1.bf16.msra.mxu0 0
  %5883 = vmatprep.subr.bf16.mxu0 0
  %5884 = vmatpush1.bf16.msra.mxu0 0
  %5885 = vmatprep.subr.bf16.mxu0 0
  %5886 = vmatpush1.bf16.msra.mxu0 0
  %5887 = vmatprep.subr.bf16.mxu0 0
  %5888 = vmatpush1.bf16.msra.mxu0 0
  %5889 = vmatprep.subr.bf16.mxu0 0
  %5890 = vmatpush1.bf16.msra.mxu0 0
  %5891 = vmatprep.subr.bf16.mxu0 0
  %5892 = vmatpush1.bf16.msra.mxu0 0
  %5893 = vmatprep.subr.bf16.mxu0 0
  %5894 = vmatpush1.bf16.msra.mxu0 0
  %5895 = vmatprep.subr.bf16.mxu0 0
  %5896 = vmatpush1.bf16.msra.mxu0 0
  %5897 = vmatprep.subr.bf16.mxu0 0
  %5898 = vmatpush1.bf16.msra.mxu0 0
  %5899 = vmatprep.subr.bf16.mxu0 0
  %5900 = vmatpush1.bf16.msra.mxu0 0
  %5901 = vmatprep.subr.bf16.mxu0 0
  %5902 = vmatpush1.bf16.msra.mxu0 0
  %5903 = vmatprep.subr.bf16.mxu0 0
  %5904 = vmatpush1.bf16.msra.mxu0 0
  %5905 = vmatprep.subr.bf16.mxu0 0
  %5906 = vmatpush1.bf16.msra.mxu0 0
  %5907 = vmatprep.mubr.bf16.mxu0 0
  %5908 = vmatmul.mubr.bf16.gmra.mrb[0].mxu0 %v5152
  %v5909 = vpop.f32.mrb[0].mxu0
  %v5910 = vadd.f32 0.0, %v5909
  %v5911 = vpop.f32.mrb[0].mxu0
  %v5912 = vpop.f32.mrb[0].mxu0
  %v5913 = vpop.f32.mrb[0].mxu0
  %5914 = vdwg.mxu0
  %v5915 = vadd.f32 %v5874, %v5910
  %v5916 = vxor.u32 %v5915, 2147483648
  %v5917 = vmul.f32 %v5916, 1.442695
  %v5918 = vpow.pop %v5917
  %v5919 = vadd.f32 %v5918, 1.0
  %v5920 = vrcp.pop %v5919
  %v5921 = vmul.f32 1.0, %v5920
  %v5922 = vtanh.pop %v5915
  %v5923 = vmul.f32 %v5921, %v5140
  %5925 = vrot.lane.b32.xlu0 %v5922, 64
  %v5926 = vpop.permute.xlu0 %5925
  %v5928 = vmul.f32 %v5921, %v5926
  %5930 = vrot.lane.b32.xlu0 %v5928, 32
  %v5931 = vpop.permute.xlu0 %5930
  %v5933 = vadd.f32 %v5923, %v5931
  %v5934 = vtanh.pop %v5933
  %5936 = vrot.lane.b32.xlu0 %v5934, 64
  %v5937 = vpop.permute.xlu0 %5936
  %v5939 = vmul.f32 %v5921, %v5937
  %v5940 = vpack.c.bf16 %v5939, %v5939
  %5942 = vrot.lane.b32.xlu0 %v5940, 32
  %v5943 = vpop.permute.xlu0 %5942
  %v5945 = vsel %vm76, %v5943, 0
  %5947 = vmatprep.subr.bf16.mxu0 0
  %5948 = vmatpush1.bf16.msra.mxu0 %v357
  %5949 = vmatprep.subr.bf16.mxu0 0
  %5950 = vmatpush1.bf16.msra.mxu0 %v358
  %5951 = vmatprep.subr.bf16.mxu0 0
  %5952 = vmatpush1.bf16.msra.mxu0 0
  %5953 = vmatprep.subr.bf16.mxu0 0
  %5954 = vmatpush1.bf16.msra.mxu0 0
  %5955 = vmatprep.subr.bf16.mxu0 0
  %5956 = vmatpush1.bf16.msra.mxu0 0
  %5957 = vmatprep.subr.bf16.mxu0 0
  %5958 = vmatpush1.bf16.msra.mxu0 0
  %5959 = vmatprep.subr.bf16.mxu0 0
  %5960 = vmatpush1.bf16.msra.mxu0 0
  %5961 = vmatprep.subr.bf16.mxu0 0
  %5962 = vmatpush1.bf16.msra.mxu0 0
  %5963 = vmatprep.subr.bf16.mxu0 0
  %5964 = vmatpush1.bf16.msra.mxu0 0
  %5965 = vmatprep.subr.bf16.mxu0 0
  %5966 = vmatpush1.bf16.msra.mxu0 0
  %5967 = vmatprep.subr.bf16.mxu0 0
  %5968 = vmatpush1.bf16.msra.mxu0 0
  %5969 = vmatprep.subr.bf16.mxu0 0
  %5970 = vmatpush1.bf16.msra.mxu0 0
  %5971 = vmatprep.subr.bf16.mxu0 0
  %5972 = vmatpush1.bf16.msra.mxu0 0
  %5973 = vmatprep.subr.bf16.mxu0 0
  %5974 = vmatpush1.bf16.msra.mxu0 0
  %5975 = vmatprep.subr.bf16.mxu0 0
  %5976 = vmatpush1.bf16.msra.mxu0 0
  %5977 = vmatprep.subr.bf16.mxu0 0
  %5978 = vmatpush1.bf16.msra.mxu0 0
  %5979 = vmatprep.mubr.bf16.mxu0 0
  %5980 = vmatmul.mubr.bf16.gmra.mrb[0].mxu0 %v5945
  %v5981 = vpop.f32.mrb[0].mxu0
  %v5982 = vadd.f32 0.0, %v5981
  %v5983 = vpop.f32.mrb[0].mxu0
  %v5984 = vpop.f32.mrb[0].mxu0
  %v5985 = vpop.f32.mrb[0].mxu0
  %5986 = vdwg.mxu0
  %v5988 = vcombine.high %v5982, %v5982
  %v5990 = vunpack.c.l.s4 1966171168
  %v5991 = vunpack.c.0.s8 %v5990
  %v5992 = vlaneseq
  %v5993 = vshrl.u32 %v5992, 7
  %v5994 = vsub.s32 %v5991, %v5993
  %v5995 = vrot.slane %v5982, %v5994
  %v5997 = vunpack.c.l.s4 1966171168
  %v5998 = vunpack.c.0.s8 %v5997
  %v5999 = vlaneseq
  %v6000 = vshrl.u32 %v5999, 7
  %v6001 = vsub.s32 %v5998, %v6000
  %v6002 = vrot.slane %v5988, %v6001
  %v6003 = vcombine.high %v5995, %v5995
  %v6004 = vcombine.high %v6002, %v6002
  %v6006 = vunpack.c.l.s4 1966171168
  %v6007 = vunpack.c.0.s8 %v6006
  %v6008 = vlaneseq
  %v6009 = vshrl.u32 %v6008, 7
  %v6010 = vsub.s32 %v6007, %v6009
  %v6011 = vrot.slane %v5995, %v6010
  %v6013 = vunpack.c.l.s4 1966171168
  %v6014 = vunpack.c.0.s8 %v6013
  %v6015 = vlaneseq
  %v6016 = vshrl.u32 %v6015, 7
  %v6017 = vsub.s32 %v6014, %v6016
  %v6018 = vrot.slane %v6002, %v6017
  %v6020 = vunpack.c.l.s4 1966171168
  %v6021 = vunpack.c.0.s8 %v6020
  %v6022 = vlaneseq
  %v6023 = vshrl.u32 %v6022, 7
  %v6024 = vsub.s32 %v6021, %v6023
  %v6025 = vrot.slane %v6003, %v6024
  %v6027 = vunpack.c.l.s4 1966171168
  %v6028 = vunpack.c.0.s8 %v6027
  %v6029 = vlaneseq
  %v6030 = vshrl.u32 %v6029, 7
  %v6031 = vsub.s32 %v6028, %v6030
  %v6032 = vrot.slane %v6004, %v6031
  %v6033 = vcombine.high %v6011, %v6011
  %v6034 = vcombine.high %v6018, %v6018
  %v6035 = vcombine.high %v6025, %v6025
  %v6036 = vcombine.high %v6032, %v6032
  %v6037 = vlaneseq
  %v6038 = vshrl.u32 %v6037, 7
  %v6039 = vsub.s32 0, %v6038
  %v6040 = vrot.slane %v6011, %v6039
  %v6041 = vlaneseq
  %v6042 = vshrl.u32 %v6041, 7
  %v6043 = vsub.s32 0, %v6042
  %v6044 = vrot.slane %v6025, %v6043
  %v6045 = vlaneseq
  %v6046 = vshrl.u32 %v6045, 7
  %v6047 = vsub.s32 0, %v6046
  %v6048 = vrot.slane %v6033, %v6047
  %v6049 = vlaneseq
  %v6050 = vshrl.u32 %v6049, 7
  %v6051 = vsub.s32 0, %v6050
  %v6052 = vrot.slane %v6035, %v6051
  %v6053 = vlaneseq
  %v6054 = vshrl.u32 %v6053, 7
  %v6055 = vsub.s32 0, %v6054
  %v6056 = vrot.slane %v6018, %v6055
  %v6057 = vlaneseq
  %v6058 = vshrl.u32 %v6057, 7
  %v6059 = vsub.s32 0, %v6058
  %v6060 = vrot.slane %v6032, %v6059
  %v6061 = vlaneseq
  %v6062 = vshrl.u32 %v6061, 7
  %v6063 = vsub.s32 0, %v6062
  %v6064 = vrot.slane %v6034, %v6063
  %v6065 = vlaneseq
  %v6066 = vshrl.u32 %v6065, 7
  %v6067 = vsub.s32 0, %v6066
  %v6068 = vrot.slane %v6036, %v6067
  %v6077 = vmul.f32 %v182, %v6040
  %v6078 = vmul.f32 %v183, %v6044
  %v6079 = vmul.f32 %v184, %v6048
  %v6080 = vmul.f32 %v185, %v6052
  %v6081 = vmul.f32 %v186, %v6056
  %v6082 = vmul.f32 %v187, %v6060
  %v6083 = vmul.f32 %v188, %v6064
  %v6084 = vmul.f32 %v189, %v6068
  %v6085 = vsel %vm76, %v6077, 0.0
  %6086 = vadd.xlane.f32.xlu0 %v6085
  %v6087 = vpop.xlane.xlu0 %6086
  %v6088 = vsel %vm76, %v6078, 0.0
  %6089 = vadd.xlane.f32.xlu0 %v6088
  %v6090 = vpop.xlane.xlu0 %6089
  %v6091 = vsel %vm76, %v6079, 0.0
  %6092 = vadd.xlane.f32.xlu0 %v6091
  %v6093 = vpop.xlane.xlu0 %6092
  %v6094 = vsel %vm76, %v6080, 0.0
  %6095 = vadd.xlane.f32.xlu0 %v6094
  %v6096 = vpop.xlane.xlu0 %6095
  %v6097 = vsel %vm76, %v6081, 0.0
  %6098 = vadd.xlane.f32.xlu0 %v6097
  %v6099 = vpop.xlane.xlu0 %6098
  %v6100 = vsel %vm76, %v6082, 0.0
  %6101 = vadd.xlane.f32.xlu0 %v6100
  %v6102 = vpop.xlane.xlu0 %6101
  %v6103 = vsel %vm76, %v6083, 0.0
  %6104 = vadd.xlane.f32.xlu0 %v6103
  %v6105 = vpop.xlane.xlu0 %6104
  %v6106 = vsel %vm76, %v6084, 0.0
  %6107 = vadd.xlane.f32.xlu0 %v6106
  %v6108 = vpop.xlane.xlu0 %6107
  %v6117 = vlaneseq
  %v6118 = vshrl.u32 %v6117, 7
  %v6119 = vsub.s32 %v535, %v6118
  %v6120 = vrot.slane %v6087, %v6119
  %v6121 = vlaneseq
  %v6122 = vshrl.u32 %v6121, 7
  %v6123 = vsub.s32 %v535, %v6122
  %v6124 = vrot.slane %v6090, %v6123
  %v6125 = vlaneseq
  %v6126 = vshrl.u32 %v6125, 7
  %v6127 = vsub.s32 %v535, %v6126
  %v6128 = vrot.slane %v6093, %v6127
  %v6129 = vlaneseq
  %v6130 = vshrl.u32 %v6129, 7
  %v6131 = vsub.s32 %v535, %v6130
  %v6132 = vrot.slane %v6096, %v6131
  %v6133 = vlaneseq
  %v6134 = vshrl.u32 %v6133, 7
  %v6135 = vsub.s32 %v535, %v6134
  %v6136 = vrot.slane %v6099, %v6135
  %v6137 = vlaneseq
  %v6138 = vshrl.u32 %v6137, 7
  %v6139 = vsub.s32 %v535, %v6138
  %v6140 = vrot.slane %v6102, %v6139
  %v6141 = vlaneseq
  %v6142 = vshrl.u32 %v6141, 7
  %v6143 = vsub.s32 %v535, %v6142
  %v6144 = vrot.slane %v6105, %v6143
  %v6145 = vlaneseq
  %v6146 = vshrl.u32 %v6145, 7
  %v6147 = vsub.s32 %v535, %v6146
  %v6148 = vrot.slane %v6108, %v6147
  %v6149 = vsel %vm568, %v6124, %v6120
  %v6150 = vsel %vm570, %v6128, %v6149
  %v6151 = vsel %vm572, %v6132, %v6150
  %v6152 = vsel %vm574, %v6136, %v6151
  %v6153 = vsel %vm576, %v6140, %v6152
  %v6154 = vsel %vm578, %v6144, %v6153
  %v6155 = vsel %vm580, %v6148, %v6154
  %v6157 = vsel %vm583, %v6155, -inf
  %6158 = vmax.xlane.f32.xlu0 %v6157
  %v6159 = vpop.xlane.xlu0 %6158
  %v6161 = vlaneseq
  %v6162 = vshrl.u32 %v6161, 7
  %v6163 = vsub.s32 0, %v6162
  %v6164 = vrot.slane %v6159, %v6163
  %v6165 = vlaneseq
  %v6166 = vshrl.u32 %v6165, 7
  %v6167 = vsub.s32 1, %v6166
  %v6168 = vrot.slane %v6159, %v6167
  %v6169 = vlaneseq
  %v6170 = vshrl.u32 %v6169, 7
  %v6171 = vsub.s32 2, %v6170
  %v6172 = vrot.slane %v6159, %v6171
  %v6173 = vlaneseq
  %v6174 = vshrl.u32 %v6173, 7
  %v6175 = vsub.s32 3, %v6174
  %v6176 = vrot.slane %v6159, %v6175
  %v6177 = vlaneseq
  %v6178 = vshrl.u32 %v6177, 7
  %v6179 = vsub.s32 4, %v6178
  %v6180 = vrot.slane %v6159, %v6179
  %v6181 = vlaneseq
  %v6182 = vshrl.u32 %v6181, 7
  %v6183 = vsub.s32 5, %v6182
  %v6184 = vrot.slane %v6159, %v6183
  %v6185 = vlaneseq
  %v6186 = vshrl.u32 %v6185, 7
  %v6187 = vsub.s32 6, %v6186
  %v6188 = vrot.slane %v6159, %v6187
  %v6189 = vlaneseq
  %v6190 = vshrl.u32 %v6189, 7
  %v6191 = vsub.s32 7, %v6190
  %v6192 = vrot.slane %v6159, %v6191
  %v6201 = vsub.f32 %v6087, %v6164
  %v6202 = vsub.f32 %v6090, %v6168
  %v6203 = vsub.f32 %v6093, %v6172
  %v6204 = vsub.f32 %v6096, %v6176
  %v6205 = vsub.f32 %v6099, %v6180
  %v6206 = vsub.f32 %v6102, %v6184
  %v6207 = vsub.f32 %v6105, %v6188
  %v6208 = vsub.f32 %v6108, %v6192
  %v6209 = vmul.f32 %v6201, 1.442695
  %v6210 = vpow.pop %v6209
  %v6211 = vmul.f32 %v6202, 1.442695
  %v6212 = vpow.pop %v6211
  %v6213 = vmul.f32 %v6203, 1.442695
  %v6214 = vpow.pop %v6213
  %v6215 = vmul.f32 %v6204, 1.442695
  %v6216 = vpow.pop %v6215
  %v6217 = vmul.f32 %v6205, 1.442695
  %v6218 = vpow.pop %v6217
  %v6219 = vmul.f32 %v6206, 1.442695
  %v6220 = vpow.pop %v6219
  %v6221 = vmul.f32 %v6207, 1.442695
  %v6222 = vpow.pop %v6221
  %v6223 = vmul.f32 %v6208, 1.442695
  %v6224 = vpow.pop %v6223
  %6233 = vset.pattern.permute.xlu0 0
  %6234 = vperm.xlu0 %6233, %v6210
  %v6235 = vpop.permute.xlu0 %6234
  %6236 = vset.pattern.permute.xlu0 0
  %6237 = vperm.xlu0 %6236, %v6212
  %v6238 = vpop.permute.xlu0 %6237
  %6239 = vset.pattern.permute.xlu0 0
  %6240 = vperm.xlu0 %6239, %v6214
  %v6241 = vpop.permute.xlu0 %6240
  %6242 = vset.pattern.permute.xlu0 0
  %6243 = vperm.xlu0 %6242, %v6216
  %v6244 = vpop.permute.xlu0 %6243
  %6245 = vset.pattern.permute.xlu0 0
  %6246 = vperm.xlu0 %6245, %v6218
  %v6247 = vpop.permute.xlu0 %6246
  %6248 = vset.pattern.permute.xlu0 0
  %6249 = vperm.xlu0 %6248, %v6220
  %v6250 = vpop.permute.xlu0 %6249
  %6251 = vset.pattern.permute.xlu0 0
  %6252 = vperm.xlu0 %6251, %v6222
  %v6253 = vpop.permute.xlu0 %6252
  %6254 = vset.pattern.permute.xlu0 0
  %6255 = vperm.xlu0 %6254, %v6224
  %v6256 = vpop.permute.xlu0 %6255
  %v6257 = vlaneseq
  %v6258 = vshrl.u32 %v6257, 7
  %v6259 = vsub.s32 %v535, %v6258
  %v6260 = vrot.slane %v6235, %v6259
  %v6261 = vlaneseq
  %v6262 = vshrl.u32 %v6261, 7
  %v6263 = vsub.s32 %v535, %v6262
  %v6264 = vrot.slane %v6238, %v6263
  %v6265 = vlaneseq
  %v6266 = vshrl.u32 %v6265, 7
  %v6267 = vsub.s32 %v535, %v6266
  %v6268 = vrot.slane %v6241, %v6267
  %v6269 = vlaneseq
  %v6270 = vshrl.u32 %v6269, 7
  %v6271 = vsub.s32 %v535, %v6270
  %v6272 = vrot.slane %v6244, %v6271
  %v6273 = vlaneseq
  %v6274 = vshrl.u32 %v6273, 7
  %v6275 = vsub.s32 %v535, %v6274
  %v6276 = vrot.slane %v6247, %v6275
  %v6277 = vlaneseq
  %v6278 = vshrl.u32 %v6277, 7
  %v6279 = vsub.s32 %v535, %v6278
  %v6280 = vrot.slane %v6250, %v6279
  %v6281 = vlaneseq
  %v6282 = vshrl.u32 %v6281, 7
  %v6283 = vsub.s32 %v535, %v6282
  %v6284 = vrot.slane %v6253, %v6283
  %v6285 = vlaneseq
  %v6286 = vshrl.u32 %v6285, 7
  %v6287 = vsub.s32 %v535, %v6286
  %v6288 = vrot.slane %v6256, %v6287
  %v6289 = vsel %vm568, %v6264, %v6260
  %v6290 = vsel %vm570, %v6268, %v6289
  %v6291 = vsel %vm572, %v6272, %v6290
  %v6292 = vsel %vm574, %v6276, %v6291
  %v6293 = vsel %vm576, %v6280, %v6292
  %v6294 = vsel %vm578, %v6284, %v6293
  %v6295 = vsel %vm580, %v6288, %v6294
  %v6297 = vsel %vm583, %v6295, 0.0
  %6298 = vadd.xlane.f32.xlu0 %v6297
  %v6299 = vpop.xlane.xlu0 %6298
  %v6301 = vlaneseq
  %v6302 = vshrl.u32 %v6301, 7
  %v6303 = vsub.s32 0, %v6302
  %v6304 = vrot.slane %v6299, %v6303
  %v6305 = vlaneseq
  %v6306 = vshrl.u32 %v6305, 7
  %v6307 = vsub.s32 1, %v6306
  %v6308 = vrot.slane %v6299, %v6307
  %v6309 = vlaneseq
  %v6310 = vshrl.u32 %v6309, 7
  %v6311 = vsub.s32 2, %v6310
  %v6312 = vrot.slane %v6299, %v6311
  %v6313 = vlaneseq
  %v6314 = vshrl.u32 %v6313, 7
  %v6315 = vsub.s32 3, %v6314
  %v6316 = vrot.slane %v6299, %v6315
  %v6317 = vlaneseq
  %v6318 = vshrl.u32 %v6317, 7
  %v6319 = vsub.s32 4, %v6318
  %v6320 = vrot.slane %v6299, %v6319
  %v6321 = vlaneseq
  %v6322 = vshrl.u32 %v6321, 7
  %v6323 = vsub.s32 5, %v6322
  %v6324 = vrot.slane %v6299, %v6323
  %v6325 = vlaneseq
  %v6326 = vshrl.u32 %v6325, 7
  %v6327 = vsub.s32 6, %v6326
  %v6328 = vrot.slane %v6299, %v6327
  %v6329 = vlaneseq
  %v6330 = vshrl.u32 %v6329, 7
  %v6331 = vsub.s32 7, %v6330
  %v6332 = vrot.slane %v6299, %v6331
  %v6341 = vrcp.pop %v6304
  %v6342 = vmul.f32 %v6210, %v6341
  %v6343 = vrcp.pop %v6308
  %v6344 = vmul.f32 %v6212, %v6343
  %v6345 = vrcp.pop %v6312
  %v6346 = vmul.f32 %v6214, %v6345
  %v6347 = vrcp.pop %v6316
  %v6348 = vmul.f32 %v6216, %v6347
  %v6349 = vrcp.pop %v6320
  %v6350 = vmul.f32 %v6218, %v6349
  %v6351 = vrcp.pop %v6324
  %v6352 = vmul.f32 %v6220, %v6351
  %v6353 = vrcp.pop %v6328
  %v6354 = vmul.f32 %v6222, %v6353
  %v6355 = vrcp.pop %v6332
  %v6356 = vmul.f32 %v6224, %v6355
  %6358 = vset.pattern.permute.xlu0 0
  %6359 = vperm.xlu0 %6358, %v6342
  %v6360 = vpop.permute.xlu0 %6359
  %6363 = vset.pattern.permute.xlu0 0
  %6364 = vperm.xlu0 %6363, %v6344
  %v6365 = vpop.permute.xlu0 %6364
  %6368 = vset.pattern.permute.xlu0 0
  %6369 = vperm.xlu0 %6368, %v6346
  %v6370 = vpop.permute.xlu0 %6369
  %6373 = vset.pattern.permute.xlu0 0
  %6374 = vperm.xlu0 %6373, %v6348
  %v6375 = vpop.permute.xlu0 %6374
  %6378 = vset.pattern.permute.xlu0 0
  %6379 = vperm.xlu0 %6378, %v6350
  %v6380 = vpop.permute.xlu0 %6379
  %6383 = vset.pattern.permute.xlu0 0
  %6384 = vperm.xlu0 %6383, %v6352
  %v6385 = vpop.permute.xlu0 %6384
  %6388 = vset.pattern.permute.xlu0 0
  %6389 = vperm.xlu0 %6388, %v6354
  %v6390 = vpop.permute.xlu0 %6389
  %6393 = vset.pattern.permute.xlu0 0
  %6394 = vperm.xlu0 %6393, %v6356
  %v6395 = vpop.permute.xlu0 %6394
  %v6397 = vmul.f32 %v6360, %v182
  %v6398 = vmul.f32 %v6365, %v183
  %v6399 = vmul.f32 %v6370, %v184
  %v6400 = vmul.f32 %v6375, %v185
  %v6401 = vmul.f32 %v6380, %v186
  %v6402 = vmul.f32 %v6385, %v187
  %v6403 = vmul.f32 %v6390, %v188
  %v6404 = vmul.f32 %v6395, %v189
  %v6405 = vsel %vm76, %v6397, 0.0
  %v6406 = vrot.slane %v6405, 4
  %v6407 = vadd.f32 %v6405, %v6406
  %v6408 = vrot.slane %v6407, 2
  %v6409 = vadd.f32 %v6407, %v6408
  %v6410 = vrot.slane %v6409, 1
  %v6411 = vadd.f32 %v6409, %v6410
  %v6412 = vsel %vm76, %v6398, 0.0
  %v6413 = vrot.slane %v6412, 4
  %v6414 = vadd.f32 %v6412, %v6413
  %v6415 = vrot.slane %v6414, 2
  %v6416 = vadd.f32 %v6414, %v6415
  %v6417 = vrot.slane %v6416, 1
  %v6418 = vadd.f32 %v6416, %v6417
  %v6419 = vsel %vm76, %v6399, 0.0
  %v6420 = vrot.slane %v6419, 4
  %v6421 = vadd.f32 %v6419, %v6420
  %v6422 = vrot.slane %v6421, 2
  %v6423 = vadd.f32 %v6421, %v6422
  %v6424 = vrot.slane %v6423, 1
  %v6425 = vadd.f32 %v6423, %v6424
  %v6426 = vsel %vm76, %v6400, 0.0
  %v6427 = vrot.slane %v6426, 4
  %v6428 = vadd.f32 %v6426, %v6427
  %v6429 = vrot.slane %v6428, 2
  %v6430 = vadd.f32 %v6428, %v6429
  %v6431 = vrot.slane %v6430, 1
  %v6432 = vadd.f32 %v6430, %v6431
  %v6433 = vsel %vm76, %v6401, 0.0
  %v6434 = vrot.slane %v6433, 4
  %v6435 = vadd.f32 %v6433, %v6434
  %v6436 = vrot.slane %v6435, 2
  %v6437 = vadd.f32 %v6435, %v6436
  %v6438 = vrot.slane %v6437, 1
  %v6439 = vadd.f32 %v6437, %v6438
  %v6440 = vsel %vm76, %v6402, 0.0
  %v6441 = vrot.slane %v6440, 4
  %v6442 = vadd.f32 %v6440, %v6441
  %v6443 = vrot.slane %v6442, 2
  %v6444 = vadd.f32 %v6442, %v6443
  %v6445 = vrot.slane %v6444, 1
  %v6446 = vadd.f32 %v6444, %v6445
  %v6447 = vsel %vm76, %v6403, 0.0
  %v6448 = vrot.slane %v6447, 4
  %v6449 = vadd.f32 %v6447, %v6448
  %v6450 = vrot.slane %v6449, 2
  %v6451 = vadd.f32 %v6449, %v6450
  %v6452 = vrot.slane %v6451, 1
  %v6453 = vadd.f32 %v6451, %v6452
  %v6454 = vsel %vm76, %v6404, 0.0
  %v6455 = vrot.slane %v6454, 4
  %v6456 = vadd.f32 %v6454, %v6455
  %v6457 = vrot.slane %v6456, 2
  %v6458 = vadd.f32 %v6456, %v6457
  %v6459 = vrot.slane %v6458, 1
  %v6460 = vadd.f32 %v6458, %v6459
  %v6461 = vpack.c.bf16 %v6411, %v6411
  %v6462 = vpack.c.bf16 %v6418, %v6418
  %v6463 = vpack.c.bf16 %v6425, %v6425
  %v6464 = vpack.c.bf16 %v6432, %v6432
  %v6465 = vpack.c.bf16 %v6439, %v6439
  %v6466 = vpack.c.bf16 %v6446, %v6446
  %v6467 = vpack.c.bf16 %v6453, %v6453
  %v6468 = vpack.c.bf16 %v6460, %v6460
  %6469 = vmatprep.subr.bf16.mxu0 0
  %6470 = vmatpush1.bf16.msra.mxu0 %v904
  %6471 = vmatprep.subr.bf16.mxu0 0
  %6472 = vmatpush1.bf16.msra.mxu0 %v905
  %6473 = vmatprep.subr.bf16.mxu0 0
  %6474 = vmatpush1.bf16.msra.mxu0 0
  %6475 = vmatprep.subr.bf16.mxu0 0
  %6476 = vmatpush1.bf16.msra.mxu0 0
  %6477 = vmatprep.subr.bf16.mxu0 0
  %6478 = vmatpush1.bf16.msra.mxu0 0
  %6479 = vmatprep.subr.bf16.mxu0 0
  %6480 = vmatpush1.bf16.msra.mxu0 0
  %6481 = vmatprep.subr.bf16.mxu0 0
  %6482 = vmatpush1.bf16.msra.mxu0 0
  %6483 = vmatprep.subr.bf16.mxu0 0
  %6484 = vmatpush1.bf16.msra.mxu0 0
  %6485 = vmatprep.subr.bf16.mxu0 0
  %6486 = vmatpush1.bf16.msra.mxu0 0
  %6487 = vmatprep.subr.bf16.mxu0 0
  %6488 = vmatpush1.bf16.msra.mxu0 0
  %6489 = vmatprep.subr.bf16.mxu0 0
  %6490 = vmatpush1.bf16.msra.mxu0 0
  %6491 = vmatprep.subr.bf16.mxu0 0
  %6492 = vmatpush1.bf16.msra.mxu0 0
  %6493 = vmatprep.subr.bf16.mxu0 0
  %6494 = vmatpush1.bf16.msra.mxu0 0
  %6495 = vmatprep.subr.bf16.mxu0 0
  %6496 = vmatpush1.bf16.msra.mxu0 0
  %6497 = vmatprep.subr.bf16.mxu0 0
  %6498 = vmatpush1.bf16.msra.mxu0 0
  %6499 = vmatprep.subr.bf16.mxu0 0
  %6500 = vmatpush1.bf16.msra.mxu0 0
  %6501 = vmatprep.mubr.bf16.mxu0 0
  %6502 = vmatmul.mubr.bf16.gmra.mrb[0].mxu0 %v5945
  %v6503 = vpop.f32.mrb[0].mxu0
  %v6504 = vadd.f32 0.0, %v6503
  %v6505 = vpop.f32.mrb[0].mxu0
  %v6506 = vpop.f32.mrb[0].mxu0
  %v6507 = vpop.f32.mrb[0].mxu0
  %6508 = vdwg.mxu0
  %v6517 = vunpack.c.l.b16 %v6461
  %v6518 = vunpack.c.l.b16 %v6462
  %v6519 = vunpack.c.l.b16 %v6463
  %v6520 = vunpack.c.l.b16 %v6464
  %v6521 = vunpack.c.l.b16 %v6465
  %v6522 = vunpack.c.l.b16 %v6466
  %v6523 = vunpack.c.l.b16 %v6467
  %v6524 = vunpack.c.l.b16 %v6468
  %v6525 = vsel %vm568, %v6518, %v6517
  %v6526 = vsel %vm570, %v6519, %v6525
  %v6527 = vsel %vm572, %v6520, %v6526
  %v6528 = vsel %vm574, %v6521, %v6527
  %v6529 = vsel %vm576, %v6522, %v6528
  %v6530 = vsel %vm578, %v6523, %v6529
  %v6531 = vsel %vm580, %v6524, %v6530
  %v6532 = vpack.c.b16 %v6531, %v6531
  %v6534 = vsel %vm76, %v6532, 0
  %6536 = vmatprep.subr.bf16.mxu0 0
  %6537 = vmatpush1.bf16.msra.mxu0 %v980
  %6538 = vmatprep.subr.bf16.mxu0 0
  %6539 = vmatpush1.bf16.msra.mxu0 %v981
  %6540 = vmatprep.subr.bf16.mxu0 0
  %6541 = vmatpush1.bf16.msra.mxu0 0
  %6542 = vmatprep.subr.bf16.mxu0 0
  %6543 = vmatpush1.bf16.msra.mxu0 0
  %6544 = vmatprep.subr.bf16.mxu0 0
  %6545 = vmatpush1.bf16.msra.mxu0 0
  %6546 = vmatprep.subr.bf16.mxu0 0
  %6547 = vmatpush1.bf16.msra.mxu0 0
  %6548 = vmatprep.subr.bf16.mxu0 0
  %6549 = vmatpush1.bf16.msra.mxu0 0
  %6550 = vmatprep.subr.bf16.mxu0 0
  %6551 = vmatpush1.bf16.msra.mxu0 0
  %6552 = vmatprep.subr.bf16.mxu0 0
  %6553 = vmatpush1.bf16.msra.mxu0 0
  %6554 = vmatprep.subr.bf16.mxu0 0
  %6555 = vmatpush1.bf16.msra.mxu0 0
  %6556 = vmatprep.subr.bf16.mxu0 0
  %6557 = vmatpush1.bf16.msra.mxu0 0
  %6558 = vmatprep.subr.bf16.mxu0 0
  %6559 = vmatpush1.bf16.msra.mxu0 0
  %6560 = vmatprep.subr.bf16.mxu0 0
  %6561 = vmatpush1.bf16.msra.mxu0 0
  %6562 = vmatprep.subr.bf16.mxu0 0
  %6563 = vmatpush1.bf16.msra.mxu0 0
  %6564 = vmatprep.subr.bf16.mxu0 0
  %6565 = vmatpush1.bf16.msra.mxu0 0
  %6566 = vmatprep.subr.bf16.mxu0 0
  %6567 = vmatpush1.bf16.msra.mxu0 0
  %6568 = vmatprep.mubr.bf16.mxu0 0
  %6569 = vmatmul.mubr.bf16.gmra.mrb[0].mxu0 %v6534
  %v6570 = vpop.f32.mrb[0].mxu0
  %v6571 = vadd.f32 %v6504, %v6570
  %v6572 = vpop.f32.mrb[0].mxu0
  %v6573 = vpop.f32.mrb[0].mxu0
  %v6574 = vpop.f32.mrb[0].mxu0
  %6575 = vdwg.mxu0
  %v6576 = vtanh.pop %v6571
  %s6577 = scalar_lea.vmem %s11, 56
  %6578 = vst.msk [vmem:[%s6577] sm:$0xff] %vm76, %v6576
  %v6579 = vlaneseq
  %v6580 = vshrl.u32 %v6579, 7
  %v6581 = vsub.s32 %v535, %v6580
  %v6582 = vrot.slane %v6360, %v6581
  %v6583 = vlaneseq
  %v6584 = vshrl.u32 %v6583, 7
  %v6585 = vsub.s32 %v535, %v6584
  %v6586 = vrot.slane %v6365, %v6585
  %v6587 = vlaneseq
  %v6588 = vshrl.u32 %v6587, 7
  %v6589 = vsub.s32 %v535, %v6588
  %v6590 = vrot.slane %v6370, %v6589
  %v6591 = vlaneseq
  %v6592 = vshrl.u32 %v6591, 7
  %v6593 = vsub.s32 %v535, %v6592
  %v6594 = vrot.slane %v6375, %v6593
  %v6595 = vlaneseq
  %v6596 = vshrl.u32 %v6595, 7
  %v6597 = vsub.s32 %v535, %v6596
  %v6598 = vrot.slane %v6380, %v6597
  %v6599 = vlaneseq
  %v6600 = vshrl.u32 %v6599, 7
  %v6601 = vsub.s32 %v535, %v6600
  %v6602 = vrot.slane %v6385, %v6601
  %v6603 = vlaneseq
  %v6604 = vshrl.u32 %v6603, 7
  %v6605 = vsub.s32 %v535, %v6604
  %v6606 = vrot.slane %v6390, %v6605
  %v6607 = vlaneseq
  %v6608 = vshrl.u32 %v6607, 7
  %v6609 = vsub.s32 %v535, %v6608
  %v6610 = vrot.slane %v6395, %v6609
  %v6611 = vsel %vm568, %v6586, %v6582
  %v6612 = vsel %vm570, %v6590, %v6611
  %v6613 = vsel %vm572, %v6594, %v6612
  %v6614 = vsel %vm574, %v6598, %v6613
  %v6615 = vsel %vm576, %v6602, %v6614
  %v6616 = vsel %vm578, %v6606, %v6615
  %v6617 = vsel %vm580, %v6610, %v6616
  %s6619 = scalar_lea.vmem %s12, 56
  %6620 = vst.msk [vmem:[%s6619] sm:$0xff] %vm583, %v6617
  %6622 = vrot.lane.b32.xlu0 %v5939, 32
  %v6623 = vpop.permute.xlu0 %6622
  %6625 = vst.msk [vmem:[#allocation3] sm:$0xff] %vm76, %v6623
  %6627 = vrot.lane.b32.xlu0 %v5933, 96
  %v6628 = vpop.permute.xlu0 %6627
  %6630 = vst.msk [vmem:[#allocation4] sm:$0xff] %vm76, %v6628
  %6631 = vst.msk [vmem:[#allocation5] sm:$0xff] %vm76, %v6576
  // Predicated region
  $region50: #{lstm_model_forward.5} parent=0 // pred_check
    _
  $region51: #{lstm_model_forward.5} parent=0 // pred_check_branch
    %6633 = sbr.rel (0) target = $region53
  $region52: #{lstm_model_forward.5} parent=0 // pred_region
    _
  $region53: #{lstm_model_forward.5} parent=0 // pred_fallthru
    _
  // Predicated region
  $region54: #{lstm_model_forward.5} parent=0 // pred_check
    _
  $region55: #{lstm_model_forward.5} parent=0 // pred_check_branch
    %6635 = sbr.rel (0) target = $region57
  $region56: #{lstm_model_forward.5} parent=0 // pred_region
    _
  $region57: #{lstm_model_forward.5} parent=0 // pred_fallthru
    _
  // Predicated region
  $region58: #{lstm_model_forward.5} parent=0 // pred_check
    _
  $region59: #{lstm_model_forward.5} parent=0 // pred_check_branch
    %6637 = sbr.rel (0) target = $region61
  $region60: #{lstm_model_forward.5} parent=0 // pred_region
    _
  $region61: #{lstm_model_forward.5} parent=0 // pred_fallthru
    _
  // Predicated region
  $region62: #{lstm_model_forward.5} parent=0 // pred_check
    _
  $region63: #{lstm_model_forward.5} parent=0 // pred_check_branch
    %6639 = sbr.rel (0) target = $region65
  $region64: #{lstm_model_forward.5} parent=0 // pred_region
    _
  $region65: #{lstm_model_forward.5} parent=0 // pred_fallthru
    _

</llo_original>
